<compile_context>
chip_gen: v6e
topology: v6e:2x2x1
jax: 0.10.0
libtpu: 0.0.40
codegen_flags: <defaults>
</compile_context>

<pallas_src>
import math
from functools import partial

import jax
import jax.numpy as jnp
from jax.experimental import pallas as pl
from jax.experimental.pallas import tpu as pltpu

NEG_INF = -1e30     # stand-in for float('-inf') in additive attention masks
LN_EPS = 1e-5

_ENC_PER_LAYER = 12
_DEC_PER_LAYER = 20


def _round_up(x, m):
    return (x + m - 1) // m * m


# ----------------------------------------------------------------------------
# in-kernel helpers (pure functions over loaded values)
# ----------------------------------------------------------------------------
def _layernorm(x, g, b):
    x = x.astype(jnp.float32)
    mean = jnp.mean(x, axis=-1, keepdims=True)
    var = jnp.mean(jnp.square(x - mean), axis=-1, keepdims=True)
    return (x - mean) * jax.lax.rsqrt(var + LN_EPS) * g + b


def _bf16(x):
    return x.astype(jnp.bfloat16)


def _mha_proj(q, k, v, wo_ref, bo_ref, *, H, Dh, scale, bias):
    """softmax(q k^T * scale + bias) v @ Wo + bo, per-head accumulated.

    q:(Lq,E)  k,v:(Lk,E) float32.  Head outputs never touch VMEM scratch:
    each head's (Lq, Dh) result is folded straight into the output
    projection, so there are no narrow masked stores or scratch reloads.
    """
    qb, kb, vb = _bf16(q), _bf16(k), _bf16(v)
    wo = wo_ref[...]                                       # (E, E) bf16
    out = jnp.zeros((q.shape[0], wo.shape[1]), jnp.float32)
    for h in range(H):                                     # short static head loop
        sl = slice(h * Dh, (h + 1) * Dh)
        s = jax.lax.dot_general(qb[:, sl], kb[:, sl], (((1,), (1,)), ((), ())),
                                preferred_element_type=jnp.float32) * scale
        if bias is not None:
            s = s + bias
        s = s - jnp.max(s, axis=-1, keepdims=True)
        p = jnp.exp(s)
        p = p * pl.reciprocal(jnp.sum(p, axis=-1, keepdims=True), approx=True)
        hv = jnp.dot(_bf16(p), vb[:, sl], preferred_element_type=jnp.float32)
        out = out + jnp.dot(_bf16(hv), wo[sl, :], preferred_element_type=jnp.float32)
    return out + bo_ref[...]


def _enc_layer(x, pad_bias, r, E, H, Dh, scale):
    (wqkv, bqkv, wo, bo, w1, b1, w2, b2, g1, be1, g2, be2) = r
    qkv = jnp.dot(_bf16(x), wqkv[...], preferred_element_type=jnp.float32) + bqkv[...]
    a = _mha_proj(qkv[:, :E], qkv[:, E:2 * E], qkv[:, 2 * E:], wo, bo,
                  H=H, Dh=Dh, scale=scale, bias=pad_bias)
    h1 = _layernorm(x + a, g1[...], be1[...])
    ff = jnp.maximum(jnp.dot(_bf16(h1), w1[...],
                             preferred_element_type=jnp.float32) + b1[...], 0.0)
    ff = jnp.dot(_bf16(ff), w2[...], preferred_element_type=jnp.float32) + b2[...]
    return _layernorm(h1 + ff, g2[...], be2[...])


def _dec_layer(y, mem, self_bias, mem_bias, r, E, H, Dh, scale):
    (swqkv, sbqkv, swo, sbo, cwq, cbq, cwkv, cbkv, cwo, cbo,
     w1, b1, w2, b2, g1, be1, g2, be2, g3, be3) = r
    # causal self attention
    qkv = jnp.dot(_bf16(y), swqkv[...], preferred_element_type=jnp.float32) + sbqkv[...]
    a = _mha_proj(qkv[:, :E], qkv[:, E:2 * E], qkv[:, 2 * E:], swo, sbo,
                  H=H, Dh=Dh, scale=scale, bias=self_bias)
    h1 = _layernorm(y + a, g1[...], be1[...])
    # cross attention (memory_key_padding_mask is None in the reference module;
    # mem_bias only masks the artificial sublane-padding columns)
    qc = jnp.dot(_bf16(h1), cwq[...], preferred_element_type=jnp.float32) + cbq[...]
    kv = jnp.dot(_bf16(mem), cwkv[...], preferred_element_type=jnp.float32) + cbkv[...]
    c = _mha_proj(qc, kv[:, :E], kv[:, E:], cwo, cbo,
                  H=H, Dh=Dh, scale=scale, bias=mem_bias)
    h2 = _layernorm(h1 + c, g2[...], be2[...])
    # feed-forward
    ff = jnp.maximum(jnp.dot(_bf16(h2), w1[...],
                             preferred_element_type=jnp.float32) + b1[...], 0.0)
    ff = jnp.dot(_bf16(ff), w2[...], preferred_element_type=jnp.float32) + b2[...]
    return _layernorm(h2 + ff, g3[...], be3[...])


# ----------------------------------------------------------------------------
# fused stack kernels (one grid point = one batch element, all layers)
# ----------------------------------------------------------------------------
def _encoder_stack_kernel(num_layers, E, H, x_ref, pad_ref, *rest):
    Dh = E // H
    scale = 1.0 / math.sqrt(Dh)
    o_ref = rest[-1]
    enc_g, enc_b = rest[num_layers * _ENC_PER_LAYER:num_layers * _ENC_PER_LAYER + 2]

    x = x_ref[0].astype(jnp.float32)        # (Lps, E)
    pad_bias = pad_ref[0]                   # (1, Lps) additive 0 / -1e30
    for l in range(num_layers):
        r = rest[l * _ENC_PER_LAYER:(l + 1) * _ENC_PER_LAYER]
        x = _enc_layer(x, pad_bias, r, E, H, Dh, scale)
    o_ref[0] = _layernorm(x, enc_g[...], enc_b[...]).astype(o_ref.dtype)


def _decoder_stack_kernel(num_layers, Lt, Ls, E, H, y_ref, mem_ref, *rest):
    Dh = E // H
    scale = 1.0 / math.sqrt(Dh)
    o_ref = rest[-1]
    base = num_layers * _DEC_PER_LAYER
    dec_g, dec_b, fcw, fcb = rest[base:base + 4]

    y = y_ref[0].astype(jnp.float32)        # (Lpt, E)
    mem = mem_ref[0].astype(jnp.float32)    # (Lps, E)
    Lpt = y.shape[0]
    Lps = mem.shape[0]

    # masks built in-kernel (never hit HBM)
    rows = jax.lax.broadcasted_iota(jnp.int32, (Lpt, Lpt), 0)
    cols = jax.lax.broadcasted_iota(jnp.int32, (Lpt, Lpt), 1)
    self_bias = jnp.where((cols > rows) | (cols >= Lt), NEG_INF, 0.0).astype(jnp.float32)
    mcols = jax.lax.broadcasted_iota(jnp.int32, (1, Lps), 1)
    mem_bias = jnp.where(mcols >= Ls, NEG_INF, 0.0).astype(jnp.float32)

    for l in range(num_layers):
        r = rest[l * _DEC_PER_LAYER:(l + 1) * _DEC_PER_LAYER]
        y = _dec_layer(y, mem, self_bias, mem_bias, r, E, H, Dh, scale)

    yn = _layernorm(y, dec_g[...], dec_b[...])
    o_ref[0] = (jnp.dot(_bf16(yn), fcw[...], preferred_element_type=jnp.float32)
                + fcb[...]).astype(o_ref.dtype)


# ----------------------------------------------------------------------------
# pallas_call wrappers
# ----------------------------------------------------------------------------
def _batch_spec(shape):
    nd = len(shape)
    return pl.BlockSpec((1,) + tuple(shape[1:]),
                        lambda n, nd=nd: (n,) + (0,) * (nd - 1))


def _full_spec(shape):
    nd = len(shape)
    return pl.BlockSpec(tuple(shape), lambda n, nd=nd: (0,) * nd)


def _encoder_stack(params, x, pad_bias, E, H):
    N, Lps, _ = x.shape
    w_inputs = []
    for lp in params["encoder_layers"]:
        a = lp["attn"]
        w_inputs += [a["wqkv"], a["bqkv"], a["wo"], a["bo"],
                     lp["w1"], lp["b1"], lp["w2"], lp["b2"],
                     lp["g1"], lp["be1"], lp["g2"], lp["be2"]]
    inputs = [x, pad_bias] + w_inputs + [params["enc_norm_g"], params["enc_norm_b"]]
    in_specs = ([_batch_spec(x.shape), _batch_spec(pad_bias.shape)]
                + [_full_spec(a.shape) for a in inputs[2:]])
    return pl.pallas_call(
        partial(_encoder_stack_kernel, len(params["encoder_layers"]), E, H),
        out_shape=jax.ShapeDtypeStruct((N, Lps, E), jnp.float32),
        grid=(N,),
        in_specs=in_specs,
        out_specs=_batch_spec((N, Lps, E)),
        compiler_params=pltpu.CompilerParams(dimension_semantics=("parallel",)),
    )(*inputs)


def _decoder_stack(params, y, memory, Lt, Ls, E, H):
    N, Lpt, _ = y.shape
    Vpad = params["fc_out_w"].shape[1]
    w_inputs = []
    for lp in params["decoder_layers"]:
        sa, ca = lp["self_attn"], lp["cross_attn"]
        w_inputs += [sa["wqkv"], sa["bqkv"], sa["wo"], sa["bo"],
                     ca["wq"], ca["bq"], ca["wkv"], ca["bkv"], ca["wo"], ca["bo"],
                     lp["w1"], lp["b1"], lp["w2"], lp["b2"],
                     lp["g1"], lp["be1"], lp["g2"], lp["be2"], lp["g3"], lp["be3"]]
    inputs = [y, memory] + w_inputs + [params["dec_norm_g"], params["dec_norm_b"],
                                       params["fc_out_w"], params["fc_out_b"]]
    in_specs = ([_batch_spec(y.shape), _batch_spec(memory.shape)]
                + [_full_spec(a.shape) for a in inputs[2:]])
    return pl.pallas_call(
        partial(_decoder_stack_kernel, len(params["decoder_layers"]), Lt, Ls, E, H),
        out_shape=jax.ShapeDtypeStruct((N, Lpt, Vpad), jnp.float32),
        grid=(N,),
        in_specs=in_specs,
        out_specs=_batch_spec((N, Lpt, Vpad)),
        compiler_params=pltpu.CompilerParams(dimension_semantics=("parallel",)),
    )(*inputs)


# ----------------------------------------------------------------------------
# full forward pass
# ----------------------------------------------------------------------------
def transformer_forward(params, src, trg, cfg):
    """src:(Ls,N) int32, trg:(Lt,N) int32 -> (Lt, N, trg_vocab) float32."""
    E = cfg["embedding_size"]
    H = cfg["num_heads"]
    V = cfg["trg_vocab_size"]
    Ls, N = src.shape
    Lt, _ = trg.shape
    Lps = _round_up(Ls, 8)
    Lpt = _round_up(Lt, 8)

    src_b = src.T                                            # (N, Ls) batch-major ids
    trg_b = trg.T                                            # (N, Lt)
    # pad to sublane-aligned lengths; padded src ids == pad_idx so the
    # key-padding bias masks them, padded trg rows are sliced off at the end.
    src_p = jnp.pad(src_b, ((0, 0), (0, Lps - Ls)), constant_values=cfg["src_pad_idx"])
    trg_p = jnp.pad(trg_b, ((0, 0), (0, Lpt - Lt)), constant_values=0)

    pos_s = jnp.minimum(jnp.arange(Lps), cfg["max_len"] - 1)
    pos_t = jnp.minimum(jnp.arange(Lpt), cfg["max_len"] - 1)
    # embedding gathers stay in XLA (not a Pallas hot path)
    x = (params["src_word_emb"][src_p]
         + params["src_pos_emb"][pos_s][None, :, :]).astype(jnp.float32)
    y = (params["trg_word_emb"][trg_p]
         + params["trg_pos_emb"][pos_t][None, :, :]).astype(jnp.float32)
    # TODO(synk): dropout on the embeddings / layers is identity (eval-mode nn.Dropout).

    pad_bias = jnp.where(src_p == cfg["src_pad_idx"], NEG_INF, 0.0).astype(jnp.float32)
    pad_bias = pad_bias[:, None, :]                          # (N, 1, Lps)

    memory = _encoder_stack(params, x, pad_bias, E, H)       # (N, Lps, E)
    logits = _decoder_stack(params, y, memory, Lt, Ls, E, H) # (N, Lpt, Vpad)
    return logits[:, :Lt, :V].transpose(1, 0, 2)             # (Lt, N, V) like PyTorch


# ----------------------------------------------------------------------------
# deterministic parameter construction (matmul weights stored (K,N) in bf16)
# ----------------------------------------------------------------------------
def _rand(key, shape, scale=0.05):
    return jax.random.normal(key, shape, jnp.float32) * scale


def _mha_params(key, E, split_q_kv=False):
    k1, k2, k3, k4 = jax.random.split(key, 4)
    in_w = _rand(k1, (3 * E, E))          # PyTorch in_proj_weight layout (3E, E)
    in_b = _rand(k2, (3 * E,))
    out_w = _rand(k3, (E, E))
    out_b = _rand(k4, (E,))
    if not split_q_kv:                    # self-attn: fused QKV, pre-transposed, bf16
        return dict(wqkv=jnp.transpose(in_w).astype(jnp.bfloat16),
                    bqkv=in_b.reshape(1, 3 * E),
                    wo=jnp.transpose(out_w).astype(jnp.bfloat16),
                    bo=out_b.reshape(1, E))
    return dict(wq=jnp.transpose(in_w[:E]).astype(jnp.bfloat16),
                bq=in_b[:E].reshape(1, E),
                wkv=jnp.transpose(in_w[E:]).astype(jnp.bfloat16),
                bkv=in_b[E:].reshape(1, 2 * E),
                wo=jnp.transpose(out_w).astype(jnp.bfloat16),
                bo=out_b.reshape(1, E))


def _enc_layer_params(key, E, F):
    ka, k1, k2, k3, k4 = jax.random.split(key, 5)
    return dict(
        attn=_mha_params(ka, E),
        w1=jnp.transpose(_rand(k1, (F, E))).astype(jnp.bfloat16),
        b1=_rand(k2, (F,)).reshape(1, F),
        w2=jnp.transpose(_rand(k3, (E, F))).astype(jnp.bfloat16),
        b2=_rand(k4, (E,)).reshape(1, E),
        g1=jnp.ones((1, E), jnp.float32), be1=jnp.zeros((1, E), jnp.float32),
        g2=jnp.ones((1, E), jnp.float32), be2=jnp.zeros((1, E), jnp.float32),
    )


def _dec_layer_params(key, E, F):
    ka, kc, k1, k2, k3, k4 = jax.random.split(key, 6)
    return dict(
        self_attn=_mha_params(ka, E),
        cross_attn=_mha_params(kc, E, split_q_kv=True),
        w1=jnp.transpose(_rand(k1, (F, E))).astype(jnp.bfloat16),
        b1=_rand(k2, (F,)).reshape(1, F),
        w2=jnp.transpose(_rand(k3, (E, F))).astype(jnp.bfloat16),
        b2=_rand(k4, (E,)).reshape(1, E),
        g1=jnp.ones((1, E), jnp.float32), be1=jnp.zeros((1, E), jnp.float32),
        g2=jnp.ones((1, E), jnp.float32), be2=jnp.zeros((1, E), jnp.float32),
        g3=jnp.ones((1, E), jnp.float32), be3=jnp.zeros((1, E), jnp.float32),
    )


def init_params(key, cfg):
    E = cfg["embedding_size"]
    F = cfg["forward_expansion"]          # nn.Transformer's dim_feedforward arg
    V = cfg["trg_vocab_size"]
    Vpad = _round_up(V, 128)              # lane-dense fc_out / logits stores
    n_keys = 4 + cfg["num_encoder_layers"] + cfg["num_decoder_layers"] + 1
    keys = jax.random.split(key, n_keys)
    ki = iter(keys)
    params = dict(
        src_word_emb=_rand(next(ki), (cfg["src_vocab_size"], E)),
        src_pos_emb=_rand(next(ki), (cfg["max_len"], E)),
        trg_word_emb=_rand(next(ki), (cfg["trg_vocab_size"], E)),
        trg_pos_emb=_rand(next(ki), (cfg["max_len"], E)),
        enc_norm_g=jnp.ones((1, E), jnp.float32),
        enc_norm_b=jnp.zeros((1, E), jnp.float32),
        dec_norm_g=jnp.ones((1, E), jnp.float32),
        dec_norm_b=jnp.zeros((1, E), jnp.float32),
    )
    params["encoder_layers"] = [_enc_layer_params(next(ki), E, F)
                                for _ in range(cfg["num_encoder_layers"])]
    params["decoder_layers"] = [_dec_layer_params(next(ki), E, F)
                                for _ in range(cfg["num_decoder_layers"])]
    kw, kb = jax.random.split(next(ki))
    fcw = jnp.transpose(_rand(kw, (V, E)))                   # (E, V)
    fcb = _rand(kb, (V,))
    params["fc_out_w"] = jnp.pad(fcw, ((0, 0), (0, Vpad - V))).astype(jnp.bfloat16)
    params["fc_out_b"] = jnp.pad(fcb, (0, Vpad - V)).reshape(1, Vpad)
    return params


# ----------------------------------------------------------------------------
if __name__ == "__main__":
    cfg = dict(
        embedding_size=32,
        num_heads=4,
        num_encoder_layers=2,
        num_decoder_layers=2,
        forward_expansion=16,   # passed as nn.Transformer dim_feedforward (as in the module)
        src_vocab_size=50,
        trg_vocab_size=48,
        max_len=100,
        src_pad_idx=1,
    )

    key = jax.random.PRNGKey(0)
    kp, ks, kt = jax.random.split(key, 3)
    params = init_params(kp, cfg)

    src_len, trg_len, N = 10, 8, 2
    src = jax.random.randint(ks, (src_len, N), 2, cfg["src_vocab_size"], jnp.int32)
    trg = jax.random.randint(kt, (trg_len, N), 2, cfg["trg_vocab_size"], jnp.int32)
    # put some padding at the tail of batch element 1 to exercise the src mask
    src = src.at[-3:, 1].set(cfg["src_pad_idx"])

    fwd = jax.jit(lambda p, s, t: transformer_forward(p, s, t, cfg))
    out = jax.block_until_ready(fwd(params, src, trg))
    assert out.shape == (trg_len, N, cfg["trg_vocab_size"])
    assert bool(jnp.all(jnp.isfinite(out)))
    print("KERNEL_OK")
</pallas_src>

<mosaic_0001>
module attributes {stable_mosaic.version = 11 : i64} {
  func.func @_encoder_stack_kernel(%arg0: i32, %arg1: memref<1x16x32xf32, #tpu.memory_space<vmem>>, %arg2: memref<1x1x16xf32, #tpu.memory_space<vmem>>, %arg3: memref<32x96xbf16, #tpu.memory_space<vmem>>, %arg4: memref<1x96xf32, #tpu.memory_space<vmem>>, %arg5: memref<32x32xbf16, #tpu.memory_space<vmem>>, %arg6: memref<1x32xf32, #tpu.memory_space<vmem>>, %arg7: memref<32x16xbf16, #tpu.memory_space<vmem>>, %arg8: memref<1x16xf32, #tpu.memory_space<vmem>>, %arg9: memref<16x32xbf16, #tpu.memory_space<vmem>>, %arg10: memref<1x32xf32, #tpu.memory_space<vmem>>, %arg11: memref<1x32xf32, #tpu.memory_space<vmem>>, %arg12: memref<1x32xf32, #tpu.memory_space<vmem>>, %arg13: memref<1x32xf32, #tpu.memory_space<vmem>>, %arg14: memref<1x32xf32, #tpu.memory_space<vmem>>, %arg15: memref<32x96xbf16, #tpu.memory_space<vmem>>, %arg16: memref<1x96xf32, #tpu.memory_space<vmem>>, %arg17: memref<32x32xbf16, #tpu.memory_space<vmem>>, %arg18: memref<1x32xf32, #tpu.memory_space<vmem>>, %arg19: memref<32x16xbf16, #tpu.memory_space<vmem>>, %arg20: memref<1x16xf32, #tpu.memory_space<vmem>>, %arg21: memref<16x32xbf16, #tpu.memory_space<vmem>>, %arg22: memref<1x32xf32, #tpu.memory_space<vmem>>, %arg23: memref<1x32xf32, #tpu.memory_space<vmem>>, %arg24: memref<1x32xf32, #tpu.memory_space<vmem>>, %arg25: memref<1x32xf32, #tpu.memory_space<vmem>>, %arg26: memref<1x32xf32, #tpu.memory_space<vmem>>, %arg27: memref<1x32xf32, #tpu.memory_space<vmem>>, %arg28: memref<1x32xf32, #tpu.memory_space<vmem>>, %arg29: memref<1x16x32xf32, #tpu.memory_space<vmem>>) attributes {dimension_semantics = [#tpu.dimension_semantics<parallel>], iteration_bounds = array<i64: 2>, scalar_prefetch = 0 : i64, scratch_operands = 0 : i64, tpu.core_type = #tpu.core_type<tc>, window_params = [{transform_indices = @transform_0, window_bounds = array<i64: 1, 16, 32>}, {transform_indices = @transform_1, window_bounds = array<i64: 1, 1, 16>}, {pipeline_mode = #tpu.pipeline_mode<synchronous>, transform_indices = @transform_2, window_bounds = array<i64: 32, 96>}, {pipeline_mode = #tpu.pipeline_mode<synchronous>, transform_indices = @transform_3, window_bounds = array<i64: 1, 96>}, {pipeline_mode = #tpu.pipeline_mode<synchronous>, transform_indices = @transform_4, window_bounds = array<i64: 32, 32>}, {pipeline_mode = #tpu.pipeline_mode<synchronous>, transform_indices = @transform_5, window_bounds = array<i64: 1, 32>}, {pipeline_mode = #tpu.pipeline_mode<synchronous>, transform_indices = @transform_6, window_bounds = array<i64: 32, 16>}, {pipeline_mode = #tpu.pipeline_mode<synchronous>, transform_indices = @transform_7, window_bounds = array<i64: 1, 16>}, {pipeline_mode = #tpu.pipeline_mode<synchronous>, transform_indices = @transform_8, window_bounds = array<i64: 16, 32>}, {pipeline_mode = #tpu.pipeline_mode<synchronous>, transform_indices = @transform_9, window_bounds = array<i64: 1, 32>}, {pipeline_mode = #tpu.pipeline_mode<synchronous>, transform_indices = @transform_10, window_bounds = array<i64: 1, 32>}, {pipeline_mode = #tpu.pipeline_mode<synchronous>, transform_indices = @transform_11, window_bounds = array<i64: 1, 32>}, {pipeline_mode = #tpu.pipeline_mode<synchronous>, transform_indices = @transform_12, window_bounds = array<i64: 1, 32>}, {pipeline_mode = #tpu.pipeline_mode<synchronous>, transform_indices = @transform_13, window_bounds = array<i64: 1, 32>}, {pipeline_mode = #tpu.pipeline_mode<synchronous>, transform_indices = @transform_14, window_bounds = array<i64: 32, 96>}, {pipeline_mode = #tpu.pipeline_mode<synchronous>, transform_indices = @transform_15, window_bounds = array<i64: 1, 96>}, {pipeline_mode = #tpu.pipeline_mode<synchronous>, transform_indices = @transform_16, window_bounds = array<i64: 32, 32>}, {pipeline_mode = #tpu.pipeline_mode<synchronous>, transform_indices = @transform_17, window_bounds = array<i64: 1, 32>}, {pipeline_mode = #tpu.pipeline_mode<synchronous>, transform_indices = @transform_18, window_bounds = array<i64: 32, 16>}, {pipeline_mode = #tpu.pipeline_mode<synchronous>, transform_indices = @transform_19, window_bounds = array<i64: 1, 16>}, {pipeline_mode = #tpu.pipeline_mode<synchronous>, transform_indices = @transform_20, window_bounds = array<i64: 16, 32>}, {pipeline_mode = #tpu.pipeline_mode<synchronous>, transform_indices = @transform_21, window_bounds = array<i64: 1, 32>}, {pipeline_mode = #tpu.pipeline_mode<synchronous>, transform_indices = @transform_22, window_bounds = array<i64: 1, 32>}, {pipeline_mode = #tpu.pipeline_mode<synchronous>, transform_indices = @transform_23, window_bounds = array<i64: 1, 32>}, {pipeline_mode = #tpu.pipeline_mode<synchronous>, transform_indices = @transform_24, window_bounds = array<i64: 1, 32>}, {pipeline_mode = #tpu.pipeline_mode<synchronous>, transform_indices = @transform_25, window_bounds = array<i64: 1, 32>}, {pipeline_mode = #tpu.pipeline_mode<synchronous>, transform_indices = @transform_26, window_bounds = array<i64: 1, 32>}, {pipeline_mode = #tpu.pipeline_mode<synchronous>, transform_indices = @transform_27, window_bounds = array<i64: 1, 32>}, {transform_indices = @transform_28, window_bounds = array<i64: 1, 16, 32>}]} {
    %c0 = arith.constant 0 : index
    %c0_0 = arith.constant 0 : index
    %c0_1 = arith.constant 0 : index
    %0 = vector.load %arg1[%c0, %c0_0, %c0_1] : memref<1x16x32xf32, #tpu.memory_space<vmem>>, vector<1x16x32xf32>
    %1 = vector.shape_cast %0 : vector<1x16x32xf32> to vector<16x32xf32>
    %c0_2 = arith.constant 0 : index
    %c0_3 = arith.constant 0 : index
    %c0_4 = arith.constant 0 : index
    %2 = vector.load %arg2[%c0_2, %c0_3, %c0_4] : memref<1x1x16xf32, #tpu.memory_space<vmem>>, vector<1x1x16xf32>
    %3 = vector.shape_cast %2 : vector<1x1x16xf32> to vector<1x16xf32>
    %4 = arith.truncf %1 : vector<16x32xf32> to vector<16x32xbf16>
    %c0_5 = arith.constant 0 : index
    %c0_6 = arith.constant 0 : index
    %5 = vector.load %arg3[%c0_5, %c0_6] : memref<32x96xbf16, #tpu.memory_space<vmem>>, vector<32x96xbf16>
    %cst = arith.constant dense<0.000000e+00> : vector<16x96xf32>
    %6 = tpu.matmul %4, %5, %cst {dimension_numbers = #tpu.dot_dimension_numbers<[1], [0], [0], [1], [0, 0, 1, 1], [], []>} : vector<16x32xbf16>, vector<32x96xbf16>, vector<16x96xf32> -> vector<16x96xf32>
    %c0_7 = arith.constant 0 : index
    %c0_8 = arith.constant 0 : index
    %7 = vector.load %arg4[%c0_7, %c0_8] : memref<1x96xf32, #tpu.memory_space<vmem>>, vector<1x96xf32>
    %8 = vector.broadcast %7 : vector<1x96xf32> to vector<16x96xf32>
    %9 = arith.addf %6, %8 : vector<16x96xf32>
    %10 = vector.extract_strided_slice %9 {offsets = [0, 0], sizes = [16, 32], strides = [1, 1]} : vector<16x96xf32> to vector<16x32xf32>
    %11 = vector.extract_strided_slice %9 {offsets = [0, 32], sizes = [16, 32], strides = [1, 1]} : vector<16x96xf32> to vector<16x32xf32>
    %12 = vector.extract_strided_slice %9 {offsets = [0, 64], sizes = [16, 32], strides = [1, 1]} : vector<16x96xf32> to vector<16x32xf32>
    %13 = arith.truncf %10 : vector<16x32xf32> to vector<16x32xbf16>
    %14 = arith.truncf %11 : vector<16x32xf32> to vector<16x32xbf16>
    %15 = arith.truncf %12 : vector<16x32xf32> to vector<16x32xbf16>
    %c0_9 = arith.constant 0 : index
    %c0_10 = arith.constant 0 : index
    %16 = vector.load %arg5[%c0_9, %c0_10] : memref<32x32xbf16, #tpu.memory_space<vmem>>, vector<32x32xbf16>
    %cst_11 = arith.constant 0.000000e+00 : f32
    %17 = vector.broadcast %cst_11 : f32 to vector<16x32xf32>
    %18 = vector.extract_strided_slice %13 {offsets = [0, 0], sizes = [16, 8], strides = [1, 1]} : vector<16x32xbf16> to vector<16x8xbf16>
    %19 = vector.extract_strided_slice %14 {offsets = [0, 0], sizes = [16, 8], strides = [1, 1]} : vector<16x32xbf16> to vector<16x8xbf16>
    %cst_12 = arith.constant dense<0.000000e+00> : vector<16x16xf32>
    %20 = tpu.matmul %18, %19, %cst_12 {dimension_numbers = #tpu.dot_dimension_numbers<[1], [1], [0], [0], [0, 0, 1, 0], [], []>} : vector<16x8xbf16>, vector<16x8xbf16>, vector<16x16xf32> -> vector<16x16xf32>
    %cst_13 = arith.constant 0.353553385 : f32
    %21 = vector.broadcast %cst_13 : f32 to vector<16x16xf32>
    %22 = arith.mulf %20, %21 : vector<16x16xf32>
    %23 = vector.broadcast %3 : vector<1x16xf32> to vector<16x16xf32>
    %24 = arith.addf %22, %23 : vector<16x16xf32>
    %cst_14 = arith.constant dense<0xFF800000> : vector<16xf32>
    %25 = vector.multi_reduction <maximumf>, %24, %cst_14 [1] : vector<16x16xf32> to vector<16xf32>
    %26 = vector.shape_cast %25 : vector<16xf32> to vector<16x1xf32>
    %27 = vector.broadcast %26 : vector<16x1xf32> to vector<16x16xf32>
    %28 = arith.subf %24, %27 : vector<16x16xf32>
    %29 = math.exp %28 : vector<16x16xf32>
    %cst_15 = arith.constant dense<0.000000e+00> : vector<16xf32>
    %30 = vector.multi_reduction <add>, %29, %cst_15 [1] : vector<16x16xf32> to vector<16xf32>
    %31 = vector.shape_cast %30 : vector<16xf32> to vector<16x1xf32>
    %32 = tpu.reciprocal %31 {approx = true} : vector<16x1xf32> -> vector<16x1xf32>
    %33 = vector.broadcast %32 : vector<16x1xf32> to vector<16x16xf32>
    %34 = arith.mulf %29, %33 : vector<16x16xf32>
    %35 = arith.truncf %34 : vector<16x16xf32> to vector<16x16xbf16>
    %36 = vector.extract_strided_slice %15 {offsets = [0, 0], sizes = [16, 8], strides = [1, 1]} : vector<16x32xbf16> to vector<16x8xbf16>
    %cst_16 = arith.constant dense<0.000000e+00> : vector<16x8xf32>
    %37 = tpu.matmul %35, %36, %cst_16 {dimension_numbers = #tpu.dot_dimension_numbers<[1], [0], [0], [1], [0, 0, 1, 1], [], []>} : vector<16x16xbf16>, vector<16x8xbf16>, vector<16x8xf32> -> vector<16x8xf32>
    %38 = arith.truncf %37 : vector<16x8xf32> to vector<16x8xbf16>
    %39 = vector.extract_strided_slice %16 {offsets = [0, 0], sizes = [8, 32], strides = [1, 1]} : vector<32x32xbf16> to vector<8x32xbf16>
    %cst_17 = arith.constant dense<0.000000e+00> : vector<16x32xf32>
    %40 = tpu.matmul %38, %39, %cst_17 {dimension_numbers = #tpu.dot_dimension_numbers<[1], [0], [0], [1], [0, 0, 1, 1], [], []>} : vector<16x8xbf16>, vector<8x32xbf16>, vector<16x32xf32> -> vector<16x32xf32>
    %41 = arith.addf %17, %40 : vector<16x32xf32>
    %42 = vector.extract_strided_slice %13 {offsets = [0, 8], sizes = [16, 8], strides = [1, 1]} : vector<16x32xbf16> to vector<16x8xbf16>
    %43 = vector.extract_strided_slice %14 {offsets = [0, 8], sizes = [16, 8], strides = [1, 1]} : vector<16x32xbf16> to vector<16x8xbf16>
    %cst_18 = arith.constant dense<0.000000e+00> : vector<16x16xf32>
    %44 = tpu.matmul %42, %43, %cst_18 {dimension_numbers = #tpu.dot_dimension_numbers<[1], [1], [0], [0], [0, 0, 1, 0], [], []>} : vector<16x8xbf16>, vector<16x8xbf16>, vector<16x16xf32> -> vector<16x16xf32>
    %cst_19 = arith.constant 0.353553385 : f32
    %45 = vector.broadcast %cst_19 : f32 to vector<16x16xf32>
    %46 = arith.mulf %44, %45 : vector<16x16xf32>
    %47 = vector.broadcast %3 : vector<1x16xf32> to vector<16x16xf32>
    %48 = arith.addf %46, %47 : vector<16x16xf32>
    %cst_20 = arith.constant dense<0xFF800000> : vector<16xf32>
    %49 = vector.multi_reduction <maximumf>, %48, %cst_20 [1] : vector<16x16xf32> to vector<16xf32>
    %50 = vector.shape_cast %49 : vector<16xf32> to vector<16x1xf32>
    %51 = vector.broadcast %50 : vector<16x1xf32> to vector<16x16xf32>
    %52 = arith.subf %48, %51 : vector<16x16xf32>
    %53 = math.exp %52 : vector<16x16xf32>
    %cst_21 = arith.constant dense<0.000000e+00> : vector<16xf32>
    %54 = vector.multi_reduction <add>, %53, %cst_21 [1] : vector<16x16xf32> to vector<16xf32>
    %55 = vector.shape_cast %54 : vector<16xf32> to vector<16x1xf32>
    %56 = tpu.reciprocal %55 {approx = true} : vector<16x1xf32> -> vector<16x1xf32>
    %57 = vector.broadcast %56 : vector<16x1xf32> to vector<16x16xf32>
    %58 = arith.mulf %53, %57 : vector<16x16xf32>
    %59 = arith.truncf %58 : vector<16x16xf32> to vector<16x16xbf16>
    %60 = vector.extract_strided_slice %15 {offsets = [0, 8], sizes = [16, 8], strides = [1, 1]} : vector<16x32xbf16> to vector<16x8xbf16>
    %cst_22 = arith.constant dense<0.000000e+00> : vector<16x8xf32>
    %61 = tpu.matmul %59, %60, %cst_22 {dimension_numbers = #tpu.dot_dimension_numbers<[1], [0], [0], [1], [0, 0, 1, 1], [], []>} : vector<16x16xbf16>, vector<16x8xbf16>, vector<16x8xf32> -> vector<16x8xf32>
    %62 = arith.truncf %61 : vector<16x8xf32> to vector<16x8xbf16>
    %63 = vector.extract_strided_slice %16 {offsets = [8, 0], sizes = [8, 32], strides = [1, 1]} : vector<32x32xbf16> to vector<8x32xbf16>
    %cst_23 = arith.constant dense<0.000000e+00> : vector<16x32xf32>
    %64 = tpu.matmul %62, %63, %cst_23 {dimension_numbers = #tpu.dot_dimension_numbers<[1], [0], [0], [1], [0, 0, 1, 1], [], []>} : vector<16x8xbf16>, vector<8x32xbf16>, vector<16x32xf32> -> vector<16x32xf32>
    %65 = arith.addf %41, %64 : vector<16x32xf32>
    %66 = vector.extract_strided_slice %13 {offsets = [0, 16], sizes = [16, 8], strides = [1, 1]} : vector<16x32xbf16> to vector<16x8xbf16>
    %67 = vector.extract_strided_slice %14 {offsets = [0, 16], sizes = [16, 8], strides = [1, 1]} : vector<16x32xbf16> to vector<16x8xbf16>
    %cst_24 = arith.constant dense<0.000000e+00> : vector<16x16xf32>
    %68 = tpu.matmul %66, %67, %cst_24 {dimension_numbers = #tpu.dot_dimension_numbers<[1], [1], [0], [0], [0, 0, 1, 0], [], []>} : vector<16x8xbf16>, vector<16x8xbf16>, vector<16x16xf32> -> vector<16x16xf32>
    %cst_25 = arith.constant 0.353553385 : f32
    %69 = vector.broadcast %cst_25 : f32 to vector<16x16xf32>
    %70 = arith.mulf %68, %69 : vector<16x16xf32>
    %71 = vector.broadcast %3 : vector<1x16xf32> to vector<16x16xf32>
    %72 = arith.addf %70, %71 : vector<16x16xf32>
    %cst_26 = arith.constant dense<0xFF800000> : vector<16xf32>
    %73 = vector.multi_reduction <maximumf>, %72, %cst_26 [1] : vector<16x16xf32> to vector<16xf32>
    %74 = vector.shape_cast %73 : vector<16xf32> to vector<16x1xf32>
    %75 = vector.broadcast %74 : vector<16x1xf32> to vector<16x16xf32>
    %76 = arith.subf %72, %75 : vector<16x16xf32>
    %77 = math.exp %76 : vector<16x16xf32>
    %cst_27 = arith.constant dense<0.000000e+00> : vector<16xf32>
    %78 = vector.multi_reduction <add>, %77, %cst_27 [1] : vector<16x16xf32> to vector<16xf32>
    %79 = vector.shape_cast %78 : vector<16xf32> to vector<16x1xf32>
    %80 = tpu.reciprocal %79 {approx = true} : vector<16x1xf32> -> vector<16x1xf32>
    %81 = vector.broadcast %80 : vector<16x1xf32> to vector<16x16xf32>
    %82 = arith.mulf %77, %81 : vector<16x16xf32>
    %83 = arith.truncf %82 : vector<16x16xf32> to vector<16x16xbf16>
    %84 = vector.extract_strided_slice %15 {offsets = [0, 16], sizes = [16, 8], strides = [1, 1]} : vector<16x32xbf16> to vector<16x8xbf16>
    %cst_28 = arith.constant dense<0.000000e+00> : vector<16x8xf32>
    %85 = tpu.matmul %83, %84, %cst_28 {dimension_numbers = #tpu.dot_dimension_numbers<[1], [0], [0], [1], [0, 0, 1, 1], [], []>} : vector<16x16xbf16>, vector<16x8xbf16>, vector<16x8xf32> -> vector<16x8xf32>
    %86 = arith.truncf %85 : vector<16x8xf32> to vector<16x8xbf16>
    %87 = vector.extract_strided_slice %16 {offsets = [16, 0], sizes = [8, 32], strides = [1, 1]} : vector<32x32xbf16> to vector<8x32xbf16>
    %cst_29 = arith.constant dense<0.000000e+00> : vector<16x32xf32>
    %88 = tpu.matmul %86, %87, %cst_29 {dimension_numbers = #tpu.dot_dimension_numbers<[1], [0], [0], [1], [0, 0, 1, 1], [], []>} : vector<16x8xbf16>, vector<8x32xbf16>, vector<16x32xf32> -> vector<16x32xf32>
    %89 = arith.addf %65, %88 : vector<16x32xf32>
    %90 = vector.extract_strided_slice %13 {offsets = [0, 24], sizes = [16, 8], strides = [1, 1]} : vector<16x32xbf16> to vector<16x8xbf16>
    %91 = vector.extract_strided_slice %14 {offsets = [0, 24], sizes = [16, 8], strides = [1, 1]} : vector<16x32xbf16> to vector<16x8xbf16>
    %cst_30 = arith.constant dense<0.000000e+00> : vector<16x16xf32>
    %92 = tpu.matmul %90, %91, %cst_30 {dimension_numbers = #tpu.dot_dimension_numbers<[1], [1], [0], [0], [0, 0, 1, 0], [], []>} : vector<16x8xbf16>, vector<16x8xbf16>, vector<16x16xf32> -> vector<16x16xf32>
    %cst_31 = arith.constant 0.353553385 : f32
    %93 = vector.broadcast %cst_31 : f32 to vector<16x16xf32>
    %94 = arith.mulf %92, %93 : vector<16x16xf32>
    %95 = vector.broadcast %3 : vector<1x16xf32> to vector<16x16xf32>
    %96 = arith.addf %94, %95 : vector<16x16xf32>
    %cst_32 = arith.constant dense<0xFF800000> : vector<16xf32>
    %97 = vector.multi_reduction <maximumf>, %96, %cst_32 [1] : vector<16x16xf32> to vector<16xf32>
    %98 = vector.shape_cast %97 : vector<16xf32> to vector<16x1xf32>
    %99 = vector.broadcast %98 : vector<16x1xf32> to vector<16x16xf32>
    %100 = arith.subf %96, %99 : vector<16x16xf32>
    %101 = math.exp %100 : vector<16x16xf32>
    %cst_33 = arith.constant dense<0.000000e+00> : vector<16xf32>
    %102 = vector.multi_reduction <add>, %101, %cst_33 [1] : vector<16x16xf32> to vector<16xf32>
    %103 = vector.shape_cast %102 : vector<16xf32> to vector<16x1xf32>
    %104 = tpu.reciprocal %103 {approx = true} : vector<16x1xf32> -> vector<16x1xf32>
    %105 = vector.broadcast %104 : vector<16x1xf32> to vector<16x16xf32>
    %106 = arith.mulf %101, %105 : vector<16x16xf32>
    %107 = arith.truncf %106 : vector<16x16xf32> to vector<16x16xbf16>
    %108 = vector.extract_strided_slice %15 {offsets = [0, 24], sizes = [16, 8], strides = [1, 1]} : vector<16x32xbf16> to vector<16x8xbf16>
    %cst_34 = arith.constant dense<0.000000e+00> : vector<16x8xf32>
    %109 = tpu.matmul %107, %108, %cst_34 {dimension_numbers = #tpu.dot_dimension_numbers<[1], [0], [0], [1], [0, 0, 1, 1], [], []>} : vector<16x16xbf16>, vector<16x8xbf16>, vector<16x8xf32> -> vector<16x8xf32>
    %110 = arith.truncf %109 : vector<16x8xf32> to vector<16x8xbf16>
    %111 = vector.extract_strided_slice %16 {offsets = [24, 0], sizes = [8, 32], strides = [1, 1]} : vector<32x32xbf16> to vector<8x32xbf16>
    %cst_35 = arith.constant dense<0.000000e+00> : vector<16x32xf32>
    %112 = tpu.matmul %110, %111, %cst_35 {dimension_numbers = #tpu.dot_dimension_numbers<[1], [0], [0], [1], [0, 0, 1, 1], [], []>} : vector<16x8xbf16>, vector<8x32xbf16>, vector<16x32xf32> -> vector<16x32xf32>
    %113 = arith.addf %89, %112 : vector<16x32xf32>
    %c0_36 = arith.constant 0 : index
    %c0_37 = arith.constant 0 : index
    %114 = vector.load %arg6[%c0_36, %c0_37] : memref<1x32xf32, #tpu.memory_space<vmem>>, vector<1x32xf32>
    %115 = vector.broadcast %114 : vector<1x32xf32> to vector<16x32xf32>
    %116 = arith.addf %113, %115 : vector<16x32xf32>
    %117 = arith.addf %1, %116 : vector<16x32xf32>
    %c0_38 = arith.constant 0 : index
    %c0_39 = arith.constant 0 : index
    %118 = vector.load %arg11[%c0_38, %c0_39] : memref<1x32xf32, #tpu.memory_space<vmem>>, vector<1x32xf32>
    %c0_40 = arith.constant 0 : index
    %c0_41 = arith.constant 0 : index
    %119 = vector.load %arg12[%c0_40, %c0_41] : memref<1x32xf32, #tpu.memory_space<vmem>>, vector<1x32xf32>
    %cst_42 = arith.constant dense<0.000000e+00> : vector<16xf32>
    %120 = vector.multi_reduction <add>, %117, %cst_42 [1] : vector<16x32xf32> to vector<16xf32>
    %121 = vector.shape_cast %120 : vector<16xf32> to vector<16x1xf32>
    %cst_43 = arith.constant 3.200000e+01 : f32
    %122 = vector.broadcast %cst_43 : f32 to vector<16x1xf32>
    %123 = arith.divf %121, %122 : vector<16x1xf32>
    %124 = vector.broadcast %123 : vector<16x1xf32> to vector<16x32xf32>
    %125 = arith.subf %117, %124 : vector<16x32xf32>
    %126 = arith.mulf %125, %125 : vector<16x32xf32>
    %cst_44 = arith.constant dense<0.000000e+00> : vector<16xf32>
    %127 = vector.multi_reduction <add>, %126, %cst_44 [1] : vector<16x32xf32> to vector<16xf32>
    %128 = vector.shape_cast %127 : vector<16xf32> to vector<16x1xf32>
    %cst_45 = arith.constant 3.200000e+01 : f32
    %129 = vector.broadcast %cst_45 : f32 to vector<16x1xf32>
    %130 = arith.divf %128, %129 : vector<16x1xf32>
    %131 = vector.broadcast %123 : vector<16x1xf32> to vector<16x32xf32>
    %132 = arith.subf %117, %131 : vector<16x32xf32>
    %cst_46 = arith.constant 9.99999974E-6 : f32
    %133 = vector.broadcast %cst_46 : f32 to vector<16x1xf32>
    %134 = arith.addf %130, %133 : vector<16x1xf32>
    %135 = math.rsqrt %134 : vector<16x1xf32>
    %136 = vector.broadcast %135 : vector<16x1xf32> to vector<16x32xf32>
    %137 = arith.mulf %132, %136 : vector<16x32xf32>
    %138 = vector.broadcast %118 : vector<1x32xf32> to vector<16x32xf32>
    %139 = arith.mulf %137, %138 : vector<16x32xf32>
    %140 = vector.broadcast %119 : vector<1x32xf32> to vector<16x32xf32>
    %141 = arith.addf %139, %140 : vector<16x32xf32>
    %142 = arith.truncf %141 : vector<16x32xf32> to vector<16x32xbf16>
    %c0_47 = arith.constant 0 : index
    %c0_48 = arith.constant 0 : index
    %143 = vector.load %arg7[%c0_47, %c0_48] : memref<32x16xbf16, #tpu.memory_space<vmem>>, vector<32x16xbf16>
    %cst_49 = arith.constant dense<0.000000e+00> : vector<16x16xf32>
    %144 = tpu.matmul %142, %143, %cst_49 {dimension_numbers = #tpu.dot_dimension_numbers<[1], [0], [0], [1], [0, 0, 1, 1], [], []>} : vector<16x32xbf16>, vector<32x16xbf16>, vector<16x16xf32> -> vector<16x16xf32>
    %c0_50 = arith.constant 0 : index
    %c0_51 = arith.constant 0 : index
    %145 = vector.load %arg8[%c0_50, %c0_51] : memref<1x16xf32, #tpu.memory_space<vmem>>, vector<1x16xf32>
    %146 = vector.broadcast %145 : vector<1x16xf32> to vector<16x16xf32>
    %147 = arith.addf %144, %146 : vector<16x16xf32>
    %cst_52 = arith.constant 0.000000e+00 : f32
    %148 = vector.broadcast %cst_52 : f32 to vector<16x16xf32>
    %149 = arith.maximumf %147, %148 : vector<16x16xf32>
    %150 = arith.truncf %149 : vector<16x16xf32> to vector<16x16xbf16>
    %c0_53 = arith.constant 0 : index
    %c0_54 = arith.constant 0 : index
    %151 = vector.load %arg9[%c0_53, %c0_54] : memref<16x32xbf16, #tpu.memory_space<vmem>>, vector<16x32xbf16>
    %cst_55 = arith.constant dense<0.000000e+00> : vector<16x32xf32>
    %152 = tpu.matmul %150, %151, %cst_55 {dimension_numbers = #tpu.dot_dimension_numbers<[1], [0], [0], [1], [0, 0, 1, 1], [], []>} : vector<16x16xbf16>, vector<16x32xbf16>, vector<16x32xf32> -> vector<16x32xf32>
    %c0_56 = arith.constant 0 : index
    %c0_57 = arith.constant 0 : index
    %153 = vector.load %arg10[%c0_56, %c0_57] : memref<1x32xf32, #tpu.memory_space<vmem>>, vector<1x32xf32>
    %154 = vector.broadcast %153 : vector<1x32xf32> to vector<16x32xf32>
    %155 = arith.addf %152, %154 : vector<16x32xf32>
    %156 = arith.addf %141, %155 : vector<16x32xf32>
    %c0_58 = arith.constant 0 : index
    %c0_59 = arith.constant 0 : index
    %157 = vector.load %arg13[%c0_58, %c0_59] : memref<1x32xf32, #tpu.memory_space<vmem>>, vector<1x32xf32>
    %c0_60 = arith.constant 0 : index
    %c0_61 = arith.constant 0 : index
    %158 = vector.load %arg14[%c0_60, %c0_61] : memref<1x32xf32, #tpu.memory_space<vmem>>, vector<1x32xf32>
    %cst_62 = arith.constant dense<0.000000e+00> : vector<16xf32>
    %159 = vector.multi_reduction <add>, %156, %cst_62 [1] : vector<16x32xf32> to vector<16xf32>
    %160 = vector.shape_cast %159 : vector<16xf32> to vector<16x1xf32>
    %cst_63 = arith.constant 3.200000e+01 : f32
    %161 = vector.broadcast %cst_63 : f32 to vector<16x1xf32>
    %162 = arith.divf %160, %161 : vector<16x1xf32>
    %163 = vector.broadcast %162 : vector<16x1xf32> to vector<16x32xf32>
    %164 = arith.subf %156, %163 : vector<16x32xf32>
    %165 = arith.mulf %164, %164 : vector<16x32xf32>
    %cst_64 = arith.constant dense<0.000000e+00> : vector<16xf32>
    %166 = vector.multi_reduction <add>, %165, %cst_64 [1] : vector<16x32xf32> to vector<16xf32>
    %167 = vector.shape_cast %166 : vector<16xf32> to vector<16x1xf32>
    %cst_65 = arith.constant 3.200000e+01 : f32
    %168 = vector.broadcast %cst_65 : f32 to vector<16x1xf32>
    %169 = arith.divf %167, %168 : vector<16x1xf32>
    %170 = vector.broadcast %162 : vector<16x1xf32> to vector<16x32xf32>
    %171 = arith.subf %156, %170 : vector<16x32xf32>
    %cst_66 = arith.constant 9.99999974E-6 : f32
    %172 = vector.broadcast %cst_66 : f32 to vector<16x1xf32>
    %173 = arith.addf %169, %172 : vector<16x1xf32>
    %174 = math.rsqrt %173 : vector<16x1xf32>
    %175 = vector.broadcast %174 : vector<16x1xf32> to vector<16x32xf32>
    %176 = arith.mulf %171, %175 : vector<16x32xf32>
    %177 = vector.broadcast %157 : vector<1x32xf32> to vector<16x32xf32>
    %178 = arith.mulf %176, %177 : vector<16x32xf32>
    %179 = vector.broadcast %158 : vector<1x32xf32> to vector<16x32xf32>
    %180 = arith.addf %178, %179 : vector<16x32xf32>
    %181 = arith.truncf %180 : vector<16x32xf32> to vector<16x32xbf16>
    %c0_67 = arith.constant 0 : index
    %c0_68 = arith.constant 0 : index
    %182 = vector.load %arg15[%c0_67, %c0_68] : memref<32x96xbf16, #tpu.memory_space<vmem>>, vector<32x96xbf16>
    %cst_69 = arith.constant dense<0.000000e+00> : vector<16x96xf32>
    %183 = tpu.matmul %181, %182, %cst_69 {dimension_numbers = #tpu.dot_dimension_numbers<[1], [0], [0], [1], [0, 0, 1, 1], [], []>} : vector<16x32xbf16>, vector<32x96xbf16>, vector<16x96xf32> -> vector<16x96xf32>
    %c0_70 = arith.constant 0 : index
    %c0_71 = arith.constant 0 : index
    %184 = vector.load %arg16[%c0_70, %c0_71] : memref<1x96xf32, #tpu.memory_space<vmem>>, vector<1x96xf32>
    %185 = vector.broadcast %184 : vector<1x96xf32> to vector<16x96xf32>
    %186 = arith.addf %183, %185 : vector<16x96xf32>
    %187 = vector.extract_strided_slice %186 {offsets = [0, 0], sizes = [16, 32], strides = [1, 1]} : vector<16x96xf32> to vector<16x32xf32>
    %188 = vector.extract_strided_slice %186 {offsets = [0, 32], sizes = [16, 32], strides = [1, 1]} : vector<16x96xf32> to vector<16x32xf32>
    %189 = vector.extract_strided_slice %186 {offsets = [0, 64], sizes = [16, 32], strides = [1, 1]} : vector<16x96xf32> to vector<16x32xf32>
    %190 = arith.truncf %187 : vector<16x32xf32> to vector<16x32xbf16>
    %191 = arith.truncf %188 : vector<16x32xf32> to vector<16x32xbf16>
    %192 = arith.truncf %189 : vector<16x32xf32> to vector<16x32xbf16>
    %c0_72 = arith.constant 0 : index
    %c0_73 = arith.constant 0 : index
    %193 = vector.load %arg17[%c0_72, %c0_73] : memref<32x32xbf16, #tpu.memory_space<vmem>>, vector<32x32xbf16>
    %cst_74 = arith.constant 0.000000e+00 : f32
    %194 = vector.broadcast %cst_74 : f32 to vector<16x32xf32>
    %195 = vector.extract_strided_slice %190 {offsets = [0, 0], sizes = [16, 8], strides = [1, 1]} : vector<16x32xbf16> to vector<16x8xbf16>
    %196 = vector.extract_strided_slice %191 {offsets = [0, 0], sizes = [16, 8], strides = [1, 1]} : vector<16x32xbf16> to vector<16x8xbf16>
    %cst_75 = arith.constant dense<0.000000e+00> : vector<16x16xf32>
    %197 = tpu.matmul %195, %196, %cst_75 {dimension_numbers = #tpu.dot_dimension_numbers<[1], [1], [0], [0], [0, 0, 1, 0], [], []>} : vector<16x8xbf16>, vector<16x8xbf16>, vector<16x16xf32> -> vector<16x16xf32>
    %cst_76 = arith.constant 0.353553385 : f32
    %198 = vector.broadcast %cst_76 : f32 to vector<16x16xf32>
    %199 = arith.mulf %197, %198 : vector<16x16xf32>
    %200 = vector.broadcast %3 : vector<1x16xf32> to vector<16x16xf32>
    %201 = arith.addf %199, %200 : vector<16x16xf32>
    %cst_77 = arith.constant dense<0xFF800000> : vector<16xf32>
    %202 = vector.multi_reduction <maximumf>, %201, %cst_77 [1] : vector<16x16xf32> to vector<16xf32>
    %203 = vector.shape_cast %202 : vector<16xf32> to vector<16x1xf32>
    %204 = vector.broadcast %203 : vector<16x1xf32> to vector<16x16xf32>
    %205 = arith.subf %201, %204 : vector<16x16xf32>
    %206 = math.exp %205 : vector<16x16xf32>
    %cst_78 = arith.constant dense<0.000000e+00> : vector<16xf32>
    %207 = vector.multi_reduction <add>, %206, %cst_78 [1] : vector<16x16xf32> to vector<16xf32>
    %208 = vector.shape_cast %207 : vector<16xf32> to vector<16x1xf32>
    %209 = tpu.reciprocal %208 {approx = true} : vector<16x1xf32> -> vector<16x1xf32>
    %210 = vector.broadcast %209 : vector<16x1xf32> to vector<16x16xf32>
    %211 = arith.mulf %206, %210 : vector<16x16xf32>
    %212 = arith.truncf %211 : vector<16x16xf32> to vector<16x16xbf16>
    %213 = vector.extract_strided_slice %192 {offsets = [0, 0], sizes = [16, 8], strides = [1, 1]} : vector<16x32xbf16> to vector<16x8xbf16>
    %cst_79 = arith.constant dense<0.000000e+00> : vector<16x8xf32>
    %214 = tpu.matmul %212, %213, %cst_79 {dimension_numbers = #tpu.dot_dimension_numbers<[1], [0], [0], [1], [0, 0, 1, 1], [], []>} : vector<16x16xbf16>, vector<16x8xbf16>, vector<16x8xf32> -> vector<16x8xf32>
    %215 = arith.truncf %214 : vector<16x8xf32> to vector<16x8xbf16>
    %216 = vector.extract_strided_slice %193 {offsets = [0, 0], sizes = [8, 32], strides = [1, 1]} : vector<32x32xbf16> to vector<8x32xbf16>
    %cst_80 = arith.constant dense<0.000000e+00> : vector<16x32xf32>
    %217 = tpu.matmul %215, %216, %cst_80 {dimension_numbers = #tpu.dot_dimension_numbers<[1], [0], [0], [1], [0, 0, 1, 1], [], []>} : vector<16x8xbf16>, vector<8x32xbf16>, vector<16x32xf32> -> vector<16x32xf32>
    %218 = arith.addf %194, %217 : vector<16x32xf32>
    %219 = vector.extract_strided_slice %190 {offsets = [0, 8], sizes = [16, 8], strides = [1, 1]} : vector<16x32xbf16> to vector<16x8xbf16>
    %220 = vector.extract_strided_slice %191 {offsets = [0, 8], sizes = [16, 8], strides = [1, 1]} : vector<16x32xbf16> to vector<16x8xbf16>
    %cst_81 = arith.constant dense<0.000000e+00> : vector<16x16xf32>
    %221 = tpu.matmul %219, %220, %cst_81 {dimension_numbers = #tpu.dot_dimension_numbers<[1], [1], [0], [0], [0, 0, 1, 0], [], []>} : vector<16x8xbf16>, vector<16x8xbf16>, vector<16x16xf32> -> vector<16x16xf32>
    %cst_82 = arith.constant 0.353553385 : f32
    %222 = vector.broadcast %cst_82 : f32 to vector<16x16xf32>
    %223 = arith.mulf %221, %222 : vector<16x16xf32>
    %224 = vector.broadcast %3 : vector<1x16xf32> to vector<16x16xf32>
    %225 = arith.addf %223, %224 : vector<16x16xf32>
    %cst_83 = arith.constant dense<0xFF800000> : vector<16xf32>
    %226 = vector.multi_reduction <maximumf>, %225, %cst_83 [1] : vector<16x16xf32> to vector<16xf32>
    %227 = vector.shape_cast %226 : vector<16xf32> to vector<16x1xf32>
    %228 = vector.broadcast %227 : vector<16x1xf32> to vector<16x16xf32>
    %229 = arith.subf %225, %228 : vector<16x16xf32>
    %230 = math.exp %229 : vector<16x16xf32>
    %cst_84 = arith.constant dense<0.000000e+00> : vector<16xf32>
    %231 = vector.multi_reduction <add>, %230, %cst_84 [1] : vector<16x16xf32> to vector<16xf32>
    %232 = vector.shape_cast %231 : vector<16xf32> to vector<16x1xf32>
    %233 = tpu.reciprocal %232 {approx = true} : vector<16x1xf32> -> vector<16x1xf32>
    %234 = vector.broadcast %233 : vector<16x1xf32> to vector<16x16xf32>
    %235 = arith.mulf %230, %234 : vector<16x16xf32>
    %236 = arith.truncf %235 : vector<16x16xf32> to vector<16x16xbf16>
    %237 = vector.extract_strided_slice %192 {offsets = [0, 8], sizes = [16, 8], strides = [1, 1]} : vector<16x32xbf16> to vector<16x8xbf16>
    %cst_85 = arith.constant dense<0.000000e+00> : vector<16x8xf32>
    %238 = tpu.matmul %236, %237, %cst_85 {dimension_numbers = #tpu.dot_dimension_numbers<[1], [0], [0], [1], [0, 0, 1, 1], [], []>} : vector<16x16xbf16>, vector<16x8xbf16>, vector<16x8xf32> -> vector<16x8xf32>
    %239 = arith.truncf %238 : vector<16x8xf32> to vector<16x8xbf16>
    %240 = vector.extract_strided_slice %193 {offsets = [8, 0], sizes = [8, 32], strides = [1, 1]} : vector<32x32xbf16> to vector<8x32xbf16>
    %cst_86 = arith.constant dense<0.000000e+00> : vector<16x32xf32>
    %241 = tpu.matmul %239, %240, %cst_86 {dimension_numbers = #tpu.dot_dimension_numbers<[1], [0], [0], [1], [0, 0, 1, 1], [], []>} : vector<16x8xbf16>, vector<8x32xbf16>, vector<16x32xf32> -> vector<16x32xf32>
    %242 = arith.addf %218, %241 : vector<16x32xf32>
    %243 = vector.extract_strided_slice %190 {offsets = [0, 16], sizes = [16, 8], strides = [1, 1]} : vector<16x32xbf16> to vector<16x8xbf16>
    %244 = vector.extract_strided_slice %191 {offsets = [0, 16], sizes = [16, 8], strides = [1, 1]} : vector<16x32xbf16> to vector<16x8xbf16>
    %cst_87 = arith.constant dense<0.000000e+00> : vector<16x16xf32>
    %245 = tpu.matmul %243, %244, %cst_87 {dimension_numbers = #tpu.dot_dimension_numbers<[1], [1], [0], [0], [0, 0, 1, 0], [], []>} : vector<16x8xbf16>, vector<16x8xbf16>, vector<16x16xf32> -> vector<16x16xf32>
    %cst_88 = arith.constant 0.353553385 : f32
    %246 = vector.broadcast %cst_88 : f32 to vector<16x16xf32>
    %247 = arith.mulf %245, %246 : vector<16x16xf32>
    %248 = vector.broadcast %3 : vector<1x16xf32> to vector<16x16xf32>
    %249 = arith.addf %247, %248 : vector<16x16xf32>
    %cst_89 = arith.constant dense<0xFF800000> : vector<16xf32>
    %250 = vector.multi_reduction <maximumf>, %249, %cst_89 [1] : vector<16x16xf32> to vector<16xf32>
    %251 = vector.shape_cast %250 : vector<16xf32> to vector<16x1xf32>
    %252 = vector.broadcast %251 : vector<16x1xf32> to vector<16x16xf32>
    %253 = arith.subf %249, %252 : vector<16x16xf32>
    %254 = math.exp %253 : vector<16x16xf32>
    %cst_90 = arith.constant dense<0.000000e+00> : vector<16xf32>
    %255 = vector.multi_reduction <add>, %254, %cst_90 [1] : vector<16x16xf32> to vector<16xf32>
    %256 = vector.shape_cast %255 : vector<16xf32> to vector<16x1xf32>
    %257 = tpu.reciprocal %256 {approx = true} : vector<16x1xf32> -> vector<16x1xf32>
    %258 = vector.broadcast %257 : vector<16x1xf32> to vector<16x16xf32>
    %259 = arith.mulf %254, %258 : vector<16x16xf32>
    %260 = arith.truncf %259 : vector<16x16xf32> to vector<16x16xbf16>
    %261 = vector.extract_strided_slice %192 {offsets = [0, 16], sizes = [16, 8], strides = [1, 1]} : vector<16x32xbf16> to vector<16x8xbf16>
    %cst_91 = arith.constant dense<0.000000e+00> : vector<16x8xf32>
    %262 = tpu.matmul %260, %261, %cst_91 {dimension_numbers = #tpu.dot_dimension_numbers<[1], [0], [0], [1], [0, 0, 1, 1], [], []>} : vector<16x16xbf16>, vector<16x8xbf16>, vector<16x8xf32> -> vector<16x8xf32>
    %263 = arith.truncf %262 : vector<16x8xf32> to vector<16x8xbf16>
    %264 = vector.extract_strided_slice %193 {offsets = [16, 0], sizes = [8, 32], strides = [1, 1]} : vector<32x32xbf16> to vector<8x32xbf16>
    %cst_92 = arith.constant dense<0.000000e+00> : vector<16x32xf32>
    %265 = tpu.matmul %263, %264, %cst_92 {dimension_numbers = #tpu.dot_dimension_numbers<[1], [0], [0], [1], [0, 0, 1, 1], [], []>} : vector<16x8xbf16>, vector<8x32xbf16>, vector<16x32xf32> -> vector<16x32xf32>
    %266 = arith.addf %242, %265 : vector<16x32xf32>
    %267 = vector.extract_strided_slice %190 {offsets = [0, 24], sizes = [16, 8], strides = [1, 1]} : vector<16x32xbf16> to vector<16x8xbf16>
    %268 = vector.extract_strided_slice %191 {offsets = [0, 24], sizes = [16, 8], strides = [1, 1]} : vector<16x32xbf16> to vector<16x8xbf16>
    %cst_93 = arith.constant dense<0.000000e+00> : vector<16x16xf32>
    %269 = tpu.matmul %267, %268, %cst_93 {dimension_numbers = #tpu.dot_dimension_numbers<[1], [1], [0], [0], [0, 0, 1, 0], [], []>} : vector<16x8xbf16>, vector<16x8xbf16>, vector<16x16xf32> -> vector<16x16xf32>
    %cst_94 = arith.constant 0.353553385 : f32
    %270 = vector.broadcast %cst_94 : f32 to vector<16x16xf32>
    %271 = arith.mulf %269, %270 : vector<16x16xf32>
    %272 = vector.broadcast %3 : vector<1x16xf32> to vector<16x16xf32>
    %273 = arith.addf %271, %272 : vector<16x16xf32>
    %cst_95 = arith.constant dense<0xFF800000> : vector<16xf32>
    %274 = vector.multi_reduction <maximumf>, %273, %cst_95 [1] : vector<16x16xf32> to vector<16xf32>
    %275 = vector.shape_cast %274 : vector<16xf32> to vector<16x1xf32>
    %276 = vector.broadcast %275 : vector<16x1xf32> to vector<16x16xf32>
    %277 = arith.subf %273, %276 : vector<16x16xf32>
    %278 = math.exp %277 : vector<16x16xf32>
    %cst_96 = arith.constant dense<0.000000e+00> : vector<16xf32>
    %279 = vector.multi_reduction <add>, %278, %cst_96 [1] : vector<16x16xf32> to vector<16xf32>
    %280 = vector.shape_cast %279 : vector<16xf32> to vector<16x1xf32>
    %281 = tpu.reciprocal %280 {approx = true} : vector<16x1xf32> -> vector<16x1xf32>
    %282 = vector.broadcast %281 : vector<16x1xf32> to vector<16x16xf32>
    %283 = arith.mulf %278, %282 : vector<16x16xf32>
    %284 = arith.truncf %283 : vector<16x16xf32> to vector<16x16xbf16>
    %285 = vector.extract_strided_slice %192 {offsets = [0, 24], sizes = [16, 8], strides = [1, 1]} : vector<16x32xbf16> to vector<16x8xbf16>
    %cst_97 = arith.constant dense<0.000000e+00> : vector<16x8xf32>
    %286 = tpu.matmul %284, %285, %cst_97 {dimension_numbers = #tpu.dot_dimension_numbers<[1], [0], [0], [1], [0, 0, 1, 1], [], []>} : vector<16x16xbf16>, vector<16x8xbf16>, vector<16x8xf32> -> vector<16x8xf32>
    %287 = arith.truncf %286 : vector<16x8xf32> to vector<16x8xbf16>
    %288 = vector.extract_strided_slice %193 {offsets = [24, 0], sizes = [8, 32], strides = [1, 1]} : vector<32x32xbf16> to vector<8x32xbf16>
    %cst_98 = arith.constant dense<0.000000e+00> : vector<16x32xf32>
    %289 = tpu.matmul %287, %288, %cst_98 {dimension_numbers = #tpu.dot_dimension_numbers<[1], [0], [0], [1], [0, 0, 1, 1], [], []>} : vector<16x8xbf16>, vector<8x32xbf16>, vector<16x32xf32> -> vector<16x32xf32>
    %290 = arith.addf %266, %289 : vector<16x32xf32>
    %c0_99 = arith.constant 0 : index
    %c0_100 = arith.constant 0 : index
    %291 = vector.load %arg18[%c0_99, %c0_100] : memref<1x32xf32, #tpu.memory_space<vmem>>, vector<1x32xf32>
    %292 = vector.broadcast %291 : vector<1x32xf32> to vector<16x32xf32>
    %293 = arith.addf %290, %292 : vector<16x32xf32>
    %294 = arith.addf %180, %293 : vector<16x32xf32>
    %c0_101 = arith.constant 0 : index
    %c0_102 = arith.constant 0 : index
    %295 = vector.load %arg23[%c0_101, %c0_102] : memref<1x32xf32, #tpu.memory_space<vmem>>, vector<1x32xf32>
    %c0_103 = arith.constant 0 : index
    %c0_104 = arith.constant 0 : index
    %296 = vector.load %arg24[%c0_103, %c0_104] : memref<1x32xf32, #tpu.memory_space<vmem>>, vector<1x32xf32>
    %cst_105 = arith.constant dense<0.000000e+00> : vector<16xf32>
    %297 = vector.multi_reduction <add>, %294, %cst_105 [1] : vector<16x32xf32> to vector<16xf32>
    %298 = vector.shape_cast %297 : vector<16xf32> to vector<16x1xf32>
    %cst_106 = arith.constant 3.200000e+01 : f32
    %299 = vector.broadcast %cst_106 : f32 to vector<16x1xf32>
    %300 = arith.divf %298, %299 : vector<16x1xf32>
    %301 = vector.broadcast %300 : vector<16x1xf32> to vector<16x32xf32>
    %302 = arith.subf %294, %301 : vector<16x32xf32>
    %303 = arith.mulf %302, %302 : vector<16x32xf32>
    %cst_107 = arith.constant dense<0.000000e+00> : vector<16xf32>
    %304 = vector.multi_reduction <add>, %303, %cst_107 [1] : vector<16x32xf32> to vector<16xf32>
    %305 = vector.shape_cast %304 : vector<16xf32> to vector<16x1xf32>
    %cst_108 = arith.constant 3.200000e+01 : f32
    %306 = vector.broadcast %cst_108 : f32 to vector<16x1xf32>
    %307 = arith.divf %305, %306 : vector<16x1xf32>
    %308 = vector.broadcast %300 : vector<16x1xf32> to vector<16x32xf32>
    %309 = arith.subf %294, %308 : vector<16x32xf32>
    %cst_109 = arith.constant 9.99999974E-6 : f32
    %310 = vector.broadcast %cst_109 : f32 to vector<16x1xf32>
    %311 = arith.addf %307, %310 : vector<16x1xf32>
    %312 = math.rsqrt %311 : vector<16x1xf32>
    %313 = vector.broadcast %312 : vector<16x1xf32> to vector<16x32xf32>
    %314 = arith.mulf %309, %313 : vector<16x32xf32>
    %315 = vector.broadcast %295 : vector<1x32xf32> to vector<16x32xf32>
    %316 = arith.mulf %314, %315 : vector<16x32xf32>
    %317 = vector.broadcast %296 : vector<1x32xf32> to vector<16x32xf32>
    %318 = arith.addf %316, %317 : vector<16x32xf32>
    %319 = arith.truncf %318 : vector<16x32xf32> to vector<16x32xbf16>
    %c0_110 = arith.constant 0 : index
    %c0_111 = arith.constant 0 : index
    %320 = vector.load %arg19[%c0_110, %c0_111] : memref<32x16xbf16, #tpu.memory_space<vmem>>, vector<32x16xbf16>
    %cst_112 = arith.constant dense<0.000000e+00> : vector<16x16xf32>
    %321 = tpu.matmul %319, %320, %cst_112 {dimension_numbers = #tpu.dot_dimension_numbers<[1], [0], [0], [1], [0, 0, 1, 1], [], []>} : vector<16x32xbf16>, vector<32x16xbf16>, vector<16x16xf32> -> vector<16x16xf32>
    %c0_113 = arith.constant 0 : index
    %c0_114 = arith.constant 0 : index
    %322 = vector.load %arg20[%c0_113, %c0_114] : memref<1x16xf32, #tpu.memory_space<vmem>>, vector<1x16xf32>
    %323 = vector.broadcast %322 : vector<1x16xf32> to vector<16x16xf32>
    %324 = arith.addf %321, %323 : vector<16x16xf32>
    %cst_115 = arith.constant 0.000000e+00 : f32
    %325 = vector.broadcast %cst_115 : f32 to vector<16x16xf32>
    %326 = arith.maximumf %324, %325 : vector<16x16xf32>
    %327 = arith.truncf %326 : vector<16x16xf32> to vector<16x16xbf16>
    %c0_116 = arith.constant 0 : index
    %c0_117 = arith.constant 0 : index
    %328 = vector.load %arg21[%c0_116, %c0_117] : memref<16x32xbf16, #tpu.memory_space<vmem>>, vector<16x32xbf16>
    %cst_118 = arith.constant dense<0.000000e+00> : vector<16x32xf32>
    %329 = tpu.matmul %327, %328, %cst_118 {dimension_numbers = #tpu.dot_dimension_numbers<[1], [0], [0], [1], [0, 0, 1, 1], [], []>} : vector<16x16xbf16>, vector<16x32xbf16>, vector<16x32xf32> -> vector<16x32xf32>
    %c0_119 = arith.constant 0 : index
    %c0_120 = arith.constant 0 : index
    %330 = vector.load %arg22[%c0_119, %c0_120] : memref<1x32xf32, #tpu.memory_space<vmem>>, vector<1x32xf32>
    %331 = vector.broadcast %330 : vector<1x32xf32> to vector<16x32xf32>
    %332 = arith.addf %329, %331 : vector<16x32xf32>
    %333 = arith.addf %318, %332 : vector<16x32xf32>
    %c0_121 = arith.constant 0 : index
    %c0_122 = arith.constant 0 : index
    %334 = vector.load %arg25[%c0_121, %c0_122] : memref<1x32xf32, #tpu.memory_space<vmem>>, vector<1x32xf32>
    %c0_123 = arith.constant 0 : index
    %c0_124 = arith.constant 0 : index
    %335 = vector.load %arg26[%c0_123, %c0_124] : memref<1x32xf32, #tpu.memory_space<vmem>>, vector<1x32xf32>
    %cst_125 = arith.constant dense<0.000000e+00> : vector<16xf32>
    %336 = vector.multi_reduction <add>, %333, %cst_125 [1] : vector<16x32xf32> to vector<16xf32>
    %337 = vector.shape_cast %336 : vector<16xf32> to vector<16x1xf32>
    %cst_126 = arith.constant 3.200000e+01 : f32
    %338 = vector.broadcast %cst_126 : f32 to vector<16x1xf32>
    %339 = arith.divf %337, %338 : vector<16x1xf32>
    %340 = vector.broadcast %339 : vector<16x1xf32> to vector<16x32xf32>
    %341 = arith.subf %333, %340 : vector<16x32xf32>
    %342 = arith.mulf %341, %341 : vector<16x32xf32>
    %cst_127 = arith.constant dense<0.000000e+00> : vector<16xf32>
    %343 = vector.multi_reduction <add>, %342, %cst_127 [1] : vector<16x32xf32> to vector<16xf32>
    %344 = vector.shape_cast %343 : vector<16xf32> to vector<16x1xf32>
    %cst_128 = arith.constant 3.200000e+01 : f32
    %345 = vector.broadcast %cst_128 : f32 to vector<16x1xf32>
    %346 = arith.divf %344, %345 : vector<16x1xf32>
    %347 = vector.broadcast %339 : vector<16x1xf32> to vector<16x32xf32>
    %348 = arith.subf %333, %347 : vector<16x32xf32>
    %cst_129 = arith.constant 9.99999974E-6 : f32
    %349 = vector.broadcast %cst_129 : f32 to vector<16x1xf32>
    %350 = arith.addf %346, %349 : vector<16x1xf32>
    %351 = math.rsqrt %350 : vector<16x1xf32>
    %352 = vector.broadcast %351 : vector<16x1xf32> to vector<16x32xf32>
    %353 = arith.mulf %348, %352 : vector<16x32xf32>
    %354 = vector.broadcast %334 : vector<1x32xf32> to vector<16x32xf32>
    %355 = arith.mulf %353, %354 : vector<16x32xf32>
    %356 = vector.broadcast %335 : vector<1x32xf32> to vector<16x32xf32>
    %357 = arith.addf %355, %356 : vector<16x32xf32>
    %c0_130 = arith.constant 0 : index
    %c0_131 = arith.constant 0 : index
    %358 = vector.load %arg27[%c0_130, %c0_131] : memref<1x32xf32, #tpu.memory_space<vmem>>, vector<1x32xf32>
    %c0_132 = arith.constant 0 : index
    %c0_133 = arith.constant 0 : index
    %359 = vector.load %arg28[%c0_132, %c0_133] : memref<1x32xf32, #tpu.memory_space<vmem>>, vector<1x32xf32>
    %cst_134 = arith.constant dense<0.000000e+00> : vector<16xf32>
    %360 = vector.multi_reduction <add>, %357, %cst_134 [1] : vector<16x32xf32> to vector<16xf32>
    %361 = vector.shape_cast %360 : vector<16xf32> to vector<16x1xf32>
    %cst_135 = arith.constant 3.200000e+01 : f32
    %362 = vector.broadcast %cst_135 : f32 to vector<16x1xf32>
    %363 = arith.divf %361, %362 : vector<16x1xf32>
    %364 = vector.broadcast %363 : vector<16x1xf32> to vector<16x32xf32>
    %365 = arith.subf %357, %364 : vector<16x32xf32>
    %366 = arith.mulf %365, %365 : vector<16x32xf32>
    %cst_136 = arith.constant dense<0.000000e+00> : vector<16xf32>
    %367 = vector.multi_reduction <add>, %366, %cst_136 [1] : vector<16x32xf32> to vector<16xf32>
    %368 = vector.shape_cast %367 : vector<16xf32> to vector<16x1xf32>
    %cst_137 = arith.constant 3.200000e+01 : f32
    %369 = vector.broadcast %cst_137 : f32 to vector<16x1xf32>
    %370 = arith.divf %368, %369 : vector<16x1xf32>
    %371 = vector.broadcast %363 : vector<16x1xf32> to vector<16x32xf32>
    %372 = arith.subf %357, %371 : vector<16x32xf32>
    %cst_138 = arith.constant 9.99999974E-6 : f32
    %373 = vector.broadcast %cst_138 : f32 to vector<16x1xf32>
    %374 = arith.addf %370, %373 : vector<16x1xf32>
    %375 = math.rsqrt %374 : vector<16x1xf32>
    %376 = vector.broadcast %375 : vector<16x1xf32> to vector<16x32xf32>
    %377 = arith.mulf %372, %376 : vector<16x32xf32>
    %378 = vector.broadcast %358 : vector<1x32xf32> to vector<16x32xf32>
    %379 = arith.mulf %377, %378 : vector<16x32xf32>
    %380 = vector.broadcast %359 : vector<1x32xf32> to vector<16x32xf32>
    %381 = arith.addf %379, %380 : vector<16x32xf32>
    %c0_139 = arith.constant 0 : index
    %c0_140 = arith.constant 0 : index
    %c0_141 = arith.constant 0 : index
    %382 = vector.load %arg29[%c0_139, %c0_140, %c0_141] : memref<1x16x32xf32, #tpu.memory_space<vmem>>, vector<1x16x32xf32>
    %383 = vector.shape_cast %382 : vector<1x16x32xf32> to vector<16x32xf32>
    %384 = vector.shape_cast %381 : vector<16x32xf32> to vector<1x16x32xf32>
    tpu.vector_store %arg29[%c0_139, %c0_140, %c0_141], %384 {strides = array<i32>} : memref<1x16x32xf32, #tpu.memory_space<vmem>>, vector<1x16x32xf32>,
    return
  }
  func.func @transform_0(%arg0: i32) -> (i32, i32, i32) {
    %c0_i32 = arith.constant 0 : i32
    %c0_i32_0 = arith.constant 0 : i32
    %c0_i32_1 = arith.constant 0 : i32
    return %arg0, %c0_i32, %c0_i32_0 : i32, i32, i32
  }
  func.func @transform_1(%arg0: i32) -> (i32, i32, i32) {
    %c0_i32 = arith.constant 0 : i32
    %c0_i32_0 = arith.constant 0 : i32
    %c0_i32_1 = arith.constant 0 : i32
    return %arg0, %c0_i32, %c0_i32_0 : i32, i32, i32
  }
  func.func @transform_2(%arg0: i32) -> (i32, i32) {
    %c0_i32 = arith.constant 0 : i32
    %c0_i32_0 = arith.constant 0 : i32
    %c0_i32_1 = arith.constant 0 : i32
    return %c0_i32, %c0_i32_0 : i32, i32
  }
  func.func @transform_3(%arg0: i32) -> (i32, i32) {
    %c0_i32 = arith.constant 0 : i32
    %c0_i32_0 = arith.constant 0 : i32
    %c0_i32_1 = arith.constant 0 : i32
    return %c0_i32, %c0_i32_0 : i32, i32
  }
  func.func @transform_4(%arg0: i32) -> (i32, i32) {
    %c0_i32 = arith.constant 0 : i32
    %c0_i32_0 = arith.constant 0 : i32
    %c0_i32_1 = arith.constant 0 : i32
    return %c0_i32, %c0_i32_0 : i32, i32
  }
  func.func @transform_5(%arg0: i32) -> (i32, i32) {
    %c0_i32 = arith.constant 0 : i32
    %c0_i32_0 = arith.constant 0 : i32
    %c0_i32_1 = arith.constant 0 : i32
    return %c0_i32, %c0_i32_0 : i32, i32
  }
  func.func @transform_6(%arg0: i32) -> (i32, i32) {
    %c0_i32 = arith.constant 0 : i32
    %c0_i32_0 = arith.constant 0 : i32
    %c0_i32_1 = arith.constant 0 : i32
    return %c0_i32, %c0_i32_0 : i32, i32
  }
  func.func @transform_7(%arg0: i32) -> (i32, i32) {
    %c0_i32 = arith.constant 0 : i32
    %c0_i32_0 = arith.constant 0 : i32
    %c0_i32_1 = arith.constant 0 : i32
    return %c0_i32, %c0_i32_0 : i32, i32
  }
  func.func @transform_8(%arg0: i32) -> (i32, i32) {
    %c0_i32 = arith.constant 0 : i32
    %c0_i32_0 = arith.constant 0 : i32
    %c0_i32_1 = arith.constant 0 : i32
    return %c0_i32, %c0_i32_0 : i32, i32
  }
  func.func @transform_9(%arg0: i32) -> (i32, i32) {
    %c0_i32 = arith.constant 0 : i32
    %c0_i32_0 = arith.constant 0 : i32
    %c0_i32_1 = arith.constant 0 : i32
    return %c0_i32, %c0_i32_0 : i32, i32
  }
  func.func @transform_10(%arg0: i32) -> (i32, i32) {
    %c0_i32 = arith.constant 0 : i32
    %c0_i32_0 = arith.constant 0 : i32
    %c0_i32_1 = arith.constant 0 : i32
    return %c0_i32, %c0_i32_0 : i32, i32
  }
  func.func @transform_11(%arg0: i32) -> (i32, i32) {
    %c0_i32 = arith.constant 0 : i32
    %c0_i32_0 = arith.constant 0 : i32
    %c0_i32_1 = arith.constant 0 : i32
    return %c0_i32, %c0_i32_0 : i32, i32
  }
  func.func @transform_12(%arg0: i32) -> (i32, i32) {
    %c0_i32 = arith.constant 0 : i32
    %c0_i32_0 = arith.constant 0 : i32
    %c0_i32_1 = arith.constant 0 : i32
    return %c0_i32, %c0_i32_0 : i32, i32
  }
  func.func @transform_13(%arg0: i32) -> (i32, i32) {
    %c0_i32 = arith.constant 0 : i32
    %c0_i32_0 = arith.constant 0 : i32
    %c0_i32_1 = arith.constant 0 : i32
    return %c0_i32, %c0_i32_0 : i32, i32
  }
  func.func @transform_14(%arg0: i32) -> (i32, i32) {
    %c0_i32 = arith.constant 0 : i32
    %c0_i32_0 = arith.constant 0 : i32
    %c0_i32_1 = arith.constant 0 : i32
    return %c0_i32, %c0_i32_0 : i32, i32
  }
  func.func @transform_15(%arg0: i32) -> (i32, i32) {
    %c0_i32 = arith.constant 0 : i32
    %c0_i32_0 = arith.constant 0 : i32
    %c0_i32_1 = arith.constant 0 : i32
    return %c0_i32, %c0_i32_0 : i32, i32
  }
  func.func @transform_16(%arg0: i32) -> (i32, i32) {
    %c0_i32 = arith.constant 0 : i32
    %c0_i32_0 = arith.constant 0 : i32
    %c0_i32_1 = arith.constant 0 : i32
    return %c0_i32, %c0_i32_0 : i32, i32
  }
  func.func @transform_17(%arg0: i32) -> (i32, i32) {
    %c0_i32 = arith.constant 0 : i32
    %c0_i32_0 = arith.constant 0 : i32
    %c0_i32_1 = arith.constant 0 : i32
    return %c0_i32, %c0_i32_0 : i32, i32
  }
  func.func @transform_18(%arg0: i32) -> (i32, i32) {
    %c0_i32 = arith.constant 0 : i32
    %c0_i32_0 = arith.constant 0 : i32
    %c0_i32_1 = arith.constant 0 : i32
    return %c0_i32, %c0_i32_0 : i32, i32
  }
  func.func @transform_19(%arg0: i32) -> (i32, i32) {
    %c0_i32 = arith.constant 0 : i32
    %c0_i32_0 = arith.constant 0 : i32
    %c0_i32_1 = arith.constant 0 : i32
    return %c0_i32, %c0_i32_0 : i32, i32
  }
  func.func @transform_20(%arg0: i32) -> (i32, i32) {
    %c0_i32 = arith.constant 0 : i32
    %c0_i32_0 = arith.constant 0 : i32
    %c0_i32_1 = arith.constant 0 : i32
    return %c0_i32, %c0_i32_0 : i32, i32
  }
  func.func @transform_21(%arg0: i32) -> (i32, i32) {
    %c0_i32 = arith.constant 0 : i32
    %c0_i32_0 = arith.constant 0 : i32
    %c0_i32_1 = arith.constant 0 : i32
    return %c0_i32, %c0_i32_0 : i32, i32
  }
  func.func @transform_22(%arg0: i32) -> (i32, i32) {
    %c0_i32 = arith.constant 0 : i32
    %c0_i32_0 = arith.constant 0 : i32
    %c0_i32_1 = arith.constant 0 : i32
    return %c0_i32, %c0_i32_0 : i32, i32
  }
  func.func @transform_23(%arg0: i32) -> (i32, i32) {
    %c0_i32 = arith.constant 0 : i32
    %c0_i32_0 = arith.constant 0 : i32
    %c0_i32_1 = arith.constant 0 : i32
    return %c0_i32, %c0_i32_0 : i32, i32
  }
  func.func @transform_24(%arg0: i32) -> (i32, i32) {
    %c0_i32 = arith.constant 0 : i32
    %c0_i32_0 = arith.constant 0 : i32
    %c0_i32_1 = arith.constant 0 : i32
    return %c0_i32, %c0_i32_0 : i32, i32
  }
  func.func @transform_25(%arg0: i32) -> (i32, i32) {
    %c0_i32 = arith.constant 0 : i32
    %c0_i32_0 = arith.constant 0 : i32
    %c0_i32_1 = arith.constant 0 : i32
    return %c0_i32, %c0_i32_0 : i32, i32
  }
  func.func @transform_26(%arg0: i32) -> (i32, i32) {
    %c0_i32 = arith.constant 0 : i32
    %c0_i32_0 = arith.constant 0 : i32
    %c0_i32_1 = arith.constant 0 : i32
    return %c0_i32, %c0_i32_0 : i32, i32
  }
  func.func @transform_27(%arg0: i32) -> (i32, i32) {
    %c0_i32 = arith.constant 0 : i32
    %c0_i32_0 = arith.constant 0 : i32
    %c0_i32_1 = arith.constant 0 : i32
    return %c0_i32, %c0_i32_0 : i32, i32
  }
  func.func @transform_28(%arg0: i32) -> (i32, i32, i32) {
    %c0_i32 = arith.constant 0 : i32
    %c0_i32_0 = arith.constant 0 : i32
    %c0_i32_1 = arith.constant 0 : i32
    return %arg0, %c0_i32, %c0_i32_0 : i32, i32, i32
  }
}

module attributes {stable_mosaic.version = 11 : i64} {
  func.func @_decoder_stack_kernel(%arg0: i32, %arg1: memref<1x8x32xf32, #tpu.memory_space<vmem>>, %arg2: memref<1x16x32xf32, #tpu.memory_space<vmem>>, %arg3: memref<32x96xbf16, #tpu.memory_space<vmem>>, %arg4: memref<1x96xf32, #tpu.memory_space<vmem>>, %arg5: memref<32x32xbf16, #tpu.memory_space<vmem>>, %arg6: memref<1x32xf32, #tpu.memory_space<vmem>>, %arg7: memref<32x32xbf16, #tpu.memory_space<vmem>>, %arg8: memref<1x32xf32, #tpu.memory_space<vmem>>, %arg9: memref<32x64xbf16, #tpu.memory_space<vmem>>, %arg10: memref<1x64xf32, #tpu.memory_space<vmem>>, %arg11: memref<32x32xbf16, #tpu.memory_space<vmem>>, %arg12: memref<1x32xf32, #tpu.memory_space<vmem>>, %arg13: memref<32x16xbf16, #tpu.memory_space<vmem>>, %arg14: memref<1x16xf32, #tpu.memory_space<vmem>>, %arg15: memref<16x32xbf16, #tpu.memory_space<vmem>>, %arg16: memref<1x32xf32, #tpu.memory_space<vmem>>, %arg17: memref<1x32xf32, #tpu.memory_space<vmem>>, %arg18: memref<1x32xf32, #tpu.memory_space<vmem>>, %arg19: memref<1x32xf32, #tpu.memory_space<vmem>>, %arg20: memref<1x32xf32, #tpu.memory_space<vmem>>, %arg21: memref<1x32xf32, #tpu.memory_space<vmem>>, %arg22: memref<1x32xf32, #tpu.memory_space<vmem>>, %arg23: memref<32x96xbf16, #tpu.memory_space<vmem>>, %arg24: memref<1x96xf32, #tpu.memory_space<vmem>>, %arg25: memref<32x32xbf16, #tpu.memory_space<vmem>>, %arg26: memref<1x32xf32, #tpu.memory_space<vmem>>, %arg27: memref<32x32xbf16, #tpu.memory_space<vmem>>, %arg28: memref<1x32xf32, #tpu.memory_space<vmem>>, %arg29: memref<32x64xbf16, #tpu.memory_space<vmem>>, %arg30: memref<1x64xf32, #tpu.memory_space<vmem>>, %arg31: memref<32x32xbf16, #tpu.memory_space<vmem>>, %arg32: memref<1x32xf32, #tpu.memory_space<vmem>>, %arg33: memref<32x16xbf16, #tpu.memory_space<vmem>>, %arg34: memref<1x16xf32, #tpu.memory_space<vmem>>, %arg35: memref<16x32xbf16, #tpu.memory_space<vmem>>, %arg36: memref<1x32xf32, #tpu.memory_space<vmem>>, %arg37: memref<1x32xf32, #tpu.memory_space<vmem>>, %arg38: memref<1x32xf32, #tpu.memory_space<vmem>>, %arg39: memref<1x32xf32, #tpu.memory_space<vmem>>, %arg40: memref<1x32xf32, #tpu.memory_space<vmem>>, %arg41: memref<1x32xf32, #tpu.memory_space<vmem>>, %arg42: memref<1x32xf32, #tpu.memory_space<vmem>>, %arg43: memref<1x32xf32, #tpu.memory_space<vmem>>, %arg44: memref<1x32xf32, #tpu.memory_space<vmem>>, %arg45: memref<32x128xbf16, #tpu.memory_space<vmem>>, %arg46: memref<1x128xf32, #tpu.memory_space<vmem>>, %arg47: memref<1x8x128xf32, #tpu.memory_space<vmem>>) attributes {dimension_semantics = [#tpu.dimension_semantics<parallel>], iteration_bounds = array<i64: 2>, scalar_prefetch = 0 : i64, scratch_operands = 0 : i64, tpu.core_type = #tpu.core_type<tc>, window_params = [{transform_indices = @transform_0, window_bounds = array<i64: 1, 8, 32>}, {transform_indices = @transform_1, window_bounds = array<i64: 1, 16, 32>}, {pipeline_mode = #tpu.pipeline_mode<synchronous>, transform_indices = @transform_2, window_bounds = array<i64: 32, 96>}, {pipeline_mode = #tpu.pipeline_mode<synchronous>, transform_indices = @transform_3, window_bounds = array<i64: 1, 96>}, {pipeline_mode = #tpu.pipeline_mode<synchronous>, transform_indices = @transform_4, window_bounds = array<i64: 32, 32>}, {pipeline_mode = #tpu.pipeline_mode<synchronous>, transform_indices = @transform_5, window_bounds = array<i64: 1, 32>}, {pipeline_mode = #tpu.pipeline_mode<synchronous>, transform_indices = @transform_6, window_bounds = array<i64: 32, 32>}, {pipeline_mode = #tpu.pipeline_mode<synchronous>, transform_indices = @transform_7, window_bounds = array<i64: 1, 32>}, {pipeline_mode = #tpu.pipeline_mode<synchronous>, transform_indices = @transform_8, window_bounds = array<i64: 32, 64>}, {pipeline_mode = #tpu.pipeline_mode<synchronous>, transform_indices = @transform_9, window_bounds = array<i64: 1, 64>}, {pipeline_mode = #tpu.pipeline_mode<synchronous>, transform_indices = @transform_10, window_bounds = array<i64: 32, 32>}, {pipeline_mode = #tpu.pipeline_mode<synchronous>, transform_indices = @transform_11, window_bounds = array<i64: 1, 32>}, {pipeline_mode = #tpu.pipeline_mode<synchronous>, transform_indices = @transform_12, window_bounds = array<i64: 32, 16>}, {pipeline_mode = #tpu.pipeline_mode<synchronous>, transform_indices = @transform_13, window_bounds = array<i64: 1, 16>}, {pipeline_mode = #tpu.pipeline_mode<synchronous>, transform_indices = @transform_14, window_bounds = array<i64: 16, 32>}, {pipeline_mode = #tpu.pipeline_mode<synchronous>, transform_indices = @transform_15, window_bounds = array<i64: 1, 32>}, {pipeline_mode = #tpu.pipeline_mode<synchronous>, transform_indices = @transform_16, window_bounds = array<i64: 1, 32>}, {pipeline_mode = #tpu.pipeline_mode<synchronous>, transform_indices = @transform_17, window_bounds = array<i64: 1, 32>}, {pipeline_mode = #tpu.pipeline_mode<synchronous>, transform_indices = @transform_18, window_bounds = array<i64: 1, 32>}, {pipeline_mode = #tpu.pipeline_mode<synchronous>, transform_indices = @transform_19, window_bounds = array<i64: 1, 32>}, {pipeline_mode = #tpu.pipeline_mode<synchronous>, transform_indices = @transform_20, window_bounds = array<i64: 1, 32>}, {pipeline_mode = #tpu.pipeline_mode<synchronous>, transform_indices = @transform_21, window_bounds = array<i64: 1, 32>}, {pipeline_mode = #tpu.pipeline_mode<synchronous>, transform_indices = @transform_22, window_bounds = array<i64: 32, 96>}, {pipeline_mode = #tpu.pipeline_mode<synchronous>, transform_indices = @transform_23, window_bounds = array<i64: 1, 96>}, {pipeline_mode = #tpu.pipeline_mode<synchronous>, transform_indices = @transform_24, window_bounds = array<i64: 32, 32>}, {pipeline_mode = #tpu.pipeline_mode<synchronous>, transform_indices = @transform_25, window_bounds = array<i64: 1, 32>}, {pipeline_mode = #tpu.pipeline_mode<synchronous>, transform_indices = @transform_26, window_bounds = array<i64: 32, 32>}, {pipeline_mode = #tpu.pipeline_mode<synchronous>, transform_indices = @transform_27, window_bounds = array<i64: 1, 32>}, {pipeline_mode = #tpu.pipeline_mode<synchronous>, transform_indices = @transform_28, window_bounds = array<i64: 32, 64>}, {pipeline_mode = #tpu.pipeline_mode<synchronous>, transform_indices = @transform_29, window_bounds = array<i64: 1, 64>}, {pipeline_mode = #tpu.pipeline_mode<synchronous>, transform_indices = @transform_30, window_bounds = array<i64: 32, 32>}, {pipeline_mode = #tpu.pipeline_mode<synchronous>, transform_indices = @transform_31, window_bounds = array<i64: 1, 32>}, {pipeline_mode = #tpu.pipeline_mode<synchronous>, transform_indices = @transform_32, window_bounds = array<i64: 32, 16>}, {pipeline_mode = #tpu.pipeline_mode<synchronous>, transform_indices = @transform_33, window_bounds = array<i64: 1, 16>}, {pipeline_mode = #tpu.pipeline_mode<synchronous>, transform_indices = @transform_34, window_bounds = array<i64: 16, 32>}, {pipeline_mode = #tpu.pipeline_mode<synchronous>, transform_indices = @transform_35, window_bounds = array<i64: 1, 32>}, {pipeline_mode = #tpu.pipeline_mode<synchronous>, transform_indices = @transform_36, window_bounds = array<i64: 1, 32>}, {pipeline_mode = #tpu.pipeline_mode<synchronous>, transform_indices = @transform_37, window_bounds = array<i64: 1, 32>}, {pipeline_mode = #tpu.pipeline_mode<synchronous>, transform_indices = @transform_38, window_bounds = array<i64: 1, 32>}, {pipeline_mode = #tpu.pipeline_mode<synchronous>, transform_indices = @transform_39, window_bounds = array<i64: 1, 32>}, {pipeline_mode = #tpu.pipeline_mode<synchronous>, transform_indices = @transform_40, window_bounds = array<i64: 1, 32>}, {pipeline_mode = #tpu.pipeline_mode<synchronous>, transform_indices = @transform_41, window_bounds = array<i64: 1, 32>}, {pipeline_mode = #tpu.pipeline_mode<synchronous>, transform_indices = @transform_42, window_bounds = array<i64: 1, 32>}, {pipeline_mode = #tpu.pipeline_mode<synchronous>, transform_indices = @transform_43, window_bounds = array<i64: 1, 32>}, {pipeline_mode = #tpu.pipeline_mode<synchronous>, transform_indices = @transform_44, window_bounds = array<i64: 32, 128>}, {pipeline_mode = #tpu.pipeline_mode<synchronous>, transform_indices = @transform_45, window_bounds = array<i64: 1, 128>}, {transform_indices = @transform_46, window_bounds = array<i64: 1, 8, 128>}]} {
    %c0 = arith.constant 0 : index
    %c0_0 = arith.constant 0 : index
    %c0_1 = arith.constant 0 : index
    %0 = vector.load %arg1[%c0, %c0_0, %c0_1] : memref<1x8x32xf32, #tpu.memory_space<vmem>>, vector<1x8x32xf32>
    %1 = vector.shape_cast %0 : vector<1x8x32xf32> to vector<8x32xf32>
    %c0_2 = arith.constant 0 : index
    %c0_3 = arith.constant 0 : index
    %c0_4 = arith.constant 0 : index
    %2 = vector.load %arg2[%c0_2, %c0_3, %c0_4] : memref<1x16x32xf32, #tpu.memory_space<vmem>>, vector<1x16x32xf32>
    %3 = vector.shape_cast %2 : vector<1x16x32xf32> to vector<16x32xf32>
    %4 = tpu.iota {dimensions = array<i32: 0>} : vector<8x8xi32>
    %5 = tpu.iota {dimensions = array<i32: 1>} : vector<8x8xi32>
    %6 = arith.cmpi sgt, %5, %4 : vector<8x8xi32>
    %c8_i32 = arith.constant 8 : i32
    %7 = vector.broadcast %c8_i32 : i32 to vector<8x8xi32>
    %8 = arith.cmpi sge, %5, %7 : vector<8x8xi32>
    %9 = arith.ori %6, %8 : vector<8x8xi1>
    %cst = arith.constant -1.000000e+30 : f32
    %cst_5 = arith.constant 0.000000e+00 : f32
    %10 = vector.broadcast %cst : f32 to vector<8x8xf32>
    %11 = vector.broadcast %cst_5 : f32 to vector<8x8xf32>
    %12 = arith.select %9, %10, %11 : vector<8x8xi1>, vector<8x8xf32>
    %13 = tpu.iota {dimensions = array<i32: 1>} : vector<1x16xi32>
    %c10_i32 = arith.constant 10 : i32
    %14 = vector.broadcast %c10_i32 : i32 to vector<1x16xi32>
    %15 = arith.cmpi sge, %13, %14 : vector<1x16xi32>
    %cst_6 = arith.constant -1.000000e+30 : f32
    %cst_7 = arith.constant 0.000000e+00 : f32
    %16 = vector.broadcast %cst_6 : f32 to vector<1x16xf32>
    %17 = vector.broadcast %cst_7 : f32 to vector<1x16xf32>
    %18 = arith.select %15, %16, %17 : vector<1x16xi1>, vector<1x16xf32>
    %19 = arith.truncf %1 : vector<8x32xf32> to vector<8x32xbf16>
    %c0_8 = arith.constant 0 : index
    %c0_9 = arith.constant 0 : index
    %20 = vector.load %arg3[%c0_8, %c0_9] : memref<32x96xbf16, #tpu.memory_space<vmem>>, vector<32x96xbf16>
    %cst_10 = arith.constant dense<0.000000e+00> : vector<8x96xf32>
    %21 = tpu.matmul %19, %20, %cst_10 {dimension_numbers = #tpu.dot_dimension_numbers<[1], [0], [0], [1], [0, 0, 1, 1], [], []>} : vector<8x32xbf16>, vector<32x96xbf16>, vector<8x96xf32> -> vector<8x96xf32>
    %c0_11 = arith.constant 0 : index
    %c0_12 = arith.constant 0 : index
    %22 = vector.load %arg4[%c0_11, %c0_12] : memref<1x96xf32, #tpu.memory_space<vmem>>, vector<1x96xf32>
    %23 = vector.broadcast %22 : vector<1x96xf32> to vector<8x96xf32>
    %24 = arith.addf %21, %23 : vector<8x96xf32>
    %25 = vector.extract_strided_slice %24 {offsets = [0, 0], sizes = [8, 32], strides = [1, 1]} : vector<8x96xf32> to vector<8x32xf32>
    %26 = vector.extract_strided_slice %24 {offsets = [0, 32], sizes = [8, 32], strides = [1, 1]} : vector<8x96xf32> to vector<8x32xf32>
    %27 = vector.extract_strided_slice %24 {offsets = [0, 64], sizes = [8, 32], strides = [1, 1]} : vector<8x96xf32> to vector<8x32xf32>
    %28 = arith.truncf %25 : vector<8x32xf32> to vector<8x32xbf16>
    %29 = arith.truncf %26 : vector<8x32xf32> to vector<8x32xbf16>
    %30 = arith.truncf %27 : vector<8x32xf32> to vector<8x32xbf16>
    %c0_13 = arith.constant 0 : index
    %c0_14 = arith.constant 0 : index
    %31 = vector.load %arg5[%c0_13, %c0_14] : memref<32x32xbf16, #tpu.memory_space<vmem>>, vector<32x32xbf16>
    %cst_15 = arith.constant 0.000000e+00 : f32
    %32 = vector.broadcast %cst_15 : f32 to vector<8x32xf32>
    %33 = vector.extract_strided_slice %28 {offsets = [0, 0], sizes = [8, 8], strides = [1, 1]} : vector<8x32xbf16> to vector<8x8xbf16>
    %34 = vector.extract_strided_slice %29 {offsets = [0, 0], sizes = [8, 8], strides = [1, 1]} : vector<8x32xbf16> to vector<8x8xbf16>
    %cst_16 = arith.constant dense<0.000000e+00> : vector<8x8xf32>
    %35 = tpu.matmul %33, %34, %cst_16 {dimension_numbers = #tpu.dot_dimension_numbers<[1], [1], [0], [0], [0, 0, 1, 0], [], []>} : vector<8x8xbf16>, vector<8x8xbf16>, vector<8x8xf32> -> vector<8x8xf32>
    %cst_17 = arith.constant 0.353553385 : f32
    %36 = vector.broadcast %cst_17 : f32 to vector<8x8xf32>
    %37 = arith.mulf %35, %36 : vector<8x8xf32>
    %38 = arith.addf %37, %12 : vector<8x8xf32>
    %cst_18 = arith.constant dense<0xFF800000> : vector<8xf32>
    %39 = vector.multi_reduction <maximumf>, %38, %cst_18 [1] : vector<8x8xf32> to vector<8xf32>
    %40 = vector.shape_cast %39 : vector<8xf32> to vector<8x1xf32>
    %41 = vector.broadcast %40 : vector<8x1xf32> to vector<8x8xf32>
    %42 = arith.subf %38, %41 : vector<8x8xf32>
    %43 = math.exp %42 : vector<8x8xf32>
    %cst_19 = arith.constant dense<0.000000e+00> : vector<8xf32>
    %44 = vector.multi_reduction <add>, %43, %cst_19 [1] : vector<8x8xf32> to vector<8xf32>
    %45 = vector.shape_cast %44 : vector<8xf32> to vector<8x1xf32>
    %46 = tpu.reciprocal %45 {approx = true} : vector<8x1xf32> -> vector<8x1xf32>
    %47 = vector.broadcast %46 : vector<8x1xf32> to vector<8x8xf32>
    %48 = arith.mulf %43, %47 : vector<8x8xf32>
    %49 = arith.truncf %48 : vector<8x8xf32> to vector<8x8xbf16>
    %50 = vector.extract_strided_slice %30 {offsets = [0, 0], sizes = [8, 8], strides = [1, 1]} : vector<8x32xbf16> to vector<8x8xbf16>
    %cst_20 = arith.constant dense<0.000000e+00> : vector<8x8xf32>
    %51 = tpu.matmul %49, %50, %cst_20 {dimension_numbers = #tpu.dot_dimension_numbers<[1], [0], [0], [1], [0, 0, 1, 1], [], []>} : vector<8x8xbf16>, vector<8x8xbf16>, vector<8x8xf32> -> vector<8x8xf32>
    %52 = arith.truncf %51 : vector<8x8xf32> to vector<8x8xbf16>
    %53 = vector.extract_strided_slice %31 {offsets = [0, 0], sizes = [8, 32], strides = [1, 1]} : vector<32x32xbf16> to vector<8x32xbf16>
    %cst_21 = arith.constant dense<0.000000e+00> : vector<8x32xf32>
    %54 = tpu.matmul %52, %53, %cst_21 {dimension_numbers = #tpu.dot_dimension_numbers<[1], [0], [0], [1], [0, 0, 1, 1], [], []>} : vector<8x8xbf16>, vector<8x32xbf16>, vector<8x32xf32> -> vector<8x32xf32>
    %55 = arith.addf %32, %54 : vector<8x32xf32>
    %56 = vector.extract_strided_slice %28 {offsets = [0, 8], sizes = [8, 8], strides = [1, 1]} : vector<8x32xbf16> to vector<8x8xbf16>
    %57 = vector.extract_strided_slice %29 {offsets = [0, 8], sizes = [8, 8], strides = [1, 1]} : vector<8x32xbf16> to vector<8x8xbf16>
    %cst_22 = arith.constant dense<0.000000e+00> : vector<8x8xf32>
    %58 = tpu.matmul %56, %57, %cst_22 {dimension_numbers = #tpu.dot_dimension_numbers<[1], [1], [0], [0], [0, 0, 1, 0], [], []>} : vector<8x8xbf16>, vector<8x8xbf16>, vector<8x8xf32> -> vector<8x8xf32>
    %cst_23 = arith.constant 0.353553385 : f32
    %59 = vector.broadcast %cst_23 : f32 to vector<8x8xf32>
    %60 = arith.mulf %58, %59 : vector<8x8xf32>
    %61 = arith.addf %60, %12 : vector<8x8xf32>
    %cst_24 = arith.constant dense<0xFF800000> : vector<8xf32>
    %62 = vector.multi_reduction <maximumf>, %61, %cst_24 [1] : vector<8x8xf32> to vector<8xf32>
    %63 = vector.shape_cast %62 : vector<8xf32> to vector<8x1xf32>
    %64 = vector.broadcast %63 : vector<8x1xf32> to vector<8x8xf32>
    %65 = arith.subf %61, %64 : vector<8x8xf32>
    %66 = math.exp %65 : vector<8x8xf32>
    %cst_25 = arith.constant dense<0.000000e+00> : vector<8xf32>
    %67 = vector.multi_reduction <add>, %66, %cst_25 [1] : vector<8x8xf32> to vector<8xf32>
    %68 = vector.shape_cast %67 : vector<8xf32> to vector<8x1xf32>
    %69 = tpu.reciprocal %68 {approx = true} : vector<8x1xf32> -> vector<8x1xf32>
    %70 = vector.broadcast %69 : vector<8x1xf32> to vector<8x8xf32>
    %71 = arith.mulf %66, %70 : vector<8x8xf32>
    %72 = arith.truncf %71 : vector<8x8xf32> to vector<8x8xbf16>
    %73 = vector.extract_strided_slice %30 {offsets = [0, 8], sizes = [8, 8], strides = [1, 1]} : vector<8x32xbf16> to vector<8x8xbf16>
    %cst_26 = arith.constant dense<0.000000e+00> : vector<8x8xf32>
    %74 = tpu.matmul %72, %73, %cst_26 {dimension_numbers = #tpu.dot_dimension_numbers<[1], [0], [0], [1], [0, 0, 1, 1], [], []>} : vector<8x8xbf16>, vector<8x8xbf16>, vector<8x8xf32> -> vector<8x8xf32>
    %75 = arith.truncf %74 : vector<8x8xf32> to vector<8x8xbf16>
    %76 = vector.extract_strided_slice %31 {offsets = [8, 0], sizes = [8, 32], strides = [1, 1]} : vector<32x32xbf16> to vector<8x32xbf16>
    %cst_27 = arith.constant dense<0.000000e+00> : vector<8x32xf32>
    %77 = tpu.matmul %75, %76, %cst_27 {dimension_numbers = #tpu.dot_dimension_numbers<[1], [0], [0], [1], [0, 0, 1, 1], [], []>} : vector<8x8xbf16>, vector<8x32xbf16>, vector<8x32xf32> -> vector<8x32xf32>
    %78 = arith.addf %55, %77 : vector<8x32xf32>
    %79 = vector.extract_strided_slice %28 {offsets = [0, 16], sizes = [8, 8], strides = [1, 1]} : vector<8x32xbf16> to vector<8x8xbf16>
    %80 = vector.extract_strided_slice %29 {offsets = [0, 16], sizes = [8, 8], strides = [1, 1]} : vector<8x32xbf16> to vector<8x8xbf16>
    %cst_28 = arith.constant dense<0.000000e+00> : vector<8x8xf32>
    %81 = tpu.matmul %79, %80, %cst_28 {dimension_numbers = #tpu.dot_dimension_numbers<[1], [1], [0], [0], [0, 0, 1, 0], [], []>} : vector<8x8xbf16>, vector<8x8xbf16>, vector<8x8xf32> -> vector<8x8xf32>
    %cst_29 = arith.constant 0.353553385 : f32
    %82 = vector.broadcast %cst_29 : f32 to vector<8x8xf32>
    %83 = arith.mulf %81, %82 : vector<8x8xf32>
    %84 = arith.addf %83, %12 : vector<8x8xf32>
    %cst_30 = arith.constant dense<0xFF800000> : vector<8xf32>
    %85 = vector.multi_reduction <maximumf>, %84, %cst_30 [1] : vector<8x8xf32> to vector<8xf32>
    %86 = vector.shape_cast %85 : vector<8xf32> to vector<8x1xf32>
    %87 = vector.broadcast %86 : vector<8x1xf32> to vector<8x8xf32>
    %88 = arith.subf %84, %87 : vector<8x8xf32>
    %89 = math.exp %88 : vector<8x8xf32>
    %cst_31 = arith.constant dense<0.000000e+00> : vector<8xf32>
    %90 = vector.multi_reduction <add>, %89, %cst_31 [1] : vector<8x8xf32> to vector<8xf32>
    %91 = vector.shape_cast %90 : vector<8xf32> to vector<8x1xf32>
    %92 = tpu.reciprocal %91 {approx = true} : vector<8x1xf32> -> vector<8x1xf32>
    %93 = vector.broadcast %92 : vector<8x1xf32> to vector<8x8xf32>
    %94 = arith.mulf %89, %93 : vector<8x8xf32>
    %95 = arith.truncf %94 : vector<8x8xf32> to vector<8x8xbf16>
    %96 = vector.extract_strided_slice %30 {offsets = [0, 16], sizes = [8, 8], strides = [1, 1]} : vector<8x32xbf16> to vector<8x8xbf16>
    %cst_32 = arith.constant dense<0.000000e+00> : vector<8x8xf32>
    %97 = tpu.matmul %95, %96, %cst_32 {dimension_numbers = #tpu.dot_dimension_numbers<[1], [0], [0], [1], [0, 0, 1, 1], [], []>} : vector<8x8xbf16>, vector<8x8xbf16>, vector<8x8xf32> -> vector<8x8xf32>
    %98 = arith.truncf %97 : vector<8x8xf32> to vector<8x8xbf16>
    %99 = vector.extract_strided_slice %31 {offsets = [16, 0], sizes = [8, 32], strides = [1, 1]} : vector<32x32xbf16> to vector<8x32xbf16>
    %cst_33 = arith.constant dense<0.000000e+00> : vector<8x32xf32>
    %100 = tpu.matmul %98, %99, %cst_33 {dimension_numbers = #tpu.dot_dimension_numbers<[1], [0], [0], [1], [0, 0, 1, 1], [], []>} : vector<8x8xbf16>, vector<8x32xbf16>, vector<8x32xf32> -> vector<8x32xf32>
    %101 = arith.addf %78, %100 : vector<8x32xf32>
    %102 = vector.extract_strided_slice %28 {offsets = [0, 24], sizes = [8, 8], strides = [1, 1]} : vector<8x32xbf16> to vector<8x8xbf16>
    %103 = vector.extract_strided_slice %29 {offsets = [0, 24], sizes = [8, 8], strides = [1, 1]} : vector<8x32xbf16> to vector<8x8xbf16>
    %cst_34 = arith.constant dense<0.000000e+00> : vector<8x8xf32>
    %104 = tpu.matmul %102, %103, %cst_34 {dimension_numbers = #tpu.dot_dimension_numbers<[1], [1], [0], [0], [0, 0, 1, 0], [], []>} : vector<8x8xbf16>, vector<8x8xbf16>, vector<8x8xf32> -> vector<8x8xf32>
    %cst_35 = arith.constant 0.353553385 : f32
    %105 = vector.broadcast %cst_35 : f32 to vector<8x8xf32>
    %106 = arith.mulf %104, %105 : vector<8x8xf32>
    %107 = arith.addf %106, %12 : vector<8x8xf32>
    %cst_36 = arith.constant dense<0xFF800000> : vector<8xf32>
    %108 = vector.multi_reduction <maximumf>, %107, %cst_36 [1] : vector<8x8xf32> to vector<8xf32>
    %109 = vector.shape_cast %108 : vector<8xf32> to vector<8x1xf32>
    %110 = vector.broadcast %109 : vector<8x1xf32> to vector<8x8xf32>
    %111 = arith.subf %107, %110 : vector<8x8xf32>
    %112 = math.exp %111 : vector<8x8xf32>
    %cst_37 = arith.constant dense<0.000000e+00> : vector<8xf32>
    %113 = vector.multi_reduction <add>, %112, %cst_37 [1] : vector<8x8xf32> to vector<8xf32>
    %114 = vector.shape_cast %113 : vector<8xf32> to vector<8x1xf32>
    %115 = tpu.reciprocal %114 {approx = true} : vector<8x1xf32> -> vector<8x1xf32>
    %116 = vector.broadcast %115 : vector<8x1xf32> to vector<8x8xf32>
    %117 = arith.mulf %112, %116 : vector<8x8xf32>
    %118 = arith.truncf %117 : vector<8x8xf32> to vector<8x8xbf16>
    %119 = vector.extract_strided_slice %30 {offsets = [0, 24], sizes = [8, 8], strides = [1, 1]} : vector<8x32xbf16> to vector<8x8xbf16>
    %cst_38 = arith.constant dense<0.000000e+00> : vector<8x8xf32>
    %120 = tpu.matmul %118, %119, %cst_38 {dimension_numbers = #tpu.dot_dimension_numbers<[1], [0], [0], [1], [0, 0, 1, 1], [], []>} : vector<8x8xbf16>, vector<8x8xbf16>, vector<8x8xf32> -> vector<8x8xf32>
    %121 = arith.truncf %120 : vector<8x8xf32> to vector<8x8xbf16>
    %122 = vector.extract_strided_slice %31 {offsets = [24, 0], sizes = [8, 32], strides = [1, 1]} : vector<32x32xbf16> to vector<8x32xbf16>
    %cst_39 = arith.constant dense<0.000000e+00> : vector<8x32xf32>
    %123 = tpu.matmul %121, %122, %cst_39 {dimension_numbers = #tpu.dot_dimension_numbers<[1], [0], [0], [1], [0, 0, 1, 1], [], []>} : vector<8x8xbf16>, vector<8x32xbf16>, vector<8x32xf32> -> vector<8x32xf32>
    %124 = arith.addf %101, %123 : vector<8x32xf32>
    %c0_40 = arith.constant 0 : index
    %c0_41 = arith.constant 0 : index
    %125 = vector.load %arg6[%c0_40, %c0_41] : memref<1x32xf32, #tpu.memory_space<vmem>>, vector<1x32xf32>
    %126 = vector.broadcast %125 : vector<1x32xf32> to vector<8x32xf32>
    %127 = arith.addf %124, %126 : vector<8x32xf32>
    %128 = arith.addf %1, %127 : vector<8x32xf32>
    %c0_42 = arith.constant 0 : index
    %c0_43 = arith.constant 0 : index
    %129 = vector.load %arg17[%c0_42, %c0_43] : memref<1x32xf32, #tpu.memory_space<vmem>>, vector<1x32xf32>
    %c0_44 = arith.constant 0 : index
    %c0_45 = arith.constant 0 : index
    %130 = vector.load %arg18[%c0_44, %c0_45] : memref<1x32xf32, #tpu.memory_space<vmem>>, vector<1x32xf32>
    %cst_46 = arith.constant dense<0.000000e+00> : vector<8xf32>
    %131 = vector.multi_reduction <add>, %128, %cst_46 [1] : vector<8x32xf32> to vector<8xf32>
    %132 = vector.shape_cast %131 : vector<8xf32> to vector<8x1xf32>
    %cst_47 = arith.constant 3.200000e+01 : f32
    %133 = vector.broadcast %cst_47 : f32 to vector<8x1xf32>
    %134 = arith.divf %132, %133 : vector<8x1xf32>
    %135 = vector.broadcast %134 : vector<8x1xf32> to vector<8x32xf32>
    %136 = arith.subf %128, %135 : vector<8x32xf32>
    %137 = arith.mulf %136, %136 : vector<8x32xf32>
    %cst_48 = arith.constant dense<0.000000e+00> : vector<8xf32>
    %138 = vector.multi_reduction <add>, %137, %cst_48 [1] : vector<8x32xf32> to vector<8xf32>
    %139 = vector.shape_cast %138 : vector<8xf32> to vector<8x1xf32>
    %cst_49 = arith.constant 3.200000e+01 : f32
    %140 = vector.broadcast %cst_49 : f32 to vector<8x1xf32>
    %141 = arith.divf %139, %140 : vector<8x1xf32>
    %142 = vector.broadcast %134 : vector<8x1xf32> to vector<8x32xf32>
    %143 = arith.subf %128, %142 : vector<8x32xf32>
    %cst_50 = arith.constant 9.99999974E-6 : f32
    %144 = vector.broadcast %cst_50 : f32 to vector<8x1xf32>
    %145 = arith.addf %141, %144 : vector<8x1xf32>
    %146 = math.rsqrt %145 : vector<8x1xf32>
    %147 = vector.broadcast %146 : vector<8x1xf32> to vector<8x32xf32>
    %148 = arith.mulf %143, %147 : vector<8x32xf32>
    %149 = vector.broadcast %129 : vector<1x32xf32> to vector<8x32xf32>
    %150 = arith.mulf %148, %149 : vector<8x32xf32>
    %151 = vector.broadcast %130 : vector<1x32xf32> to vector<8x32xf32>
    %152 = arith.addf %150, %151 : vector<8x32xf32>
    %153 = arith.truncf %152 : vector<8x32xf32> to vector<8x32xbf16>
    %c0_51 = arith.constant 0 : index
    %c0_52 = arith.constant 0 : index
    %154 = vector.load %arg7[%c0_51, %c0_52] : memref<32x32xbf16, #tpu.memory_space<vmem>>, vector<32x32xbf16>
    %cst_53 = arith.constant dense<0.000000e+00> : vector<8x32xf32>
    %155 = tpu.matmul %153, %154, %cst_53 {dimension_numbers = #tpu.dot_dimension_numbers<[1], [0], [0], [1], [0, 0, 1, 1], [], []>} : vector<8x32xbf16>, vector<32x32xbf16>, vector<8x32xf32> -> vector<8x32xf32>
    %c0_54 = arith.constant 0 : index
    %c0_55 = arith.constant 0 : index
    %156 = vector.load %arg8[%c0_54, %c0_55] : memref<1x32xf32, #tpu.memory_space<vmem>>, vector<1x32xf32>
    %157 = vector.broadcast %156 : vector<1x32xf32> to vector<8x32xf32>
    %158 = arith.addf %155, %157 : vector<8x32xf32>
    %159 = arith.truncf %3 : vector<16x32xf32> to vector<16x32xbf16>
    %c0_56 = arith.constant 0 : index
    %c0_57 = arith.constant 0 : index
    %160 = vector.load %arg9[%c0_56, %c0_57] : memref<32x64xbf16, #tpu.memory_space<vmem>>, vector<32x64xbf16>
    %cst_58 = arith.constant dense<0.000000e+00> : vector<16x64xf32>
    %161 = tpu.matmul %159, %160, %cst_58 {dimension_numbers = #tpu.dot_dimension_numbers<[1], [0], [0], [1], [0, 0, 1, 1], [], []>} : vector<16x32xbf16>, vector<32x64xbf16>, vector<16x64xf32> -> vector<16x64xf32>
    %c0_59 = arith.constant 0 : index
    %c0_60 = arith.constant 0 : index
    %162 = vector.load %arg10[%c0_59, %c0_60] : memref<1x64xf32, #tpu.memory_space<vmem>>, vector<1x64xf32>
    %163 = vector.broadcast %162 : vector<1x64xf32> to vector<16x64xf32>
    %164 = arith.addf %161, %163 : vector<16x64xf32>
    %165 = vector.extract_strided_slice %164 {offsets = [0, 0], sizes = [16, 32], strides = [1, 1]} : vector<16x64xf32> to vector<16x32xf32>
    %166 = vector.extract_strided_slice %164 {offsets = [0, 32], sizes = [16, 32], strides = [1, 1]} : vector<16x64xf32> to vector<16x32xf32>
    %167 = arith.truncf %158 : vector<8x32xf32> to vector<8x32xbf16>
    %168 = arith.truncf %165 : vector<16x32xf32> to vector<16x32xbf16>
    %169 = arith.truncf %166 : vector<16x32xf32> to vector<16x32xbf16>
    %c0_61 = arith.constant 0 : index
    %c0_62 = arith.constant 0 : index
    %170 = vector.load %arg11[%c0_61, %c0_62] : memref<32x32xbf16, #tpu.memory_space<vmem>>, vector<32x32xbf16>
    %cst_63 = arith.constant 0.000000e+00 : f32
    %171 = vector.broadcast %cst_63 : f32 to vector<8x32xf32>
    %172 = vector.extract_strided_slice %167 {offsets = [0, 0], sizes = [8, 8], strides = [1, 1]} : vector<8x32xbf16> to vector<8x8xbf16>
    %173 = vector.extract_strided_slice %168 {offsets = [0, 0], sizes = [16, 8], strides = [1, 1]} : vector<16x32xbf16> to vector<16x8xbf16>
    %cst_64 = arith.constant dense<0.000000e+00> : vector<8x16xf32>
    %174 = tpu.matmul %172, %173, %cst_64 {dimension_numbers = #tpu.dot_dimension_numbers<[1], [1], [0], [0], [0, 0, 1, 0], [], []>} : vector<8x8xbf16>, vector<16x8xbf16>, vector<8x16xf32> -> vector<8x16xf32>
    %cst_65 = arith.constant 0.353553385 : f32
    %175 = vector.broadcast %cst_65 : f32 to vector<8x16xf32>
    %176 = arith.mulf %174, %175 : vector<8x16xf32>
    %177 = vector.broadcast %18 : vector<1x16xf32> to vector<8x16xf32>
    %178 = arith.addf %176, %177 : vector<8x16xf32>
    %cst_66 = arith.constant dense<0xFF800000> : vector<8xf32>
    %179 = vector.multi_reduction <maximumf>, %178, %cst_66 [1] : vector<8x16xf32> to vector<8xf32>
    %180 = vector.shape_cast %179 : vector<8xf32> to vector<8x1xf32>
    %181 = vector.broadcast %180 : vector<8x1xf32> to vector<8x16xf32>
    %182 = arith.subf %178, %181 : vector<8x16xf32>
    %183 = math.exp %182 : vector<8x16xf32>
    %cst_67 = arith.constant dense<0.000000e+00> : vector<8xf32>
    %184 = vector.multi_reduction <add>, %183, %cst_67 [1] : vector<8x16xf32> to vector<8xf32>
    %185 = vector.shape_cast %184 : vector<8xf32> to vector<8x1xf32>
    %186 = tpu.reciprocal %185 {approx = true} : vector<8x1xf32> -> vector<8x1xf32>
    %187 = vector.broadcast %186 : vector<8x1xf32> to vector<8x16xf32>
    %188 = arith.mulf %183, %187 : vector<8x16xf32>
    %189 = arith.truncf %188 : vector<8x16xf32> to vector<8x16xbf16>
    %190 = vector.extract_strided_slice %169 {offsets = [0, 0], sizes = [16, 8], strides = [1, 1]} : vector<16x32xbf16> to vector<16x8xbf16>
    %cst_68 = arith.constant dense<0.000000e+00> : vector<8x8xf32>
    %191 = tpu.matmul %189, %190, %cst_68 {dimension_numbers = #tpu.dot_dimension_numbers<[1], [0], [0], [1], [0, 0, 1, 1], [], []>} : vector<8x16xbf16>, vector<16x8xbf16>, vector<8x8xf32> -> vector<8x8xf32>
    %192 = arith.truncf %191 : vector<8x8xf32> to vector<8x8xbf16>
    %193 = vector.extract_strided_slice %170 {offsets = [0, 0], sizes = [8, 32], strides = [1, 1]} : vector<32x32xbf16> to vector<8x32xbf16>
    %cst_69 = arith.constant dense<0.000000e+00> : vector<8x32xf32>
    %194 = tpu.matmul %192, %193, %cst_69 {dimension_numbers = #tpu.dot_dimension_numbers<[1], [0], [0], [1], [0, 0, 1, 1], [], []>} : vector<8x8xbf16>, vector<8x32xbf16>, vector<8x32xf32> -> vector<8x32xf32>
    %195 = arith.addf %171, %194 : vector<8x32xf32>
    %196 = vector.extract_strided_slice %167 {offsets = [0, 8], sizes = [8, 8], strides = [1, 1]} : vector<8x32xbf16> to vector<8x8xbf16>
    %197 = vector.extract_strided_slice %168 {offsets = [0, 8], sizes = [16, 8], strides = [1, 1]} : vector<16x32xbf16> to vector<16x8xbf16>
    %cst_70 = arith.constant dense<0.000000e+00> : vector<8x16xf32>
    %198 = tpu.matmul %196, %197, %cst_70 {dimension_numbers = #tpu.dot_dimension_numbers<[1], [1], [0], [0], [0, 0, 1, 0], [], []>} : vector<8x8xbf16>, vector<16x8xbf16>, vector<8x16xf32> -> vector<8x16xf32>
    %cst_71 = arith.constant 0.353553385 : f32
    %199 = vector.broadcast %cst_71 : f32 to vector<8x16xf32>
    %200 = arith.mulf %198, %199 : vector<8x16xf32>
    %201 = vector.broadcast %18 : vector<1x16xf32> to vector<8x16xf32>
    %202 = arith.addf %200, %201 : vector<8x16xf32>
    %cst_72 = arith.constant dense<0xFF800000> : vector<8xf32>
    %203 = vector.multi_reduction <maximumf>, %202, %cst_72 [1] : vector<8x16xf32> to vector<8xf32>
    %204 = vector.shape_cast %203 : vector<8xf32> to vector<8x1xf32>
    %205 = vector.broadcast %204 : vector<8x1xf32> to vector<8x16xf32>
    %206 = arith.subf %202, %205 : vector<8x16xf32>
    %207 = math.exp %206 : vector<8x16xf32>
    %cst_73 = arith.constant dense<0.000000e+00> : vector<8xf32>
    %208 = vector.multi_reduction <add>, %207, %cst_73 [1] : vector<8x16xf32> to vector<8xf32>
    %209 = vector.shape_cast %208 : vector<8xf32> to vector<8x1xf32>
    %210 = tpu.reciprocal %209 {approx = true} : vector<8x1xf32> -> vector<8x1xf32>
    %211 = vector.broadcast %210 : vector<8x1xf32> to vector<8x16xf32>
    %212 = arith.mulf %207, %211 : vector<8x16xf32>
    %213 = arith.truncf %212 : vector<8x16xf32> to vector<8x16xbf16>
    %214 = vector.extract_strided_slice %169 {offsets = [0, 8], sizes = [16, 8], strides = [1, 1]} : vector<16x32xbf16> to vector<16x8xbf16>
    %cst_74 = arith.constant dense<0.000000e+00> : vector<8x8xf32>
    %215 = tpu.matmul %213, %214, %cst_74 {dimension_numbers = #tpu.dot_dimension_numbers<[1], [0], [0], [1], [0, 0, 1, 1], [], []>} : vector<8x16xbf16>, vector<16x8xbf16>, vector<8x8xf32> -> vector<8x8xf32>
    %216 = arith.truncf %215 : vector<8x8xf32> to vector<8x8xbf16>
    %217 = vector.extract_strided_slice %170 {offsets = [8, 0], sizes = [8, 32], strides = [1, 1]} : vector<32x32xbf16> to vector<8x32xbf16>
    %cst_75 = arith.constant dense<0.000000e+00> : vector<8x32xf32>
    %218 = tpu.matmul %216, %217, %cst_75 {dimension_numbers = #tpu.dot_dimension_numbers<[1], [0], [0], [1], [0, 0, 1, 1], [], []>} : vector<8x8xbf16>, vector<8x32xbf16>, vector<8x32xf32> -> vector<8x32xf32>
    %219 = arith.addf %195, %218 : vector<8x32xf32>
    %220 = vector.extract_strided_slice %167 {offsets = [0, 16], sizes = [8, 8], strides = [1, 1]} : vector<8x32xbf16> to vector<8x8xbf16>
    %221 = vector.extract_strided_slice %168 {offsets = [0, 16], sizes = [16, 8], strides = [1, 1]} : vector<16x32xbf16> to vector<16x8xbf16>
    %cst_76 = arith.constant dense<0.000000e+00> : vector<8x16xf32>
    %222 = tpu.matmul %220, %221, %cst_76 {dimension_numbers = #tpu.dot_dimension_numbers<[1], [1], [0], [0], [0, 0, 1, 0], [], []>} : vector<8x8xbf16>, vector<16x8xbf16>, vector<8x16xf32> -> vector<8x16xf32>
    %cst_77 = arith.constant 0.353553385 : f32
    %223 = vector.broadcast %cst_77 : f32 to vector<8x16xf32>
    %224 = arith.mulf %222, %223 : vector<8x16xf32>
    %225 = vector.broadcast %18 : vector<1x16xf32> to vector<8x16xf32>
    %226 = arith.addf %224, %225 : vector<8x16xf32>
    %cst_78 = arith.constant dense<0xFF800000> : vector<8xf32>
    %227 = vector.multi_reduction <maximumf>, %226, %cst_78 [1] : vector<8x16xf32> to vector<8xf32>
    %228 = vector.shape_cast %227 : vector<8xf32> to vector<8x1xf32>
    %229 = vector.broadcast %228 : vector<8x1xf32> to vector<8x16xf32>
    %230 = arith.subf %226, %229 : vector<8x16xf32>
    %231 = math.exp %230 : vector<8x16xf32>
    %cst_79 = arith.constant dense<0.000000e+00> : vector<8xf32>
    %232 = vector.multi_reduction <add>, %231, %cst_79 [1] : vector<8x16xf32> to vector<8xf32>
    %233 = vector.shape_cast %232 : vector<8xf32> to vector<8x1xf32>
    %234 = tpu.reciprocal %233 {approx = true} : vector<8x1xf32> -> vector<8x1xf32>
    %235 = vector.broadcast %234 : vector<8x1xf32> to vector<8x16xf32>
    %236 = arith.mulf %231, %235 : vector<8x16xf32>
    %237 = arith.truncf %236 : vector<8x16xf32> to vector<8x16xbf16>
    %238 = vector.extract_strided_slice %169 {offsets = [0, 16], sizes = [16, 8], strides = [1, 1]} : vector<16x32xbf16> to vector<16x8xbf16>
    %cst_80 = arith.constant dense<0.000000e+00> : vector<8x8xf32>
    %239 = tpu.matmul %237, %238, %cst_80 {dimension_numbers = #tpu.dot_dimension_numbers<[1], [0], [0], [1], [0, 0, 1, 1], [], []>} : vector<8x16xbf16>, vector<16x8xbf16>, vector<8x8xf32> -> vector<8x8xf32>
    %240 = arith.truncf %239 : vector<8x8xf32> to vector<8x8xbf16>
    %241 = vector.extract_strided_slice %170 {offsets = [16, 0], sizes = [8, 32], strides = [1, 1]} : vector<32x32xbf16> to vector<8x32xbf16>
    %cst_81 = arith.constant dense<0.000000e+00> : vector<8x32xf32>
    %242 = tpu.matmul %240, %241, %cst_81 {dimension_numbers = #tpu.dot_dimension_numbers<[1], [0], [0], [1], [0, 0, 1, 1], [], []>} : vector<8x8xbf16>, vector<8x32xbf16>, vector<8x32xf32> -> vector<8x32xf32>
    %243 = arith.addf %219, %242 : vector<8x32xf32>
    %244 = vector.extract_strided_slice %167 {offsets = [0, 24], sizes = [8, 8], strides = [1, 1]} : vector<8x32xbf16> to vector<8x8xbf16>
    %245 = vector.extract_strided_slice %168 {offsets = [0, 24], sizes = [16, 8], strides = [1, 1]} : vector<16x32xbf16> to vector<16x8xbf16>
    %cst_82 = arith.constant dense<0.000000e+00> : vector<8x16xf32>
    %246 = tpu.matmul %244, %245, %cst_82 {dimension_numbers = #tpu.dot_dimension_numbers<[1], [1], [0], [0], [0, 0, 1, 0], [], []>} : vector<8x8xbf16>, vector<16x8xbf16>, vector<8x16xf32> -> vector<8x16xf32>
    %cst_83 = arith.constant 0.353553385 : f32
    %247 = vector.broadcast %cst_83 : f32 to vector<8x16xf32>
    %248 = arith.mulf %246, %247 : vector<8x16xf32>
    %249 = vector.broadcast %18 : vector<1x16xf32> to vector<8x16xf32>
    %250 = arith.addf %248, %249 : vector<8x16xf32>
    %cst_84 = arith.constant dense<0xFF800000> : vector<8xf32>
    %251 = vector.multi_reduction <maximumf>, %250, %cst_84 [1] : vector<8x16xf32> to vector<8xf32>
    %252 = vector.shape_cast %251 : vector<8xf32> to vector<8x1xf32>
    %253 = vector.broadcast %252 : vector<8x1xf32> to vector<8x16xf32>
    %254 = arith.subf %250, %253 : vector<8x16xf32>
    %255 = math.exp %254 : vector<8x16xf32>
    %cst_85 = arith.constant dense<0.000000e+00> : vector<8xf32>
    %256 = vector.multi_reduction <add>, %255, %cst_85 [1] : vector<8x16xf32> to vector<8xf32>
    %257 = vector.shape_cast %256 : vector<8xf32> to vector<8x1xf32>
    %258 = tpu.reciprocal %257 {approx = true} : vector<8x1xf32> -> vector<8x1xf32>
    %259 = vector.broadcast %258 : vector<8x1xf32> to vector<8x16xf32>
    %260 = arith.mulf %255, %259 : vector<8x16xf32>
    %261 = arith.truncf %260 : vector<8x16xf32> to vector<8x16xbf16>
    %262 = vector.extract_strided_slice %169 {offsets = [0, 24], sizes = [16, 8], strides = [1, 1]} : vector<16x32xbf16> to vector<16x8xbf16>
    %cst_86 = arith.constant dense<0.000000e+00> : vector<8x8xf32>
    %263 = tpu.matmul %261, %262, %cst_86 {dimension_numbers = #tpu.dot_dimension_numbers<[1], [0], [0], [1], [0, 0, 1, 1], [], []>} : vector<8x16xbf16>, vector<16x8xbf16>, vector<8x8xf32> -> vector<8x8xf32>
    %264 = arith.truncf %263 : vector<8x8xf32> to vector<8x8xbf16>
    %265 = vector.extract_strided_slice %170 {offsets = [24, 0], sizes = [8, 32], strides = [1, 1]} : vector<32x32xbf16> to vector<8x32xbf16>
    %cst_87 = arith.constant dense<0.000000e+00> : vector<8x32xf32>
    %266 = tpu.matmul %264, %265, %cst_87 {dimension_numbers = #tpu.dot_dimension_numbers<[1], [0], [0], [1], [0, 0, 1, 1], [], []>} : vector<8x8xbf16>, vector<8x32xbf16>, vector<8x32xf32> -> vector<8x32xf32>
    %267 = arith.addf %243, %266 : vector<8x32xf32>
    %c0_88 = arith.constant 0 : index
    %c0_89 = arith.constant 0 : index
    %268 = vector.load %arg12[%c0_88, %c0_89] : memref<1x32xf32, #tpu.memory_space<vmem>>, vector<1x32xf32>
    %269 = vector.broadcast %268 : vector<1x32xf32> to vector<8x32xf32>
    %270 = arith.addf %267, %269 : vector<8x32xf32>
    %271 = arith.addf %152, %270 : vector<8x32xf32>
    %c0_90 = arith.constant 0 : index
    %c0_91 = arith.constant 0 : index
    %272 = vector.load %arg19[%c0_90, %c0_91] : memref<1x32xf32, #tpu.memory_space<vmem>>, vector<1x32xf32>
    %c0_92 = arith.constant 0 : index
    %c0_93 = arith.constant 0 : index
    %273 = vector.load %arg20[%c0_92, %c0_93] : memref<1x32xf32, #tpu.memory_space<vmem>>, vector<1x32xf32>
    %cst_94 = arith.constant dense<0.000000e+00> : vector<8xf32>
    %274 = vector.multi_reduction <add>, %271, %cst_94 [1] : vector<8x32xf32> to vector<8xf32>
    %275 = vector.shape_cast %274 : vector<8xf32> to vector<8x1xf32>
    %cst_95 = arith.constant 3.200000e+01 : f32
    %276 = vector.broadcast %cst_95 : f32 to vector<8x1xf32>
    %277 = arith.divf %275, %276 : vector<8x1xf32>
    %278 = vector.broadcast %277 : vector<8x1xf32> to vector<8x32xf32>
    %279 = arith.subf %271, %278 : vector<8x32xf32>
    %280 = arith.mulf %279, %279 : vector<8x32xf32>
    %cst_96 = arith.constant dense<0.000000e+00> : vector<8xf32>
    %281 = vector.multi_reduction <add>, %280, %cst_96 [1] : vector<8x32xf32> to vector<8xf32>
    %282 = vector.shape_cast %281 : vector<8xf32> to vector<8x1xf32>
    %cst_97 = arith.constant 3.200000e+01 : f32
    %283 = vector.broadcast %cst_97 : f32 to vector<8x1xf32>
    %284 = arith.divf %282, %283 : vector<8x1xf32>
    %285 = vector.broadcast %277 : vector<8x1xf32> to vector<8x32xf32>
    %286 = arith.subf %271, %285 : vector<8x32xf32>
    %cst_98 = arith.constant 9.99999974E-6 : f32
    %287 = vector.broadcast %cst_98 : f32 to vector<8x1xf32>
    %288 = arith.addf %284, %287 : vector<8x1xf32>
    %289 = math.rsqrt %288 : vector<8x1xf32>
    %290 = vector.broadcast %289 : vector<8x1xf32> to vector<8x32xf32>
    %291 = arith.mulf %286, %290 : vector<8x32xf32>
    %292 = vector.broadcast %272 : vector<1x32xf32> to vector<8x32xf32>
    %293 = arith.mulf %291, %292 : vector<8x32xf32>
    %294 = vector.broadcast %273 : vector<1x32xf32> to vector<8x32xf32>
    %295 = arith.addf %293, %294 : vector<8x32xf32>
    %296 = arith.truncf %295 : vector<8x32xf32> to vector<8x32xbf16>
    %c0_99 = arith.constant 0 : index
    %c0_100 = arith.constant 0 : index
    %297 = vector.load %arg13[%c0_99, %c0_100] : memref<32x16xbf16, #tpu.memory_space<vmem>>, vector<32x16xbf16>
    %cst_101 = arith.constant dense<0.000000e+00> : vector<8x16xf32>
    %298 = tpu.matmul %296, %297, %cst_101 {dimension_numbers = #tpu.dot_dimension_numbers<[1], [0], [0], [1], [0, 0, 1, 1], [], []>} : vector<8x32xbf16>, vector<32x16xbf16>, vector<8x16xf32> -> vector<8x16xf32>
    %c0_102 = arith.constant 0 : index
    %c0_103 = arith.constant 0 : index
    %299 = vector.load %arg14[%c0_102, %c0_103] : memref<1x16xf32, #tpu.memory_space<vmem>>, vector<1x16xf32>
    %300 = vector.broadcast %299 : vector<1x16xf32> to vector<8x16xf32>
    %301 = arith.addf %298, %300 : vector<8x16xf32>
    %cst_104 = arith.constant 0.000000e+00 : f32
    %302 = vector.broadcast %cst_104 : f32 to vector<8x16xf32>
    %303 = arith.maximumf %301, %302 : vector<8x16xf32>
    %304 = arith.truncf %303 : vector<8x16xf32> to vector<8x16xbf16>
    %c0_105 = arith.constant 0 : index
    %c0_106 = arith.constant 0 : index
    %305 = vector.load %arg15[%c0_105, %c0_106] : memref<16x32xbf16, #tpu.memory_space<vmem>>, vector<16x32xbf16>
    %cst_107 = arith.constant dense<0.000000e+00> : vector<8x32xf32>
    %306 = tpu.matmul %304, %305, %cst_107 {dimension_numbers = #tpu.dot_dimension_numbers<[1], [0], [0], [1], [0, 0, 1, 1], [], []>} : vector<8x16xbf16>, vector<16x32xbf16>, vector<8x32xf32> -> vector<8x32xf32>
    %c0_108 = arith.constant 0 : index
    %c0_109 = arith.constant 0 : index
    %307 = vector.load %arg16[%c0_108, %c0_109] : memref<1x32xf32, #tpu.memory_space<vmem>>, vector<1x32xf32>
    %308 = vector.broadcast %307 : vector<1x32xf32> to vector<8x32xf32>
    %309 = arith.addf %306, %308 : vector<8x32xf32>
    %310 = arith.addf %295, %309 : vector<8x32xf32>
    %c0_110 = arith.constant 0 : index
    %c0_111 = arith.constant 0 : index
    %311 = vector.load %arg21[%c0_110, %c0_111] : memref<1x32xf32, #tpu.memory_space<vmem>>, vector<1x32xf32>
    %c0_112 = arith.constant 0 : index
    %c0_113 = arith.constant 0 : index
    %312 = vector.load %arg22[%c0_112, %c0_113] : memref<1x32xf32, #tpu.memory_space<vmem>>, vector<1x32xf32>
    %cst_114 = arith.constant dense<0.000000e+00> : vector<8xf32>
    %313 = vector.multi_reduction <add>, %310, %cst_114 [1] : vector<8x32xf32> to vector<8xf32>
    %314 = vector.shape_cast %313 : vector<8xf32> to vector<8x1xf32>
    %cst_115 = arith.constant 3.200000e+01 : f32
    %315 = vector.broadcast %cst_115 : f32 to vector<8x1xf32>
    %316 = arith.divf %314, %315 : vector<8x1xf32>
    %317 = vector.broadcast %316 : vector<8x1xf32> to vector<8x32xf32>
    %318 = arith.subf %310, %317 : vector<8x32xf32>
    %319 = arith.mulf %318, %318 : vector<8x32xf32>
    %cst_116 = arith.constant dense<0.000000e+00> : vector<8xf32>
    %320 = vector.multi_reduction <add>, %319, %cst_116 [1] : vector<8x32xf32> to vector<8xf32>
    %321 = vector.shape_cast %320 : vector<8xf32> to vector<8x1xf32>
    %cst_117 = arith.constant 3.200000e+01 : f32
    %322 = vector.broadcast %cst_117 : f32 to vector<8x1xf32>
    %323 = arith.divf %321, %322 : vector<8x1xf32>
    %324 = vector.broadcast %316 : vector<8x1xf32> to vector<8x32xf32>
    %325 = arith.subf %310, %324 : vector<8x32xf32>
    %cst_118 = arith.constant 9.99999974E-6 : f32
    %326 = vector.broadcast %cst_118 : f32 to vector<8x1xf32>
    %327 = arith.addf %323, %326 : vector<8x1xf32>
    %328 = math.rsqrt %327 : vector<8x1xf32>
    %329 = vector.broadcast %328 : vector<8x1xf32> to vector<8x32xf32>
    %330 = arith.mulf %325, %329 : vector<8x32xf32>
    %331 = vector.broadcast %311 : vector<1x32xf32> to vector<8x32xf32>
    %332 = arith.mulf %330, %331 : vector<8x32xf32>
    %333 = vector.broadcast %312 : vector<1x32xf32> to vector<8x32xf32>
    %334 = arith.addf %332, %333 : vector<8x32xf32>
    %335 = arith.truncf %334 : vector<8x32xf32> to vector<8x32xbf16>
    %c0_119 = arith.constant 0 : index
    %c0_120 = arith.constant 0 : index
    %336 = vector.load %arg23[%c0_119, %c0_120] : memref<32x96xbf16, #tpu.memory_space<vmem>>, vector<32x96xbf16>
    %cst_121 = arith.constant dense<0.000000e+00> : vector<8x96xf32>
    %337 = tpu.matmul %335, %336, %cst_121 {dimension_numbers = #tpu.dot_dimension_numbers<[1], [0], [0], [1], [0, 0, 1, 1], [], []>} : vector<8x32xbf16>, vector<32x96xbf16>, vector<8x96xf32> -> vector<8x96xf32>
    %c0_122 = arith.constant 0 : index
    %c0_123 = arith.constant 0 : index
    %338 = vector.load %arg24[%c0_122, %c0_123] : memref<1x96xf32, #tpu.memory_space<vmem>>, vector<1x96xf32>
    %339 = vector.broadcast %338 : vector<1x96xf32> to vector<8x96xf32>
    %340 = arith.addf %337, %339 : vector<8x96xf32>
    %341 = vector.extract_strided_slice %340 {offsets = [0, 0], sizes = [8, 32], strides = [1, 1]} : vector<8x96xf32> to vector<8x32xf32>
    %342 = vector.extract_strided_slice %340 {offsets = [0, 32], sizes = [8, 32], strides = [1, 1]} : vector<8x96xf32> to vector<8x32xf32>
    %343 = vector.extract_strided_slice %340 {offsets = [0, 64], sizes = [8, 32], strides = [1, 1]} : vector<8x96xf32> to vector<8x32xf32>
    %344 = arith.truncf %341 : vector<8x32xf32> to vector<8x32xbf16>
    %345 = arith.truncf %342 : vector<8x32xf32> to vector<8x32xbf16>
    %346 = arith.truncf %343 : vector<8x32xf32> to vector<8x32xbf16>
    %c0_124 = arith.constant 0 : index
    %c0_125 = arith.constant 0 : index
    %347 = vector.load %arg25[%c0_124, %c0_125] : memref<32x32xbf16, #tpu.memory_space<vmem>>, vector<32x32xbf16>
    %cst_126 = arith.constant 0.000000e+00 : f32
    %348 = vector.broadcast %cst_126 : f32 to vector<8x32xf32>
    %349 = vector.extract_strided_slice %344 {offsets = [0, 0], sizes = [8, 8], strides = [1, 1]} : vector<8x32xbf16> to vector<8x8xbf16>
    %350 = vector.extract_strided_slice %345 {offsets = [0, 0], sizes = [8, 8], strides = [1, 1]} : vector<8x32xbf16> to vector<8x8xbf16>
    %cst_127 = arith.constant dense<0.000000e+00> : vector<8x8xf32>
    %351 = tpu.matmul %349, %350, %cst_127 {dimension_numbers = #tpu.dot_dimension_numbers<[1], [1], [0], [0], [0, 0, 1, 0], [], []>} : vector<8x8xbf16>, vector<8x8xbf16>, vector<8x8xf32> -> vector<8x8xf32>
    %cst_128 = arith.constant 0.353553385 : f32
    %352 = vector.broadcast %cst_128 : f32 to vector<8x8xf32>
    %353 = arith.mulf %351, %352 : vector<8x8xf32>
    %354 = arith.addf %353, %12 : vector<8x8xf32>
    %cst_129 = arith.constant dense<0xFF800000> : vector<8xf32>
    %355 = vector.multi_reduction <maximumf>, %354, %cst_129 [1] : vector<8x8xf32> to vector<8xf32>
    %356 = vector.shape_cast %355 : vector<8xf32> to vector<8x1xf32>
    %357 = vector.broadcast %356 : vector<8x1xf32> to vector<8x8xf32>
    %358 = arith.subf %354, %357 : vector<8x8xf32>
    %359 = math.exp %358 : vector<8x8xf32>
    %cst_130 = arith.constant dense<0.000000e+00> : vector<8xf32>
    %360 = vector.multi_reduction <add>, %359, %cst_130 [1] : vector<8x8xf32> to vector<8xf32>
    %361 = vector.shape_cast %360 : vector<8xf32> to vector<8x1xf32>
    %362 = tpu.reciprocal %361 {approx = true} : vector<8x1xf32> -> vector<8x1xf32>
    %363 = vector.broadcast %362 : vector<8x1xf32> to vector<8x8xf32>
    %364 = arith.mulf %359, %363 : vector<8x8xf32>
    %365 = arith.truncf %364 : vector<8x8xf32> to vector<8x8xbf16>
    %366 = vector.extract_strided_slice %346 {offsets = [0, 0], sizes = [8, 8], strides = [1, 1]} : vector<8x32xbf16> to vector<8x8xbf16>
    %cst_131 = arith.constant dense<0.000000e+00> : vector<8x8xf32>
    %367 = tpu.matmul %365, %366, %cst_131 {dimension_numbers = #tpu.dot_dimension_numbers<[1], [0], [0], [1], [0, 0, 1, 1], [], []>} : vector<8x8xbf16>, vector<8x8xbf16>, vector<8x8xf32> -> vector<8x8xf32>
    %368 = arith.truncf %367 : vector<8x8xf32> to vector<8x8xbf16>
    %369 = vector.extract_strided_slice %347 {offsets = [0, 0], sizes = [8, 32], strides = [1, 1]} : vector<32x32xbf16> to vector<8x32xbf16>
    %cst_132 = arith.constant dense<0.000000e+00> : vector<8x32xf32>
    %370 = tpu.matmul %368, %369, %cst_132 {dimension_numbers = #tpu.dot_dimension_numbers<[1], [0], [0], [1], [0, 0, 1, 1], [], []>} : vector<8x8xbf16>, vector<8x32xbf16>, vector<8x32xf32> -> vector<8x32xf32>
    %371 = arith.addf %348, %370 : vector<8x32xf32>
    %372 = vector.extract_strided_slice %344 {offsets = [0, 8], sizes = [8, 8], strides = [1, 1]} : vector<8x32xbf16> to vector<8x8xbf16>
    %373 = vector.extract_strided_slice %345 {offsets = [0, 8], sizes = [8, 8], strides = [1, 1]} : vector<8x32xbf16> to vector<8x8xbf16>
    %cst_133 = arith.constant dense<0.000000e+00> : vector<8x8xf32>
    %374 = tpu.matmul %372, %373, %cst_133 {dimension_numbers = #tpu.dot_dimension_numbers<[1], [1], [0], [0], [0, 0, 1, 0], [], []>} : vector<8x8xbf16>, vector<8x8xbf16>, vector<8x8xf32> -> vector<8x8xf32>
    %cst_134 = arith.constant 0.353553385 : f32
    %375 = vector.broadcast %cst_134 : f32 to vector<8x8xf32>
    %376 = arith.mulf %374, %375 : vector<8x8xf32>
    %377 = arith.addf %376, %12 : vector<8x8xf32>
    %cst_135 = arith.constant dense<0xFF800000> : vector<8xf32>
    %378 = vector.multi_reduction <maximumf>, %377, %cst_135 [1] : vector<8x8xf32> to vector<8xf32>
    %379 = vector.shape_cast %378 : vector<8xf32> to vector<8x1xf32>
    %380 = vector.broadcast %379 : vector<8x1xf32> to vector<8x8xf32>
    %381 = arith.subf %377, %380 : vector<8x8xf32>
    %382 = math.exp %381 : vector<8x8xf32>
    %cst_136 = arith.constant dense<0.000000e+00> : vector<8xf32>
    %383 = vector.multi_reduction <add>, %382, %cst_136 [1] : vector<8x8xf32> to vector<8xf32>
    %384 = vector.shape_cast %383 : vector<8xf32> to vector<8x1xf32>
    %385 = tpu.reciprocal %384 {approx = true} : vector<8x1xf32> -> vector<8x1xf32>
    %386 = vector.broadcast %385 : vector<8x1xf32> to vector<8x8xf32>
    %387 = arith.mulf %382, %386 : vector<8x8xf32>
    %388 = arith.truncf %387 : vector<8x8xf32> to vector<8x8xbf16>
    %389 = vector.extract_strided_slice %346 {offsets = [0, 8], sizes = [8, 8], strides = [1, 1]} : vector<8x32xbf16> to vector<8x8xbf16>
    %cst_137 = arith.constant dense<0.000000e+00> : vector<8x8xf32>
    %390 = tpu.matmul %388, %389, %cst_137 {dimension_numbers = #tpu.dot_dimension_numbers<[1], [0], [0], [1], [0, 0, 1, 1], [], []>} : vector<8x8xbf16>, vector<8x8xbf16>, vector<8x8xf32> -> vector<8x8xf32>
    %391 = arith.truncf %390 : vector<8x8xf32> to vector<8x8xbf16>
    %392 = vector.extract_strided_slice %347 {offsets = [8, 0], sizes = [8, 32], strides = [1, 1]} : vector<32x32xbf16> to vector<8x32xbf16>
    %cst_138 = arith.constant dense<0.000000e+00> : vector<8x32xf32>
    %393 = tpu.matmul %391, %392, %cst_138 {dimension_numbers = #tpu.dot_dimension_numbers<[1], [0], [0], [1], [0, 0, 1, 1], [], []>} : vector<8x8xbf16>, vector<8x32xbf16>, vector<8x32xf32> -> vector<8x32xf32>
    %394 = arith.addf %371, %393 : vector<8x32xf32>
    %395 = vector.extract_strided_slice %344 {offsets = [0, 16], sizes = [8, 8], strides = [1, 1]} : vector<8x32xbf16> to vector<8x8xbf16>
    %396 = vector.extract_strided_slice %345 {offsets = [0, 16], sizes = [8, 8], strides = [1, 1]} : vector<8x32xbf16> to vector<8x8xbf16>
    %cst_139 = arith.constant dense<0.000000e+00> : vector<8x8xf32>
    %397 = tpu.matmul %395, %396, %cst_139 {dimension_numbers = #tpu.dot_dimension_numbers<[1], [1], [0], [0], [0, 0, 1, 0], [], []>} : vector<8x8xbf16>, vector<8x8xbf16>, vector<8x8xf32> -> vector<8x8xf32>
    %cst_140 = arith.constant 0.353553385 : f32
    %398 = vector.broadcast %cst_140 : f32 to vector<8x8xf32>
    %399 = arith.mulf %397, %398 : vector<8x8xf32>
    %400 = arith.addf %399, %12 : vector<8x8xf32>
    %cst_141 = arith.constant dense<0xFF800000> : vector<8xf32>
    %401 = vector.multi_reduction <maximumf>, %400, %cst_141 [1] : vector<8x8xf32> to vector<8xf32>
    %402 = vector.shape_cast %401 : vector<8xf32> to vector<8x1xf32>
    %403 = vector.broadcast %402 : vector<8x1xf32> to vector<8x8xf32>
    %404 = arith.subf %400, %403 : vector<8x8xf32>
    %405 = math.exp %404 : vector<8x8xf32>
    %cst_142 = arith.constant dense<0.000000e+00> : vector<8xf32>
    %406 = vector.multi_reduction <add>, %405, %cst_142 [1] : vector<8x8xf32> to vector<8xf32>
    %407 = vector.shape_cast %406 : vector<8xf32> to vector<8x1xf32>
    %408 = tpu.reciprocal %407 {approx = true} : vector<8x1xf32> -> vector<8x1xf32>
    %409 = vector.broadcast %408 : vector<8x1xf32> to vector<8x8xf32>
    %410 = arith.mulf %405, %409 : vector<8x8xf32>
    %411 = arith.truncf %410 : vector<8x8xf32> to vector<8x8xbf16>
    %412 = vector.extract_strided_slice %346 {offsets = [0, 16], sizes = [8, 8], strides = [1, 1]} : vector<8x32xbf16> to vector<8x8xbf16>
    %cst_143 = arith.constant dense<0.000000e+00> : vector<8x8xf32>
    %413 = tpu.matmul %411, %412, %cst_143 {dimension_numbers = #tpu.dot_dimension_numbers<[1], [0], [0], [1], [0, 0, 1, 1], [], []>} : vector<8x8xbf16>, vector<8x8xbf16>, vector<8x8xf32> -> vector<8x8xf32>
    %414 = arith.truncf %413 : vector<8x8xf32> to vector<8x8xbf16>
    %415 = vector.extract_strided_slice %347 {offsets = [16, 0], sizes = [8, 32], strides = [1, 1]} : vector<32x32xbf16> to vector<8x32xbf16>
    %cst_144 = arith.constant dense<0.000000e+00> : vector<8x32xf32>
    %416 = tpu.matmul %414, %415, %cst_144 {dimension_numbers = #tpu.dot_dimension_numbers<[1], [0], [0], [1], [0, 0, 1, 1], [], []>} : vector<8x8xbf16>, vector<8x32xbf16>, vector<8x32xf32> -> vector<8x32xf32>
    %417 = arith.addf %394, %416 : vector<8x32xf32>
    %418 = vector.extract_strided_slice %344 {offsets = [0, 24], sizes = [8, 8], strides = [1, 1]} : vector<8x32xbf16> to vector<8x8xbf16>
    %419 = vector.extract_strided_slice %345 {offsets = [0, 24], sizes = [8, 8], strides = [1, 1]} : vector<8x32xbf16> to vector<8x8xbf16>
    %cst_145 = arith.constant dense<0.000000e+00> : vector<8x8xf32>
    %420 = tpu.matmul %418, %419, %cst_145 {dimension_numbers = #tpu.dot_dimension_numbers<[1], [1], [0], [0], [0, 0, 1, 0], [], []>} : vector<8x8xbf16>, vector<8x8xbf16>, vector<8x8xf32> -> vector<8x8xf32>
    %cst_146 = arith.constant 0.353553385 : f32
    %421 = vector.broadcast %cst_146 : f32 to vector<8x8xf32>
    %422 = arith.mulf %420, %421 : vector<8x8xf32>
    %423 = arith.addf %422, %12 : vector<8x8xf32>
    %cst_147 = arith.constant dense<0xFF800000> : vector<8xf32>
    %424 = vector.multi_reduction <maximumf>, %423, %cst_147 [1] : vector<8x8xf32> to vector<8xf32>
    %425 = vector.shape_cast %424 : vector<8xf32> to vector<8x1xf32>
    %426 = vector.broadcast %425 : vector<8x1xf32> to vector<8x8xf32>
    %427 = arith.subf %423, %426 : vector<8x8xf32>
    %428 = math.exp %427 : vector<8x8xf32>
    %cst_148 = arith.constant dense<0.000000e+00> : vector<8xf32>
    %429 = vector.multi_reduction <add>, %428, %cst_148 [1] : vector<8x8xf32> to vector<8xf32>
    %430 = vector.shape_cast %429 : vector<8xf32> to vector<8x1xf32>
    %431 = tpu.reciprocal %430 {approx = true} : vector<8x1xf32> -> vector<8x1xf32>
    %432 = vector.broadcast %431 : vector<8x1xf32> to vector<8x8xf32>
    %433 = arith.mulf %428, %432 : vector<8x8xf32>
    %434 = arith.truncf %433 : vector<8x8xf32> to vector<8x8xbf16>
    %435 = vector.extract_strided_slice %346 {offsets = [0, 24], sizes = [8, 8], strides = [1, 1]} : vector<8x32xbf16> to vector<8x8xbf16>
    %cst_149 = arith.constant dense<0.000000e+00> : vector<8x8xf32>
    %436 = tpu.matmul %434, %435, %cst_149 {dimension_numbers = #tpu.dot_dimension_numbers<[1], [0], [0], [1], [0, 0, 1, 1], [], []>} : vector<8x8xbf16>, vector<8x8xbf16>, vector<8x8xf32> -> vector<8x8xf32>
    %437 = arith.truncf %436 : vector<8x8xf32> to vector<8x8xbf16>
    %438 = vector.extract_strided_slice %347 {offsets = [24, 0], sizes = [8, 32], strides = [1, 1]} : vector<32x32xbf16> to vector<8x32xbf16>
    %cst_150 = arith.constant dense<0.000000e+00> : vector<8x32xf32>
    %439 = tpu.matmul %437, %438, %cst_150 {dimension_numbers = #tpu.dot_dimension_numbers<[1], [0], [0], [1], [0, 0, 1, 1], [], []>} : vector<8x8xbf16>, vector<8x32xbf16>, vector<8x32xf32> -> vector<8x32xf32>
    %440 = arith.addf %417, %439 : vector<8x32xf32>
    %c0_151 = arith.constant 0 : index
    %c0_152 = arith.constant 0 : index
    %441 = vector.load %arg26[%c0_151, %c0_152] : memref<1x32xf32, #tpu.memory_space<vmem>>, vector<1x32xf32>
    %442 = vector.broadcast %441 : vector<1x32xf32> to vector<8x32xf32>
    %443 = arith.addf %440, %442 : vector<8x32xf32>
    %444 = arith.addf %334, %443 : vector<8x32xf32>
    %c0_153 = arith.constant 0 : index
    %c0_154 = arith.constant 0 : index
    %445 = vector.load %arg37[%c0_153, %c0_154] : memref<1x32xf32, #tpu.memory_space<vmem>>, vector<1x32xf32>
    %c0_155 = arith.constant 0 : index
    %c0_156 = arith.constant 0 : index
    %446 = vector.load %arg38[%c0_155, %c0_156] : memref<1x32xf32, #tpu.memory_space<vmem>>, vector<1x32xf32>
    %cst_157 = arith.constant dense<0.000000e+00> : vector<8xf32>
    %447 = vector.multi_reduction <add>, %444, %cst_157 [1] : vector<8x32xf32> to vector<8xf32>
    %448 = vector.shape_cast %447 : vector<8xf32> to vector<8x1xf32>
    %cst_158 = arith.constant 3.200000e+01 : f32
    %449 = vector.broadcast %cst_158 : f32 to vector<8x1xf32>
    %450 = arith.divf %448, %449 : vector<8x1xf32>
    %451 = vector.broadcast %450 : vector<8x1xf32> to vector<8x32xf32>
    %452 = arith.subf %444, %451 : vector<8x32xf32>
    %453 = arith.mulf %452, %452 : vector<8x32xf32>
    %cst_159 = arith.constant dense<0.000000e+00> : vector<8xf32>
    %454 = vector.multi_reduction <add>, %453, %cst_159 [1] : vector<8x32xf32> to vector<8xf32>
    %455 = vector.shape_cast %454 : vector<8xf32> to vector<8x1xf32>
    %cst_160 = arith.constant 3.200000e+01 : f32
    %456 = vector.broadcast %cst_160 : f32 to vector<8x1xf32>
    %457 = arith.divf %455, %456 : vector<8x1xf32>
    %458 = vector.broadcast %450 : vector<8x1xf32> to vector<8x32xf32>
    %459 = arith.subf %444, %458 : vector<8x32xf32>
    %cst_161 = arith.constant 9.99999974E-6 : f32
    %460 = vector.broadcast %cst_161 : f32 to vector<8x1xf32>
    %461 = arith.addf %457, %460 : vector<8x1xf32>
    %462 = math.rsqrt %461 : vector<8x1xf32>
    %463 = vector.broadcast %462 : vector<8x1xf32> to vector<8x32xf32>
    %464 = arith.mulf %459, %463 : vector<8x32xf32>
    %465 = vector.broadcast %445 : vector<1x32xf32> to vector<8x32xf32>
    %466 = arith.mulf %464, %465 : vector<8x32xf32>
    %467 = vector.broadcast %446 : vector<1x32xf32> to vector<8x32xf32>
    %468 = arith.addf %466, %467 : vector<8x32xf32>
    %469 = arith.truncf %468 : vector<8x32xf32> to vector<8x32xbf16>
    %c0_162 = arith.constant 0 : index
    %c0_163 = arith.constant 0 : index
    %470 = vector.load %arg27[%c0_162, %c0_163] : memref<32x32xbf16, #tpu.memory_space<vmem>>, vector<32x32xbf16>
    %cst_164 = arith.constant dense<0.000000e+00> : vector<8x32xf32>
    %471 = tpu.matmul %469, %470, %cst_164 {dimension_numbers = #tpu.dot_dimension_numbers<[1], [0], [0], [1], [0, 0, 1, 1], [], []>} : vector<8x32xbf16>, vector<32x32xbf16>, vector<8x32xf32> -> vector<8x32xf32>
    %c0_165 = arith.constant 0 : index
    %c0_166 = arith.constant 0 : index
    %472 = vector.load %arg28[%c0_165, %c0_166] : memref<1x32xf32, #tpu.memory_space<vmem>>, vector<1x32xf32>
    %473 = vector.broadcast %472 : vector<1x32xf32> to vector<8x32xf32>
    %474 = arith.addf %471, %473 : vector<8x32xf32>
    %475 = arith.truncf %3 : vector<16x32xf32> to vector<16x32xbf16>
    %c0_167 = arith.constant 0 : index
    %c0_168 = arith.constant 0 : index
    %476 = vector.load %arg29[%c0_167, %c0_168] : memref<32x64xbf16, #tpu.memory_space<vmem>>, vector<32x64xbf16>
    %cst_169 = arith.constant dense<0.000000e+00> : vector<16x64xf32>
    %477 = tpu.matmul %475, %476, %cst_169 {dimension_numbers = #tpu.dot_dimension_numbers<[1], [0], [0], [1], [0, 0, 1, 1], [], []>} : vector<16x32xbf16>, vector<32x64xbf16>, vector<16x64xf32> -> vector<16x64xf32>
    %c0_170 = arith.constant 0 : index
    %c0_171 = arith.constant 0 : index
    %478 = vector.load %arg30[%c0_170, %c0_171] : memref<1x64xf32, #tpu.memory_space<vmem>>, vector<1x64xf32>
    %479 = vector.broadcast %478 : vector<1x64xf32> to vector<16x64xf32>
    %480 = arith.addf %477, %479 : vector<16x64xf32>
    %481 = vector.extract_strided_slice %480 {offsets = [0, 0], sizes = [16, 32], strides = [1, 1]} : vector<16x64xf32> to vector<16x32xf32>
    %482 = vector.extract_strided_slice %480 {offsets = [0, 32], sizes = [16, 32], strides = [1, 1]} : vector<16x64xf32> to vector<16x32xf32>
    %483 = arith.truncf %474 : vector<8x32xf32> to vector<8x32xbf16>
    %484 = arith.truncf %481 : vector<16x32xf32> to vector<16x32xbf16>
    %485 = arith.truncf %482 : vector<16x32xf32> to vector<16x32xbf16>
    %c0_172 = arith.constant 0 : index
    %c0_173 = arith.constant 0 : index
    %486 = vector.load %arg31[%c0_172, %c0_173] : memref<32x32xbf16, #tpu.memory_space<vmem>>, vector<32x32xbf16>
    %cst_174 = arith.constant 0.000000e+00 : f32
    %487 = vector.broadcast %cst_174 : f32 to vector<8x32xf32>
    %488 = vector.extract_strided_slice %483 {offsets = [0, 0], sizes = [8, 8], strides = [1, 1]} : vector<8x32xbf16> to vector<8x8xbf16>
    %489 = vector.extract_strided_slice %484 {offsets = [0, 0], sizes = [16, 8], strides = [1, 1]} : vector<16x32xbf16> to vector<16x8xbf16>
    %cst_175 = arith.constant dense<0.000000e+00> : vector<8x16xf32>
    %490 = tpu.matmul %488, %489, %cst_175 {dimension_numbers = #tpu.dot_dimension_numbers<[1], [1], [0], [0], [0, 0, 1, 0], [], []>} : vector<8x8xbf16>, vector<16x8xbf16>, vector<8x16xf32> -> vector<8x16xf32>
    %cst_176 = arith.constant 0.353553385 : f32
    %491 = vector.broadcast %cst_176 : f32 to vector<8x16xf32>
    %492 = arith.mulf %490, %491 : vector<8x16xf32>
    %493 = vector.broadcast %18 : vector<1x16xf32> to vector<8x16xf32>
    %494 = arith.addf %492, %493 : vector<8x16xf32>
    %cst_177 = arith.constant dense<0xFF800000> : vector<8xf32>
    %495 = vector.multi_reduction <maximumf>, %494, %cst_177 [1] : vector<8x16xf32> to vector<8xf32>
    %496 = vector.shape_cast %495 : vector<8xf32> to vector<8x1xf32>
    %497 = vector.broadcast %496 : vector<8x1xf32> to vector<8x16xf32>
    %498 = arith.subf %494, %497 : vector<8x16xf32>
    %499 = math.exp %498 : vector<8x16xf32>
    %cst_178 = arith.constant dense<0.000000e+00> : vector<8xf32>
    %500 = vector.multi_reduction <add>, %499, %cst_178 [1] : vector<8x16xf32> to vector<8xf32>
    %501 = vector.shape_cast %500 : vector<8xf32> to vector<8x1xf32>
    %502 = tpu.reciprocal %501 {approx = true} : vector<8x1xf32> -> vector<8x1xf32>
    %503 = vector.broadcast %502 : vector<8x1xf32> to vector<8x16xf32>
    %504 = arith.mulf %499, %503 : vector<8x16xf32>
    %505 = arith.truncf %504 : vector<8x16xf32> to vector<8x16xbf16>
    %506 = vector.extract_strided_slice %485 {offsets = [0, 0], sizes = [16, 8], strides = [1, 1]} : vector<16x32xbf16> to vector<16x8xbf16>
    %cst_179 = arith.constant dense<0.000000e+00> : vector<8x8xf32>
    %507 = tpu.matmul %505, %506, %cst_179 {dimension_numbers = #tpu.dot_dimension_numbers<[1], [0], [0], [1], [0, 0, 1, 1], [], []>} : vector<8x16xbf16>, vector<16x8xbf16>, vector<8x8xf32> -> vector<8x8xf32>
    %508 = arith.truncf %507 : vector<8x8xf32> to vector<8x8xbf16>
    %509 = vector.extract_strided_slice %486 {offsets = [0, 0], sizes = [8, 32], strides = [1, 1]} : vector<32x32xbf16> to vector<8x32xbf16>
    %cst_180 = arith.constant dense<0.000000e+00> : vector<8x32xf32>
    %510 = tpu.matmul %508, %509, %cst_180 {dimension_numbers = #tpu.dot_dimension_numbers<[1], [0], [0], [1], [0, 0, 1, 1], [], []>} : vector<8x8xbf16>, vector<8x32xbf16>, vector<8x32xf32> -> vector<8x32xf32>
    %511 = arith.addf %487, %510 : vector<8x32xf32>
    %512 = vector.extract_strided_slice %483 {offsets = [0, 8], sizes = [8, 8], strides = [1, 1]} : vector<8x32xbf16> to vector<8x8xbf16>
    %513 = vector.extract_strided_slice %484 {offsets = [0, 8], sizes = [16, 8], strides = [1, 1]} : vector<16x32xbf16> to vector<16x8xbf16>
    %cst_181 = arith.constant dense<0.000000e+00> : vector<8x16xf32>
    %514 = tpu.matmul %512, %513, %cst_181 {dimension_numbers = #tpu.dot_dimension_numbers<[1], [1], [0], [0], [0, 0, 1, 0], [], []>} : vector<8x8xbf16>, vector<16x8xbf16>, vector<8x16xf32> -> vector<8x16xf32>
    %cst_182 = arith.constant 0.353553385 : f32
    %515 = vector.broadcast %cst_182 : f32 to vector<8x16xf32>
    %516 = arith.mulf %514, %515 : vector<8x16xf32>
    %517 = vector.broadcast %18 : vector<1x16xf32> to vector<8x16xf32>
    %518 = arith.addf %516, %517 : vector<8x16xf32>
    %cst_183 = arith.constant dense<0xFF800000> : vector<8xf32>
    %519 = vector.multi_reduction <maximumf>, %518, %cst_183 [1] : vector<8x16xf32> to vector<8xf32>
    %520 = vector.shape_cast %519 : vector<8xf32> to vector<8x1xf32>
    %521 = vector.broadcast %520 : vector<8x1xf32> to vector<8x16xf32>
    %522 = arith.subf %518, %521 : vector<8x16xf32>
    %523 = math.exp %522 : vector<8x16xf32>
    %cst_184 = arith.constant dense<0.000000e+00> : vector<8xf32>
    %524 = vector.multi_reduction <add>, %523, %cst_184 [1] : vector<8x16xf32> to vector<8xf32>
    %525 = vector.shape_cast %524 : vector<8xf32> to vector<8x1xf32>
    %526 = tpu.reciprocal %525 {approx = true} : vector<8x1xf32> -> vector<8x1xf32>
    %527 = vector.broadcast %526 : vector<8x1xf32> to vector<8x16xf32>
    %528 = arith.mulf %523, %527 : vector<8x16xf32>
    %529 = arith.truncf %528 : vector<8x16xf32> to vector<8x16xbf16>
    %530 = vector.extract_strided_slice %485 {offsets = [0, 8], sizes = [16, 8], strides = [1, 1]} : vector<16x32xbf16> to vector<16x8xbf16>
    %cst_185 = arith.constant dense<0.000000e+00> : vector<8x8xf32>
    %531 = tpu.matmul %529, %530, %cst_185 {dimension_numbers = #tpu.dot_dimension_numbers<[1], [0], [0], [1], [0, 0, 1, 1], [], []>} : vector<8x16xbf16>, vector<16x8xbf16>, vector<8x8xf32> -> vector<8x8xf32>
    %532 = arith.truncf %531 : vector<8x8xf32> to vector<8x8xbf16>
    %533 = vector.extract_strided_slice %486 {offsets = [8, 0], sizes = [8, 32], strides = [1, 1]} : vector<32x32xbf16> to vector<8x32xbf16>
    %cst_186 = arith.constant dense<0.000000e+00> : vector<8x32xf32>
    %534 = tpu.matmul %532, %533, %cst_186 {dimension_numbers = #tpu.dot_dimension_numbers<[1], [0], [0], [1], [0, 0, 1, 1], [], []>} : vector<8x8xbf16>, vector<8x32xbf16>, vector<8x32xf32> -> vector<8x32xf32>
    %535 = arith.addf %511, %534 : vector<8x32xf32>
    %536 = vector.extract_strided_slice %483 {offsets = [0, 16], sizes = [8, 8], strides = [1, 1]} : vector<8x32xbf16> to vector<8x8xbf16>
    %537 = vector.extract_strided_slice %484 {offsets = [0, 16], sizes = [16, 8], strides = [1, 1]} : vector<16x32xbf16> to vector<16x8xbf16>
    %cst_187 = arith.constant dense<0.000000e+00> : vector<8x16xf32>
    %538 = tpu.matmul %536, %537, %cst_187 {dimension_numbers = #tpu.dot_dimension_numbers<[1], [1], [0], [0], [0, 0, 1, 0], [], []>} : vector<8x8xbf16>, vector<16x8xbf16>, vector<8x16xf32> -> vector<8x16xf32>
    %cst_188 = arith.constant 0.353553385 : f32
    %539 = vector.broadcast %cst_188 : f32 to vector<8x16xf32>
    %540 = arith.mulf %538, %539 : vector<8x16xf32>
    %541 = vector.broadcast %18 : vector<1x16xf32> to vector<8x16xf32>
    %542 = arith.addf %540, %541 : vector<8x16xf32>
    %cst_189 = arith.constant dense<0xFF800000> : vector<8xf32>
    %543 = vector.multi_reduction <maximumf>, %542, %cst_189 [1] : vector<8x16xf32> to vector<8xf32>
    %544 = vector.shape_cast %543 : vector<8xf32> to vector<8x1xf32>
    %545 = vector.broadcast %544 : vector<8x1xf32> to vector<8x16xf32>
    %546 = arith.subf %542, %545 : vector<8x16xf32>
    %547 = math.exp %546 : vector<8x16xf32>
    %cst_190 = arith.constant dense<0.000000e+00> : vector<8xf32>
    %548 = vector.multi_reduction <add>, %547, %cst_190 [1] : vector<8x16xf32> to vector<8xf32>
    %549 = vector.shape_cast %548 : vector<8xf32> to vector<8x1xf32>
    %550 = tpu.reciprocal %549 {approx = true} : vector<8x1xf32> -> vector<8x1xf32>
    %551 = vector.broadcast %550 : vector<8x1xf32> to vector<8x16xf32>
    %552 = arith.mulf %547, %551 : vector<8x16xf32>
    %553 = arith.truncf %552 : vector<8x16xf32> to vector<8x16xbf16>
    %554 = vector.extract_strided_slice %485 {offsets = [0, 16], sizes = [16, 8], strides = [1, 1]} : vector<16x32xbf16> to vector<16x8xbf16>
    %cst_191 = arith.constant dense<0.000000e+00> : vector<8x8xf32>
    %555 = tpu.matmul %553, %554, %cst_191 {dimension_numbers = #tpu.dot_dimension_numbers<[1], [0], [0], [1], [0, 0, 1, 1], [], []>} : vector<8x16xbf16>, vector<16x8xbf16>, vector<8x8xf32> -> vector<8x8xf32>
    %556 = arith.truncf %555 : vector<8x8xf32> to vector<8x8xbf16>
    %557 = vector.extract_strided_slice %486 {offsets = [16, 0], sizes = [8, 32], strides = [1, 1]} : vector<32x32xbf16> to vector<8x32xbf16>
    %cst_192 = arith.constant dense<0.000000e+00> : vector<8x32xf32>
    %558 = tpu.matmul %556, %557, %cst_192 {dimension_numbers = #tpu.dot_dimension_numbers<[1], [0], [0], [1], [0, 0, 1, 1], [], []>} : vector<8x8xbf16>, vector<8x32xbf16>, vector<8x32xf32> -> vector<8x32xf32>
    %559 = arith.addf %535, %558 : vector<8x32xf32>
    %560 = vector.extract_strided_slice %483 {offsets = [0, 24], sizes = [8, 8], strides = [1, 1]} : vector<8x32xbf16> to vector<8x8xbf16>
    %561 = vector.extract_strided_slice %484 {offsets = [0, 24], sizes = [16, 8], strides = [1, 1]} : vector<16x32xbf16> to vector<16x8xbf16>
    %cst_193 = arith.constant dense<0.000000e+00> : vector<8x16xf32>
    %562 = tpu.matmul %560, %561, %cst_193 {dimension_numbers = #tpu.dot_dimension_numbers<[1], [1], [0], [0], [0, 0, 1, 0], [], []>} : vector<8x8xbf16>, vector<16x8xbf16>, vector<8x16xf32> -> vector<8x16xf32>
    %cst_194 = arith.constant 0.353553385 : f32
    %563 = vector.broadcast %cst_194 : f32 to vector<8x16xf32>
    %564 = arith.mulf %562, %563 : vector<8x16xf32>
    %565 = vector.broadcast %18 : vector<1x16xf32> to vector<8x16xf32>
    %566 = arith.addf %564, %565 : vector<8x16xf32>
    %cst_195 = arith.constant dense<0xFF800000> : vector<8xf32>
    %567 = vector.multi_reduction <maximumf>, %566, %cst_195 [1] : vector<8x16xf32> to vector<8xf32>
    %568 = vector.shape_cast %567 : vector<8xf32> to vector<8x1xf32>
    %569 = vector.broadcast %568 : vector<8x1xf32> to vector<8x16xf32>
    %570 = arith.subf %566, %569 : vector<8x16xf32>
    %571 = math.exp %570 : vector<8x16xf32>
    %cst_196 = arith.constant dense<0.000000e+00> : vector<8xf32>
    %572 = vector.multi_reduction <add>, %571, %cst_196 [1] : vector<8x16xf32> to vector<8xf32>
    %573 = vector.shape_cast %572 : vector<8xf32> to vector<8x1xf32>
    %574 = tpu.reciprocal %573 {approx = true} : vector<8x1xf32> -> vector<8x1xf32>
    %575 = vector.broadcast %574 : vector<8x1xf32> to vector<8x16xf32>
    %576 = arith.mulf %571, %575 : vector<8x16xf32>
    %577 = arith.truncf %576 : vector<8x16xf32> to vector<8x16xbf16>
    %578 = vector.extract_strided_slice %485 {offsets = [0, 24], sizes = [16, 8], strides = [1, 1]} : vector<16x32xbf16> to vector<16x8xbf16>
    %cst_197 = arith.constant dense<0.000000e+00> : vector<8x8xf32>
    %579 = tpu.matmul %577, %578, %cst_197 {dimension_numbers = #tpu.dot_dimension_numbers<[1], [0], [0], [1], [0, 0, 1, 1], [], []>} : vector<8x16xbf16>, vector<16x8xbf16>, vector<8x8xf32> -> vector<8x8xf32>
    %580 = arith.truncf %579 : vector<8x8xf32> to vector<8x8xbf16>
    %581 = vector.extract_strided_slice %486 {offsets = [24, 0], sizes = [8, 32], strides = [1, 1]} : vector<32x32xbf16> to vector<8x32xbf16>
    %cst_198 = arith.constant dense<0.000000e+00> : vector<8x32xf32>
    %582 = tpu.matmul %580, %581, %cst_198 {dimension_numbers = #tpu.dot_dimension_numbers<[1], [0], [0], [1], [0, 0, 1, 1], [], []>} : vector<8x8xbf16>, vector<8x32xbf16>, vector<8x32xf32> -> vector<8x32xf32>
    %583 = arith.addf %559, %582 : vector<8x32xf32>
    %c0_199 = arith.constant 0 : index
    %c0_200 = arith.constant 0 : index
    %584 = vector.load %arg32[%c0_199, %c0_200] : memref<1x32xf32, #tpu.memory_space<vmem>>, vector<1x32xf32>
    %585 = vector.broadcast %584 : vector<1x32xf32> to vector<8x32xf32>
    %586 = arith.addf %583, %585 : vector<8x32xf32>
    %587 = arith.addf %468, %586 : vector<8x32xf32>
    %c0_201 = arith.constant 0 : index
    %c0_202 = arith.constant 0 : index
    %588 = vector.load %arg39[%c0_201, %c0_202] : memref<1x32xf32, #tpu.memory_space<vmem>>, vector<1x32xf32>
    %c0_203 = arith.constant 0 : index
    %c0_204 = arith.constant 0 : index
    %589 = vector.load %arg40[%c0_203, %c0_204] : memref<1x32xf32, #tpu.memory_space<vmem>>, vector<1x32xf32>
    %cst_205 = arith.constant dense<0.000000e+00> : vector<8xf32>
    %590 = vector.multi_reduction <add>, %587, %cst_205 [1] : vector<8x32xf32> to vector<8xf32>
    %591 = vector.shape_cast %590 : vector<8xf32> to vector<8x1xf32>
    %cst_206 = arith.constant 3.200000e+01 : f32
    %592 = vector.broadcast %cst_206 : f32 to vector<8x1xf32>
    %593 = arith.divf %591, %592 : vector<8x1xf32>
    %594 = vector.broadcast %593 : vector<8x1xf32> to vector<8x32xf32>
    %595 = arith.subf %587, %594 : vector<8x32xf32>
    %596 = arith.mulf %595, %595 : vector<8x32xf32>
    %cst_207 = arith.constant dense<0.000000e+00> : vector<8xf32>
    %597 = vector.multi_reduction <add>, %596, %cst_207 [1] : vector<8x32xf32> to vector<8xf32>
    %598 = vector.shape_cast %597 : vector<8xf32> to vector<8x1xf32>
    %cst_208 = arith.constant 3.200000e+01 : f32
    %599 = vector.broadcast %cst_208 : f32 to vector<8x1xf32>
    %600 = arith.divf %598, %599 : vector<8x1xf32>
    %601 = vector.broadcast %593 : vector<8x1xf32> to vector<8x32xf32>
    %602 = arith.subf %587, %601 : vector<8x32xf32>
    %cst_209 = arith.constant 9.99999974E-6 : f32
    %603 = vector.broadcast %cst_209 : f32 to vector<8x1xf32>
    %604 = arith.addf %600, %603 : vector<8x1xf32>
    %605 = math.rsqrt %604 : vector<8x1xf32>
    %606 = vector.broadcast %605 : vector<8x1xf32> to vector<8x32xf32>
    %607 = arith.mulf %602, %606 : vector<8x32xf32>
    %608 = vector.broadcast %588 : vector<1x32xf32> to vector<8x32xf32>
    %609 = arith.mulf %607, %608 : vector<8x32xf32>
    %610 = vector.broadcast %589 : vector<1x32xf32> to vector<8x32xf32>
    %611 = arith.addf %609, %610 : vector<8x32xf32>
    %612 = arith.truncf %611 : vector<8x32xf32> to vector<8x32xbf16>
    %c0_210 = arith.constant 0 : index
    %c0_211 = arith.constant 0 : index
    %613 = vector.load %arg33[%c0_210, %c0_211] : memref<32x16xbf16, #tpu.memory_space<vmem>>, vector<32x16xbf16>
    %cst_212 = arith.constant dense<0.000000e+00> : vector<8x16xf32>
    %614 = tpu.matmul %612, %613, %cst_212 {dimension_numbers = #tpu.dot_dimension_numbers<[1], [0], [0], [1], [0, 0, 1, 1], [], []>} : vector<8x32xbf16>, vector<32x16xbf16>, vector<8x16xf32> -> vector<8x16xf32>
    %c0_213 = arith.constant 0 : index
    %c0_214 = arith.constant 0 : index
    %615 = vector.load %arg34[%c0_213, %c0_214] : memref<1x16xf32, #tpu.memory_space<vmem>>, vector<1x16xf32>
    %616 = vector.broadcast %615 : vector<1x16xf32> to vector<8x16xf32>
    %617 = arith.addf %614, %616 : vector<8x16xf32>
    %cst_215 = arith.constant 0.000000e+00 : f32
    %618 = vector.broadcast %cst_215 : f32 to vector<8x16xf32>
    %619 = arith.maximumf %617, %618 : vector<8x16xf32>
    %620 = arith.truncf %619 : vector<8x16xf32> to vector<8x16xbf16>
    %c0_216 = arith.constant 0 : index
    %c0_217 = arith.constant 0 : index
    %621 = vector.load %arg35[%c0_216, %c0_217] : memref<16x32xbf16, #tpu.memory_space<vmem>>, vector<16x32xbf16>
    %cst_218 = arith.constant dense<0.000000e+00> : vector<8x32xf32>
    %622 = tpu.matmul %620, %621, %cst_218 {dimension_numbers = #tpu.dot_dimension_numbers<[1], [0], [0], [1], [0, 0, 1, 1], [], []>} : vector<8x16xbf16>, vector<16x32xbf16>, vector<8x32xf32> -> vector<8x32xf32>
    %c0_219 = arith.constant 0 : index
    %c0_220 = arith.constant 0 : index
    %623 = vector.load %arg36[%c0_219, %c0_220] : memref<1x32xf32, #tpu.memory_space<vmem>>, vector<1x32xf32>
    %624 = vector.broadcast %623 : vector<1x32xf32> to vector<8x32xf32>
    %625 = arith.addf %622, %624 : vector<8x32xf32>
    %626 = arith.addf %611, %625 : vector<8x32xf32>
    %c0_221 = arith.constant 0 : index
    %c0_222 = arith.constant 0 : index
    %627 = vector.load %arg41[%c0_221, %c0_222] : memref<1x32xf32, #tpu.memory_space<vmem>>, vector<1x32xf32>
    %c0_223 = arith.constant 0 : index
    %c0_224 = arith.constant 0 : index
    %628 = vector.load %arg42[%c0_223, %c0_224] : memref<1x32xf32, #tpu.memory_space<vmem>>, vector<1x32xf32>
    %cst_225 = arith.constant dense<0.000000e+00> : vector<8xf32>
    %629 = vector.multi_reduction <add>, %626, %cst_225 [1] : vector<8x32xf32> to vector<8xf32>
    %630 = vector.shape_cast %629 : vector<8xf32> to vector<8x1xf32>
    %cst_226 = arith.constant 3.200000e+01 : f32
    %631 = vector.broadcast %cst_226 : f32 to vector<8x1xf32>
    %632 = arith.divf %630, %631 : vector<8x1xf32>
    %633 = vector.broadcast %632 : vector<8x1xf32> to vector<8x32xf32>
    %634 = arith.subf %626, %633 : vector<8x32xf32>
    %635 = arith.mulf %634, %634 : vector<8x32xf32>
    %cst_227 = arith.constant dense<0.000000e+00> : vector<8xf32>
    %636 = vector.multi_reduction <add>, %635, %cst_227 [1] : vector<8x32xf32> to vector<8xf32>
    %637 = vector.shape_cast %636 : vector<8xf32> to vector<8x1xf32>
    %cst_228 = arith.constant 3.200000e+01 : f32
    %638 = vector.broadcast %cst_228 : f32 to vector<8x1xf32>
    %639 = arith.divf %637, %638 : vector<8x1xf32>
    %640 = vector.broadcast %632 : vector<8x1xf32> to vector<8x32xf32>
    %641 = arith.subf %626, %640 : vector<8x32xf32>
    %cst_229 = arith.constant 9.99999974E-6 : f32
    %642 = vector.broadcast %cst_229 : f32 to vector<8x1xf32>
    %643 = arith.addf %639, %642 : vector<8x1xf32>
    %644 = math.rsqrt %643 : vector<8x1xf32>
    %645 = vector.broadcast %644 : vector<8x1xf32> to vector<8x32xf32>
    %646 = arith.mulf %641, %645 : vector<8x32xf32>
    %647 = vector.broadcast %627 : vector<1x32xf32> to vector<8x32xf32>
    %648 = arith.mulf %646, %647 : vector<8x32xf32>
    %649 = vector.broadcast %628 : vector<1x32xf32> to vector<8x32xf32>
    %650 = arith.addf %648, %649 : vector<8x32xf32>
    %c0_230 = arith.constant 0 : index
    %c0_231 = arith.constant 0 : index
    %651 = vector.load %arg43[%c0_230, %c0_231] : memref<1x32xf32, #tpu.memory_space<vmem>>, vector<1x32xf32>
    %c0_232 = arith.constant 0 : index
    %c0_233 = arith.constant 0 : index
    %652 = vector.load %arg44[%c0_232, %c0_233] : memref<1x32xf32, #tpu.memory_space<vmem>>, vector<1x32xf32>
    %cst_234 = arith.constant dense<0.000000e+00> : vector<8xf32>
    %653 = vector.multi_reduction <add>, %650, %cst_234 [1] : vector<8x32xf32> to vector<8xf32>
    %654 = vector.shape_cast %653 : vector<8xf32> to vector<8x1xf32>
    %cst_235 = arith.constant 3.200000e+01 : f32
    %655 = vector.broadcast %cst_235 : f32 to vector<8x1xf32>
    %656 = arith.divf %654, %655 : vector<8x1xf32>
    %657 = vector.broadcast %656 : vector<8x1xf32> to vector<8x32xf32>
    %658 = arith.subf %650, %657 : vector<8x32xf32>
    %659 = arith.mulf %658, %658 : vector<8x32xf32>
    %cst_236 = arith.constant dense<0.000000e+00> : vector<8xf32>
    %660 = vector.multi_reduction <add>, %659, %cst_236 [1] : vector<8x32xf32> to vector<8xf32>
    %661 = vector.shape_cast %660 : vector<8xf32> to vector<8x1xf32>
    %cst_237 = arith.constant 3.200000e+01 : f32
    %662 = vector.broadcast %cst_237 : f32 to vector<8x1xf32>
    %663 = arith.divf %661, %662 : vector<8x1xf32>
    %664 = vector.broadcast %656 : vector<8x1xf32> to vector<8x32xf32>
    %665 = arith.subf %650, %664 : vector<8x32xf32>
    %cst_238 = arith.constant 9.99999974E-6 : f32
    %666 = vector.broadcast %cst_238 : f32 to vector<8x1xf32>
    %667 = arith.addf %663, %666 : vector<8x1xf32>
    %668 = math.rsqrt %667 : vector<8x1xf32>
    %669 = vector.broadcast %668 : vector<8x1xf32> to vector<8x32xf32>
    %670 = arith.mulf %665, %669 : vector<8x32xf32>
    %671 = vector.broadcast %651 : vector<1x32xf32> to vector<8x32xf32>
    %672 = arith.mulf %670, %671 : vector<8x32xf32>
    %673 = vector.broadcast %652 : vector<1x32xf32> to vector<8x32xf32>
    %674 = arith.addf %672, %673 : vector<8x32xf32>
    %675 = arith.truncf %674 : vector<8x32xf32> to vector<8x32xbf16>
    %c0_239 = arith.constant 0 : index
    %c0_240 = arith.constant 0 : index
    %676 = vector.load %arg45[%c0_239, %c0_240] : memref<32x128xbf16, #tpu.memory_space<vmem>>, vector<32x128xbf16>
    %cst_241 = arith.constant dense<0.000000e+00> : vector<8x128xf32>
    %677 = tpu.matmul %675, %676, %cst_241 {dimension_numbers = #tpu.dot_dimension_numbers<[1], [0], [0], [1], [0, 0, 1, 1], [], []>} : vector<8x32xbf16>, vector<32x128xbf16>, vector<8x128xf32> -> vector<8x128xf32>
    %c0_242 = arith.constant 0 : index
    %c0_243 = arith.constant 0 : index
    %678 = vector.load %arg46[%c0_242, %c0_243] : memref<1x128xf32, #tpu.memory_space<vmem>>, vector<1x128xf32>
    %679 = vector.broadcast %678 : vector<1x128xf32> to vector<8x128xf32>
    %680 = arith.addf %677, %679 : vector<8x128xf32>
    %c0_244 = arith.constant 0 : index
    %c0_245 = arith.constant 0 : index
    %c0_246 = arith.constant 0 : index
    %681 = vector.load %arg47[%c0_244, %c0_245, %c0_246] : memref<1x8x128xf32, #tpu.memory_space<vmem>>, vector<1x8x128xf32>
    %682 = vector.shape_cast %681 : vector<1x8x128xf32> to vector<8x128xf32>
    %683 = vector.shape_cast %680 : vector<8x128xf32> to vector<1x8x128xf32>
    tpu.vector_store %arg47[%c0_244, %c0_245, %c0_246], %683 {strides = array<i32>} : memref<1x8x128xf32, #tpu.memory_space<vmem>>, vector<1x8x128xf32>,
    return
  }
  func.func @transform_0(%arg0: i32) -> (i32, i32, i32) {
    %c0_i32 = arith.constant 0 : i32
    %c0_i32_0 = arith.constant 0 : i32
    %c0_i32_1 = arith.constant 0 : i32
    return %arg0, %c0_i32, %c0_i32_0 : i32, i32, i32
  }
  func.func @transform_1(%arg0: i32) -> (i32, i32, i32) {
    %c0_i32 = arith.constant 0 : i32
    %c0_i32_0 = arith.constant 0 : i32
    %c0_i32_1 = arith.constant 0 : i32
    return %arg0, %c0_i32, %c0_i32_0 : i32, i32, i32
  }
  func.func @transform_2(%arg0: i32) -> (i32, i32) {
    %c0_i32 = arith.constant 0 : i32
    %c0_i32_0 = arith.constant 0 : i32
    %c0_i32_1 = arith.constant 0 : i32
    return %c0_i32, %c0_i32_0 : i32, i32
  }
  func.func @transform_3(%arg0: i32) -> (i32, i32) {
    %c0_i32 = arith.constant 0 : i32
    %c0_i32_0 = arith.constant 0 : i32
    %c0_i32_1 = arith.constant 0 : i32
    return %c0_i32, %c0_i32_0 : i32, i32
  }
  func.func @transform_4(%arg0: i32) -> (i32, i32) {
    %c0_i32 = arith.constant 0 : i32
    %c0_i32_0 = arith.constant 0 : i32
    %c0_i32_1 = arith.constant 0 : i32
    return %c0_i32, %c0_i32_0 : i32, i32
  }
  func.func @transform_5(%arg0: i32) -> (i32, i32) {
    %c0_i32 = arith.constant 0 : i32
    %c0_i32_0 = arith.constant 0 : i32
    %c0_i32_1 = arith.constant 0 : i32
    return %c0_i32, %c0_i32_0 : i32, i32
  }
  func.func @transform_6(%arg0: i32) -> (i32, i32) {
    %c0_i32 = arith.constant 0 : i32
    %c0_i32_0 = arith.constant 0 : i32
    %c0_i32_1 = arith.constant 0 : i32
    return %c0_i32, %c0_i32_0 : i32, i32
  }
  func.func @transform_7(%arg0: i32) -> (i32, i32) {
    %c0_i32 = arith.constant 0 : i32
    %c0_i32_0 = arith.constant 0 : i32
    %c0_i32_1 = arith.constant 0 : i32
    return %c0_i32, %c0_i32_0 : i32, i32
  }
  func.func @transform_8(%arg0: i32) -> (i32, i32) {
    %c0_i32 = arith.constant 0 : i32
    %c0_i32_0 = arith.constant 0 : i32
    %c0_i32_1 = arith.constant 0 : i32
    return %c0_i32, %c0_i32_0 : i32, i32
  }
  func.func @transform_9(%arg0: i32) -> (i32, i32) {
    %c0_i32 = arith.constant 0 : i32
    %c0_i32_0 = arith.constant 0 : i32
    %c0_i32_1 = arith.constant 0 : i32
    return %c0_i32, %c0_i32_0 : i32, i32
  }
  func.func @transform_10(%arg0: i32) -> (i32, i32) {
    %c0_i32 = arith.constant 0 : i32
    %c0_i32_0 = arith.constant 0 : i32
    %c0_i32_1 = arith.constant 0 : i32
    return %c0_i32, %c0_i32_0 : i32, i32
  }
  func.func @transform_11(%arg0: i32) -> (i32, i32) {
    %c0_i32 = arith.constant 0 : i32
    %c0_i32_0 = arith.constant 0 : i32
    %c0_i32_1 = arith.constant 0 : i32
    return %c0_i32, %c0_i32_0 : i32, i32
  }
  func.func @transform_12(%arg0: i32) -> (i32, i32) {
    %c0_i32 = arith.constant 0 : i32
    %c0_i32_0 = arith.constant 0 : i32
    %c0_i32_1 = arith.constant 0 : i32
    return %c0_i32, %c0_i32_0 : i32, i32
  }
  func.func @transform_13(%arg0: i32) -> (i32, i32) {
    %c0_i32 = arith.constant 0 : i32
    %c0_i32_0 = arith.constant 0 : i32
    %c0_i32_1 = arith.constant 0 : i32
    return %c0_i32, %c0_i32_0 : i32, i32
  }
  func.func @transform_14(%arg0: i32) -> (i32, i32) {
    %c0_i32 = arith.constant 0 : i32
    %c0_i32_0 = arith.constant 0 : i32
    %c0_i32_1 = arith.constant 0 : i32
    return %c0_i32, %c0_i32_0 : i32, i32
  }
  func.func @transform_15(%arg0: i32) -> (i32, i32) {
    %c0_i32 = arith.constant 0 : i32
    %c0_i32_0 = arith.constant 0 : i32
    %c0_i32_1 = arith.constant 0 : i32
    return %c0_i32, %c0_i32_0 : i32, i32
  }
  func.func @transform_16(%arg0: i32) -> (i32, i32) {
    %c0_i32 = arith.constant 0 : i32
    %c0_i32_0 = arith.constant 0 : i32
    %c0_i32_1 = arith.constant 0 : i32
    return %c0_i32, %c0_i32_0 : i32, i32
  }
  func.func @transform_17(%arg0: i32) -> (i32, i32) {
    %c0_i32 = arith.constant 0 : i32
    %c0_i32_0 = arith.constant 0 : i32
    %c0_i32_1 = arith.constant 0 : i32
    return %c0_i32, %c0_i32_0 : i32, i32
  }
  func.func @transform_18(%arg0: i32) -> (i32, i32) {
    %c0_i32 = arith.constant 0 : i32
    %c0_i32_0 = arith.constant 0 : i32
    %c0_i32_1 = arith.constant 0 : i32
    return %c0_i32, %c0_i32_0 : i32, i32
  }
  func.func @transform_19(%arg0: i32) -> (i32, i32) {
    %c0_i32 = arith.constant 0 : i32
    %c0_i32_0 = arith.constant 0 : i32
    %c0_i32_1 = arith.constant 0 : i32
    return %c0_i32, %c0_i32_0 : i32, i32
  }
  func.func @transform_20(%arg0: i32) -> (i32, i32) {
    %c0_i32 = arith.constant 0 : i32
    %c0_i32_0 = arith.constant 0 : i32
    %c0_i32_1 = arith.constant 0 : i32
    return %c0_i32, %c0_i32_0 : i32, i32
  }
  func.func @transform_21(%arg0: i32) -> (i32, i32) {
    %c0_i32 = arith.constant 0 : i32
    %c0_i32_0 = arith.constant 0 : i32
    %c0_i32_1 = arith.constant 0 : i32
    return %c0_i32, %c0_i32_0 : i32, i32
  }
  func.func @transform_22(%arg0: i32) -> (i32, i32) {
    %c0_i32 = arith.constant 0 : i32
    %c0_i32_0 = arith.constant 0 : i32
    %c0_i32_1 = arith.constant 0 : i32
    return %c0_i32, %c0_i32_0 : i32, i32
  }
  func.func @transform_23(%arg0: i32) -> (i32, i32) {
    %c0_i32 = arith.constant 0 : i32
    %c0_i32_0 = arith.constant 0 : i32
    %c0_i32_1 = arith.constant 0 : i32
    return %c0_i32, %c0_i32_0 : i32, i32
  }
  func.func @transform_24(%arg0: i32) -> (i32, i32) {
    %c0_i32 = arith.constant 0 : i32
    %c0_i32_0 = arith.constant 0 : i32
    %c0_i32_1 = arith.constant 0 : i32
    return %c0_i32, %c0_i32_0 : i32, i32
  }
  func.func @transform_25(%arg0: i32) -> (i32, i32) {
    %c0_i32 = arith.constant 0 : i32
    %c0_i32_0 = arith.constant 0 : i32
    %c0_i32_1 = arith.constant 0 : i32
    return %c0_i32, %c0_i32_0 : i32, i32
  }
  func.func @transform_26(%arg0: i32) -> (i32, i32) {
    %c0_i32 = arith.constant 0 : i32
    %c0_i32_0 = arith.constant 0 : i32
    %c0_i32_1 = arith.constant 0 : i32
    return %c0_i32, %c0_i32_0 : i32, i32
  }
  func.func @transform_27(%arg0: i32) -> (i32, i32) {
    %c0_i32 = arith.constant 0 : i32
    %c0_i32_0 = arith.constant 0 : i32
    %c0_i32_1 = arith.constant 0 : i32
    return %c0_i32, %c0_i32_0 : i32, i32
  }
  func.func @transform_28(%arg0: i32) -> (i32, i32) {
    %c0_i32 = arith.constant 0 : i32
    %c0_i32_0 = arith.constant 0 : i32
    %c0_i32_1 = arith.constant 0 : i32
    return %c0_i32, %c0_i32_0 : i32, i32
  }
  func.func @transform_29(%arg0: i32) -> (i32, i32) {
    %c0_i32 = arith.constant 0 : i32
    %c0_i32_0 = arith.constant 0 : i32
    %c0_i32_1 = arith.constant 0 : i32
    return %c0_i32, %c0_i32_0 : i32, i32
  }
  func.func @transform_30(%arg0: i32) -> (i32, i32) {
    %c0_i32 = arith.constant 0 : i32
    %c0_i32_0 = arith.constant 0 : i32
    %c0_i32_1 = arith.constant 0 : i32
    return %c0_i32, %c0_i32_0 : i32, i32
  }
  func.func @transform_31(%arg0: i32) -> (i32, i32) {
    %c0_i32 = arith.constant 0 : i32
    %c0_i32_0 = arith.constant 0 : i32
    %c0_i32_1 = arith.constant 0 : i32
    return %c0_i32, %c0_i32_0 : i32, i32
  }
  func.func @transform_32(%arg0: i32) -> (i32, i32) {
    %c0_i32 = arith.constant 0 : i32
    %c0_i32_0 = arith.constant 0 : i32
    %c0_i32_1 = arith.constant 0 : i32
    return %c0_i32, %c0_i32_0 : i32, i32
  }
  func.func @transform_33(%arg0: i32) -> (i32, i32) {
    %c0_i32 = arith.constant 0 : i32
    %c0_i32_0 = arith.constant 0 : i32
    %c0_i32_1 = arith.constant 0 : i32
    return %c0_i32, %c0_i32_0 : i32, i32
  }
  func.func @transform_34(%arg0: i32) -> (i32, i32) {
    %c0_i32 = arith.constant 0 : i32
    %c0_i32_0 = arith.constant 0 : i32
    %c0_i32_1 = arith.constant 0 : i32
    return %c0_i32, %c0_i32_0 : i32, i32
  }
  func.func @transform_35(%arg0: i32) -> (i32, i32) {
    %c0_i32 = arith.constant 0 : i32
    %c0_i32_0 = arith.constant 0 : i32
    %c0_i32_1 = arith.constant 0 : i32
    return %c0_i32, %c0_i32_0 : i32, i32
  }
  func.func @transform_36(%arg0: i32) -> (i32, i32) {
    %c0_i32 = arith.constant 0 : i32
    %c0_i32_0 = arith.constant 0 : i32
    %c0_i32_1 = arith.constant 0 : i32
    return %c0_i32, %c0_i32_0 : i32, i32
  }
  func.func @transform_37(%arg0: i32) -> (i32, i32) {
    %c0_i32 = arith.constant 0 : i32
    %c0_i32_0 = arith.constant 0 : i32
    %c0_i32_1 = arith.constant 0 : i32
    return %c0_i32, %c0_i32_0 : i32, i32
  }
  func.func @transform_38(%arg0: i32) -> (i32, i32) {
    %c0_i32 = arith.constant 0 : i32
    %c0_i32_0 = arith.constant 0 : i32
    %c0_i32_1 = arith.constant 0 : i32
    return %c0_i32, %c0_i32_0 : i32, i32
  }
  func.func @transform_39(%arg0: i32) -> (i32, i32) {
    %c0_i32 = arith.constant 0 : i32
    %c0_i32_0 = arith.constant 0 : i32
    %c0_i32_1 = arith.constant 0 : i32
    return %c0_i32, %c0_i32_0 : i32, i32
  }
  func.func @transform_40(%arg0: i32) -> (i32, i32) {
    %c0_i32 = arith.constant 0 : i32
    %c0_i32_0 = arith.constant 0 : i32
    %c0_i32_1 = arith.constant 0 : i32
    return %c0_i32, %c0_i32_0 : i32, i32
  }
  func.func @transform_41(%arg0: i32) -> (i32, i32) {
    %c0_i32 = arith.constant 0 : i32
    %c0_i32_0 = arith.constant 0 : i32
    %c0_i32_1 = arith.constant 0 : i32
    return %c0_i32, %c0_i32_0 : i32, i32
  }
  func.func @transform_42(%arg0: i32) -> (i32, i32) {
    %c0_i32 = arith.constant 0 : i32
    %c0_i32_0 = arith.constant 0 : i32
    %c0_i32_1 = arith.constant 0 : i32
    return %c0_i32, %c0_i32_0 : i32, i32
  }
  func.func @transform_43(%arg0: i32) -> (i32, i32) {
    %c0_i32 = arith.constant 0 : i32
    %c0_i32_0 = arith.constant 0 : i32
    %c0_i32_1 = arith.constant 0 : i32
    return %c0_i32, %c0_i32_0 : i32, i32
  }
  func.func @transform_44(%arg0: i32) -> (i32, i32) {
    %c0_i32 = arith.constant 0 : i32
    %c0_i32_0 = arith.constant 0 : i32
    %c0_i32_1 = arith.constant 0 : i32
    return %c0_i32, %c0_i32_0 : i32, i32
  }
  func.func @transform_45(%arg0: i32) -> (i32, i32) {
    %c0_i32 = arith.constant 0 : i32
    %c0_i32_0 = arith.constant 0 : i32
    %c0_i32_1 = arith.constant 0 : i32
    return %c0_i32, %c0_i32_0 : i32, i32
  }
  func.func @transform_46(%arg0: i32) -> (i32, i32, i32) {
    %c0_i32 = arith.constant 0 : i32
    %c0_i32_0 = arith.constant 0 : i32
    %c0_i32_1 = arith.constant 0 : i32
    return %arg0, %c0_i32, %c0_i32_0 : i32, i32, i32
  }
}

</mosaic_0001>

<llo_original>
// kernel: _lambda_.2
$region0: #{_lambda_.2}
  #allocation0 [shape = 'u32[]', space=smem, size = 0x4, offset = 0x4, fixed_abs, tag = 'smem constant byte address 0x4 - core index']
  #allocation1 [shape = 'u32[144,128]{1,0:T(1,128)}', space=vmem, size = 0x12000, scoped, tag = 'internal scratch']
  %s0 = inlined_call_operand.vmem [shape: f32[2,16,32], index: 0, kind: input, shape index: {}]
  %s1 = inlined_call_operand.vmem [shape: f32[2,1,16], index: 1, kind: input, shape index: {}]
  %s2 = inlined_call_operand.vmem [shape: bf16[32,96], index: 2, kind: input, shape index: {}]
  %s3 = inlined_call_operand.vmem [shape: f32[1,96], index: 3, kind: input, shape index: {}]
  %s4 = inlined_call_operand.vmem [shape: bf16[32,32], index: 4, kind: input, shape index: {}]
  %s5 = inlined_call_operand.vmem [shape: f32[1,32], index: 5, kind: input, shape index: {}]
  %s6 = inlined_call_operand.vmem [shape: bf16[32,16], index: 6, kind: input, shape index: {}]
  %s7 = inlined_call_operand.vmem [shape: f32[1,16], index: 7, kind: input, shape index: {}]
  %s8 = inlined_call_operand.vmem [shape: bf16[16,32], index: 8, kind: input, shape index: {}]
  %s9 = inlined_call_operand.vmem [shape: f32[1,32], index: 9, kind: input, shape index: {}]
  %s10 = inlined_call_operand.vmem [shape: f32[1,32], index: 10, kind: input, shape index: {}]
  %s11 = inlined_call_operand.vmem [shape: f32[1,32], index: 11, kind: input, shape index: {}]
  %s12 = inlined_call_operand.vmem [shape: f32[1,32], index: 12, kind: input, shape index: {}]
  %s13 = inlined_call_operand.vmem [shape: f32[1,32], index: 13, kind: input, shape index: {}]
  %s14 = inlined_call_operand.vmem [shape: bf16[32,96], index: 14, kind: input, shape index: {}]
  %s15 = inlined_call_operand.vmem [shape: f32[1,96], index: 15, kind: input, shape index: {}]
  %s16 = inlined_call_operand.vmem [shape: bf16[32,32], index: 16, kind: input, shape index: {}]
  %s17 = inlined_call_operand.vmem [shape: f32[1,32], index: 17, kind: input, shape index: {}]
  %s18 = inlined_call_operand.vmem [shape: bf16[32,16], index: 18, kind: input, shape index: {}]
  %s19 = inlined_call_operand.vmem [shape: f32[1,16], index: 19, kind: input, shape index: {}]
  %s20 = inlined_call_operand.vmem [shape: bf16[16,32], index: 20, kind: input, shape index: {}]
  %s21 = inlined_call_operand.vmem [shape: f32[1,32], index: 21, kind: input, shape index: {}]
  %s22 = inlined_call_operand.vmem [shape: f32[1,32], index: 22, kind: input, shape index: {}]
  %s23 = inlined_call_operand.vmem [shape: f32[1,32], index: 23, kind: input, shape index: {}]
  %s24 = inlined_call_operand.vmem [shape: f32[1,32], index: 24, kind: input, shape index: {}]
  %s25 = inlined_call_operand.vmem [shape: f32[1,32], index: 25, kind: input, shape index: {}]
  %s26 = inlined_call_operand.vmem [shape: f32[1,32], index: 26, kind: input, shape index: {}]
  %s27 = inlined_call_operand.vmem [shape: f32[1,32], index: 27, kind: input, shape index: {}]
  %s28 = inlined_call_operand.vmem [shape: f32[2,16,32], index: 28, kind: output, shape index: {}]
  %s29 = sld [smem:[#allocation0]]
  $region145: #{_lambda_.2} parent=0
    _
  %s31 = ssub.s32 1, %s29
  %s32 = scalar_select 0, %s31, %s29
  loop: start=0, step=1, limit=4
  $region2: #{_lambda_.2} parent=0 // loop_pre_header
    _
  $region3: #{_lambda_.2} parent=0 // loop_header
    %s34 = sphi 0, %s38
    %p35 = scmp.ge.s32.totalorder %s34, 4
    %s44 = sphi 0, %s46
    %s47 = sphi 0, %s44
    %s48 = sphi 0, %s47
    %s64 = sphi 0, %s48
    %s70 = sphi 0, %s72
    %s73 = sphi 0, %s70
    %s74 = sphi 0, %s73
    %s90 = sphi 0, %s74
    %s94 = sphi 0, %s94
    %s96 = sphi 0, %s94
    %s97 = sphi 0, %s96
    %s111 = sphi 0, %s97
    %s115 = sphi 0, %s115
    %s117 = sphi 0, %s115
    %s118 = sphi 0, %s117
    %s132 = sphi 0, %s118
    %s136 = sphi 0, %s136
    %s138 = sphi 0, %s136
    %s139 = sphi 0, %s138
    %s153 = sphi 0, %s139
    %s157 = sphi 0, %s157
    %s159 = sphi 0, %s157
    %s160 = sphi 0, %s159
    %s174 = sphi 0, %s160
    %s178 = sphi 0, %s178
    %s180 = sphi 0, %s178
    %s181 = sphi 0, %s180
    %s195 = sphi 0, %s181
    %s199 = sphi 0, %s199
    %s201 = sphi 0, %s199
    %s202 = sphi 0, %s201
    %s216 = sphi 0, %s202
    %s220 = sphi 0, %s220
    %s222 = sphi 0, %s220
    %s223 = sphi 0, %s222
    %s237 = sphi 0, %s223
    %s241 = sphi 0, %s241
    %s243 = sphi 0, %s241
    %s244 = sphi 0, %s243
    %s258 = sphi 0, %s244
    %s262 = sphi 0, %s262
    %s264 = sphi 0, %s262
    %s265 = sphi 0, %s264
    %s279 = sphi 0, %s265
    %s283 = sphi 0, %s283
    %s285 = sphi 0, %s283
    %s286 = sphi 0, %s285
    %s300 = sphi 0, %s286
    %s304 = sphi 0, %s304
    %s306 = sphi 0, %s304
    %s307 = sphi 0, %s306
    %s321 = sphi 0, %s307
    %s325 = sphi 0, %s325
    %s327 = sphi 0, %s325
    %s328 = sphi 0, %s327
    %s342 = sphi 0, %s328
    %s346 = sphi 0, %s346
    %s348 = sphi 0, %s346
    %s349 = sphi 0, %s348
    %s363 = sphi 0, %s349
    %s367 = sphi 0, %s367
    %s369 = sphi 0, %s367
    %s370 = sphi 0, %s369
    %s384 = sphi 0, %s370
    %s388 = sphi 0, %s388
    %s390 = sphi 0, %s388
    %s391 = sphi 0, %s390
    %s405 = sphi 0, %s391
    %s409 = sphi 0, %s409
    %s411 = sphi 0, %s409
    %s412 = sphi 0, %s411
    %s426 = sphi 0, %s412
    %s430 = sphi 0, %s430
    %s432 = sphi 0, %s430
    %s433 = sphi 0, %s432
    %s447 = sphi 0, %s433
    %s451 = sphi 0, %s451
    %s453 = sphi 0, %s451
    %s454 = sphi 0, %s453
    %s468 = sphi 0, %s454
    %s472 = sphi 0, %s472
    %s474 = sphi 0, %s472
    %s475 = sphi 0, %s474
    %s489 = sphi 0, %s475
    %s493 = sphi 0, %s493
    %s495 = sphi 0, %s493
    %s496 = sphi 0, %s495
    %s510 = sphi 0, %s496
    %s514 = sphi 0, %s514
    %s516 = sphi 0, %s514
    %s517 = sphi 0, %s516
    %s531 = sphi 0, %s517
    %s535 = sphi 0, %s535
    %s537 = sphi 0, %s535
    %s538 = sphi 0, %s537
    %s552 = sphi 0, %s538
    %s556 = sphi 0, %s556
    %s558 = sphi 0, %s556
    %s559 = sphi 0, %s558
    %s573 = sphi 0, %s559
    %s577 = sphi 0, %s577
    %s579 = sphi 0, %s577
    %s580 = sphi 0, %s579
    %s594 = sphi 0, %s580
    %s598 = sphi 0, %s598
    %s600 = sphi 0, %s598
    %s601 = sphi 0, %s600
    %s615 = sphi 0, %s601
    %s619 = sphi 0, %s619
    %s621 = sphi 0, %s619
    %s622 = sphi 0, %s621
    %s636 = sphi 0, %s622
    %s642 = sphi 0, %s644
    %s645 = sphi 0, %s642
    %s646 = sphi 0, %s645
    %s662 = sphi 0, %s646
  $region4: #{_lambda_.2} parent=0 // loop_header_branch
    %37 = sbr.rel (%p35) target = $region8
  $region5: #{_lambda_.2} parent=0 // loop_body
    %s39 = ssub.s32 %s34, 1
    %s40 = ssub.s32 %s34, 2
    %s41 = sadd.s32 %s34, 1
    %s42 = ssub.s32 %s34, %s41
    %p43 = scmp.eq.s32.totalorder %s42, 0
    %s45 = sadd.s32 %s44, 1
    %s46 = scalar_select %p43, %s44, %s45
    %p49 = pneg %p43
    %p50 = scmp.eq.s32.totalorder %s34, 1
    %p51 = por %p49, %p50
    %p52 = scmp.ne.s32.totalorder %s44, %s47
    %p53 = scmp.eq.s32.totalorder %s34, 0
    %p54 = por %p52, %p53
    %p55 = scmp.ne.s32.totalorder %s44, %s47
    %p56 = scmp.eq.s32.totalorder %s39, 1
    %p57 = por %p55, %p56
    %p58 = scmp.ne.s32.totalorder %s47, %s48
    %p59 = scmp.eq.s32.totalorder %s39, 0
    %p60 = por %p58, %p59
    %p61 = scmp.ne.s32.totalorder %s47, %s48
    %p62 = scmp.eq.s32.totalorder %s40, 1
    %p63 = por %p61, %p62
    %p65 = scmp.ne.s32.totalorder %s48, %s64
    %p66 = scmp.eq.s32.totalorder %s40, 0
    %p67 = por %p65, %p66
    %s68 = ssub.s32 %s34, %s41
    %p69 = scmp.eq.s32.totalorder %s68, 0
    %s71 = sadd.s32 %s70, 1
    %s72 = scalar_select %p69, %s70, %s71
    %p75 = pneg %p69
    %p76 = scmp.eq.s32.totalorder %s34, 1
    %p77 = por %p75, %p76
    %p78 = scmp.ne.s32.totalorder %s70, %s73
    %p79 = scmp.eq.s32.totalorder %s34, 0
    %p80 = por %p78, %p79
    %p81 = scmp.ne.s32.totalorder %s70, %s73
    %p82 = scmp.eq.s32.totalorder %s39, 1
    %p83 = por %p81, %p82
    %p84 = scmp.ne.s32.totalorder %s73, %s74
    %p85 = scmp.eq.s32.totalorder %s39, 0
    %p86 = por %p84, %p85
    %p87 = scmp.ne.s32.totalorder %s73, %s74
    %p88 = scmp.eq.s32.totalorder %s40, 1
    %p89 = por %p87, %p88
    %p91 = scmp.ne.s32.totalorder %s74, %s90
    %p92 = scmp.eq.s32.totalorder %s40, 0
    %p93 = por %p91, %p92
    %s95 = sadd.s32 %s94, 1
    %p98 = scmp.eq.s32.totalorder %s34, 1
    %p99 = scmp.ne.s32.totalorder %s94, %s96
    %p100 = scmp.eq.s32.totalorder %s34, 0
    %p101 = por %p99, %p100
    %p102 = scmp.ne.s32.totalorder %s94, %s96
    %p103 = scmp.eq.s32.totalorder %s39, 1
    %p104 = por %p102, %p103
    %p105 = scmp.ne.s32.totalorder %s96, %s97
    %p106 = scmp.eq.s32.totalorder %s39, 0
    %p107 = por %p105, %p106
    %p108 = scmp.ne.s32.totalorder %s96, %s97
    %p109 = scmp.eq.s32.totalorder %s40, 1
    %p110 = por %p108, %p109
    %p112 = scmp.ne.s32.totalorder %s97, %s111
    %p113 = scmp.eq.s32.totalorder %s40, 0
    %p114 = por %p112, %p113
    %s116 = sadd.s32 %s115, 1
    %p119 = scmp.eq.s32.totalorder %s34, 1
    %p120 = scmp.ne.s32.totalorder %s115, %s117
    %p121 = scmp.eq.s32.totalorder %s34, 0
    %p122 = por %p120, %p121
    %p123 = scmp.ne.s32.totalorder %s115, %s117
    %p124 = scmp.eq.s32.totalorder %s39, 1
    %p125 = por %p123, %p124
    %p126 = scmp.ne.s32.totalorder %s117, %s118
    %p127 = scmp.eq.s32.totalorder %s39, 0
    %p128 = por %p126, %p127
    %p129 = scmp.ne.s32.totalorder %s117, %s118
    %p130 = scmp.eq.s32.totalorder %s40, 1
    %p131 = por %p129, %p130
    %p133 = scmp.ne.s32.totalorder %s118, %s132
    %p134 = scmp.eq.s32.totalorder %s40, 0
    %p135 = por %p133, %p134
    %s137 = sadd.s32 %s136, 1
    %p140 = scmp.eq.s32.totalorder %s34, 1
    %p141 = scmp.ne.s32.totalorder %s136, %s138
    %p142 = scmp.eq.s32.totalorder %s34, 0
    %p143 = por %p141, %p142
    %p144 = scmp.ne.s32.totalorder %s136, %s138
    %p145 = scmp.eq.s32.totalorder %s39, 1
    %p146 = por %p144, %p145
    %p147 = scmp.ne.s32.totalorder %s138, %s139
    %p148 = scmp.eq.s32.totalorder %s39, 0
    %p149 = por %p147, %p148
    %p150 = scmp.ne.s32.totalorder %s138, %s139
    %p151 = scmp.eq.s32.totalorder %s40, 1
    %p152 = por %p150, %p151
    %p154 = scmp.ne.s32.totalorder %s139, %s153
    %p155 = scmp.eq.s32.totalorder %s40, 0
    %p156 = por %p154, %p155
    %s158 = sadd.s32 %s157, 1
    %p161 = scmp.eq.s32.totalorder %s34, 1
    %p162 = scmp.ne.s32.totalorder %s157, %s159
    %p163 = scmp.eq.s32.totalorder %s34, 0
    %p164 = por %p162, %p163
    %p165 = scmp.ne.s32.totalorder %s157, %s159
    %p166 = scmp.eq.s32.totalorder %s39, 1
    %p167 = por %p165, %p166
    %p168 = scmp.ne.s32.totalorder %s159, %s160
    %p169 = scmp.eq.s32.totalorder %s39, 0
    %p170 = por %p168, %p169
    %p171 = scmp.ne.s32.totalorder %s159, %s160
    %p172 = scmp.eq.s32.totalorder %s40, 1
    %p173 = por %p171, %p172
    %p175 = scmp.ne.s32.totalorder %s160, %s174
    %p176 = scmp.eq.s32.totalorder %s40, 0
    %p177 = por %p175, %p176
    %s179 = sadd.s32 %s178, 1
    %p182 = scmp.eq.s32.totalorder %s34, 1
    %p183 = scmp.ne.s32.totalorder %s178, %s180
    %p184 = scmp.eq.s32.totalorder %s34, 0
    %p185 = por %p183, %p184
    %p186 = scmp.ne.s32.totalorder %s178, %s180
    %p187 = scmp.eq.s32.totalorder %s39, 1
    %p188 = por %p186, %p187
    %p189 = scmp.ne.s32.totalorder %s180, %s181
    %p190 = scmp.eq.s32.totalorder %s39, 0
    %p191 = por %p189, %p190
    %p192 = scmp.ne.s32.totalorder %s180, %s181
    %p193 = scmp.eq.s32.totalorder %s40, 1
    %p194 = por %p192, %p193
    %p196 = scmp.ne.s32.totalorder %s181, %s195
    %p197 = scmp.eq.s32.totalorder %s40, 0
    %p198 = por %p196, %p197
    %s200 = sadd.s32 %s199, 1
    %p203 = scmp.eq.s32.totalorder %s34, 1
    %p204 = scmp.ne.s32.totalorder %s199, %s201
    %p205 = scmp.eq.s32.totalorder %s34, 0
    %p206 = por %p204, %p205
    %p207 = scmp.ne.s32.totalorder %s199, %s201
    %p208 = scmp.eq.s32.totalorder %s39, 1
    %p209 = por %p207, %p208
    %p210 = scmp.ne.s32.totalorder %s201, %s202
    %p211 = scmp.eq.s32.totalorder %s39, 0
    %p212 = por %p210, %p211
    %p213 = scmp.ne.s32.totalorder %s201, %s202
    %p214 = scmp.eq.s32.totalorder %s40, 1
    %p215 = por %p213, %p214
    %p217 = scmp.ne.s32.totalorder %s202, %s216
    %p218 = scmp.eq.s32.totalorder %s40, 0
    %p219 = por %p217, %p218
    %s221 = sadd.s32 %s220, 1
    %p224 = scmp.eq.s32.totalorder %s34, 1
    %p225 = scmp.ne.s32.totalorder %s220, %s222
    %p226 = scmp.eq.s32.totalorder %s34, 0
    %p227 = por %p225, %p226
    %p228 = scmp.ne.s32.totalorder %s220, %s222
    %p229 = scmp.eq.s32.totalorder %s39, 1
    %p230 = por %p228, %p229
    %p231 = scmp.ne.s32.totalorder %s222, %s223
    %p232 = scmp.eq.s32.totalorder %s39, 0
    %p233 = por %p231, %p232
    %p234 = scmp.ne.s32.totalorder %s222, %s223
    %p235 = scmp.eq.s32.totalorder %s40, 1
    %p236 = por %p234, %p235
    %p238 = scmp.ne.s32.totalorder %s223, %s237
    %p239 = scmp.eq.s32.totalorder %s40, 0
    %p240 = por %p238, %p239
    %s242 = sadd.s32 %s241, 1
    %p245 = scmp.eq.s32.totalorder %s34, 1
    %p246 = scmp.ne.s32.totalorder %s241, %s243
    %p247 = scmp.eq.s32.totalorder %s34, 0
    %p248 = por %p246, %p247
    %p249 = scmp.ne.s32.totalorder %s241, %s243
    %p250 = scmp.eq.s32.totalorder %s39, 1
    %p251 = por %p249, %p250
    %p252 = scmp.ne.s32.totalorder %s243, %s244
    %p253 = scmp.eq.s32.totalorder %s39, 0
    %p254 = por %p252, %p253
    %p255 = scmp.ne.s32.totalorder %s243, %s244
    %p256 = scmp.eq.s32.totalorder %s40, 1
    %p257 = por %p255, %p256
    %p259 = scmp.ne.s32.totalorder %s244, %s258
    %p260 = scmp.eq.s32.totalorder %s40, 0
    %p261 = por %p259, %p260
    %s263 = sadd.s32 %s262, 1
    %p266 = scmp.eq.s32.totalorder %s34, 1
    %p267 = scmp.ne.s32.totalorder %s262, %s264
    %p268 = scmp.eq.s32.totalorder %s34, 0
    %p269 = por %p267, %p268
    %p270 = scmp.ne.s32.totalorder %s262, %s264
    %p271 = scmp.eq.s32.totalorder %s39, 1
    %p272 = por %p270, %p271
    %p273 = scmp.ne.s32.totalorder %s264, %s265
    %p274 = scmp.eq.s32.totalorder %s39, 0
    %p275 = por %p273, %p274
    %p276 = scmp.ne.s32.totalorder %s264, %s265
    %p277 = scmp.eq.s32.totalorder %s40, 1
    %p278 = por %p276, %p277
    %p280 = scmp.ne.s32.totalorder %s265, %s279
    %p281 = scmp.eq.s32.totalorder %s40, 0
    %p282 = por %p280, %p281
    %s284 = sadd.s32 %s283, 1
    %p287 = scmp.eq.s32.totalorder %s34, 1
    %p288 = scmp.ne.s32.totalorder %s283, %s285
    %p289 = scmp.eq.s32.totalorder %s34, 0
    %p290 = por %p288, %p289
    %p291 = scmp.ne.s32.totalorder %s283, %s285
    %p292 = scmp.eq.s32.totalorder %s39, 1
    %p293 = por %p291, %p292
    %p294 = scmp.ne.s32.totalorder %s285, %s286
    %p295 = scmp.eq.s32.totalorder %s39, 0
    %p296 = por %p294, %p295
    %p297 = scmp.ne.s32.totalorder %s285, %s286
    %p298 = scmp.eq.s32.totalorder %s40, 1
    %p299 = por %p297, %p298
    %p301 = scmp.ne.s32.totalorder %s286, %s300
    %p302 = scmp.eq.s32.totalorder %s40, 0
    %p303 = por %p301, %p302
    %s305 = sadd.s32 %s304, 1
    %p308 = scmp.eq.s32.totalorder %s34, 1
    %p309 = scmp.ne.s32.totalorder %s304, %s306
    %p310 = scmp.eq.s32.totalorder %s34, 0
    %p311 = por %p309, %p310
    %p312 = scmp.ne.s32.totalorder %s304, %s306
    %p313 = scmp.eq.s32.totalorder %s39, 1
    %p314 = por %p312, %p313
    %p315 = scmp.ne.s32.totalorder %s306, %s307
    %p316 = scmp.eq.s32.totalorder %s39, 0
    %p317 = por %p315, %p316
    %p318 = scmp.ne.s32.totalorder %s306, %s307
    %p319 = scmp.eq.s32.totalorder %s40, 1
    %p320 = por %p318, %p319
    %p322 = scmp.ne.s32.totalorder %s307, %s321
    %p323 = scmp.eq.s32.totalorder %s40, 0
    %p324 = por %p322, %p323
    %s326 = sadd.s32 %s325, 1
    %p329 = scmp.eq.s32.totalorder %s34, 1
    %p330 = scmp.ne.s32.totalorder %s325, %s327
    %p331 = scmp.eq.s32.totalorder %s34, 0
    %p332 = por %p330, %p331
    %p333 = scmp.ne.s32.totalorder %s325, %s327
    %p334 = scmp.eq.s32.totalorder %s39, 1
    %p335 = por %p333, %p334
    %p336 = scmp.ne.s32.totalorder %s327, %s328
    %p337 = scmp.eq.s32.totalorder %s39, 0
    %p338 = por %p336, %p337
    %p339 = scmp.ne.s32.totalorder %s327, %s328
    %p340 = scmp.eq.s32.totalorder %s40, 1
    %p341 = por %p339, %p340
    %p343 = scmp.ne.s32.totalorder %s328, %s342
    %p344 = scmp.eq.s32.totalorder %s40, 0
    %p345 = por %p343, %p344
    %s347 = sadd.s32 %s346, 1
    %p350 = scmp.eq.s32.totalorder %s34, 1
    %p351 = scmp.ne.s32.totalorder %s346, %s348
    %p352 = scmp.eq.s32.totalorder %s34, 0
    %p353 = por %p351, %p352
    %p354 = scmp.ne.s32.totalorder %s346, %s348
    %p355 = scmp.eq.s32.totalorder %s39, 1
    %p356 = por %p354, %p355
    %p357 = scmp.ne.s32.totalorder %s348, %s349
    %p358 = scmp.eq.s32.totalorder %s39, 0
    %p359 = por %p357, %p358
    %p360 = scmp.ne.s32.totalorder %s348, %s349
    %p361 = scmp.eq.s32.totalorder %s40, 1
    %p362 = por %p360, %p361
    %p364 = scmp.ne.s32.totalorder %s349, %s363
    %p365 = scmp.eq.s32.totalorder %s40, 0
    %p366 = por %p364, %p365
    %s368 = sadd.s32 %s367, 1
    %p371 = scmp.eq.s32.totalorder %s34, 1
    %p372 = scmp.ne.s32.totalorder %s367, %s369
    %p373 = scmp.eq.s32.totalorder %s34, 0
    %p374 = por %p372, %p373
    %p375 = scmp.ne.s32.totalorder %s367, %s369
    %p376 = scmp.eq.s32.totalorder %s39, 1
    %p377 = por %p375, %p376
    %p378 = scmp.ne.s32.totalorder %s369, %s370
    %p379 = scmp.eq.s32.totalorder %s39, 0
    %p380 = por %p378, %p379
    %p381 = scmp.ne.s32.totalorder %s369, %s370
    %p382 = scmp.eq.s32.totalorder %s40, 1
    %p383 = por %p381, %p382
    %p385 = scmp.ne.s32.totalorder %s370, %s384
    %p386 = scmp.eq.s32.totalorder %s40, 0
    %p387 = por %p385, %p386
    %s389 = sadd.s32 %s388, 1
    %p392 = scmp.eq.s32.totalorder %s34, 1
    %p393 = scmp.ne.s32.totalorder %s388, %s390
    %p394 = scmp.eq.s32.totalorder %s34, 0
    %p395 = por %p393, %p394
    %p396 = scmp.ne.s32.totalorder %s388, %s390
    %p397 = scmp.eq.s32.totalorder %s39, 1
    %p398 = por %p396, %p397
    %p399 = scmp.ne.s32.totalorder %s390, %s391
    %p400 = scmp.eq.s32.totalorder %s39, 0
    %p401 = por %p399, %p400
    %p402 = scmp.ne.s32.totalorder %s390, %s391
    %p403 = scmp.eq.s32.totalorder %s40, 1
    %p404 = por %p402, %p403
    %p406 = scmp.ne.s32.totalorder %s391, %s405
    %p407 = scmp.eq.s32.totalorder %s40, 0
    %p408 = por %p406, %p407
    %s410 = sadd.s32 %s409, 1
    %p413 = scmp.eq.s32.totalorder %s34, 1
    %p414 = scmp.ne.s32.totalorder %s409, %s411
    %p415 = scmp.eq.s32.totalorder %s34, 0
    %p416 = por %p414, %p415
    %p417 = scmp.ne.s32.totalorder %s409, %s411
    %p418 = scmp.eq.s32.totalorder %s39, 1
    %p419 = por %p417, %p418
    %p420 = scmp.ne.s32.totalorder %s411, %s412
    %p421 = scmp.eq.s32.totalorder %s39, 0
    %p422 = por %p420, %p421
    %p423 = scmp.ne.s32.totalorder %s411, %s412
    %p424 = scmp.eq.s32.totalorder %s40, 1
    %p425 = por %p423, %p424
    %p427 = scmp.ne.s32.totalorder %s412, %s426
    %p428 = scmp.eq.s32.totalorder %s40, 0
    %p429 = por %p427, %p428
    %s431 = sadd.s32 %s430, 1
    %p434 = scmp.eq.s32.totalorder %s34, 1
    %p435 = scmp.ne.s32.totalorder %s430, %s432
    %p436 = scmp.eq.s32.totalorder %s34, 0
    %p437 = por %p435, %p436
    %p438 = scmp.ne.s32.totalorder %s430, %s432
    %p439 = scmp.eq.s32.totalorder %s39, 1
    %p440 = por %p438, %p439
    %p441 = scmp.ne.s32.totalorder %s432, %s433
    %p442 = scmp.eq.s32.totalorder %s39, 0
    %p443 = por %p441, %p442
    %p444 = scmp.ne.s32.totalorder %s432, %s433
    %p445 = scmp.eq.s32.totalorder %s40, 1
    %p446 = por %p444, %p445
    %p448 = scmp.ne.s32.totalorder %s433, %s447
    %p449 = scmp.eq.s32.totalorder %s40, 0
    %p450 = por %p448, %p449
    %s452 = sadd.s32 %s451, 1
    %p455 = scmp.eq.s32.totalorder %s34, 1
    %p456 = scmp.ne.s32.totalorder %s451, %s453
    %p457 = scmp.eq.s32.totalorder %s34, 0
    %p458 = por %p456, %p457
    %p459 = scmp.ne.s32.totalorder %s451, %s453
    %p460 = scmp.eq.s32.totalorder %s39, 1
    %p461 = por %p459, %p460
    %p462 = scmp.ne.s32.totalorder %s453, %s454
    %p463 = scmp.eq.s32.totalorder %s39, 0
    %p464 = por %p462, %p463
    %p465 = scmp.ne.s32.totalorder %s453, %s454
    %p466 = scmp.eq.s32.totalorder %s40, 1
    %p467 = por %p465, %p466
    %p469 = scmp.ne.s32.totalorder %s454, %s468
    %p470 = scmp.eq.s32.totalorder %s40, 0
    %p471 = por %p469, %p470
    %s473 = sadd.s32 %s472, 1
    %p476 = scmp.eq.s32.totalorder %s34, 1
    %p477 = scmp.ne.s32.totalorder %s472, %s474
    %p478 = scmp.eq.s32.totalorder %s34, 0
    %p479 = por %p477, %p478
    %p480 = scmp.ne.s32.totalorder %s472, %s474
    %p481 = scmp.eq.s32.totalorder %s39, 1
    %p482 = por %p480, %p481
    %p483 = scmp.ne.s32.totalorder %s474, %s475
    %p484 = scmp.eq.s32.totalorder %s39, 0
    %p485 = por %p483, %p484
    %p486 = scmp.ne.s32.totalorder %s474, %s475
    %p487 = scmp.eq.s32.totalorder %s40, 1
    %p488 = por %p486, %p487
    %p490 = scmp.ne.s32.totalorder %s475, %s489
    %p491 = scmp.eq.s32.totalorder %s40, 0
    %p492 = por %p490, %p491
    %s494 = sadd.s32 %s493, 1
    %p497 = scmp.eq.s32.totalorder %s34, 1
    %p498 = scmp.ne.s32.totalorder %s493, %s495
    %p499 = scmp.eq.s32.totalorder %s34, 0
    %p500 = por %p498, %p499
    %p501 = scmp.ne.s32.totalorder %s493, %s495
    %p502 = scmp.eq.s32.totalorder %s39, 1
    %p503 = por %p501, %p502
    %p504 = scmp.ne.s32.totalorder %s495, %s496
    %p505 = scmp.eq.s32.totalorder %s39, 0
    %p506 = por %p504, %p505
    %p507 = scmp.ne.s32.totalorder %s495, %s496
    %p508 = scmp.eq.s32.totalorder %s40, 1
    %p509 = por %p507, %p508
    %p511 = scmp.ne.s32.totalorder %s496, %s510
    %p512 = scmp.eq.s32.totalorder %s40, 0
    %p513 = por %p511, %p512
    %s515 = sadd.s32 %s514, 1
    %p518 = scmp.eq.s32.totalorder %s34, 1
    %p519 = scmp.ne.s32.totalorder %s514, %s516
    %p520 = scmp.eq.s32.totalorder %s34, 0
    %p521 = por %p519, %p520
    %p522 = scmp.ne.s32.totalorder %s514, %s516
    %p523 = scmp.eq.s32.totalorder %s39, 1
    %p524 = por %p522, %p523
    %p525 = scmp.ne.s32.totalorder %s516, %s517
    %p526 = scmp.eq.s32.totalorder %s39, 0
    %p527 = por %p525, %p526
    %p528 = scmp.ne.s32.totalorder %s516, %s517
    %p529 = scmp.eq.s32.totalorder %s40, 1
    %p530 = por %p528, %p529
    %p532 = scmp.ne.s32.totalorder %s517, %s531
    %p533 = scmp.eq.s32.totalorder %s40, 0
    %p534 = por %p532, %p533
    %s536 = sadd.s32 %s535, 1
    %p539 = scmp.eq.s32.totalorder %s34, 1
    %p540 = scmp.ne.s32.totalorder %s535, %s537
    %p541 = scmp.eq.s32.totalorder %s34, 0
    %p542 = por %p540, %p541
    %p543 = scmp.ne.s32.totalorder %s535, %s537
    %p544 = scmp.eq.s32.totalorder %s39, 1
    %p545 = por %p543, %p544
    %p546 = scmp.ne.s32.totalorder %s537, %s538
    %p547 = scmp.eq.s32.totalorder %s39, 0
    %p548 = por %p546, %p547
    %p549 = scmp.ne.s32.totalorder %s537, %s538
    %p550 = scmp.eq.s32.totalorder %s40, 1
    %p551 = por %p549, %p550
    %p553 = scmp.ne.s32.totalorder %s538, %s552
    %p554 = scmp.eq.s32.totalorder %s40, 0
    %p555 = por %p553, %p554
    %s557 = sadd.s32 %s556, 1
    %p560 = scmp.eq.s32.totalorder %s34, 1
    %p561 = scmp.ne.s32.totalorder %s556, %s558
    %p562 = scmp.eq.s32.totalorder %s34, 0
    %p563 = por %p561, %p562
    %p564 = scmp.ne.s32.totalorder %s556, %s558
    %p565 = scmp.eq.s32.totalorder %s39, 1
    %p566 = por %p564, %p565
    %p567 = scmp.ne.s32.totalorder %s558, %s559
    %p568 = scmp.eq.s32.totalorder %s39, 0
    %p569 = por %p567, %p568
    %p570 = scmp.ne.s32.totalorder %s558, %s559
    %p571 = scmp.eq.s32.totalorder %s40, 1
    %p572 = por %p570, %p571
    %p574 = scmp.ne.s32.totalorder %s559, %s573
    %p575 = scmp.eq.s32.totalorder %s40, 0
    %p576 = por %p574, %p575
    %s578 = sadd.s32 %s577, 1
    %p581 = scmp.eq.s32.totalorder %s34, 1
    %p582 = scmp.ne.s32.totalorder %s577, %s579
    %p583 = scmp.eq.s32.totalorder %s34, 0
    %p584 = por %p582, %p583
    %p585 = scmp.ne.s32.totalorder %s577, %s579
    %p586 = scmp.eq.s32.totalorder %s39, 1
    %p587 = por %p585, %p586
    %p588 = scmp.ne.s32.totalorder %s579, %s580
    %p589 = scmp.eq.s32.totalorder %s39, 0
    %p590 = por %p588, %p589
    %p591 = scmp.ne.s32.totalorder %s579, %s580
    %p592 = scmp.eq.s32.totalorder %s40, 1
    %p593 = por %p591, %p592
    %p595 = scmp.ne.s32.totalorder %s580, %s594
    %p596 = scmp.eq.s32.totalorder %s40, 0
    %p597 = por %p595, %p596
    %s599 = sadd.s32 %s598, 1
    %p602 = scmp.eq.s32.totalorder %s34, 1
    %p603 = scmp.ne.s32.totalorder %s598, %s600
    %p604 = scmp.eq.s32.totalorder %s34, 0
    %p605 = por %p603, %p604
    %p606 = scmp.ne.s32.totalorder %s598, %s600
    %p607 = scmp.eq.s32.totalorder %s39, 1
    %p608 = por %p606, %p607
    %p609 = scmp.ne.s32.totalorder %s600, %s601
    %p610 = scmp.eq.s32.totalorder %s39, 0
    %p611 = por %p609, %p610
    %p612 = scmp.ne.s32.totalorder %s600, %s601
    %p613 = scmp.eq.s32.totalorder %s40, 1
    %p614 = por %p612, %p613
    %p616 = scmp.ne.s32.totalorder %s601, %s615
    %p617 = scmp.eq.s32.totalorder %s40, 0
    %p618 = por %p616, %p617
    %s620 = sadd.s32 %s619, 1
    %p623 = scmp.eq.s32.totalorder %s34, 1
    %p624 = scmp.ne.s32.totalorder %s619, %s621
    %p625 = scmp.eq.s32.totalorder %s34, 0
    %p626 = por %p624, %p625
    %p627 = scmp.ne.s32.totalorder %s619, %s621
    %p628 = scmp.eq.s32.totalorder %s39, 1
    %p629 = por %p627, %p628
    %p630 = scmp.ne.s32.totalorder %s621, %s622
    %p631 = scmp.eq.s32.totalorder %s39, 0
    %p632 = por %p630, %p631
    %p633 = scmp.ne.s32.totalorder %s621, %s622
    %p634 = scmp.eq.s32.totalorder %s40, 1
    %p635 = por %p633, %p634
    %p637 = scmp.ne.s32.totalorder %s622, %s636
    %p638 = scmp.eq.s32.totalorder %s40, 0
    %p639 = por %p637, %p638
    %s640 = ssub.s32 %s34, %s41
    %p641 = scmp.eq.s32.totalorder %s640, 0
    %s643 = sadd.s32 %s642, 1
    %s644 = scalar_select %p641, %s642, %s643
    %p647 = pneg %p641
    %p648 = scmp.eq.s32.totalorder %s34, 1
    %p649 = por %p647, %p648
    %p650 = scmp.ne.s32.totalorder %s642, %s645
    %p651 = scmp.eq.s32.totalorder %s34, 0
    %p652 = por %p650, %p651
    %p653 = scmp.ne.s32.totalorder %s642, %s645
    %p654 = scmp.eq.s32.totalorder %s39, 1
    %p655 = por %p653, %p654
    %p656 = scmp.ne.s32.totalorder %s645, %s646
    %p657 = scmp.eq.s32.totalorder %s39, 0
    %p658 = por %p656, %p657
    %p659 = scmp.ne.s32.totalorder %s645, %s646
    %p660 = scmp.eq.s32.totalorder %s40, 1
    %p661 = por %p659, %p660
    %p663 = scmp.ne.s32.totalorder %s646, %s662
    %p664 = scmp.eq.s32.totalorder %s40, 0
    %p665 = por %p663, %p664
    %p666 = scmp.le.s32.totalorder 1, %s34
    %p667 = scmp.lt.s32.totalorder %s34, 3
    %p668 = pnand %p666, %p667
    %p669 = pneg %p668
    // Predicated region
    $region9: #{_lambda_.2} parent=5 // pred_check
      _
    $region10: #{_lambda_.2} parent=5 // pred_check_branch
      %671 = sbr.rel (%p668) target = $region12
    $region11: #{_lambda_.2} parent=5 // pred_region
      %s672 = ssub.s32 %s34, 1
      // Predicated region
      $region13: #{_lambda_.2} parent=11 // pred_check
        %p673 = pneg %p107
      $region14: #{_lambda_.2} parent=11 // pred_check_branch
        %675 = sbr.rel (%p673) target = $region16
      $region15: #{_lambda_.2} parent=11 // pred_region
        _
      $region16: #{_lambda_.2} parent=11 // pred_fallthru
        _
      // Predicated region
      $region17: #{_lambda_.2} parent=11 // pred_check
        %p676 = pneg %p128
      $region18: #{_lambda_.2} parent=11 // pred_check_branch
        %678 = sbr.rel (%p676) target = $region20
      $region19: #{_lambda_.2} parent=11 // pred_region
        _
      $region20: #{_lambda_.2} parent=11 // pred_fallthru
        _
      // Predicated region
      $region21: #{_lambda_.2} parent=11 // pred_check
        %p679 = pneg %p149
      $region22: #{_lambda_.2} parent=11 // pred_check_branch
        %681 = sbr.rel (%p679) target = $region24
      $region23: #{_lambda_.2} parent=11 // pred_region
        _
      $region24: #{_lambda_.2} parent=11 // pred_fallthru
        _
      // Predicated region
      $region25: #{_lambda_.2} parent=11 // pred_check
        %p682 = pneg %p170
      $region26: #{_lambda_.2} parent=11 // pred_check_branch
        %684 = sbr.rel (%p682) target = $region28
      $region27: #{_lambda_.2} parent=11 // pred_region
        _
      $region28: #{_lambda_.2} parent=11 // pred_fallthru
        _
      // Predicated region
      $region29: #{_lambda_.2} parent=11 // pred_check
        %p685 = pneg %p191
      $region30: #{_lambda_.2} parent=11 // pred_check_branch
        %687 = sbr.rel (%p685) target = $region32
      $region31: #{_lambda_.2} parent=11 // pred_region
        _
      $region32: #{_lambda_.2} parent=11 // pred_fallthru
        _
      // Predicated region
      $region33: #{_lambda_.2} parent=11 // pred_check
        %p688 = pneg %p212
      $region34: #{_lambda_.2} parent=11 // pred_check_branch
        %690 = sbr.rel (%p688) target = $region36
      $region35: #{_lambda_.2} parent=11 // pred_region
        _
      $region36: #{_lambda_.2} parent=11 // pred_fallthru
        _
      // Predicated region
      $region37: #{_lambda_.2} parent=11 // pred_check
        %p691 = pneg %p233
      $region38: #{_lambda_.2} parent=11 // pred_check_branch
        %693 = sbr.rel (%p691) target = $region40
      $region39: #{_lambda_.2} parent=11 // pred_region
        _
      $region40: #{_lambda_.2} parent=11 // pred_fallthru
        _
      // Predicated region
      $region41: #{_lambda_.2} parent=11 // pred_check
        %p694 = pneg %p254
      $region42: #{_lambda_.2} parent=11 // pred_check_branch
        %696 = sbr.rel (%p694) target = $region44
      $region43: #{_lambda_.2} parent=11 // pred_region
        _
      $region44: #{_lambda_.2} parent=11 // pred_fallthru
        _
      // Predicated region
      $region45: #{_lambda_.2} parent=11 // pred_check
        %p697 = pneg %p275
      $region46: #{_lambda_.2} parent=11 // pred_check_branch
        %699 = sbr.rel (%p697) target = $region48
      $region47: #{_lambda_.2} parent=11 // pred_region
        _
      $region48: #{_lambda_.2} parent=11 // pred_fallthru
        _
      // Predicated region
      $region49: #{_lambda_.2} parent=11 // pred_check
        %p700 = pneg %p296
      $region50: #{_lambda_.2} parent=11 // pred_check_branch
        %702 = sbr.rel (%p700) target = $region52
      $region51: #{_lambda_.2} parent=11 // pred_region
        _
      $region52: #{_lambda_.2} parent=11 // pred_fallthru
        _
      // Predicated region
      $region53: #{_lambda_.2} parent=11 // pred_check
        %p703 = pneg %p317
      $region54: #{_lambda_.2} parent=11 // pred_check_branch
        %705 = sbr.rel (%p703) target = $region56
      $region55: #{_lambda_.2} parent=11 // pred_region
        _
      $region56: #{_lambda_.2} parent=11 // pred_fallthru
        _
      // Predicated region
      $region57: #{_lambda_.2} parent=11 // pred_check
        %p706 = pneg %p338
      $region58: #{_lambda_.2} parent=11 // pred_check_branch
        %708 = sbr.rel (%p706) target = $region60
      $region59: #{_lambda_.2} parent=11 // pred_region
        _
      $region60: #{_lambda_.2} parent=11 // pred_fallthru
        _
      // Predicated region
      $region61: #{_lambda_.2} parent=11 // pred_check
        %p709 = pneg %p359
      $region62: #{_lambda_.2} parent=11 // pred_check_branch
        %711 = sbr.rel (%p709) target = $region64
      $region63: #{_lambda_.2} parent=11 // pred_region
        _
      $region64: #{_lambda_.2} parent=11 // pred_fallthru
        _
      // Predicated region
      $region65: #{_lambda_.2} parent=11 // pred_check
        %p712 = pneg %p380
      $region66: #{_lambda_.2} parent=11 // pred_check_branch
        %714 = sbr.rel (%p712) target = $region68
      $region67: #{_lambda_.2} parent=11 // pred_region
        _
      $region68: #{_lambda_.2} parent=11 // pred_fallthru
        _
      // Predicated region
      $region69: #{_lambda_.2} parent=11 // pred_check
        %p715 = pneg %p401
      $region70: #{_lambda_.2} parent=11 // pred_check_branch
        %717 = sbr.rel (%p715) target = $region72
      $region71: #{_lambda_.2} parent=11 // pred_region
        _
      $region72: #{_lambda_.2} parent=11 // pred_fallthru
        _
      // Predicated region
      $region73: #{_lambda_.2} parent=11 // pred_check
        %p718 = pneg %p422
      $region74: #{_lambda_.2} parent=11 // pred_check_branch
        %720 = sbr.rel (%p718) target = $region76
      $region75: #{_lambda_.2} parent=11 // pred_region
        _
      $region76: #{_lambda_.2} parent=11 // pred_fallthru
        _
      // Predicated region
      $region77: #{_lambda_.2} parent=11 // pred_check
        %p721 = pneg %p443
      $region78: #{_lambda_.2} parent=11 // pred_check_branch
        %723 = sbr.rel (%p721) target = $region80
      $region79: #{_lambda_.2} parent=11 // pred_region
        _
      $region80: #{_lambda_.2} parent=11 // pred_fallthru
        _
      // Predicated region
      $region81: #{_lambda_.2} parent=11 // pred_check
        %p724 = pneg %p464
      $region82: #{_lambda_.2} parent=11 // pred_check_branch
        %726 = sbr.rel (%p724) target = $region84
      $region83: #{_lambda_.2} parent=11 // pred_region
        _
      $region84: #{_lambda_.2} parent=11 // pred_fallthru
        _
      // Predicated region
      $region85: #{_lambda_.2} parent=11 // pred_check
        %p727 = pneg %p485
      $region86: #{_lambda_.2} parent=11 // pred_check_branch
        %729 = sbr.rel (%p727) target = $region88
      $region87: #{_lambda_.2} parent=11 // pred_region
        _
      $region88: #{_lambda_.2} parent=11 // pred_fallthru
        _
      // Predicated region
      $region89: #{_lambda_.2} parent=11 // pred_check
        %p730 = pneg %p506
      $region90: #{_lambda_.2} parent=11 // pred_check_branch
        %732 = sbr.rel (%p730) target = $region92
      $region91: #{_lambda_.2} parent=11 // pred_region
        _
      $region92: #{_lambda_.2} parent=11 // pred_fallthru
        _
      // Predicated region
      $region93: #{_lambda_.2} parent=11 // pred_check
        %p733 = pneg %p527
      $region94: #{_lambda_.2} parent=11 // pred_check_branch
        %735 = sbr.rel (%p733) target = $region96
      $region95: #{_lambda_.2} parent=11 // pred_region
        _
      $region96: #{_lambda_.2} parent=11 // pred_fallthru
        _
      // Predicated region
      $region97: #{_lambda_.2} parent=11 // pred_check
        %p736 = pneg %p548
      $region98: #{_lambda_.2} parent=11 // pred_check_branch
        %738 = sbr.rel (%p736) target = $region100
      $region99: #{_lambda_.2} parent=11 // pred_region
        _
      $region100: #{_lambda_.2} parent=11 // pred_fallthru
        _
      // Predicated region
      $region101: #{_lambda_.2} parent=11 // pred_check
        %p739 = pneg %p569
      $region102: #{_lambda_.2} parent=11 // pred_check_branch
        %741 = sbr.rel (%p739) target = $region104
      $region103: #{_lambda_.2} parent=11 // pred_region
        _
      $region104: #{_lambda_.2} parent=11 // pred_fallthru
        _
      // Predicated region
      $region105: #{_lambda_.2} parent=11 // pred_check
        %p742 = pneg %p590
      $region106: #{_lambda_.2} parent=11 // pred_check_branch
        %744 = sbr.rel (%p742) target = $region108
      $region107: #{_lambda_.2} parent=11 // pred_region
        _
      $region108: #{_lambda_.2} parent=11 // pred_fallthru
        _
      // Predicated region
      $region109: #{_lambda_.2} parent=11 // pred_check
        %p745 = pneg %p611
      $region110: #{_lambda_.2} parent=11 // pred_check_branch
        %747 = sbr.rel (%p745) target = $region112
      $region111: #{_lambda_.2} parent=11 // pred_region
        _
      $region112: #{_lambda_.2} parent=11 // pred_fallthru
        _
      // Predicated region
      $region113: #{_lambda_.2} parent=11 // pred_check
        %p748 = pneg %p632
      $region114: #{_lambda_.2} parent=11 // pred_check_branch
        %750 = sbr.rel (%p748) target = $region116
      $region115: #{_lambda_.2} parent=11 // pred_region
        _
      $region116: #{_lambda_.2} parent=11 // pred_fallthru
        _
    $region12: #{_lambda_.2} parent=5 // pred_fallthru
      _
    %p751 = scmp.lt.s32.totalorder %s34, 2
    // Predicated region
    $region117: #{_lambda_.2} parent=5 // pred_check
      %p752 = pneg %p751
    $region118: #{_lambda_.2} parent=5 // pred_check_branch
      %754 = sbr.rel (%p752) target = $region120
    $region119: #{_lambda_.2} parent=5 // pred_region
      // Predicated region
      $region121: #{_lambda_.2} parent=119 // pred_check
        %p755 = pneg %p54
      $region122: #{_lambda_.2} parent=119 // pred_check_branch
        %757 = sbr.rel (%p755) target = $region124
      $region123: #{_lambda_.2} parent=119 // pred_region
        %p758 = scmp.lt.s32.totalorder %s34, 1
        %s759 = scalar_select %p758, %s34, 1
        %s760 = smul.addr %s759, 2
        %s761 = smul.addr %s760, 8
        %s762 = scalar_lea.vmem %s0, %s761
      $region124: #{_lambda_.2} parent=119 // pred_fallthru
        _
      // Predicated region
      $region125: #{_lambda_.2} parent=119 // pred_check
        %p763 = pneg %p80
      $region126: #{_lambda_.2} parent=119 // pred_check_branch
        %765 = sbr.rel (%p763) target = $region128
      $region127: #{_lambda_.2} parent=119 // pred_region
        %p766 = scmp.lt.s32.totalorder %s34, 1
        %s767 = scalar_select %p766, %s34, 1
        %s768 = scalar_lea.vmem %s1, %s767
      $region128: #{_lambda_.2} parent=119 // pred_fallthru
        _
    $region120: #{_lambda_.2} parent=5 // pred_fallthru
      _
    %p769 = scmp.le.s32.totalorder 1, %s34
    %p770 = scmp.lt.s32.totalorder %s34, 3
    %p771 = pnand %p769, %p770
    %p772 = pneg %p771
    // Predicated region
    $region129: #{_lambda_.2} parent=5 // pred_check
      _
    $region130: #{_lambda_.2} parent=5 // pred_check_branch
      %774 = sbr.rel (%p771) target = $region132
    $region131: #{_lambda_.2} parent=5 // pred_region
      %s775 = ssub.s32 %s34, 1
      %p776 = scmp.lt.s32.totalorder %s39, 1
      %s777 = scalar_select %p776, %s39, 1
      %s778 = smul.addr %s777, 2
      %s779 = smul.addr %s778, 8
      %s780 = scalar_lea.vmem %s0, %s779
      %p781 = pneg %p60
      %p782 = pneg %p57
      %p783 = scmp.lt.s32.totalorder %s39, 1
      %s784 = scalar_select %p783, %s39, 1
      %s785 = scalar_lea.vmem %s1, %s784
      %p786 = pneg %p86
      %p787 = pneg %p83
      %p788 = pneg %p107
      %p789 = pneg %p104
      %p790 = pneg %p128
      %p791 = pneg %p125
      %p792 = pneg %p149
      %p793 = pneg %p146
      %p794 = pneg %p170
      %p795 = pneg %p167
      %p796 = pneg %p191
      %p797 = pneg %p188
      %p798 = pneg %p212
      %p799 = pneg %p209
      %p800 = pneg %p233
      %p801 = pneg %p230
      %p802 = pneg %p254
      %p803 = pneg %p251
      %p804 = pneg %p275
      %p805 = pneg %p272
      %p806 = pneg %p296
      %p807 = pneg %p293
      %p808 = pneg %p317
      %p809 = pneg %p314
      %p810 = pneg %p338
      %p811 = pneg %p335
      %p812 = pneg %p359
      %p813 = pneg %p356
      %p814 = pneg %p380
      %p815 = pneg %p377
      %p816 = pneg %p401
      %p817 = pneg %p398
      %p818 = pneg %p422
      %p819 = pneg %p419
      %p820 = pneg %p443
      %p821 = pneg %p440
      %p822 = pneg %p464
      %p823 = pneg %p461
      %p824 = pneg %p485
      %p825 = pneg %p482
      %p826 = pneg %p506
      %p827 = pneg %p503
      %p828 = pneg %p527
      %p829 = pneg %p524
      %p830 = pneg %p548
      %p831 = pneg %p545
      %p832 = pneg %p569
      %p833 = pneg %p566
      %p834 = pneg %p590
      %p835 = pneg %p587
      %p836 = pneg %p611
      %p837 = pneg %p608
      %p838 = pneg %p632
      %p839 = pneg %p629
      %p840 = pneg %p658
      %p841 = pneg %p655
      %p842 = scmp.lt.s32.totalorder %s39, 1
      %s843 = scalar_select %p842, %s39, 1
      %s844 = smul.addr %s843, 2
      %s845 = smul.addr %s844, 8
      %s846 = scalar_lea.vmem %s28, %s845
      %p847 = scmp.lt.s32.totalorder %s39, 1
      %s848 = scalar_select %p847, %s39, 1
      %s849 = smul.addr %s848, 2
      %s850 = smul.addr %s849, 8
      %s851 = scalar_lea.vmem %s0, %s850
      %p852 = scmp.lt.s32.totalorder %s39, 1
      %s853 = scalar_select %p852, %s39, 1
      %s854 = scalar_lea.vmem %s1, %s853
      %p855 = scmp.lt.s32.totalorder %s39, 1
      %s856 = scalar_select %p855, %s39, 1
      %s857 = smul.addr %s856, 2
      %s858 = smul.addr %s857, 8
      %s859 = scalar_lea.vmem %s28, %s858
      %v861 = vld [vmem:[%s851] sm:$0xff]
      %v862 = vld [vmem:[%s851 + $0x8] sm:$0xff]
      %v863 = vld [vmem:[%s854] sm:$0x1]
      %v864 = vpack.c.bf16 %v862, %v861
      %v865 = vld [vmem:[%s2] sm:$0xf]
      %v866 = vld [vmem:[%s2 + $0x4] sm:$0xf]
      %v867 = vld [vmem:[%s2 + $0x8] sm:$0xf]
      %v868 = vld [vmem:[%s2 + $0xc] sm:$0xf]
      %v869 = vld [vmem:[%s3] sm:$0x1]
      %v871 = vlaneseq
      %v872 = vshrl.u32 %v871, 7
      %v873 = vsub.s32 0, %v872
      %v874 = vrot.slane %v869, %v873
      %v880 = vunpack.c.l.b16 %v865
      %v881 = vunpack.c.l.b16 %v866
      %v882 = vunpack.c.l.b16 %v867
      %v883 = vunpack.c.l.b16 %v868
      %v884 = vpack.c.b16 %v881, %v880
      %v885 = vpack.c.b16 %v883, %v882
      %vm888 = vcmask 261120
      %v890 = vsel %vm888, %v864, 0
      %892 = vmatprep.subr.bf16.mxu0 0
      %893 = vmatpush1.bf16.msra.mxu0 0
      %894 = vmatprep.subr.bf16.mxu0 0
      %895 = vmatpush1.bf16.msra.mxu0 0
      %896 = vmatprep.subr.bf16.mxu0 0
      %897 = vmatpush1.bf16.msra.mxu0 0
      %898 = vmatprep.subr.bf16.mxu0 0
      %899 = vmatpush1.bf16.msra.mxu0 0
      %900 = vmatprep.subr.bf16.mxu0 0
      %901 = vmatpush1.bf16.msra.mxu0 0
      %902 = vmatprep.subr.bf16.mxu0 0
      %903 = vmatpush1.bf16.msra.mxu0 0
      %904 = vmatprep.subr.bf16.mxu0 0
      %905 = vmatpush1.bf16.msra.mxu0 %v885
      %906 = vmatprep.subr.bf16.mxu0 0
      %907 = vmatpush1.bf16.msra.mxu0 %v884
      %908 = vmatprep.subr.bf16.mxu0 0
      %909 = vmatpush2.bf16.msra.mxu0 0
      %910 = vmatprep.subr.bf16.mxu0 0
      %911 = vmatpush2.bf16.msra.mxu0 0
      %912 = vmatprep.subr.bf16.mxu0 0
      %913 = vmatpush2.bf16.msra.mxu0 0
      %914 = vmatprep.subr.bf16.mxu0 0
      %915 = vmatpush2.bf16.msra.mxu0 0
      %916 = vmatprep.subr.bf16.mxu0 0
      %917 = vmatpush2.bf16.msra.mxu0 0
      %918 = vmatprep.subr.bf16.mxu0 0
      %919 = vmatpush2.bf16.msra.mxu0 0
      %920 = vmatprep.subr.bf16.mxu0 0
      %921 = vmatpush2.bf16.msra.mxu0 0
      %922 = vmatprep.subr.bf16.mxu0 0
      %923 = vmatpush2.bf16.msra.mxu0 0
      %924 = vmatprep.mubr.bf16.mxu0 0
      %925 = vmatmul.mubr.bf16.gmra.mxu0 %v890
      %v926 = vpop.f32.mrf.mxu0
      %v927 = vadd.f32 %v874, %v926
      %v928 = vpop.f32.mrf.mxu0
      %v929 = vpop.f32.mrf.mxu0
      %v930 = vadd.f32 %v874, %v929
      %v931 = vpop.f32.mrf.mxu0
      %932 = vdwg.mxu0
      %v933 = vpack.c.bf16 %v930, %v927
      %v934 = vld [vmem:[%s4] sm:$0xf]
      %v935 = vld [vmem:[%s4 + $0x4] sm:$0xf]
      %v936 = vld [vmem:[%s4 + $0x8] sm:$0xf]
      %v937 = vld [vmem:[%s4 + $0xc] sm:$0xf]
      %939 = vrot.lane.b32.xlu0 %v933, 96
      %v940 = vpop.permute.xlu0 %939
      %vm941 = vcmask 64512
      %v943 = vsel %vm941, %v933, 0
      %v946 = vsel %vm941, %v940, 0
      %948 = vmatprep.subr.bf16.mxu0 0
      %949 = vmatpush1.bf16.xpose.msra.mxu0 0
      %950 = vmatprep.subr.bf16.mxu0 0
      %951 = vmatpush1.bf16.xpose.msra.mxu0 0
      %952 = vmatprep.subr.bf16.mxu0 0
      %953 = vmatpush1.bf16.xpose.msra.mxu0 0
      %954 = vmatprep.subr.bf16.mxu0 0
      %955 = vmatpush1.bf16.xpose.msra.mxu0 0
      %956 = vmatprep.subr.bf16.mxu0 0
      %957 = vmatpush1.bf16.xpose.msra.mxu0 0
      %958 = vmatprep.subr.bf16.mxu0 0
      %959 = vmatpush1.bf16.xpose.msra.mxu0 0
      %960 = vmatprep.subr.bf16.mxu0 0
      %961 = vmatpush1.bf16.xpose.msra.mxu0 0
      %962 = vmatprep.subr.bf16.mxu0 0
      %963 = vmatpush1.bf16.xpose.msra.mxu0 %v946
      %964 = vmatprep.subr.bf16.mxu0 0
      %965 = vmatpush2.bf16.xpose.msra.mxu0 0
      %966 = vmatprep.subr.bf16.mxu0 0
      %967 = vmatpush2.bf16.xpose.msra.mxu0 0
      %968 = vmatprep.subr.bf16.mxu0 0
      %969 = vmatpush2.bf16.xpose.msra.mxu0 0
      %970 = vmatprep.subr.bf16.mxu0 0
      %971 = vmatpush2.bf16.xpose.msra.mxu0 0
      %972 = vmatprep.subr.bf16.mxu0 0
      %973 = vmatpush2.bf16.xpose.msra.mxu0 0
      %974 = vmatprep.subr.bf16.mxu0 0
      %975 = vmatpush2.bf16.xpose.msra.mxu0 0
      %976 = vmatprep.subr.bf16.mxu0 0
      %977 = vmatpush2.bf16.xpose.msra.mxu0 0
      %978 = vmatprep.subr.bf16.mxu0 0
      %979 = vmatpush2.bf16.xpose.msra.mxu0 0
      %980 = vmatprep.mubr.bf16.mxu0 0
      %981 = vmatmul.mubr.bf16.gmra.mxu0 %v943
      %v982 = vpop.f32.mrf.mxu0
      %v983 = vadd.f32 0.0, %v982
      %v984 = vpop.f32.mrf.mxu0
      %v985 = vpop.f32.mrf.mxu0
      %v986 = vadd.f32 0.0, %v985
      %v987 = vpop.f32.mrf.mxu0
      %988 = vdwg.mxu0
      %v989 = vmul.f32 %v983, 0.35355338
      %v990 = vmul.f32 %v986, 0.35355338
      %v992 = vlaneseq
      %v993 = vshrl.u32 %v992, 7
      %v994 = vsub.s32 0, %v993
      %v995 = vrot.slane %v863, %v994
      %v997 = vadd.f32 %v989, %v995
      %v998 = vadd.f32 %v990, %v995
      %vm999 = vcmask 130048
      %v1000 = vsel %vm999, %v997, -inf
      %1001 = vmax.xlane.f32.xlu0 %v1000
      %v1002 = vpop.xlane.xlu0 %1001
      %v1003 = vsel %vm999, %v998, -inf
      %1004 = vmax.xlane.f32.xlu0 %v1003
      %v1005 = vpop.xlane.xlu0 %1004
      %v1006 = vsub.f32 %v997, %v1002
      %v1007 = vsub.f32 %v998, %v1005
      %v1008 = vmul.f32 %v1006, 1.442695
      %v1009 = vpow.pop %v1008
      %v1010 = vmul.f32 %v1007, 1.442695
      %v1011 = vpow.pop %v1010
      %v1012 = vsel %vm999, %v1009, 0.0
      %1013 = vadd.xlane.f32.xlu0 %v1012
      %v1014 = vpop.xlane.xlu0 %1013
      %v1015 = vsel %vm999, %v1011, 0.0
      %1016 = vadd.xlane.f32.xlu0 %v1015
      %v1017 = vpop.xlane.xlu0 %1016
      %v1018 = vrcp.pop %v1014
      %v1019 = vrcp.pop %v1017
      %v1020 = vmul.f32 %v1009, %v1018
      %v1021 = vmul.f32 %v1011, %v1019
      %v1022 = vpack.c.bf16 %v1021, %v1020
      %1023 = vrot.lane.b32.xlu0 %v933, 64
      %v1024 = vpop.permute.xlu0 %1023
      %v1027 = vsel %vm999, %v1022, 0
      %1029 = vmatprep.subr.bf16.mxu0 0
      %1030 = vmatpush1.bf16.msra.mxu0 0
      %1031 = vmatprep.subr.bf16.mxu0 0
      %1032 = vmatpush1.bf16.msra.mxu0 0
      %1033 = vmatprep.subr.bf16.mxu0 0
      %1034 = vmatpush1.bf16.msra.mxu0 0
      %1035 = vmatprep.subr.bf16.mxu0 0
      %1036 = vmatpush1.bf16.msra.mxu0 0
      %1037 = vmatprep.subr.bf16.mxu0 0
      %1038 = vmatpush1.bf16.msra.mxu0 0
      %1039 = vmatprep.subr.bf16.mxu0 0
      %1040 = vmatpush1.bf16.msra.mxu0 0
      %1041 = vmatprep.subr.bf16.mxu0 0
      %1042 = vmatpush1.bf16.msra.mxu0 0
      %1043 = vmatprep.subr.bf16.mxu0 0
      %1044 = vmatpush1.bf16.msra.mxu0 %v1024
      %1045 = vmatprep.subr.bf16.mxu0 0
      %1046 = vmatpush2.bf16.msra.mxu0 0
      %1047 = vmatprep.subr.bf16.mxu0 0
      %1048 = vmatpush2.bf16.msra.mxu0 0
      %1049 = vmatprep.subr.bf16.mxu0 0
      %1050 = vmatpush2.bf16.msra.mxu0 0
      %1051 = vmatprep.subr.bf16.mxu0 0
      %1052 = vmatpush2.bf16.msra.mxu0 0
      %1053 = vmatprep.subr.bf16.mxu0 0
      %1054 = vmatpush2.bf16.msra.mxu0 0
      %1055 = vmatprep.subr.bf16.mxu0 0
      %1056 = vmatpush2.bf16.msra.mxu0 0
      %1057 = vmatprep.subr.bf16.mxu0 0
      %1058 = vmatpush2.bf16.msra.mxu0 0
      %1059 = vmatprep.subr.bf16.mxu0 0
      %1060 = vmatpush2.bf16.msra.mxu0 0
      %1061 = vmatprep.mubr.bf16.mxu0 0
      %1062 = vmatmul.mubr.bf16.gmra.mxu0 %v1027
      %v1063 = vpop.f32.mrf.mxu0
      %v1064 = vadd.f32 0.0, %v1063
      %v1065 = vpop.f32.mrf.mxu0
      %v1066 = vpop.f32.mrf.mxu0
      %v1067 = vadd.f32 0.0, %v1066
      %v1068 = vpop.f32.mrf.mxu0
      %1069 = vdwg.mxu0
      %v1070 = vpack.c.bf16 %v1067, %v1064
      %1071 = vrot.lane.b32.xlu0 %v933, 120
      %v1072 = vpop.permute.xlu0 %1071
      %1073 = vrot.lane.b32.xlu0 %v933, 88
      %v1074 = vpop.permute.xlu0 %1073
      %v1076 = vsel %vm941, %v1072, 0
      %v1079 = vsel %vm941, %v1074, 0
      %1081 = vmatprep.subr.bf16.mxu0 0
      %1082 = vmatpush1.bf16.xpose.msra.mxu0 0
      %1083 = vmatprep.subr.bf16.mxu0 0
      %1084 = vmatpush1.bf16.xpose.msra.mxu0 0
      %1085 = vmatprep.subr.bf16.mxu0 0
      %1086 = vmatpush1.bf16.xpose.msra.mxu0 0
      %1087 = vmatprep.subr.bf16.mxu0 0
      %1088 = vmatpush1.bf16.xpose.msra.mxu0 0
      %1089 = vmatprep.subr.bf16.mxu0 0
      %1090 = vmatpush1.bf16.xpose.msra.mxu0 0
      %1091 = vmatprep.subr.bf16.mxu0 0
      %1092 = vmatpush1.bf16.xpose.msra.mxu0 0
      %1093 = vmatprep.subr.bf16.mxu0 0
      %1094 = vmatpush1.bf16.xpose.msra.mxu0 0
      %1095 = vmatprep.subr.bf16.mxu0 0
      %1096 = vmatpush1.bf16.xpose.msra.mxu0 %v1079
      %1097 = vmatprep.subr.bf16.mxu0 0
      %1098 = vmatpush2.bf16.xpose.msra.mxu0 0
      %1099 = vmatprep.subr.bf16.mxu0 0
      %1100 = vmatpush2.bf16.xpose.msra.mxu0 0
      %1101 = vmatprep.subr.bf16.mxu0 0
      %1102 = vmatpush2.bf16.xpose.msra.mxu0 0
      %1103 = vmatprep.subr.bf16.mxu0 0
      %1104 = vmatpush2.bf16.xpose.msra.mxu0 0
      %1105 = vmatprep.subr.bf16.mxu0 0
      %1106 = vmatpush2.bf16.xpose.msra.mxu0 0
      %1107 = vmatprep.subr.bf16.mxu0 0
      %1108 = vmatpush2.bf16.xpose.msra.mxu0 0
      %1109 = vmatprep.subr.bf16.mxu0 0
      %1110 = vmatpush2.bf16.xpose.msra.mxu0 0
      %1111 = vmatprep.subr.bf16.mxu0 0
      %1112 = vmatpush2.bf16.xpose.msra.mxu0 0
      %1113 = vmatprep.mubr.bf16.mxu0 0
      %1114 = vmatmul.mubr.bf16.gmra.mxu0 %v1076
      %v1115 = vpop.f32.mrf.mxu0
      %v1116 = vadd.f32 0.0, %v1115
      %v1117 = vpop.f32.mrf.mxu0
      %v1118 = vpop.f32.mrf.mxu0
      %v1119 = vadd.f32 0.0, %v1118
      %v1120 = vpop.f32.mrf.mxu0
      %1121 = vdwg.mxu0
      %v1122 = vmul.f32 %v1116, 0.35355338
      %v1123 = vmul.f32 %v1119, 0.35355338
      %v1124 = vadd.f32 %v1122, %v995
      %v1125 = vadd.f32 %v1123, %v995
      %v1126 = vsel %vm999, %v1124, -inf
      %1127 = vmax.xlane.f32.xlu0 %v1126
      %v1128 = vpop.xlane.xlu0 %1127
      %v1129 = vsel %vm999, %v1125, -inf
      %1130 = vmax.xlane.f32.xlu0 %v1129
      %v1131 = vpop.xlane.xlu0 %1130
      %v1132 = vsub.f32 %v1124, %v1128
      %v1133 = vsub.f32 %v1125, %v1131
      %v1134 = vmul.f32 %v1132, 1.442695
      %v1135 = vpow.pop %v1134
      %v1136 = vmul.f32 %v1133, 1.442695
      %v1137 = vpow.pop %v1136
      %v1138 = vsel %vm999, %v1135, 0.0
      %1139 = vadd.xlane.f32.xlu0 %v1138
      %v1140 = vpop.xlane.xlu0 %1139
      %v1141 = vsel %vm999, %v1137, 0.0
      %1142 = vadd.xlane.f32.xlu0 %v1141
      %v1143 = vpop.xlane.xlu0 %1142
      %v1144 = vrcp.pop %v1140
      %v1145 = vrcp.pop %v1143
      %v1146 = vmul.f32 %v1135, %v1144
      %v1147 = vmul.f32 %v1137, %v1145
      %v1148 = vpack.c.bf16 %v1147, %v1146
      %1149 = vrot.lane.b32.xlu0 %v933, 56
      %v1150 = vpop.permute.xlu0 %1149
      %v1153 = vsel %vm999, %v1148, 0
      %1155 = vmatprep.subr.bf16.mxu0 0
      %1156 = vmatpush1.bf16.msra.mxu0 0
      %1157 = vmatprep.subr.bf16.mxu0 0
      %1158 = vmatpush1.bf16.msra.mxu0 0
      %1159 = vmatprep.subr.bf16.mxu0 0
      %1160 = vmatpush1.bf16.msra.mxu0 0
      %1161 = vmatprep.subr.bf16.mxu0 0
      %1162 = vmatpush1.bf16.msra.mxu0 0
      %1163 = vmatprep.subr.bf16.mxu0 0
      %1164 = vmatpush1.bf16.msra.mxu0 0
      %1165 = vmatprep.subr.bf16.mxu0 0
      %1166 = vmatpush1.bf16.msra.mxu0 0
      %1167 = vmatprep.subr.bf16.mxu0 0
      %1168 = vmatpush1.bf16.msra.mxu0 0
      %1169 = vmatprep.subr.bf16.mxu0 0
      %1170 = vmatpush1.bf16.msra.mxu0 %v1150
      %1171 = vmatprep.subr.bf16.mxu0 0
      %1172 = vmatpush2.bf16.msra.mxu0 0
      %1173 = vmatprep.subr.bf16.mxu0 0
      %1174 = vmatpush2.bf16.msra.mxu0 0
      %1175 = vmatprep.subr.bf16.mxu0 0
      %1176 = vmatpush2.bf16.msra.mxu0 0
      %1177 = vmatprep.subr.bf16.mxu0 0
      %1178 = vmatpush2.bf16.msra.mxu0 0
      %1179 = vmatprep.subr.bf16.mxu0 0
      %1180 = vmatpush2.bf16.msra.mxu0 0
      %1181 = vmatprep.subr.bf16.mxu0 0
      %1182 = vmatpush2.bf16.msra.mxu0 0
      %1183 = vmatprep.subr.bf16.mxu0 0
      %1184 = vmatpush2.bf16.msra.mxu0 0
      %1185 = vmatprep.subr.bf16.mxu0 0
      %1186 = vmatpush2.bf16.msra.mxu0 0
      %1187 = vmatprep.mubr.bf16.mxu0 0
      %1188 = vmatmul.mubr.bf16.gmra.mxu0 %v1153
      %v1189 = vpop.f32.mrf.mxu0
      %v1190 = vadd.f32 0.0, %v1189
      %v1191 = vpop.f32.mrf.mxu0
      %v1192 = vpop.f32.mrf.mxu0
      %v1193 = vadd.f32 0.0, %v1192
      %v1194 = vpop.f32.mrf.mxu0
      %1195 = vdwg.mxu0
      %v1196 = vpack.c.bf16 %v1193, %v1190
      %v1198 = vsel %vm941, %v1196, 0
      %vm1200 = vcmask 1043456
      %v1202 = vsel %vm1200, %v935, 0
      %1204 = vmatprep.subr.bf16.mxu0 0
      %1205 = vmatpush1.bf16.msra.mxu0 0
      %1206 = vmatprep.subr.bf16.mxu0 0
      %1207 = vmatpush1.bf16.msra.mxu0 0
      %1208 = vmatprep.subr.bf16.mxu0 0
      %1209 = vmatpush1.bf16.msra.mxu0 0
      %1210 = vmatprep.subr.bf16.mxu0 0
      %1211 = vmatpush1.bf16.msra.mxu0 0
      %1212 = vmatprep.subr.bf16.mxu0 0
      %1213 = vmatpush1.bf16.msra.mxu0 0
      %1214 = vmatprep.subr.bf16.mxu0 0
      %1215 = vmatpush1.bf16.msra.mxu0 0
      %1216 = vmatprep.subr.bf16.mxu0 0
      %1217 = vmatpush1.bf16.msra.mxu0 0
      %1218 = vmatprep.subr.bf16.mxu0 0
      %1219 = vmatpush1.bf16.msra.mxu0 %v1202
      %1220 = vmatprep.subr.bf16.mxu0 0
      %1221 = vmatpush2.bf16.msra.mxu0 0
      %1222 = vmatprep.subr.bf16.mxu0 0
      %1223 = vmatpush2.bf16.msra.mxu0 0
      %1224 = vmatprep.subr.bf16.mxu0 0
      %1225 = vmatpush2.bf16.msra.mxu0 0
      %1226 = vmatprep.subr.bf16.mxu0 0
      %1227 = vmatpush2.bf16.msra.mxu0 0
      %1228 = vmatprep.subr.bf16.mxu0 0
      %1229 = vmatpush2.bf16.msra.mxu0 0
      %1230 = vmatprep.subr.bf16.mxu0 0
      %1231 = vmatpush2.bf16.msra.mxu0 0
      %1232 = vmatprep.subr.bf16.mxu0 0
      %1233 = vmatpush2.bf16.msra.mxu0 0
      %1234 = vmatprep.subr.bf16.mxu0 0
      %1235 = vmatpush2.bf16.msra.mxu0 0
      %1236 = vmatprep.mubr.bf16.mxu0 0
      %1237 = vmatmul.mubr.bf16.gmra.mxu0 %v1198
      %v1238 = vpop.f32.mrf.mxu0
      %v1239 = vadd.f32 0.0, %v1238
      %v1240 = vpop.f32.mrf.mxu0
      %v1241 = vpop.f32.mrf.mxu0
      %v1242 = vadd.f32 0.0, %v1241
      %v1243 = vpop.f32.mrf.mxu0
      %1244 = vdwg.mxu0
      %v1246 = vsel %vm941, %v1070, 0
      %v1249 = vsel %vm1200, %v934, 0
      %1251 = vmatprep.subr.bf16.mxu0 0
      %1252 = vmatpush1.bf16.msra.mxu0 0
      %1253 = vmatprep.subr.bf16.mxu0 0
      %1254 = vmatpush1.bf16.msra.mxu0 0
      %1255 = vmatprep.subr.bf16.mxu0 0
      %1256 = vmatpush1.bf16.msra.mxu0 0
      %1257 = vmatprep.subr.bf16.mxu0 0
      %1258 = vmatpush1.bf16.msra.mxu0 0
      %1259 = vmatprep.subr.bf16.mxu0 0
      %1260 = vmatpush1.bf16.msra.mxu0 0
      %1261 = vmatprep.subr.bf16.mxu0 0
      %1262 = vmatpush1.bf16.msra.mxu0 0
      %1263 = vmatprep.subr.bf16.mxu0 0
      %1264 = vmatpush1.bf16.msra.mxu0 0
      %1265 = vmatprep.subr.bf16.mxu0 0
      %1266 = vmatpush1.bf16.msra.mxu0 %v1249
      %1267 = vmatprep.subr.bf16.mxu0 0
      %1268 = vmatpush2.bf16.msra.mxu0 0
      %1269 = vmatprep.subr.bf16.mxu0 0
      %1270 = vmatpush2.bf16.msra.mxu0 0
      %1271 = vmatprep.subr.bf16.mxu0 0
      %1272 = vmatpush2.bf16.msra.mxu0 0
      %1273 = vmatprep.subr.bf16.mxu0 0
      %1274 = vmatpush2.bf16.msra.mxu0 0
      %1275 = vmatprep.subr.bf16.mxu0 0
      %1276 = vmatpush2.bf16.msra.mxu0 0
      %1277 = vmatprep.subr.bf16.mxu0 0
      %1278 = vmatpush2.bf16.msra.mxu0 0
      %1279 = vmatprep.subr.bf16.mxu0 0
      %1280 = vmatpush2.bf16.msra.mxu0 0
      %1281 = vmatprep.subr.bf16.mxu0 0
      %1282 = vmatpush2.bf16.msra.mxu0 0
      %1283 = vmatprep.mubr.bf16.mxu0 0
      %1284 = vmatmul.mubr.bf16.gmra.mxu0 %v1246
      %v1285 = vpop.f32.mrf.mxu0
      %v1286 = vadd.f32 %v1239, %v1285
      %v1287 = vpop.f32.mrf.mxu0
      %v1288 = vpop.f32.mrf.mxu0
      %v1289 = vadd.f32 %v1242, %v1288
      %v1290 = vpop.f32.mrf.mxu0
      %1291 = vdwg.mxu0
      %1292 = vrot.lane.b32.xlu0 %v933, 112
      %v1293 = vpop.permute.xlu0 %1292
      %1294 = vrot.lane.b32.xlu0 %v933, 80
      %v1295 = vpop.permute.xlu0 %1294
      %v1297 = vsel %vm941, %v1293, 0
      %v1300 = vsel %vm941, %v1295, 0
      %1302 = vmatprep.subr.bf16.mxu0 0
      %1303 = vmatpush1.bf16.xpose.msra.mxu0 0
      %1304 = vmatprep.subr.bf16.mxu0 0
      %1305 = vmatpush1.bf16.xpose.msra.mxu0 0
      %1306 = vmatprep.subr.bf16.mxu0 0
      %1307 = vmatpush1.bf16.xpose.msra.mxu0 0
      %1308 = vmatprep.subr.bf16.mxu0 0
      %1309 = vmatpush1.bf16.xpose.msra.mxu0 0
      %1310 = vmatprep.subr.bf16.mxu0 0
      %1311 = vmatpush1.bf16.xpose.msra.mxu0 0
      %1312 = vmatprep.subr.bf16.mxu0 0
      %1313 = vmatpush1.bf16.xpose.msra.mxu0 0
      %1314 = vmatprep.subr.bf16.mxu0 0
      %1315 = vmatpush1.bf16.xpose.msra.mxu0 0
      %1316 = vmatprep.subr.bf16.mxu0 0
      %1317 = vmatpush1.bf16.xpose.msra.mxu0 %v1300
      %1318 = vmatprep.subr.bf16.mxu0 0
      %1319 = vmatpush2.bf16.xpose.msra.mxu0 0
      %1320 = vmatprep.subr.bf16.mxu0 0
      %1321 = vmatpush2.bf16.xpose.msra.mxu0 0
      %1322 = vmatprep.subr.bf16.mxu0 0
      %1323 = vmatpush2.bf16.xpose.msra.mxu0 0
      %1324 = vmatprep.subr.bf16.mxu0 0
      %1325 = vmatpush2.bf16.xpose.msra.mxu0 0
      %1326 = vmatprep.subr.bf16.mxu0 0
      %1327 = vmatpush2.bf16.xpose.msra.mxu0 0
      %1328 = vmatprep.subr.bf16.mxu0 0
      %1329 = vmatpush2.bf16.xpose.msra.mxu0 0
      %1330 = vmatprep.subr.bf16.mxu0 0
      %1331 = vmatpush2.bf16.xpose.msra.mxu0 0
      %1332 = vmatprep.subr.bf16.mxu0 0
      %1333 = vmatpush2.bf16.xpose.msra.mxu0 0
      %1334 = vmatprep.mubr.bf16.mxu0 0
      %1335 = vmatmul.mubr.bf16.gmra.mxu0 %v1297
      %v1336 = vpop.f32.mrf.mxu0
      %v1337 = vadd.f32 0.0, %v1336
      %v1338 = vpop.f32.mrf.mxu0
      %v1339 = vpop.f32.mrf.mxu0
      %v1340 = vadd.f32 0.0, %v1339
      %v1341 = vpop.f32.mrf.mxu0
      %1342 = vdwg.mxu0
      %v1343 = vmul.f32 %v1337, 0.35355338
      %v1344 = vmul.f32 %v1340, 0.35355338
      %v1345 = vadd.f32 %v1343, %v995
      %v1346 = vadd.f32 %v1344, %v995
      %v1347 = vsel %vm999, %v1345, -inf
      %1348 = vmax.xlane.f32.xlu0 %v1347
      %v1349 = vpop.xlane.xlu0 %1348
      %v1350 = vsel %vm999, %v1346, -inf
      %1351 = vmax.xlane.f32.xlu0 %v1350
      %v1352 = vpop.xlane.xlu0 %1351
      %v1353 = vsub.f32 %v1345, %v1349
      %v1354 = vsub.f32 %v1346, %v1352
      %v1355 = vmul.f32 %v1353, 1.442695
      %v1356 = vpow.pop %v1355
      %v1357 = vmul.f32 %v1354, 1.442695
      %v1358 = vpow.pop %v1357
      %v1359 = vsel %vm999, %v1356, 0.0
      %1360 = vadd.xlane.f32.xlu0 %v1359
      %v1361 = vpop.xlane.xlu0 %1360
      %v1362 = vsel %vm999, %v1358, 0.0
      %1363 = vadd.xlane.f32.xlu0 %v1362
      %v1364 = vpop.xlane.xlu0 %1363
      %v1365 = vrcp.pop %v1361
      %v1366 = vrcp.pop %v1364
      %v1367 = vmul.f32 %v1356, %v1365
      %v1368 = vmul.f32 %v1358, %v1366
      %v1369 = vpack.c.bf16 %v1368, %v1367
      %1370 = vrot.lane.b32.xlu0 %v933, 48
      %v1371 = vpop.permute.xlu0 %1370
      %v1374 = vsel %vm999, %v1369, 0
      %1376 = vmatprep.subr.bf16.mxu0 0
      %1377 = vmatpush1.bf16.msra.mxu0 0
      %1378 = vmatprep.subr.bf16.mxu0 0
      %1379 = vmatpush1.bf16.msra.mxu0 0
      %1380 = vmatprep.subr.bf16.mxu0 0
      %1381 = vmatpush1.bf16.msra.mxu0 0
      %1382 = vmatprep.subr.bf16.mxu0 0
      %1383 = vmatpush1.bf16.msra.mxu0 0
      %1384 = vmatprep.subr.bf16.mxu0 0
      %1385 = vmatpush1.bf16.msra.mxu0 0
      %1386 = vmatprep.subr.bf16.mxu0 0
      %1387 = vmatpush1.bf16.msra.mxu0 0
      %1388 = vmatprep.subr.bf16.mxu0 0
      %1389 = vmatpush1.bf16.msra.mxu0 0
      %1390 = vmatprep.subr.bf16.mxu0 0
      %1391 = vmatpush1.bf16.msra.mxu0 %v1371
      %1392 = vmatprep.subr.bf16.mxu0 0
      %1393 = vmatpush2.bf16.msra.mxu0 0
      %1394 = vmatprep.subr.bf16.mxu0 0
      %1395 = vmatpush2.bf16.msra.mxu0 0
      %1396 = vmatprep.subr.bf16.mxu0 0
      %1397 = vmatpush2.bf16.msra.mxu0 0
      %1398 = vmatprep.subr.bf16.mxu0 0
      %1399 = vmatpush2.bf16.msra.mxu0 0
      %1400 = vmatprep.subr.bf16.mxu0 0
      %1401 = vmatpush2.bf16.msra.mxu0 0
      %1402 = vmatprep.subr.bf16.mxu0 0
      %1403 = vmatpush2.bf16.msra.mxu0 0
      %1404 = vmatprep.subr.bf16.mxu0 0
      %1405 = vmatpush2.bf16.msra.mxu0 0
      %1406 = vmatprep.subr.bf16.mxu0 0
      %1407 = vmatpush2.bf16.msra.mxu0 0
      %1408 = vmatprep.mubr.bf16.mxu0 0
      %1409 = vmatmul.mubr.bf16.gmra.mxu0 %v1374
      %v1410 = vpop.f32.mrf.mxu0
      %v1411 = vadd.f32 0.0, %v1410
      %v1412 = vpop.f32.mrf.mxu0
      %v1413 = vpop.f32.mrf.mxu0
      %v1414 = vadd.f32 0.0, %v1413
      %v1415 = vpop.f32.mrf.mxu0
      %1416 = vdwg.mxu0
      %v1417 = vpack.c.bf16 %v1414, %v1411
      %v1419 = vsel %vm941, %v1417, 0
      %v1422 = vsel %vm1200, %v936, 0
      %1424 = vmatprep.subr.bf16.mxu0 0
      %1425 = vmatpush1.bf16.msra.mxu0 0
      %1426 = vmatprep.subr.bf16.mxu0 0
      %1427 = vmatpush1.bf16.msra.mxu0 0
      %1428 = vmatprep.subr.bf16.mxu0 0
      %1429 = vmatpush1.bf16.msra.mxu0 0
      %1430 = vmatprep.subr.bf16.mxu0 0
      %1431 = vmatpush1.bf16.msra.mxu0 0
      %1432 = vmatprep.subr.bf16.mxu0 0
      %1433 = vmatpush1.bf16.msra.mxu0 0
      %1434 = vmatprep.subr.bf16.mxu0 0
      %1435 = vmatpush1.bf16.msra.mxu0 0
      %1436 = vmatprep.subr.bf16.mxu0 0
      %1437 = vmatpush1.bf16.msra.mxu0 0
      %1438 = vmatprep.subr.bf16.mxu0 0
      %1439 = vmatpush1.bf16.msra.mxu0 %v1422
      %1440 = vmatprep.subr.bf16.mxu0 0
      %1441 = vmatpush2.bf16.msra.mxu0 0
      %1442 = vmatprep.subr.bf16.mxu0 0
      %1443 = vmatpush2.bf16.msra.mxu0 0
      %1444 = vmatprep.subr.bf16.mxu0 0
      %1445 = vmatpush2.bf16.msra.mxu0 0
      %1446 = vmatprep.subr.bf16.mxu0 0
      %1447 = vmatpush2.bf16.msra.mxu0 0
      %1448 = vmatprep.subr.bf16.mxu0 0
      %1449 = vmatpush2.bf16.msra.mxu0 0
      %1450 = vmatprep.subr.bf16.mxu0 0
      %1451 = vmatpush2.bf16.msra.mxu0 0
      %1452 = vmatprep.subr.bf16.mxu0 0
      %1453 = vmatpush2.bf16.msra.mxu0 0
      %1454 = vmatprep.subr.bf16.mxu0 0
      %1455 = vmatpush2.bf16.msra.mxu0 0
      %1456 = vmatprep.mubr.bf16.mxu0 0
      %1457 = vmatmul.mubr.bf16.gmra.mxu0 %v1419
      %v1458 = vpop.f32.mrf.mxu0
      %v1459 = vadd.f32 0.0, %v1458
      %v1460 = vpop.f32.mrf.mxu0
      %v1461 = vpop.f32.mrf.mxu0
      %v1462 = vadd.f32 0.0, %v1461
      %v1463 = vpop.f32.mrf.mxu0
      %1464 = vdwg.mxu0
      %v1465 = vadd.f32 %v1286, %v1459
      %v1466 = vadd.f32 %v1289, %v1462
      %1467 = vrot.lane.b32.xlu0 %v933, 104
      %v1468 = vpop.permute.xlu0 %1467
      %1469 = vrot.lane.b32.xlu0 %v933, 72
      %v1470 = vpop.permute.xlu0 %1469
      %v1472 = vsel %vm941, %v1468, 0
      %v1475 = vsel %vm941, %v1470, 0
      %1477 = vmatprep.subr.bf16.mxu0 0
      %1478 = vmatpush1.bf16.xpose.msra.mxu0 0
      %1479 = vmatprep.subr.bf16.mxu0 0
      %1480 = vmatpush1.bf16.xpose.msra.mxu0 0
      %1481 = vmatprep.subr.bf16.mxu0 0
      %1482 = vmatpush1.bf16.xpose.msra.mxu0 0
      %1483 = vmatprep.subr.bf16.mxu0 0
      %1484 = vmatpush1.bf16.xpose.msra.mxu0 0
      %1485 = vmatprep.subr.bf16.mxu0 0
      %1486 = vmatpush1.bf16.xpose.msra.mxu0 0
      %1487 = vmatprep.subr.bf16.mxu0 0
      %1488 = vmatpush1.bf16.xpose.msra.mxu0 0
      %1489 = vmatprep.subr.bf16.mxu0 0
      %1490 = vmatpush1.bf16.xpose.msra.mxu0 0
      %1491 = vmatprep.subr.bf16.mxu0 0
      %1492 = vmatpush1.bf16.xpose.msra.mxu0 %v1475
      %1493 = vmatprep.subr.bf16.mxu0 0
      %1494 = vmatpush2.bf16.xpose.msra.mxu0 0
      %1495 = vmatprep.subr.bf16.mxu0 0
      %1496 = vmatpush2.bf16.xpose.msra.mxu0 0
      %1497 = vmatprep.subr.bf16.mxu0 0
      %1498 = vmatpush2.bf16.xpose.msra.mxu0 0
      %1499 = vmatprep.subr.bf16.mxu0 0
      %1500 = vmatpush2.bf16.xpose.msra.mxu0 0
      %1501 = vmatprep.subr.bf16.mxu0 0
      %1502 = vmatpush2.bf16.xpose.msra.mxu0 0
      %1503 = vmatprep.subr.bf16.mxu0 0
      %1504 = vmatpush2.bf16.xpose.msra.mxu0 0
      %1505 = vmatprep.subr.bf16.mxu0 0
      %1506 = vmatpush2.bf16.xpose.msra.mxu0 0
      %1507 = vmatprep.subr.bf16.mxu0 0
      %1508 = vmatpush2.bf16.xpose.msra.mxu0 0
      %1509 = vmatprep.mubr.bf16.mxu0 0
      %1510 = vmatmul.mubr.bf16.gmra.mxu0 %v1472
      %v1511 = vpop.f32.mrf.mxu0
      %v1512 = vadd.f32 0.0, %v1511
      %v1513 = vpop.f32.mrf.mxu0
      %v1514 = vpop.f32.mrf.mxu0
      %v1515 = vadd.f32 0.0, %v1514
      %v1516 = vpop.f32.mrf.mxu0
      %1517 = vdwg.mxu0
      %v1518 = vmul.f32 %v1512, 0.35355338
      %v1519 = vmul.f32 %v1515, 0.35355338
      %v1520 = vadd.f32 %v1518, %v995
      %v1521 = vadd.f32 %v1519, %v995
      %v1522 = vsel %vm999, %v1520, -inf
      %1523 = vmax.xlane.f32.xlu0 %v1522
      %v1524 = vpop.xlane.xlu0 %1523
      %v1525 = vsel %vm999, %v1521, -inf
      %1526 = vmax.xlane.f32.xlu0 %v1525
      %v1527 = vpop.xlane.xlu0 %1526
      %v1528 = vsub.f32 %v1520, %v1524
      %v1529 = vsub.f32 %v1521, %v1527
      %v1530 = vmul.f32 %v1528, 1.442695
      %v1531 = vpow.pop %v1530
      %v1532 = vmul.f32 %v1529, 1.442695
      %v1533 = vpow.pop %v1532
      %v1534 = vsel %vm999, %v1531, 0.0
      %1535 = vadd.xlane.f32.xlu0 %v1534
      %v1536 = vpop.xlane.xlu0 %1535
      %v1537 = vsel %vm999, %v1533, 0.0
      %1538 = vadd.xlane.f32.xlu0 %v1537
      %v1539 = vpop.xlane.xlu0 %1538
      %v1540 = vrcp.pop %v1536
      %v1541 = vrcp.pop %v1539
      %v1542 = vmul.f32 %v1531, %v1540
      %v1543 = vmul.f32 %v1533, %v1541
      %v1544 = vpack.c.bf16 %v1543, %v1542
      %1545 = vrot.lane.b32.xlu0 %v933, 40
      %v1546 = vpop.permute.xlu0 %1545
      %v1549 = vsel %vm999, %v1544, 0
      %1551 = vmatprep.subr.bf16.mxu0 0
      %1552 = vmatpush1.bf16.msra.mxu0 0
      %1553 = vmatprep.subr.bf16.mxu0 0
      %1554 = vmatpush1.bf16.msra.mxu0 0
      %1555 = vmatprep.subr.bf16.mxu0 0
      %1556 = vmatpush1.bf16.msra.mxu0 0
      %1557 = vmatprep.subr.bf16.mxu0 0
      %1558 = vmatpush1.bf16.msra.mxu0 0
      %1559 = vmatprep.subr.bf16.mxu0 0
      %1560 = vmatpush1.bf16.msra.mxu0 0
      %1561 = vmatprep.subr.bf16.mxu0 0
      %1562 = vmatpush1.bf16.msra.mxu0 0
      %1563 = vmatprep.subr.bf16.mxu0 0
      %1564 = vmatpush1.bf16.msra.mxu0 0
      %1565 = vmatprep.subr.bf16.mxu0 0
      %1566 = vmatpush1.bf16.msra.mxu0 %v1546
      %1567 = vmatprep.subr.bf16.mxu0 0
      %1568 = vmatpush2.bf16.msra.mxu0 0
      %1569 = vmatprep.subr.bf16.mxu0 0
      %1570 = vmatpush2.bf16.msra.mxu0 0
      %1571 = vmatprep.subr.bf16.mxu0 0
      %1572 = vmatpush2.bf16.msra.mxu0 0
      %1573 = vmatprep.subr.bf16.mxu0 0
      %1574 = vmatpush2.bf16.msra.mxu0 0
      %1575 = vmatprep.subr.bf16.mxu0 0
      %1576 = vmatpush2.bf16.msra.mxu0 0
      %1577 = vmatprep.subr.bf16.mxu0 0
      %1578 = vmatpush2.bf16.msra.mxu0 0
      %1579 = vmatprep.subr.bf16.mxu0 0
      %1580 = vmatpush2.bf16.msra.mxu0 0
      %1581 = vmatprep.subr.bf16.mxu0 0
      %1582 = vmatpush2.bf16.msra.mxu0 0
      %1583 = vmatprep.mubr.bf16.mxu0 0
      %1584 = vmatmul.mubr.bf16.gmra.mxu0 %v1549
      %v1585 = vpop.f32.mrf.mxu0
      %v1586 = vadd.f32 0.0, %v1585
      %v1587 = vpop.f32.mrf.mxu0
      %v1588 = vpop.f32.mrf.mxu0
      %v1589 = vadd.f32 0.0, %v1588
      %v1590 = vpop.f32.mrf.mxu0
      %1591 = vdwg.mxu0
      %v1592 = vpack.c.bf16 %v1589, %v1586
      %v1594 = vsel %vm941, %v1592, 0
      %v1597 = vsel %vm1200, %v937, 0
      %1599 = vmatprep.subr.bf16.mxu0 0
      %1600 = vmatpush1.bf16.msra.mxu0 0
      %1601 = vmatprep.subr.bf16.mxu0 0
      %1602 = vmatpush1.bf16.msra.mxu0 0
      %1603 = vmatprep.subr.bf16.mxu0 0
      %1604 = vmatpush1.bf16.msra.mxu0 0
      %1605 = vmatprep.subr.bf16.mxu0 0
      %1606 = vmatpush1.bf16.msra.mxu0 0
      %1607 = vmatprep.subr.bf16.mxu0 0
      %1608 = vmatpush1.bf16.msra.mxu0 0
      %1609 = vmatprep.subr.bf16.mxu0 0
      %1610 = vmatpush1.bf16.msra.mxu0 0
      %1611 = vmatprep.subr.bf16.mxu0 0
      %1612 = vmatpush1.bf16.msra.mxu0 0
      %1613 = vmatprep.subr.bf16.mxu0 0
      %1614 = vmatpush1.bf16.msra.mxu0 %v1597
      %1615 = vmatprep.subr.bf16.mxu0 0
      %1616 = vmatpush2.bf16.msra.mxu0 0
      %1617 = vmatprep.subr.bf16.mxu0 0
      %1618 = vmatpush2.bf16.msra.mxu0 0
      %1619 = vmatprep.subr.bf16.mxu0 0
      %1620 = vmatpush2.bf16.msra.mxu0 0
      %1621 = vmatprep.subr.bf16.mxu0 0
      %1622 = vmatpush2.bf16.msra.mxu0 0
      %1623 = vmatprep.subr.bf16.mxu0 0
      %1624 = vmatpush2.bf16.msra.mxu0 0
      %1625 = vmatprep.subr.bf16.mxu0 0
      %1626 = vmatpush2.bf16.msra.mxu0 0
      %1627 = vmatprep.subr.bf16.mxu0 0
      %1628 = vmatpush2.bf16.msra.mxu0 0
      %1629 = vmatprep.subr.bf16.mxu0 0
      %1630 = vmatpush2.bf16.msra.mxu0 0
      %1631 = vmatprep.mubr.bf16.mxu0 0
      %1632 = vmatmul.mubr.bf16.gmra.mxu0 %v1594
      %v1633 = vpop.f32.mrf.mxu0
      %v1634 = vadd.f32 0.0, %v1633
      %v1635 = vpop.f32.mrf.mxu0
      %v1636 = vpop.f32.mrf.mxu0
      %v1637 = vadd.f32 0.0, %v1636
      %v1638 = vpop.f32.mrf.mxu0
      %1639 = vdwg.mxu0
      %v1640 = vadd.f32 %v1465, %v1634
      %v1641 = vadd.f32 %v1466, %v1637
      %v1642 = vld [vmem:[%s5] sm:$0x1]
      %v1644 = vlaneseq
      %v1645 = vshrl.u32 %v1644, 7
      %v1646 = vsub.s32 0, %v1645
      %v1647 = vrot.slane %v1642, %v1646
      %v1649 = vadd.f32 %v1640, %v1647
      %v1650 = vadd.f32 %v1641, %v1647
      %v1651 = vadd.f32 %v861, %v1649
      %v1652 = vadd.f32 %v862, %v1650
      %v1653 = vld [vmem:[%s10] sm:$0x1]
      %v1654 = vld [vmem:[%s11] sm:$0x1]
      %v1655 = vsel %vm888, %v1651, 0.0
      %1656 = vadd.xlane.f32.xlu0 %v1655
      %v1657 = vpop.xlane.xlu0 %1656
      %v1658 = vsel %vm888, %v1652, 0.0
      %1659 = vadd.xlane.f32.xlu0 %v1658
      %v1660 = vpop.xlane.xlu0 %1659
      %v1661 = vrcp.pop 32.0
      %v1662 = vmul.f32 %v1657, %v1661
      %v1663 = vmul.f32 %v1660, %v1661
      %v1664 = vsub.f32 %v1651, %v1662
      %v1665 = vsub.f32 %v1652, %v1663
      %v1666 = vmul.f32 %v1664, %v1664
      %v1667 = vmul.f32 %v1665, %v1665
      %v1668 = vsel %vm888, %v1666, 0.0
      %1669 = vadd.xlane.f32.xlu0 %v1668
      %v1670 = vpop.xlane.xlu0 %1669
      %v1671 = vsel %vm888, %v1667, 0.0
      %1672 = vadd.xlane.f32.xlu0 %v1671
      %v1673 = vpop.xlane.xlu0 %1672
      %v1674 = vmul.f32 %v1670, %v1661
      %v1675 = vmul.f32 %v1673, %v1661
      %v1676 = vadd.f32 %v1674, 1e-05
      %v1677 = vadd.f32 %v1675, 1e-05
      %v1678 = vrsqrt.pop %v1676
      %v1679 = vrsqrt.pop %v1677
      %v1680 = vmul.f32 %v1664, %v1678
      %v1681 = vmul.f32 %v1665, %v1679
      %v1683 = vlaneseq
      %v1684 = vshrl.u32 %v1683, 7
      %v1685 = vsub.s32 0, %v1684
      %v1686 = vrot.slane %v1653, %v1685
      %v1688 = vmul.f32 %v1680, %v1686
      %v1689 = vmul.f32 %v1681, %v1686
      %v1691 = vlaneseq
      %v1692 = vshrl.u32 %v1691, 7
      %v1693 = vsub.s32 0, %v1692
      %v1694 = vrot.slane %v1654, %v1693
      %v1696 = vadd.f32 %v1688, %v1694
      %v1697 = vadd.f32 %v1689, %v1694
      %v1698 = vpack.c.bf16 %v1697, %v1696
      %v1699 = vld [vmem:[%s6] sm:$0xf]
      %v1700 = vld [vmem:[%s6 + $0x4] sm:$0xf]
      %v1701 = vld [vmem:[%s6 + $0x8] sm:$0xf]
      %v1702 = vld [vmem:[%s6 + $0xc] sm:$0xf]
      %v1703 = vld [vmem:[%s7] sm:$0x1]
      %v1705 = vlaneseq
      %v1706 = vshrl.u32 %v1705, 7
      %v1707 = vsub.s32 0, %v1706
      %v1708 = vrot.slane %v1703, %v1707
      %v1714 = vunpack.c.l.b16 %v1699
      %v1715 = vunpack.c.l.b16 %v1700
      %v1716 = vunpack.c.l.b16 %v1701
      %v1717 = vunpack.c.l.b16 %v1702
      %v1718 = vpack.c.b16 %v1715, %v1714
      %v1719 = vpack.c.b16 %v1717, %v1716
      %v1723 = vsel %vm888, %v1698, 0
      %1725 = vmatprep.subr.bf16.mxu0 0
      %1726 = vmatpush1.bf16.msra.mxu0 0
      %1727 = vmatprep.subr.bf16.mxu0 0
      %1728 = vmatpush1.bf16.msra.mxu0 0
      %1729 = vmatprep.subr.bf16.mxu0 0
      %1730 = vmatpush1.bf16.msra.mxu0 0
      %1731 = vmatprep.subr.bf16.mxu0 0
      %1732 = vmatpush1.bf16.msra.mxu0 0
      %1733 = vmatprep.subr.bf16.mxu0 0
      %1734 = vmatpush1.bf16.msra.mxu0 0
      %1735 = vmatprep.subr.bf16.mxu0 0
      %1736 = vmatpush1.bf16.msra.mxu0 0
      %1737 = vmatprep.subr.bf16.mxu0 0
      %1738 = vmatpush1.bf16.msra.mxu0 %v1719
      %1739 = vmatprep.subr.bf16.mxu0 0
      %1740 = vmatpush1.bf16.msra.mxu0 %v1718
      %1741 = vmatprep.subr.bf16.mxu0 0
      %1742 = vmatpush2.bf16.msra.mxu0 0
      %1743 = vmatprep.subr.bf16.mxu0 0
      %1744 = vmatpush2.bf16.msra.mxu0 0
      %1745 = vmatprep.subr.bf16.mxu0 0
      %1746 = vmatpush2.bf16.msra.mxu0 0
      %1747 = vmatprep.subr.bf16.mxu0 0
      %1748 = vmatpush2.bf16.msra.mxu0 0
      %1749 = vmatprep.subr.bf16.mxu0 0
      %1750 = vmatpush2.bf16.msra.mxu0 0
      %1751 = vmatprep.subr.bf16.mxu0 0
      %1752 = vmatpush2.bf16.msra.mxu0 0
      %1753 = vmatprep.subr.bf16.mxu0 0
      %1754 = vmatpush2.bf16.msra.mxu0 0
      %1755 = vmatprep.subr.bf16.mxu0 0
      %1756 = vmatpush2.bf16.msra.mxu0 0
      %1757 = vmatprep.mubr.bf16.mxu0 0
      %1758 = vmatmul.mubr.bf16.gmra.mxu0 %v1723
      %v1759 = vpop.f32.mrf.mxu0
      %v1760 = vadd.f32 %v1708, %v1759
      %v1761 = vpop.f32.mrf.mxu0
      %v1762 = vpop.f32.mrf.mxu0
      %v1763 = vadd.f32 %v1708, %v1762
      %v1764 = vpop.f32.mrf.mxu0
      %1765 = vdwg.mxu0
      %v1766 = vmax.f32 %v1760, 0.0
      %v1767 = vmax.f32 %v1763, 0.0
      %v1768 = vpack.c.bf16 %v1767, %v1766
      %v1769 = vld [vmem:[%s8] sm:$0xf]
      %v1770 = vld [vmem:[%s8 + $0x4] sm:$0xf]
      %v1771 = vld [vmem:[%s9] sm:$0x1]
      %v1773 = vlaneseq
      %v1774 = vshrl.u32 %v1773, 7
      %v1775 = vsub.s32 0, %v1774
      %v1776 = vrot.slane %v1771, %v1775
      %v1780 = vunpack.c.l.b16 %v1769
      %v1781 = vunpack.c.l.b16 %v1770
      %v1782 = vpack.c.b16 %v1781, %v1780
      %v1785 = vsel %vm999, %v1768, 0
      %1787 = vmatprep.subr.bf16.mxu0 0
      %1788 = vmatpush1.bf16.msra.mxu0 0
      %1789 = vmatprep.subr.bf16.mxu0 0
      %1790 = vmatpush1.bf16.msra.mxu0 0
      %1791 = vmatprep.subr.bf16.mxu0 0
      %1792 = vmatpush1.bf16.msra.mxu0 0
      %1793 = vmatprep.subr.bf16.mxu0 0
      %1794 = vmatpush1.bf16.msra.mxu0 0
      %1795 = vmatprep.subr.bf16.mxu0 0
      %1796 = vmatpush1.bf16.msra.mxu0 0
      %1797 = vmatprep.subr.bf16.mxu0 0
      %1798 = vmatpush1.bf16.msra.mxu0 0
      %1799 = vmatprep.subr.bf16.mxu0 0
      %1800 = vmatpush1.bf16.msra.mxu0 0
      %1801 = vmatprep.subr.bf16.mxu0 0
      %1802 = vmatpush1.bf16.msra.mxu0 %v1782
      %1803 = vmatprep.subr.bf16.mxu0 0
      %1804 = vmatpush2.bf16.msra.mxu0 0
      %1805 = vmatprep.subr.bf16.mxu0 0
      %1806 = vmatpush2.bf16.msra.mxu0 0
      %1807 = vmatprep.subr.bf16.mxu0 0
      %1808 = vmatpush2.bf16.msra.mxu0 0
      %1809 = vmatprep.subr.bf16.mxu0 0
      %1810 = vmatpush2.bf16.msra.mxu0 0
      %1811 = vmatprep.subr.bf16.mxu0 0
      %1812 = vmatpush2.bf16.msra.mxu0 0
      %1813 = vmatprep.subr.bf16.mxu0 0
      %1814 = vmatpush2.bf16.msra.mxu0 0
      %1815 = vmatprep.subr.bf16.mxu0 0
      %1816 = vmatpush2.bf16.msra.mxu0 0
      %1817 = vmatprep.subr.bf16.mxu0 0
      %1818 = vmatpush2.bf16.msra.mxu0 0
      %1819 = vmatprep.mubr.bf16.mxu0 0
      %1820 = vmatmul.mubr.bf16.gmra.mxu0 %v1785
      %v1821 = vpop.f32.mrf.mxu0
      %v1822 = vadd.f32 %v1776, %v1821
      %v1823 = vpop.f32.mrf.mxu0
      %v1824 = vpop.f32.mrf.mxu0
      %v1825 = vadd.f32 %v1776, %v1824
      %v1826 = vpop.f32.mrf.mxu0
      %1827 = vdwg.mxu0
      %v1828 = vadd.f32 %v1696, %v1822
      %v1829 = vadd.f32 %v1697, %v1825
      %v1830 = vld [vmem:[%s12] sm:$0x1]
      %v1831 = vld [vmem:[%s13] sm:$0x1]
      %v1832 = vsel %vm888, %v1828, 0.0
      %1833 = vadd.xlane.f32.xlu0 %v1832
      %v1834 = vpop.xlane.xlu0 %1833
      %v1835 = vsel %vm888, %v1829, 0.0
      %1836 = vadd.xlane.f32.xlu0 %v1835
      %v1837 = vpop.xlane.xlu0 %1836
      %v1838 = vmul.f32 %v1834, %v1661
      %v1839 = vmul.f32 %v1837, %v1661
      %v1840 = vsub.f32 %v1828, %v1838
      %v1841 = vsub.f32 %v1829, %v1839
      %v1842 = vmul.f32 %v1840, %v1840
      %v1843 = vmul.f32 %v1841, %v1841
      %v1844 = vsel %vm888, %v1842, 0.0
      %1845 = vadd.xlane.f32.xlu0 %v1844
      %v1846 = vpop.xlane.xlu0 %1845
      %v1847 = vsel %vm888, %v1843, 0.0
      %1848 = vadd.xlane.f32.xlu0 %v1847
      %v1849 = vpop.xlane.xlu0 %1848
      %v1850 = vmul.f32 %v1846, %v1661
      %v1851 = vmul.f32 %v1849, %v1661
      %v1852 = vadd.f32 %v1850, 1e-05
      %v1853 = vadd.f32 %v1851, 1e-05
      %v1854 = vrsqrt.pop %v1852
      %v1855 = vrsqrt.pop %v1853
      %v1856 = vmul.f32 %v1840, %v1854
      %v1857 = vmul.f32 %v1841, %v1855
      %v1859 = vlaneseq
      %v1860 = vshrl.u32 %v1859, 7
      %v1861 = vsub.s32 0, %v1860
      %v1862 = vrot.slane %v1830, %v1861
      %v1864 = vmul.f32 %v1856, %v1862
      %v1865 = vmul.f32 %v1857, %v1862
      %v1867 = vlaneseq
      %v1868 = vshrl.u32 %v1867, 7
      %v1869 = vsub.s32 0, %v1868
      %v1870 = vrot.slane %v1831, %v1869
      %v1872 = vadd.f32 %v1864, %v1870
      %v1873 = vadd.f32 %v1865, %v1870
      %v1874 = vpack.c.bf16 %v1873, %v1872
      %v1875 = vld [vmem:[%s14] sm:$0xf]
      %v1876 = vld [vmem:[%s14 + $0x4] sm:$0xf]
      %v1877 = vld [vmem:[%s14 + $0x8] sm:$0xf]
      %v1878 = vld [vmem:[%s14 + $0xc] sm:$0xf]
      %v1879 = vld [vmem:[%s15] sm:$0x1]
      %v1881 = vlaneseq
      %v1882 = vshrl.u32 %v1881, 7
      %v1883 = vsub.s32 0, %v1882
      %v1884 = vrot.slane %v1879, %v1883
      %v1890 = vunpack.c.l.b16 %v1875
      %v1891 = vunpack.c.l.b16 %v1876
      %v1892 = vunpack.c.l.b16 %v1877
      %v1893 = vunpack.c.l.b16 %v1878
      %v1894 = vpack.c.b16 %v1891, %v1890
      %v1895 = vpack.c.b16 %v1893, %v1892
      %v1899 = vsel %vm888, %v1874, 0
      %1901 = vmatprep.subr.bf16.mxu0 0
      %1902 = vmatpush1.bf16.msra.mxu0 0
      %1903 = vmatprep.subr.bf16.mxu0 0
      %1904 = vmatpush1.bf16.msra.mxu0 0
      %1905 = vmatprep.subr.bf16.mxu0 0
      %1906 = vmatpush1.bf16.msra.mxu0 0
      %1907 = vmatprep.subr.bf16.mxu0 0
      %1908 = vmatpush1.bf16.msra.mxu0 0
      %1909 = vmatprep.subr.bf16.mxu0 0
      %1910 = vmatpush1.bf16.msra.mxu0 0
      %1911 = vmatprep.subr.bf16.mxu0 0
      %1912 = vmatpush1.bf16.msra.mxu0 0
      %1913 = vmatprep.subr.bf16.mxu0 0
      %1914 = vmatpush1.bf16.msra.mxu0 %v1895
      %1915 = vmatprep.subr.bf16.mxu0 0
      %1916 = vmatpush1.bf16.msra.mxu0 %v1894
      %1917 = vmatprep.subr.bf16.mxu0 0
      %1918 = vmatpush2.bf16.msra.mxu0 0
      %1919 = vmatprep.subr.bf16.mxu0 0
      %1920 = vmatpush2.bf16.msra.mxu0 0
      %1921 = vmatprep.subr.bf16.mxu0 0
      %1922 = vmatpush2.bf16.msra.mxu0 0
      %1923 = vmatprep.subr.bf16.mxu0 0
      %1924 = vmatpush2.bf16.msra.mxu0 0
      %1925 = vmatprep.subr.bf16.mxu0 0
      %1926 = vmatpush2.bf16.msra.mxu0 0
      %1927 = vmatprep.subr.bf16.mxu0 0
      %1928 = vmatpush2.bf16.msra.mxu0 0
      %1929 = vmatprep.subr.bf16.mxu0 0
      %1930 = vmatpush2.bf16.msra.mxu0 0
      %1931 = vmatprep.subr.bf16.mxu0 0
      %1932 = vmatpush2.bf16.msra.mxu0 0
      %1933 = vmatprep.mubr.bf16.mxu0 0
      %1934 = vmatmul.mubr.bf16.gmra.mxu0 %v1899
      %v1935 = vpop.f32.mrf.mxu0
      %v1936 = vadd.f32 %v1884, %v1935
      %v1937 = vpop.f32.mrf.mxu0
      %v1938 = vpop.f32.mrf.mxu0
      %v1939 = vadd.f32 %v1884, %v1938
      %v1940 = vpop.f32.mrf.mxu0
      %1941 = vdwg.mxu0
      %v1942 = vpack.c.bf16 %v1939, %v1936
      %v1943 = vld [vmem:[%s16] sm:$0xf]
      %v1944 = vld [vmem:[%s16 + $0x4] sm:$0xf]
      %v1945 = vld [vmem:[%s16 + $0x8] sm:$0xf]
      %v1946 = vld [vmem:[%s16 + $0xc] sm:$0xf]
      %1948 = vrot.lane.b32.xlu0 %v1942, 96
      %v1949 = vpop.permute.xlu0 %1948
      %v1951 = vsel %vm941, %v1942, 0
      %v1954 = vsel %vm941, %v1949, 0
      %1956 = vmatprep.subr.bf16.mxu0 0
      %1957 = vmatpush1.bf16.xpose.msra.mxu0 0
      %1958 = vmatprep.subr.bf16.mxu0 0
      %1959 = vmatpush1.bf16.xpose.msra.mxu0 0
      %1960 = vmatprep.subr.bf16.mxu0 0
      %1961 = vmatpush1.bf16.xpose.msra.mxu0 0
      %1962 = vmatprep.subr.bf16.mxu0 0
      %1963 = vmatpush1.bf16.xpose.msra.mxu0 0
      %1964 = vmatprep.subr.bf16.mxu0 0
      %1965 = vmatpush1.bf16.xpose.msra.mxu0 0
      %1966 = vmatprep.subr.bf16.mxu0 0
      %1967 = vmatpush1.bf16.xpose.msra.mxu0 0
      %1968 = vmatprep.subr.bf16.mxu0 0
      %1969 = vmatpush1.bf16.xpose.msra.mxu0 0
      %1970 = vmatprep.subr.bf16.mxu0 0
      %1971 = vmatpush1.bf16.xpose.msra.mxu0 %v1954
      %1972 = vmatprep.subr.bf16.mxu0 0
      %1973 = vmatpush2.bf16.xpose.msra.mxu0 0
      %1974 = vmatprep.subr.bf16.mxu0 0
      %1975 = vmatpush2.bf16.xpose.msra.mxu0 0
      %1976 = vmatprep.subr.bf16.mxu0 0
      %1977 = vmatpush2.bf16.xpose.msra.mxu0 0
      %1978 = vmatprep.subr.bf16.mxu0 0
      %1979 = vmatpush2.bf16.xpose.msra.mxu0 0
      %1980 = vmatprep.subr.bf16.mxu0 0
      %1981 = vmatpush2.bf16.xpose.msra.mxu0 0
      %1982 = vmatprep.subr.bf16.mxu0 0
      %1983 = vmatpush2.bf16.xpose.msra.mxu0 0
      %1984 = vmatprep.subr.bf16.mxu0 0
      %1985 = vmatpush2.bf16.xpose.msra.mxu0 0
      %1986 = vmatprep.subr.bf16.mxu0 0
      %1987 = vmatpush2.bf16.xpose.msra.mxu0 0
      %1988 = vmatprep.mubr.bf16.mxu0 0
      %1989 = vmatmul.mubr.bf16.gmra.mxu0 %v1951
      %v1990 = vpop.f32.mrf.mxu0
      %v1991 = vadd.f32 0.0, %v1990
      %v1992 = vpop.f32.mrf.mxu0
      %v1993 = vpop.f32.mrf.mxu0
      %v1994 = vadd.f32 0.0, %v1993
      %v1995 = vpop.f32.mrf.mxu0
      %1996 = vdwg.mxu0
      %v1997 = vmul.f32 %v1991, 0.35355338
      %v1998 = vmul.f32 %v1994, 0.35355338
      %v1999 = vadd.f32 %v1997, %v995
      %v2000 = vadd.f32 %v1998, %v995
      %v2001 = vsel %vm999, %v1999, -inf
      %2002 = vmax.xlane.f32.xlu0 %v2001
      %v2003 = vpop.xlane.xlu0 %2002
      %v2004 = vsel %vm999, %v2000, -inf
      %2005 = vmax.xlane.f32.xlu0 %v2004
      %v2006 = vpop.xlane.xlu0 %2005
      %v2007 = vsub.f32 %v1999, %v2003
      %v2008 = vsub.f32 %v2000, %v2006
      %v2009 = vmul.f32 %v2007, 1.442695
      %v2010 = vpow.pop %v2009
      %v2011 = vmul.f32 %v2008, 1.442695
      %v2012 = vpow.pop %v2011
      %v2013 = vsel %vm999, %v2010, 0.0
      %2014 = vadd.xlane.f32.xlu0 %v2013
      %v2015 = vpop.xlane.xlu0 %2014
      %v2016 = vsel %vm999, %v2012, 0.0
      %2017 = vadd.xlane.f32.xlu0 %v2016
      %v2018 = vpop.xlane.xlu0 %2017
      %v2019 = vrcp.pop %v2015
      %v2020 = vrcp.pop %v2018
      %v2021 = vmul.f32 %v2010, %v2019
      %v2022 = vmul.f32 %v2012, %v2020
      %v2023 = vpack.c.bf16 %v2022, %v2021
      %2024 = vrot.lane.b32.xlu0 %v1942, 64
      %v2025 = vpop.permute.xlu0 %2024
      %v2028 = vsel %vm999, %v2023, 0
      %2030 = vmatprep.subr.bf16.mxu0 0
      %2031 = vmatpush1.bf16.msra.mxu0 0
      %2032 = vmatprep.subr.bf16.mxu0 0
      %2033 = vmatpush1.bf16.msra.mxu0 0
      %2034 = vmatprep.subr.bf16.mxu0 0
      %2035 = vmatpush1.bf16.msra.mxu0 0
      %2036 = vmatprep.subr.bf16.mxu0 0
      %2037 = vmatpush1.bf16.msra.mxu0 0
      %2038 = vmatprep.subr.bf16.mxu0 0
      %2039 = vmatpush1.bf16.msra.mxu0 0
      %2040 = vmatprep.subr.bf16.mxu0 0
      %2041 = vmatpush1.bf16.msra.mxu0 0
      %2042 = vmatprep.subr.bf16.mxu0 0
      %2043 = vmatpush1.bf16.msra.mxu0 0
      %2044 = vmatprep.subr.bf16.mxu0 0
      %2045 = vmatpush1.bf16.msra.mxu0 %v2025
      %2046 = vmatprep.subr.bf16.mxu0 0
      %2047 = vmatpush2.bf16.msra.mxu0 0
      %2048 = vmatprep.subr.bf16.mxu0 0
      %2049 = vmatpush2.bf16.msra.mxu0 0
      %2050 = vmatprep.subr.bf16.mxu0 0
      %2051 = vmatpush2.bf16.msra.mxu0 0
      %2052 = vmatprep.subr.bf16.mxu0 0
      %2053 = vmatpush2.bf16.msra.mxu0 0
      %2054 = vmatprep.subr.bf16.mxu0 0
      %2055 = vmatpush2.bf16.msra.mxu0 0
      %2056 = vmatprep.subr.bf16.mxu0 0
      %2057 = vmatpush2.bf16.msra.mxu0 0
      %2058 = vmatprep.subr.bf16.mxu0 0
      %2059 = vmatpush2.bf16.msra.mxu0 0
      %2060 = vmatprep.subr.bf16.mxu0 0
      %2061 = vmatpush2.bf16.msra.mxu0 0
      %2062 = vmatprep.mubr.bf16.mxu0 0
      %2063 = vmatmul.mubr.bf16.gmra.mxu0 %v2028
      %v2064 = vpop.f32.mrf.mxu0
      %v2065 = vadd.f32 0.0, %v2064
      %v2066 = vpop.f32.mrf.mxu0
      %v2067 = vpop.f32.mrf.mxu0
      %v2068 = vadd.f32 0.0, %v2067
      %v2069 = vpop.f32.mrf.mxu0
      %2070 = vdwg.mxu0
      %v2071 = vpack.c.bf16 %v2068, %v2065
      %2072 = vrot.lane.b32.xlu0 %v1942, 120
      %v2073 = vpop.permute.xlu0 %2072
      %2074 = vrot.lane.b32.xlu0 %v1942, 88
      %v2075 = vpop.permute.xlu0 %2074
      %v2077 = vsel %vm941, %v2073, 0
      %v2080 = vsel %vm941, %v2075, 0
      %2082 = vmatprep.subr.bf16.mxu0 0
      %2083 = vmatpush1.bf16.xpose.msra.mxu0 0
      %2084 = vmatprep.subr.bf16.mxu0 0
      %2085 = vmatpush1.bf16.xpose.msra.mxu0 0
      %2086 = vmatprep.subr.bf16.mxu0 0
      %2087 = vmatpush1.bf16.xpose.msra.mxu0 0
      %2088 = vmatprep.subr.bf16.mxu0 0
      %2089 = vmatpush1.bf16.xpose.msra.mxu0 0
      %2090 = vmatprep.subr.bf16.mxu0 0
      %2091 = vmatpush1.bf16.xpose.msra.mxu0 0
      %2092 = vmatprep.subr.bf16.mxu0 0
      %2093 = vmatpush1.bf16.xpose.msra.mxu0 0
      %2094 = vmatprep.subr.bf16.mxu0 0
      %2095 = vmatpush1.bf16.xpose.msra.mxu0 0
      %2096 = vmatprep.subr.bf16.mxu0 0
      %2097 = vmatpush1.bf16.xpose.msra.mxu0 %v2080
      %2098 = vmatprep.subr.bf16.mxu0 0
      %2099 = vmatpush2.bf16.xpose.msra.mxu0 0
      %2100 = vmatprep.subr.bf16.mxu0 0
      %2101 = vmatpush2.bf16.xpose.msra.mxu0 0
      %2102 = vmatprep.subr.bf16.mxu0 0
      %2103 = vmatpush2.bf16.xpose.msra.mxu0 0
      %2104 = vmatprep.subr.bf16.mxu0 0
      %2105 = vmatpush2.bf16.xpose.msra.mxu0 0
      %2106 = vmatprep.subr.bf16.mxu0 0
      %2107 = vmatpush2.bf16.xpose.msra.mxu0 0
      %2108 = vmatprep.subr.bf16.mxu0 0
      %2109 = vmatpush2.bf16.xpose.msra.mxu0 0
      %2110 = vmatprep.subr.bf16.mxu0 0
      %2111 = vmatpush2.bf16.xpose.msra.mxu0 0
      %2112 = vmatprep.subr.bf16.mxu0 0
      %2113 = vmatpush2.bf16.xpose.msra.mxu0 0
      %2114 = vmatprep.mubr.bf16.mxu0 0
      %2115 = vmatmul.mubr.bf16.gmra.mxu0 %v2077
      %v2116 = vpop.f32.mrf.mxu0
      %v2117 = vadd.f32 0.0, %v2116
      %v2118 = vpop.f32.mrf.mxu0
      %v2119 = vpop.f32.mrf.mxu0
      %v2120 = vadd.f32 0.0, %v2119
      %v2121 = vpop.f32.mrf.mxu0
      %2122 = vdwg.mxu0
      %v2123 = vmul.f32 %v2117, 0.35355338
      %v2124 = vmul.f32 %v2120, 0.35355338
      %v2125 = vadd.f32 %v2123, %v995
      %v2126 = vadd.f32 %v2124, %v995
      %v2127 = vsel %vm999, %v2125, -inf
      %2128 = vmax.xlane.f32.xlu0 %v2127
      %v2129 = vpop.xlane.xlu0 %2128
      %v2130 = vsel %vm999, %v2126, -inf
      %2131 = vmax.xlane.f32.xlu0 %v2130
      %v2132 = vpop.xlane.xlu0 %2131
      %v2133 = vsub.f32 %v2125, %v2129
      %v2134 = vsub.f32 %v2126, %v2132
      %v2135 = vmul.f32 %v2133, 1.442695
      %v2136 = vpow.pop %v2135
      %v2137 = vmul.f32 %v2134, 1.442695
      %v2138 = vpow.pop %v2137
      %v2139 = vsel %vm999, %v2136, 0.0
      %2140 = vadd.xlane.f32.xlu0 %v2139
      %v2141 = vpop.xlane.xlu0 %2140
      %v2142 = vsel %vm999, %v2138, 0.0
      %2143 = vadd.xlane.f32.xlu0 %v2142
      %v2144 = vpop.xlane.xlu0 %2143
      %v2145 = vrcp.pop %v2141
      %v2146 = vrcp.pop %v2144
      %v2147 = vmul.f32 %v2136, %v2145
      %v2148 = vmul.f32 %v2138, %v2146
      %v2149 = vpack.c.bf16 %v2148, %v2147
      %2150 = vrot.lane.b32.xlu0 %v1942, 56
      %v2151 = vpop.permute.xlu0 %2150
      %v2154 = vsel %vm999, %v2149, 0
      %2156 = vmatprep.subr.bf16.mxu0 0
      %2157 = vmatpush1.bf16.msra.mxu0 0
      %2158 = vmatprep.subr.bf16.mxu0 0
      %2159 = vmatpush1.bf16.msra.mxu0 0
      %2160 = vmatprep.subr.bf16.mxu0 0
      %2161 = vmatpush1.bf16.msra.mxu0 0
      %2162 = vmatprep.subr.bf16.mxu0 0
      %2163 = vmatpush1.bf16.msra.mxu0 0
      %2164 = vmatprep.subr.bf16.mxu0 0
      %2165 = vmatpush1.bf16.msra.mxu0 0
      %2166 = vmatprep.subr.bf16.mxu0 0
      %2167 = vmatpush1.bf16.msra.mxu0 0
      %2168 = vmatprep.subr.bf16.mxu0 0
      %2169 = vmatpush1.bf16.msra.mxu0 0
      %2170 = vmatprep.subr.bf16.mxu0 0
      %2171 = vmatpush1.bf16.msra.mxu0 %v2151
      %2172 = vmatprep.subr.bf16.mxu0 0
      %2173 = vmatpush2.bf16.msra.mxu0 0
      %2174 = vmatprep.subr.bf16.mxu0 0
      %2175 = vmatpush2.bf16.msra.mxu0 0
      %2176 = vmatprep.subr.bf16.mxu0 0
      %2177 = vmatpush2.bf16.msra.mxu0 0
      %2178 = vmatprep.subr.bf16.mxu0 0
      %2179 = vmatpush2.bf16.msra.mxu0 0
      %2180 = vmatprep.subr.bf16.mxu0 0
      %2181 = vmatpush2.bf16.msra.mxu0 0
      %2182 = vmatprep.subr.bf16.mxu0 0
      %2183 = vmatpush2.bf16.msra.mxu0 0
      %2184 = vmatprep.subr.bf16.mxu0 0
      %2185 = vmatpush2.bf16.msra.mxu0 0
      %2186 = vmatprep.subr.bf16.mxu0 0
      %2187 = vmatpush2.bf16.msra.mxu0 0
      %2188 = vmatprep.mubr.bf16.mxu0 0
      %2189 = vmatmul.mubr.bf16.gmra.mxu0 %v2154
      %v2190 = vpop.f32.mrf.mxu0
      %v2191 = vadd.f32 0.0, %v2190
      %v2192 = vpop.f32.mrf.mxu0
      %v2193 = vpop.f32.mrf.mxu0
      %v2194 = vadd.f32 0.0, %v2193
      %v2195 = vpop.f32.mrf.mxu0
      %2196 = vdwg.mxu0
      %v2197 = vpack.c.bf16 %v2194, %v2191
      %v2199 = vsel %vm941, %v2197, 0
      %v2202 = vsel %vm1200, %v1944, 0
      %2204 = vmatprep.subr.bf16.mxu0 0
      %2205 = vmatpush1.bf16.msra.mxu0 0
      %2206 = vmatprep.subr.bf16.mxu0 0
      %2207 = vmatpush1.bf16.msra.mxu0 0
      %2208 = vmatprep.subr.bf16.mxu0 0
      %2209 = vmatpush1.bf16.msra.mxu0 0
      %2210 = vmatprep.subr.bf16.mxu0 0
      %2211 = vmatpush1.bf16.msra.mxu0 0
      %2212 = vmatprep.subr.bf16.mxu0 0
      %2213 = vmatpush1.bf16.msra.mxu0 0
      %2214 = vmatprep.subr.bf16.mxu0 0
      %2215 = vmatpush1.bf16.msra.mxu0 0
      %2216 = vmatprep.subr.bf16.mxu0 0
      %2217 = vmatpush1.bf16.msra.mxu0 0
      %2218 = vmatprep.subr.bf16.mxu0 0
      %2219 = vmatpush1.bf16.msra.mxu0 %v2202
      %2220 = vmatprep.subr.bf16.mxu0 0
      %2221 = vmatpush2.bf16.msra.mxu0 0
      %2222 = vmatprep.subr.bf16.mxu0 0
      %2223 = vmatpush2.bf16.msra.mxu0 0
      %2224 = vmatprep.subr.bf16.mxu0 0
      %2225 = vmatpush2.bf16.msra.mxu0 0
      %2226 = vmatprep.subr.bf16.mxu0 0
      %2227 = vmatpush2.bf16.msra.mxu0 0
      %2228 = vmatprep.subr.bf16.mxu0 0
      %2229 = vmatpush2.bf16.msra.mxu0 0
      %2230 = vmatprep.subr.bf16.mxu0 0
      %2231 = vmatpush2.bf16.msra.mxu0 0
      %2232 = vmatprep.subr.bf16.mxu0 0
      %2233 = vmatpush2.bf16.msra.mxu0 0
      %2234 = vmatprep.subr.bf16.mxu0 0
      %2235 = vmatpush2.bf16.msra.mxu0 0
      %2236 = vmatprep.mubr.bf16.mxu0 0
      %2237 = vmatmul.mubr.bf16.gmra.mxu0 %v2199
      %v2238 = vpop.f32.mrf.mxu0
      %v2239 = vadd.f32 0.0, %v2238
      %v2240 = vpop.f32.mrf.mxu0
      %v2241 = vpop.f32.mrf.mxu0
      %v2242 = vadd.f32 0.0, %v2241
      %v2243 = vpop.f32.mrf.mxu0
      %2244 = vdwg.mxu0
      %v2246 = vsel %vm941, %v2071, 0
      %v2249 = vsel %vm1200, %v1943, 0
      %2251 = vmatprep.subr.bf16.mxu0 0
      %2252 = vmatpush1.bf16.msra.mxu0 0
      %2253 = vmatprep.subr.bf16.mxu0 0
      %2254 = vmatpush1.bf16.msra.mxu0 0
      %2255 = vmatprep.subr.bf16.mxu0 0
      %2256 = vmatpush1.bf16.msra.mxu0 0
      %2257 = vmatprep.subr.bf16.mxu0 0
      %2258 = vmatpush1.bf16.msra.mxu0 0
      %2259 = vmatprep.subr.bf16.mxu0 0
      %2260 = vmatpush1.bf16.msra.mxu0 0
      %2261 = vmatprep.subr.bf16.mxu0 0
      %2262 = vmatpush1.bf16.msra.mxu0 0
      %2263 = vmatprep.subr.bf16.mxu0 0
      %2264 = vmatpush1.bf16.msra.mxu0 0
      %2265 = vmatprep.subr.bf16.mxu0 0
      %2266 = vmatpush1.bf16.msra.mxu0 %v2249
      %2267 = vmatprep.subr.bf16.mxu0 0
      %2268 = vmatpush2.bf16.msra.mxu0 0
      %2269 = vmatprep.subr.bf16.mxu0 0
      %2270 = vmatpush2.bf16.msra.mxu0 0
      %2271 = vmatprep.subr.bf16.mxu0 0
      %2272 = vmatpush2.bf16.msra.mxu0 0
      %2273 = vmatprep.subr.bf16.mxu0 0
      %2274 = vmatpush2.bf16.msra.mxu0 0
      %2275 = vmatprep.subr.bf16.mxu0 0
      %2276 = vmatpush2.bf16.msra.mxu0 0
      %2277 = vmatprep.subr.bf16.mxu0 0
      %2278 = vmatpush2.bf16.msra.mxu0 0
      %2279 = vmatprep.subr.bf16.mxu0 0
      %2280 = vmatpush2.bf16.msra.mxu0 0
      %2281 = vmatprep.subr.bf16.mxu0 0
      %2282 = vmatpush2.bf16.msra.mxu0 0
      %2283 = vmatprep.mubr.bf16.mxu0 0
      %2284 = vmatmul.mubr.bf16.gmra.mxu0 %v2246
      %v2285 = vpop.f32.mrf.mxu0
      %v2286 = vadd.f32 %v2239, %v2285
      %v2287 = vpop.f32.mrf.mxu0
      %v2288 = vpop.f32.mrf.mxu0
      %v2289 = vadd.f32 %v2242, %v2288
      %v2290 = vpop.f32.mrf.mxu0
      %2291 = vdwg.mxu0
      %2292 = vrot.lane.b32.xlu0 %v1942, 112
      %v2293 = vpop.permute.xlu0 %2292
      %2294 = vrot.lane.b32.xlu0 %v1942, 80
      %v2295 = vpop.permute.xlu0 %2294
      %v2297 = vsel %vm941, %v2293, 0
      %v2300 = vsel %vm941, %v2295, 0
      %2302 = vmatprep.subr.bf16.mxu0 0
      %2303 = vmatpush1.bf16.xpose.msra.mxu0 0
      %2304 = vmatprep.subr.bf16.mxu0 0
      %2305 = vmatpush1.bf16.xpose.msra.mxu0 0
      %2306 = vmatprep.subr.bf16.mxu0 0
      %2307 = vmatpush1.bf16.xpose.msra.mxu0 0
      %2308 = vmatprep.subr.bf16.mxu0 0
      %2309 = vmatpush1.bf16.xpose.msra.mxu0 0
      %2310 = vmatprep.subr.bf16.mxu0 0
      %2311 = vmatpush1.bf16.xpose.msra.mxu0 0
      %2312 = vmatprep.subr.bf16.mxu0 0
      %2313 = vmatpush1.bf16.xpose.msra.mxu0 0
      %2314 = vmatprep.subr.bf16.mxu0 0
      %2315 = vmatpush1.bf16.xpose.msra.mxu0 0
      %2316 = vmatprep.subr.bf16.mxu0 0
      %2317 = vmatpush1.bf16.xpose.msra.mxu0 %v2300
      %2318 = vmatprep.subr.bf16.mxu0 0
      %2319 = vmatpush2.bf16.xpose.msra.mxu0 0
      %2320 = vmatprep.subr.bf16.mxu0 0
      %2321 = vmatpush2.bf16.xpose.msra.mxu0 0
      %2322 = vmatprep.subr.bf16.mxu0 0
      %2323 = vmatpush2.bf16.xpose.msra.mxu0 0
      %2324 = vmatprep.subr.bf16.mxu0 0
      %2325 = vmatpush2.bf16.xpose.msra.mxu0 0
      %2326 = vmatprep.subr.bf16.mxu0 0
      %2327 = vmatpush2.bf16.xpose.msra.mxu0 0
      %2328 = vmatprep.subr.bf16.mxu0 0
      %2329 = vmatpush2.bf16.xpose.msra.mxu0 0
      %2330 = vmatprep.subr.bf16.mxu0 0
      %2331 = vmatpush2.bf16.xpose.msra.mxu0 0
      %2332 = vmatprep.subr.bf16.mxu0 0
      %2333 = vmatpush2.bf16.xpose.msra.mxu0 0
      %2334 = vmatprep.mubr.bf16.mxu0 0
      %2335 = vmatmul.mubr.bf16.gmra.mxu0 %v2297
      %v2336 = vpop.f32.mrf.mxu0
      %v2337 = vadd.f32 0.0, %v2336
      %v2338 = vpop.f32.mrf.mxu0
      %v2339 = vpop.f32.mrf.mxu0
      %v2340 = vadd.f32 0.0, %v2339
      %v2341 = vpop.f32.mrf.mxu0
      %2342 = vdwg.mxu0
      %v2343 = vmul.f32 %v2337, 0.35355338
      %v2344 = vmul.f32 %v2340, 0.35355338
      %v2345 = vadd.f32 %v2343, %v995
      %v2346 = vadd.f32 %v2344, %v995
      %v2347 = vsel %vm999, %v2345, -inf
      %2348 = vmax.xlane.f32.xlu0 %v2347
      %v2349 = vpop.xlane.xlu0 %2348
      %v2350 = vsel %vm999, %v2346, -inf
      %2351 = vmax.xlane.f32.xlu0 %v2350
      %v2352 = vpop.xlane.xlu0 %2351
      %v2353 = vsub.f32 %v2345, %v2349
      %v2354 = vsub.f32 %v2346, %v2352
      %v2355 = vmul.f32 %v2353, 1.442695
      %v2356 = vpow.pop %v2355
      %v2357 = vmul.f32 %v2354, 1.442695
      %v2358 = vpow.pop %v2357
      %v2359 = vsel %vm999, %v2356, 0.0
      %2360 = vadd.xlane.f32.xlu0 %v2359
      %v2361 = vpop.xlane.xlu0 %2360
      %v2362 = vsel %vm999, %v2358, 0.0
      %2363 = vadd.xlane.f32.xlu0 %v2362
      %v2364 = vpop.xlane.xlu0 %2363
      %v2365 = vrcp.pop %v2361
      %v2366 = vrcp.pop %v2364
      %v2367 = vmul.f32 %v2356, %v2365
      %v2368 = vmul.f32 %v2358, %v2366
      %v2369 = vpack.c.bf16 %v2368, %v2367
      %2370 = vrot.lane.b32.xlu0 %v1942, 48
      %v2371 = vpop.permute.xlu0 %2370
      %v2374 = vsel %vm999, %v2369, 0
      %2376 = vmatprep.subr.bf16.mxu0 0
      %2377 = vmatpush1.bf16.msra.mxu0 0
      %2378 = vmatprep.subr.bf16.mxu0 0
      %2379 = vmatpush1.bf16.msra.mxu0 0
      %2380 = vmatprep.subr.bf16.mxu0 0
      %2381 = vmatpush1.bf16.msra.mxu0 0
      %2382 = vmatprep.subr.bf16.mxu0 0
      %2383 = vmatpush1.bf16.msra.mxu0 0
      %2384 = vmatprep.subr.bf16.mxu0 0
      %2385 = vmatpush1.bf16.msra.mxu0 0
      %2386 = vmatprep.subr.bf16.mxu0 0
      %2387 = vmatpush1.bf16.msra.mxu0 0
      %2388 = vmatprep.subr.bf16.mxu0 0
      %2389 = vmatpush1.bf16.msra.mxu0 0
      %2390 = vmatprep.subr.bf16.mxu0 0
      %2391 = vmatpush1.bf16.msra.mxu0 %v2371
      %2392 = vmatprep.subr.bf16.mxu0 0
      %2393 = vmatpush2.bf16.msra.mxu0 0
      %2394 = vmatprep.subr.bf16.mxu0 0
      %2395 = vmatpush2.bf16.msra.mxu0 0
      %2396 = vmatprep.subr.bf16.mxu0 0
      %2397 = vmatpush2.bf16.msra.mxu0 0
      %2398 = vmatprep.subr.bf16.mxu0 0
      %2399 = vmatpush2.bf16.msra.mxu0 0
      %2400 = vmatprep.subr.bf16.mxu0 0
      %2401 = vmatpush2.bf16.msra.mxu0 0
      %2402 = vmatprep.subr.bf16.mxu0 0
      %2403 = vmatpush2.bf16.msra.mxu0 0
      %2404 = vmatprep.subr.bf16.mxu0 0
      %2405 = vmatpush2.bf16.msra.mxu0 0
      %2406 = vmatprep.subr.bf16.mxu0 0
      %2407 = vmatpush2.bf16.msra.mxu0 0
      %2408 = vmatprep.mubr.bf16.mxu0 0
      %2409 = vmatmul.mubr.bf16.gmra.mxu0 %v2374
      %v2410 = vpop.f32.mrf.mxu0
      %v2411 = vadd.f32 0.0, %v2410
      %v2412 = vpop.f32.mrf.mxu0
      %v2413 = vpop.f32.mrf.mxu0
      %v2414 = vadd.f32 0.0, %v2413
      %v2415 = vpop.f32.mrf.mxu0
      %2416 = vdwg.mxu0
      %v2417 = vpack.c.bf16 %v2414, %v2411
      %v2419 = vsel %vm941, %v2417, 0
      %v2422 = vsel %vm1200, %v1945, 0
      %2424 = vmatprep.subr.bf16.mxu0 0
      %2425 = vmatpush1.bf16.msra.mxu0 0
      %2426 = vmatprep.subr.bf16.mxu0 0
      %2427 = vmatpush1.bf16.msra.mxu0 0
      %2428 = vmatprep.subr.bf16.mxu0 0
      %2429 = vmatpush1.bf16.msra.mxu0 0
      %2430 = vmatprep.subr.bf16.mxu0 0
      %2431 = vmatpush1.bf16.msra.mxu0 0
      %2432 = vmatprep.subr.bf16.mxu0 0
      %2433 = vmatpush1.bf16.msra.mxu0 0
      %2434 = vmatprep.subr.bf16.mxu0 0
      %2435 = vmatpush1.bf16.msra.mxu0 0
      %2436 = vmatprep.subr.bf16.mxu0 0
      %2437 = vmatpush1.bf16.msra.mxu0 0
      %2438 = vmatprep.subr.bf16.mxu0 0
      %2439 = vmatpush1.bf16.msra.mxu0 %v2422
      %2440 = vmatprep.subr.bf16.mxu0 0
      %2441 = vmatpush2.bf16.msra.mxu0 0
      %2442 = vmatprep.subr.bf16.mxu0 0
      %2443 = vmatpush2.bf16.msra.mxu0 0
      %2444 = vmatprep.subr.bf16.mxu0 0
      %2445 = vmatpush2.bf16.msra.mxu0 0
      %2446 = vmatprep.subr.bf16.mxu0 0
      %2447 = vmatpush2.bf16.msra.mxu0 0
      %2448 = vmatprep.subr.bf16.mxu0 0
      %2449 = vmatpush2.bf16.msra.mxu0 0
      %2450 = vmatprep.subr.bf16.mxu0 0
      %2451 = vmatpush2.bf16.msra.mxu0 0
      %2452 = vmatprep.subr.bf16.mxu0 0
      %2453 = vmatpush2.bf16.msra.mxu0 0
      %2454 = vmatprep.subr.bf16.mxu0 0
      %2455 = vmatpush2.bf16.msra.mxu0 0
      %2456 = vmatprep.mubr.bf16.mxu0 0
      %2457 = vmatmul.mubr.bf16.gmra.mxu0 %v2419
      %v2458 = vpop.f32.mrf.mxu0
      %v2459 = vadd.f32 0.0, %v2458
      %v2460 = vpop.f32.mrf.mxu0
      %v2461 = vpop.f32.mrf.mxu0
      %v2462 = vadd.f32 0.0, %v2461
      %v2463 = vpop.f32.mrf.mxu0
      %2464 = vdwg.mxu0
      %v2465 = vadd.f32 %v2286, %v2459
      %v2466 = vadd.f32 %v2289, %v2462
      %2467 = vrot.lane.b32.xlu0 %v1942, 104
      %v2468 = vpop.permute.xlu0 %2467
      %2469 = vrot.lane.b32.xlu0 %v1942, 72
      %v2470 = vpop.permute.xlu0 %2469
      %v2472 = vsel %vm941, %v2468, 0
      %v2475 = vsel %vm941, %v2470, 0
      %2477 = vmatprep.subr.bf16.mxu0 0
      %2478 = vmatpush1.bf16.xpose.msra.mxu0 0
      %2479 = vmatprep.subr.bf16.mxu0 0
      %2480 = vmatpush1.bf16.xpose.msra.mxu0 0
      %2481 = vmatprep.subr.bf16.mxu0 0
      %2482 = vmatpush1.bf16.xpose.msra.mxu0 0
      %2483 = vmatprep.subr.bf16.mxu0 0
      %2484 = vmatpush1.bf16.xpose.msra.mxu0 0
      %2485 = vmatprep.subr.bf16.mxu0 0
      %2486 = vmatpush1.bf16.xpose.msra.mxu0 0
      %2487 = vmatprep.subr.bf16.mxu0 0
      %2488 = vmatpush1.bf16.xpose.msra.mxu0 0
      %2489 = vmatprep.subr.bf16.mxu0 0
      %2490 = vmatpush1.bf16.xpose.msra.mxu0 0
      %2491 = vmatprep.subr.bf16.mxu0 0
      %2492 = vmatpush1.bf16.xpose.msra.mxu0 %v2475
      %2493 = vmatprep.subr.bf16.mxu0 0
      %2494 = vmatpush2.bf16.xpose.msra.mxu0 0
      %2495 = vmatprep.subr.bf16.mxu0 0
      %2496 = vmatpush2.bf16.xpose.msra.mxu0 0
      %2497 = vmatprep.subr.bf16.mxu0 0
      %2498 = vmatpush2.bf16.xpose.msra.mxu0 0
      %2499 = vmatprep.subr.bf16.mxu0 0
      %2500 = vmatpush2.bf16.xpose.msra.mxu0 0
      %2501 = vmatprep.subr.bf16.mxu0 0
      %2502 = vmatpush2.bf16.xpose.msra.mxu0 0
      %2503 = vmatprep.subr.bf16.mxu0 0
      %2504 = vmatpush2.bf16.xpose.msra.mxu0 0
      %2505 = vmatprep.subr.bf16.mxu0 0
      %2506 = vmatpush2.bf16.xpose.msra.mxu0 0
      %2507 = vmatprep.subr.bf16.mxu0 0
      %2508 = vmatpush2.bf16.xpose.msra.mxu0 0
      %2509 = vmatprep.mubr.bf16.mxu0 0
      %2510 = vmatmul.mubr.bf16.gmra.mxu0 %v2472
      %v2511 = vpop.f32.mrf.mxu0
      %v2512 = vadd.f32 0.0, %v2511
      %v2513 = vpop.f32.mrf.mxu0
      %v2514 = vpop.f32.mrf.mxu0
      %v2515 = vadd.f32 0.0, %v2514
      %v2516 = vpop.f32.mrf.mxu0
      %2517 = vdwg.mxu0
      %v2518 = vmul.f32 %v2512, 0.35355338
      %v2519 = vmul.f32 %v2515, 0.35355338
      %v2520 = vadd.f32 %v2518, %v995
      %v2521 = vadd.f32 %v2519, %v995
      %v2522 = vsel %vm999, %v2520, -inf
      %2523 = vmax.xlane.f32.xlu0 %v2522
      %v2524 = vpop.xlane.xlu0 %2523
      %v2525 = vsel %vm999, %v2521, -inf
      %2526 = vmax.xlane.f32.xlu0 %v2525
      %v2527 = vpop.xlane.xlu0 %2526
      %v2528 = vsub.f32 %v2520, %v2524
      %v2529 = vsub.f32 %v2521, %v2527
      %v2530 = vmul.f32 %v2528, 1.442695
      %v2531 = vpow.pop %v2530
      %v2532 = vmul.f32 %v2529, 1.442695
      %v2533 = vpow.pop %v2532
      %v2534 = vsel %vm999, %v2531, 0.0
      %2535 = vadd.xlane.f32.xlu0 %v2534
      %v2536 = vpop.xlane.xlu0 %2535
      %v2537 = vsel %vm999, %v2533, 0.0
      %2538 = vadd.xlane.f32.xlu0 %v2537
      %v2539 = vpop.xlane.xlu0 %2538
      %v2540 = vrcp.pop %v2536
      %v2541 = vrcp.pop %v2539
      %v2542 = vmul.f32 %v2531, %v2540
      %v2543 = vmul.f32 %v2533, %v2541
      %v2544 = vpack.c.bf16 %v2543, %v2542
      %2545 = vrot.lane.b32.xlu0 %v1942, 40
      %v2546 = vpop.permute.xlu0 %2545
      %v2549 = vsel %vm999, %v2544, 0
      %2551 = vmatprep.subr.bf16.mxu0 0
      %2552 = vmatpush1.bf16.msra.mxu0 0
      %2553 = vmatprep.subr.bf16.mxu0 0
      %2554 = vmatpush1.bf16.msra.mxu0 0
      %2555 = vmatprep.subr.bf16.mxu0 0
      %2556 = vmatpush1.bf16.msra.mxu0 0
      %2557 = vmatprep.subr.bf16.mxu0 0
      %2558 = vmatpush1.bf16.msra.mxu0 0
      %2559 = vmatprep.subr.bf16.mxu0 0
      %2560 = vmatpush1.bf16.msra.mxu0 0
      %2561 = vmatprep.subr.bf16.mxu0 0
      %2562 = vmatpush1.bf16.msra.mxu0 0
      %2563 = vmatprep.subr.bf16.mxu0 0
      %2564 = vmatpush1.bf16.msra.mxu0 0
      %2565 = vmatprep.subr.bf16.mxu0 0
      %2566 = vmatpush1.bf16.msra.mxu0 %v2546
      %2567 = vmatprep.subr.bf16.mxu0 0
      %2568 = vmatpush2.bf16.msra.mxu0 0
      %2569 = vmatprep.subr.bf16.mxu0 0
      %2570 = vmatpush2.bf16.msra.mxu0 0
      %2571 = vmatprep.subr.bf16.mxu0 0
      %2572 = vmatpush2.bf16.msra.mxu0 0
      %2573 = vmatprep.subr.bf16.mxu0 0
      %2574 = vmatpush2.bf16.msra.mxu0 0
      %2575 = vmatprep.subr.bf16.mxu0 0
      %2576 = vmatpush2.bf16.msra.mxu0 0
      %2577 = vmatprep.subr.bf16.mxu0 0
      %2578 = vmatpush2.bf16.msra.mxu0 0
      %2579 = vmatprep.subr.bf16.mxu0 0
      %2580 = vmatpush2.bf16.msra.mxu0 0
      %2581 = vmatprep.subr.bf16.mxu0 0
      %2582 = vmatpush2.bf16.msra.mxu0 0
      %2583 = vmatprep.mubr.bf16.mxu0 0
      %2584 = vmatmul.mubr.bf16.gmra.mxu0 %v2549
      %v2585 = vpop.f32.mrf.mxu0
      %v2586 = vadd.f32 0.0, %v2585
      %v2587 = vpop.f32.mrf.mxu0
      %v2588 = vpop.f32.mrf.mxu0
      %v2589 = vadd.f32 0.0, %v2588
      %v2590 = vpop.f32.mrf.mxu0
      %2591 = vdwg.mxu0
      %v2592 = vpack.c.bf16 %v2589, %v2586
      %v2594 = vsel %vm941, %v2592, 0
      %v2597 = vsel %vm1200, %v1946, 0
      %2599 = vmatprep.subr.bf16.mxu0 0
      %2600 = vmatpush1.bf16.msra.mxu0 0
      %2601 = vmatprep.subr.bf16.mxu0 0
      %2602 = vmatpush1.bf16.msra.mxu0 0
      %2603 = vmatprep.subr.bf16.mxu0 0
      %2604 = vmatpush1.bf16.msra.mxu0 0
      %2605 = vmatprep.subr.bf16.mxu0 0
      %2606 = vmatpush1.bf16.msra.mxu0 0
      %2607 = vmatprep.subr.bf16.mxu0 0
      %2608 = vmatpush1.bf16.msra.mxu0 0
      %2609 = vmatprep.subr.bf16.mxu0 0
      %2610 = vmatpush1.bf16.msra.mxu0 0
      %2611 = vmatprep.subr.bf16.mxu0 0
      %2612 = vmatpush1.bf16.msra.mxu0 0
      %2613 = vmatprep.subr.bf16.mxu0 0
      %2614 = vmatpush1.bf16.msra.mxu0 %v2597
      %2615 = vmatprep.subr.bf16.mxu0 0
      %2616 = vmatpush2.bf16.msra.mxu0 0
      %2617 = vmatprep.subr.bf16.mxu0 0
      %2618 = vmatpush2.bf16.msra.mxu0 0
      %2619 = vmatprep.subr.bf16.mxu0 0
      %2620 = vmatpush2.bf16.msra.mxu0 0
      %2621 = vmatprep.subr.bf16.mxu0 0
      %2622 = vmatpush2.bf16.msra.mxu0 0
      %2623 = vmatprep.subr.bf16.mxu0 0
      %2624 = vmatpush2.bf16.msra.mxu0 0
      %2625 = vmatprep.subr.bf16.mxu0 0
      %2626 = vmatpush2.bf16.msra.mxu0 0
      %2627 = vmatprep.subr.bf16.mxu0 0
      %2628 = vmatpush2.bf16.msra.mxu0 0
      %2629 = vmatprep.subr.bf16.mxu0 0
      %2630 = vmatpush2.bf16.msra.mxu0 0
      %2631 = vmatprep.mubr.bf16.mxu0 0
      %2632 = vmatmul.mubr.bf16.gmra.mxu0 %v2594
      %v2633 = vpop.f32.mrf.mxu0
      %v2634 = vadd.f32 0.0, %v2633
      %v2635 = vpop.f32.mrf.mxu0
      %v2636 = vpop.f32.mrf.mxu0
      %v2637 = vadd.f32 0.0, %v2636
      %v2638 = vpop.f32.mrf.mxu0
      %2639 = vdwg.mxu0
      %v2640 = vadd.f32 %v2465, %v2634
      %v2641 = vadd.f32 %v2466, %v2637
      %v2642 = vld [vmem:[%s17] sm:$0x1]
      %v2644 = vlaneseq
      %v2645 = vshrl.u32 %v2644, 7
      %v2646 = vsub.s32 0, %v2645
      %v2647 = vrot.slane %v2642, %v2646
      %v2649 = vadd.f32 %v2640, %v2647
      %v2650 = vadd.f32 %v2641, %v2647
      %v2651 = vadd.f32 %v1872, %v2649
      %v2652 = vadd.f32 %v1873, %v2650
      %v2653 = vld [vmem:[%s22] sm:$0x1]
      %v2654 = vld [vmem:[%s23] sm:$0x1]
      %v2655 = vsel %vm888, %v2651, 0.0
      %2656 = vadd.xlane.f32.xlu0 %v2655
      %v2657 = vpop.xlane.xlu0 %2656
      %v2658 = vsel %vm888, %v2652, 0.0
      %2659 = vadd.xlane.f32.xlu0 %v2658
      %v2660 = vpop.xlane.xlu0 %2659
      %v2661 = vmul.f32 %v2657, %v1661
      %v2662 = vmul.f32 %v2660, %v1661
      %v2663 = vsub.f32 %v2651, %v2661
      %v2664 = vsub.f32 %v2652, %v2662
      %v2665 = vmul.f32 %v2663, %v2663
      %v2666 = vmul.f32 %v2664, %v2664
      %v2667 = vsel %vm888, %v2665, 0.0
      %2668 = vadd.xlane.f32.xlu0 %v2667
      %v2669 = vpop.xlane.xlu0 %2668
      %v2670 = vsel %vm888, %v2666, 0.0
      %2671 = vadd.xlane.f32.xlu0 %v2670
      %v2672 = vpop.xlane.xlu0 %2671
      %v2673 = vmul.f32 %v2669, %v1661
      %v2674 = vmul.f32 %v2672, %v1661
      %v2675 = vadd.f32 %v2673, 1e-05
      %v2676 = vadd.f32 %v2674, 1e-05
      %v2677 = vrsqrt.pop %v2675
      %v2678 = vrsqrt.pop %v2676
      %v2679 = vmul.f32 %v2663, %v2677
      %v2680 = vmul.f32 %v2664, %v2678
      %v2682 = vlaneseq
      %v2683 = vshrl.u32 %v2682, 7
      %v2684 = vsub.s32 0, %v2683
      %v2685 = vrot.slane %v2653, %v2684
      %v2687 = vmul.f32 %v2679, %v2685
      %v2688 = vmul.f32 %v2680, %v2685
      %v2690 = vlaneseq
      %v2691 = vshrl.u32 %v2690, 7
      %v2692 = vsub.s32 0, %v2691
      %v2693 = vrot.slane %v2654, %v2692
      %v2695 = vadd.f32 %v2687, %v2693
      %v2696 = vadd.f32 %v2688, %v2693
      %v2697 = vpack.c.bf16 %v2696, %v2695
      %v2698 = vld [vmem:[%s18] sm:$0xf]
      %v2699 = vld [vmem:[%s18 + $0x4] sm:$0xf]
      %v2700 = vld [vmem:[%s18 + $0x8] sm:$0xf]
      %v2701 = vld [vmem:[%s18 + $0xc] sm:$0xf]
      %v2702 = vld [vmem:[%s19] sm:$0x1]
      %v2704 = vlaneseq
      %v2705 = vshrl.u32 %v2704, 7
      %v2706 = vsub.s32 0, %v2705
      %v2707 = vrot.slane %v2702, %v2706
      %v2713 = vunpack.c.l.b16 %v2698
      %v2714 = vunpack.c.l.b16 %v2699
      %v2715 = vunpack.c.l.b16 %v2700
      %v2716 = vunpack.c.l.b16 %v2701
      %v2717 = vpack.c.b16 %v2714, %v2713
      %v2718 = vpack.c.b16 %v2716, %v2715
      %v2722 = vsel %vm888, %v2697, 0
      %2724 = vmatprep.subr.bf16.mxu0 0
      %2725 = vmatpush1.bf16.msra.mxu0 0
      %2726 = vmatprep.subr.bf16.mxu0 0
      %2727 = vmatpush1.bf16.msra.mxu0 0
      %2728 = vmatprep.subr.bf16.mxu0 0
      %2729 = vmatpush1.bf16.msra.mxu0 0
      %2730 = vmatprep.subr.bf16.mxu0 0
      %2731 = vmatpush1.bf16.msra.mxu0 0
      %2732 = vmatprep.subr.bf16.mxu0 0
      %2733 = vmatpush1.bf16.msra.mxu0 0
      %2734 = vmatprep.subr.bf16.mxu0 0
      %2735 = vmatpush1.bf16.msra.mxu0 0
      %2736 = vmatprep.subr.bf16.mxu0 0
      %2737 = vmatpush1.bf16.msra.mxu0 %v2718
      %2738 = vmatprep.subr.bf16.mxu0 0
      %2739 = vmatpush1.bf16.msra.mxu0 %v2717
      %2740 = vmatprep.subr.bf16.mxu0 0
      %2741 = vmatpush2.bf16.msra.mxu0 0
      %2742 = vmatprep.subr.bf16.mxu0 0
      %2743 = vmatpush2.bf16.msra.mxu0 0
      %2744 = vmatprep.subr.bf16.mxu0 0
      %2745 = vmatpush2.bf16.msra.mxu0 0
      %2746 = vmatprep.subr.bf16.mxu0 0
      %2747 = vmatpush2.bf16.msra.mxu0 0
      %2748 = vmatprep.subr.bf16.mxu0 0
      %2749 = vmatpush2.bf16.msra.mxu0 0
      %2750 = vmatprep.subr.bf16.mxu0 0
      %2751 = vmatpush2.bf16.msra.mxu0 0
      %2752 = vmatprep.subr.bf16.mxu0 0
      %2753 = vmatpush2.bf16.msra.mxu0 0
      %2754 = vmatprep.subr.bf16.mxu0 0
      %2755 = vmatpush2.bf16.msra.mxu0 0
      %2756 = vmatprep.mubr.bf16.mxu0 0
      %2757 = vmatmul.mubr.bf16.gmra.mxu0 %v2722
      %v2758 = vpop.f32.mrf.mxu0
      %v2759 = vadd.f32 %v2707, %v2758
      %v2760 = vpop.f32.mrf.mxu0
      %v2761 = vpop.f32.mrf.mxu0
      %v2762 = vadd.f32 %v2707, %v2761
      %v2763 = vpop.f32.mrf.mxu0
      %2764 = vdwg.mxu0
      %v2765 = vmax.f32 %v2759, 0.0
      %v2766 = vmax.f32 %v2762, 0.0
      %v2767 = vpack.c.bf16 %v2766, %v2765
      %v2768 = vld [vmem:[%s20] sm:$0xf]
      %v2769 = vld [vmem:[%s20 + $0x4] sm:$0xf]
      %v2770 = vld [vmem:[%s21] sm:$0x1]
      %v2772 = vlaneseq
      %v2773 = vshrl.u32 %v2772, 7
      %v2774 = vsub.s32 0, %v2773
      %v2775 = vrot.slane %v2770, %v2774
      %v2779 = vunpack.c.l.b16 %v2768
      %v2780 = vunpack.c.l.b16 %v2769
      %v2781 = vpack.c.b16 %v2780, %v2779
      %v2784 = vsel %vm999, %v2767, 0
      %2786 = vmatprep.subr.bf16.mxu0 0
      %2787 = vmatpush1.bf16.msra.mxu0 0
      %2788 = vmatprep.subr.bf16.mxu0 0
      %2789 = vmatpush1.bf16.msra.mxu0 0
      %2790 = vmatprep.subr.bf16.mxu0 0
      %2791 = vmatpush1.bf16.msra.mxu0 0
      %2792 = vmatprep.subr.bf16.mxu0 0
      %2793 = vmatpush1.bf16.msra.mxu0 0
      %2794 = vmatprep.subr.bf16.mxu0 0
      %2795 = vmatpush1.bf16.msra.mxu0 0
      %2796 = vmatprep.subr.bf16.mxu0 0
      %2797 = vmatpush1.bf16.msra.mxu0 0
      %2798 = vmatprep.subr.bf16.mxu0 0
      %2799 = vmatpush1.bf16.msra.mxu0 0
      %2800 = vmatprep.subr.bf16.mxu0 0
      %2801 = vmatpush1.bf16.msra.mxu0 %v2781
      %2802 = vmatprep.subr.bf16.mxu0 0
      %2803 = vmatpush2.bf16.msra.mxu0 0
      %2804 = vmatprep.subr.bf16.mxu0 0
      %2805 = vmatpush2.bf16.msra.mxu0 0
      %2806 = vmatprep.subr.bf16.mxu0 0
      %2807 = vmatpush2.bf16.msra.mxu0 0
      %2808 = vmatprep.subr.bf16.mxu0 0
      %2809 = vmatpush2.bf16.msra.mxu0 0
      %2810 = vmatprep.subr.bf16.mxu0 0
      %2811 = vmatpush2.bf16.msra.mxu0 0
      %2812 = vmatprep.subr.bf16.mxu0 0
      %2813 = vmatpush2.bf16.msra.mxu0 0
      %2814 = vmatprep.subr.bf16.mxu0 0
      %2815 = vmatpush2.bf16.msra.mxu0 0
      %2816 = vmatprep.subr.bf16.mxu0 0
      %2817 = vmatpush2.bf16.msra.mxu0 0
      %2818 = vmatprep.mubr.bf16.mxu0 0
      %2819 = vmatmul.mubr.bf16.gmra.mxu0 %v2784
      %v2820 = vpop.f32.mrf.mxu0
      %v2821 = vadd.f32 %v2775, %v2820
      %v2822 = vpop.f32.mrf.mxu0
      %v2823 = vpop.f32.mrf.mxu0
      %v2824 = vadd.f32 %v2775, %v2823
      %v2825 = vpop.f32.mrf.mxu0
      %2826 = vdwg.mxu0
      %v2827 = vadd.f32 %v2695, %v2821
      %v2828 = vadd.f32 %v2696, %v2824
      %v2829 = vld [vmem:[%s24] sm:$0x1]
      %v2830 = vld [vmem:[%s25] sm:$0x1]
      %v2831 = vsel %vm888, %v2827, 0.0
      %2832 = vadd.xlane.f32.xlu0 %v2831
      %v2833 = vpop.xlane.xlu0 %2832
      %v2834 = vsel %vm888, %v2828, 0.0
      %2835 = vadd.xlane.f32.xlu0 %v2834
      %v2836 = vpop.xlane.xlu0 %2835
      %v2837 = vmul.f32 %v2833, %v1661
      %v2838 = vmul.f32 %v2836, %v1661
      %v2839 = vsub.f32 %v2827, %v2837
      %v2840 = vsub.f32 %v2828, %v2838
      %v2841 = vmul.f32 %v2839, %v2839
      %v2842 = vmul.f32 %v2840, %v2840
      %v2843 = vsel %vm888, %v2841, 0.0
      %2844 = vadd.xlane.f32.xlu0 %v2843
      %v2845 = vpop.xlane.xlu0 %2844
      %v2846 = vsel %vm888, %v2842, 0.0
      %2847 = vadd.xlane.f32.xlu0 %v2846
      %v2848 = vpop.xlane.xlu0 %2847
      %v2849 = vmul.f32 %v2845, %v1661
      %v2850 = vmul.f32 %v2848, %v1661
      %v2851 = vadd.f32 %v2849, 1e-05
      %v2852 = vadd.f32 %v2850, 1e-05
      %v2853 = vrsqrt.pop %v2851
      %v2854 = vrsqrt.pop %v2852
      %v2855 = vmul.f32 %v2839, %v2853
      %v2856 = vmul.f32 %v2840, %v2854
      %v2858 = vlaneseq
      %v2859 = vshrl.u32 %v2858, 7
      %v2860 = vsub.s32 0, %v2859
      %v2861 = vrot.slane %v2829, %v2860
      %v2863 = vmul.f32 %v2855, %v2861
      %v2864 = vmul.f32 %v2856, %v2861
      %v2866 = vlaneseq
      %v2867 = vshrl.u32 %v2866, 7
      %v2868 = vsub.s32 0, %v2867
      %v2869 = vrot.slane %v2830, %v2868
      %v2871 = vadd.f32 %v2863, %v2869
      %v2872 = vadd.f32 %v2864, %v2869
      %v2873 = vld [vmem:[%s26] sm:$0x1]
      %v2874 = vld [vmem:[%s27] sm:$0x1]
      %v2875 = vsel %vm888, %v2871, 0.0
      %2876 = vadd.xlane.f32.xlu0 %v2875
      %v2877 = vpop.xlane.xlu0 %2876
      %v2878 = vsel %vm888, %v2872, 0.0
      %2879 = vadd.xlane.f32.xlu0 %v2878
      %v2880 = vpop.xlane.xlu0 %2879
      %v2881 = vmul.f32 %v2877, %v1661
      %v2882 = vmul.f32 %v2880, %v1661
      %v2883 = vsub.f32 %v2871, %v2881
      %v2884 = vsub.f32 %v2872, %v2882
      %v2885 = vmul.f32 %v2883, %v2883
      %v2886 = vmul.f32 %v2884, %v2884
      %v2887 = vsel %vm888, %v2885, 0.0
      %2888 = vadd.xlane.f32.xlu0 %v2887
      %v2889 = vpop.xlane.xlu0 %2888
      %v2890 = vsel %vm888, %v2886, 0.0
      %2891 = vadd.xlane.f32.xlu0 %v2890
      %v2892 = vpop.xlane.xlu0 %2891
      %v2893 = vmul.f32 %v2889, %v1661
      %v2894 = vmul.f32 %v2892, %v1661
      %v2895 = vadd.f32 %v2893, 1e-05
      %v2896 = vadd.f32 %v2894, 1e-05
      %v2897 = vrsqrt.pop %v2895
      %v2898 = vrsqrt.pop %v2896
      %v2899 = vmul.f32 %v2883, %v2897
      %v2900 = vmul.f32 %v2884, %v2898
      %v2902 = vlaneseq
      %v2903 = vshrl.u32 %v2902, 7
      %v2904 = vsub.s32 0, %v2903
      %v2905 = vrot.slane %v2873, %v2904
      %v2907 = vmul.f32 %v2899, %v2905
      %v2908 = vmul.f32 %v2900, %v2905
      %v2910 = vlaneseq
      %v2911 = vshrl.u32 %v2910, 7
      %v2912 = vsub.s32 0, %v2911
      %v2913 = vrot.slane %v2874, %v2912
      %v2915 = vadd.f32 %v2907, %v2913
      %v2916 = vadd.f32 %v2908, %v2913
      %2917 = vst.msk [vmem:[%s859] sm:$0xff] %vm888, %v2915
      %2918 = vst.msk [vmem:[%s859 + $0x8] sm:$0xff] %vm888, %v2916
      %p2919 = scmp.lt.s32.totalorder %s39, 1
      %s2920 = scalar_select %p2919, %s39, 1
      %s2921 = smul.addr %s2920, 2
      %s2922 = smul.addr %s2921, 8
      %s2923 = scalar_lea.vmem %s28, %s2922
      // Predicated region
      $region133: #{_lambda_.2} parent=131 // pred_check
        %p2924 = pneg %p655
      $region134: #{_lambda_.2} parent=131 // pred_check_branch
        %2926 = sbr.rel (%p2924) target = $region136
      $region135: #{_lambda_.2} parent=131 // pred_region
        _
      $region136: #{_lambda_.2} parent=131 // pred_fallthru
        _
    $region132: #{_lambda_.2} parent=5 // pred_fallthru
      _
    %p2927 = scmp.le.s32.totalorder 2, %s34
    // Predicated region
    $region137: #{_lambda_.2} parent=5 // pred_check
      %p2928 = pneg %p2927
    $region138: #{_lambda_.2} parent=5 // pred_check_branch
      %2930 = sbr.rel (%p2928) target = $region140
    $region139: #{_lambda_.2} parent=5 // pred_region
      %s2931 = ssub.s32 %s34, 2
      // Predicated region
      $region141: #{_lambda_.2} parent=139 // pred_check
        %p2932 = pneg %p661
      $region142: #{_lambda_.2} parent=139 // pred_check_branch
        %2934 = sbr.rel (%p2932) target = $region144
      $region143: #{_lambda_.2} parent=139 // pred_region
        %p2935 = scmp.lt.s32.totalorder %s40, 1
        %s2936 = scalar_select %p2935, %s40, 1
        %s2937 = smul.addr %s2936, 2
        %s2938 = smul.addr %s2937, 8
        %s2939 = scalar_lea.vmem %s28, %s2938
      $region144: #{_lambda_.2} parent=139 // pred_fallthru
        _
    $region140: #{_lambda_.2} parent=5 // pred_fallthru
      _
  $region6: #{_lambda_.2} parent=0 // loop_footer
    %s38 = sadd.s32 1, %s34
  $region7: #{_lambda_.2} parent=0 // loop_footer_branch
    %33 = sbr.rel target = $region3
  $region8: #{_lambda_.2} parent=0 // loop_exit
    _

// kernel: _lambda_.3
$region0: #{_lambda_.3}
  #allocation0 [shape = 'u32[]', space=smem, size = 0x4, offset = 0x4, fixed_abs, tag = 'smem constant byte address 0x4 - core index']
  #allocation1 [shape = 'u32[144,128]{1,0:T(1,128)}', space=vmem, size = 0x12000, scoped, tag = 'internal scratch']
  %s0 = inlined_call_operand.smem [shape: u32[47], index: -1, kind: input, shape index: {}]
  %s1 = sld [smem:[%s0]]
  %s2 = scalar_lea.smem %s0, 1
  %s3 = sld [smem:[%s2]]
  %s4 = scalar_lea.smem %s0, 2
  %s5 = sld [smem:[%s4]]
  %s6 = scalar_lea.smem %s0, 3
  %s7 = sld [smem:[%s6]]
  %s8 = scalar_lea.smem %s0, 4
  %s9 = sld [smem:[%s8]]
  %s10 = scalar_lea.smem %s0, 5
  %s11 = sld [smem:[%s10]]
  %s12 = scalar_lea.smem %s0, 6
  %s13 = sld [smem:[%s12]]
  %s14 = scalar_lea.smem %s0, 7
  %s15 = sld [smem:[%s14]]
  %s16 = scalar_lea.smem %s0, 8
  %s17 = sld [smem:[%s16]]
  %s18 = scalar_lea.smem %s0, 9
  %s19 = sld [smem:[%s18]]
  %s20 = scalar_lea.smem %s0, 10
  %s21 = sld [smem:[%s20]]
  %s22 = scalar_lea.smem %s0, 11
  %s23 = sld [smem:[%s22]]
  %s24 = scalar_lea.smem %s0, 12
  %s25 = sld [smem:[%s24]]
  %s26 = scalar_lea.smem %s0, 13
  %s27 = sld [smem:[%s26]]
  %s28 = scalar_lea.smem %s0, 14
  %s29 = sld [smem:[%s28]]
  %s30 = scalar_lea.smem %s0, 15
  %s31 = sld [smem:[%s30]]
  %s32 = scalar_lea.smem %s0, 16
  %s33 = sld [smem:[%s32]]
  %s34 = scalar_lea.smem %s0, 17
  %s35 = sld [smem:[%s34]]
  %s36 = scalar_lea.smem %s0, 18
  %s37 = sld [smem:[%s36]]
  %s38 = scalar_lea.smem %s0, 19
  %s39 = sld [smem:[%s38]]
  %s40 = scalar_lea.smem %s0, 20
  %s41 = sld [smem:[%s40]]
  %s42 = scalar_lea.smem %s0, 21
  %s43 = sld [smem:[%s42]]
  %s44 = scalar_lea.smem %s0, 22
  %s45 = sld [smem:[%s44]]
  %s46 = scalar_lea.smem %s0, 23
  %s47 = sld [smem:[%s46]]
  %s48 = scalar_lea.smem %s0, 24
  %s49 = sld [smem:[%s48]]
  %s50 = scalar_lea.smem %s0, 25
  %s51 = sld [smem:[%s50]]
  %s52 = scalar_lea.smem %s0, 26
  %s53 = sld [smem:[%s52]]
  %s54 = scalar_lea.smem %s0, 27
  %s55 = sld [smem:[%s54]]
  %s56 = scalar_lea.smem %s0, 28
  %s57 = sld [smem:[%s56]]
  %s58 = scalar_lea.smem %s0, 29
  %s59 = sld [smem:[%s58]]
  %s60 = scalar_lea.smem %s0, 30
  %s61 = sld [smem:[%s60]]
  %s62 = scalar_lea.smem %s0, 31
  %s63 = sld [smem:[%s62]]
  %s64 = scalar_lea.smem %s0, 32
  %s65 = sld [smem:[%s64]]
  %s66 = scalar_lea.smem %s0, 33
  %s67 = sld [smem:[%s66]]
  %s68 = scalar_lea.smem %s0, 34
  %s69 = sld [smem:[%s68]]
  %s70 = scalar_lea.smem %s0, 35
  %s71 = sld [smem:[%s70]]
  %s72 = scalar_lea.smem %s0, 36
  %s73 = sld [smem:[%s72]]
  %s74 = scalar_lea.smem %s0, 37
  %s75 = sld [smem:[%s74]]
  %s76 = scalar_lea.smem %s0, 38
  %s77 = sld [smem:[%s76]]
  %s78 = scalar_lea.smem %s0, 39
  %s79 = sld [smem:[%s78]]
  %s80 = scalar_lea.smem %s0, 40
  %s81 = sld [smem:[%s80]]
  %s82 = scalar_lea.smem %s0, 41
  %s83 = sld [smem:[%s82]]
  %s84 = scalar_lea.smem %s0, 42
  %s85 = sld [smem:[%s84]]
  %s86 = scalar_lea.smem %s0, 43
  %s87 = sld [smem:[%s86]]
  %s88 = scalar_lea.smem %s0, 44
  %s89 = sld [smem:[%s88]]
  %s90 = scalar_lea.smem %s0, 45
  %s91 = sld [smem:[%s90]]
  %s92 = scalar_lea.smem %s0, 46
  %s93 = sld [smem:[%s92]]
  %s94 = sld [smem:[#allocation0]]
  $region233: #{_lambda_.3} parent=0
    _
  %s96 = ssub.s32 1, %s94
  %s97 = scalar_select 0, %s96, %s94
  $region1: #{_lambda_.3} parent=0
    #allocation2 [shape = 'u8[512]{0}', space=vmem, size = 0x400, scoped, tag = 'input window, operand 41, single buffered']
    #allocation3 [shape = 's32[2]{0}', space=sflag, size = 0x8, scoped, tag = 'scoped memory for _lambda_.3']
    #allocation4 [shape = 'u8[512]{0}', space=vmem, size = 0x400, scoped, tag = 'input window, operand 42, single buffered']
    #allocation5 [shape = 's32[1]{0}', space=sflag, size = 0x4, scoped, tag = 'scoped memory for _lambda_.3']
    #allocation6 [shape = 'u8[512]{0}', space=vmem, size = 0x400, scoped, tag = 'input window, operand 43, single buffered']
    #allocation7 [shape = 'u8[512]{0}', space=vmem, size = 0x400, scoped, tag = 'input window, operand 45, single buffered']
    #allocation8 [shape = 's32[1]{0}', space=sflag, size = 0x4, scoped, tag = 'scoped memory for _lambda_.3']
    %98 = vsyncpa [#allocation3], 0
    %99 = vsyncpa [#allocation5], 0
    %100 = vsyncpa [#allocation8], 0
    loop: start=0, step=1, limit=4
    $region2: #{_lambda_.3} parent=1 // loop_pre_header
      _
    $region3: #{_lambda_.3} parent=1 // loop_header
      %s102 = sphi 0, %s106
      %p103 = scmp.ge.s32.totalorder %s102, 4
      %s112 = sphi 0, %s114
      %s115 = sphi 0, %s112
      %s116 = sphi 0, %s115
      %s132 = sphi 0, %s116
      %s138 = sphi 0, %s140
      %s141 = sphi 0, %s138
      %s142 = sphi 0, %s141
      %s158 = sphi 0, %s142
      %s162 = sphi 0, %s162
      %s164 = sphi 0, %s162
      %s165 = sphi 0, %s164
      %s179 = sphi 0, %s165
      %s183 = sphi 0, %s183
      %s185 = sphi 0, %s183
      %s186 = sphi 0, %s185
      %s200 = sphi 0, %s186
      %s204 = sphi 0, %s204
      %s206 = sphi 0, %s204
      %s207 = sphi 0, %s206
      %s221 = sphi 0, %s207
      %s225 = sphi 0, %s225
      %s227 = sphi 0, %s225
      %s228 = sphi 0, %s227
      %s242 = sphi 0, %s228
      %s246 = sphi 0, %s246
      %s248 = sphi 0, %s246
      %s249 = sphi 0, %s248
      %s263 = sphi 0, %s249
      %s267 = sphi 0, %s267
      %s269 = sphi 0, %s267
      %s270 = sphi 0, %s269
      %s284 = sphi 0, %s270
      %s288 = sphi 0, %s288
      %s290 = sphi 0, %s288
      %s291 = sphi 0, %s290
      %s305 = sphi 0, %s291
      %s309 = sphi 0, %s309
      %s311 = sphi 0, %s309
      %s312 = sphi 0, %s311
      %s326 = sphi 0, %s312
      %s330 = sphi 0, %s330
      %s332 = sphi 0, %s330
      %s333 = sphi 0, %s332
      %s347 = sphi 0, %s333
      %s351 = sphi 0, %s351
      %s353 = sphi 0, %s351
      %s354 = sphi 0, %s353
      %s368 = sphi 0, %s354
      %s372 = sphi 0, %s372
      %s374 = sphi 0, %s372
      %s375 = sphi 0, %s374
      %s389 = sphi 0, %s375
      %s393 = sphi 0, %s393
      %s395 = sphi 0, %s393
      %s396 = sphi 0, %s395
      %s410 = sphi 0, %s396
      %s414 = sphi 0, %s414
      %s416 = sphi 0, %s414
      %s417 = sphi 0, %s416
      %s431 = sphi 0, %s417
      %s435 = sphi 0, %s435
      %s437 = sphi 0, %s435
      %s438 = sphi 0, %s437
      %s452 = sphi 0, %s438
      %s456 = sphi 0, %s456
      %s458 = sphi 0, %s456
      %s459 = sphi 0, %s458
      %s473 = sphi 0, %s459
      %s477 = sphi 0, %s477
      %s479 = sphi 0, %s477
      %s480 = sphi 0, %s479
      %s494 = sphi 0, %s480
      %s498 = sphi 0, %s498
      %s500 = sphi 0, %s498
      %s501 = sphi 0, %s500
      %s515 = sphi 0, %s501
      %s519 = sphi 0, %s519
      %s521 = sphi 0, %s519
      %s522 = sphi 0, %s521
      %s536 = sphi 0, %s522
      %s540 = sphi 0, %s540
      %s542 = sphi 0, %s540
      %s543 = sphi 0, %s542
      %s557 = sphi 0, %s543
      %s561 = sphi 0, %s561
      %s563 = sphi 0, %s561
      %s564 = sphi 0, %s563
      %s578 = sphi 0, %s564
      %s582 = sphi 0, %s582
      %s584 = sphi 0, %s582
      %s585 = sphi 0, %s584
      %s599 = sphi 0, %s585
      %s603 = sphi 0, %s603
      %s605 = sphi 0, %s603
      %s606 = sphi 0, %s605
      %s620 = sphi 0, %s606
      %s624 = sphi 0, %s624
      %s626 = sphi 0, %s624
      %s627 = sphi 0, %s626
      %s641 = sphi 0, %s627
      %s645 = sphi 0, %s645
      %s647 = sphi 0, %s645
      %s648 = sphi 0, %s647
      %s662 = sphi 0, %s648
      %s666 = sphi 0, %s666
      %s668 = sphi 0, %s666
      %s669 = sphi 0, %s668
      %s683 = sphi 0, %s669
      %s687 = sphi 0, %s687
      %s689 = sphi 0, %s687
      %s690 = sphi 0, %s689
      %s704 = sphi 0, %s690
      %s708 = sphi 0, %s708
      %s710 = sphi 0, %s708
      %s711 = sphi 0, %s710
      %s725 = sphi 0, %s711
      %s729 = sphi 0, %s729
      %s731 = sphi 0, %s729
      %s732 = sphi 0, %s731
      %s746 = sphi 0, %s732
      %s750 = sphi 0, %s750
      %s752 = sphi 0, %s750
      %s753 = sphi 0, %s752
      %s767 = sphi 0, %s753
      %s771 = sphi 0, %s771
      %s773 = sphi 0, %s771
      %s774 = sphi 0, %s773
      %s788 = sphi 0, %s774
      %s792 = sphi 0, %s792
      %s794 = sphi 0, %s792
      %s795 = sphi 0, %s794
      %s809 = sphi 0, %s795
      %s813 = sphi 0, %s813
      %s815 = sphi 0, %s813
      %s816 = sphi 0, %s815
      %s830 = sphi 0, %s816
      %s834 = sphi 0, %s834
      %s836 = sphi 0, %s834
      %s837 = sphi 0, %s836
      %s851 = sphi 0, %s837
      %s855 = sphi 0, %s855
      %s857 = sphi 0, %s855
      %s858 = sphi 0, %s857
      %s872 = sphi 0, %s858
      %s876 = sphi 0, %s876
      %s878 = sphi 0, %s876
      %s879 = sphi 0, %s878
      %s893 = sphi 0, %s879
      %s897 = sphi 0, %s897
      %s899 = sphi 0, %s897
      %s900 = sphi 0, %s899
      %s914 = sphi 0, %s900
      %s918 = sphi 0, %s918
      %s920 = sphi 0, %s918
      %s921 = sphi 0, %s920
      %s935 = sphi 0, %s921
      %s939 = sphi 0, %s939
      %s941 = sphi 0, %s939
      %s942 = sphi 0, %s941
      %s956 = sphi 0, %s942
      %s960 = sphi 0, %s960
      %s962 = sphi 0, %s960
      %s963 = sphi 0, %s962
      %s977 = sphi 0, %s963
      %s981 = sphi 0, %s981
      %s983 = sphi 0, %s981
      %s984 = sphi 0, %s983
      %s998 = sphi 0, %s984
      %s1002 = sphi 0, %s1002
      %s1004 = sphi 0, %s1002
      %s1005 = sphi 0, %s1004
      %s1019 = sphi 0, %s1005
      %s1023 = sphi 0, %s1023
      %s1025 = sphi 0, %s1023
      %s1026 = sphi 0, %s1025
      %s1040 = sphi 0, %s1026
      %s1044 = sphi 0, %s1044
      %s1046 = sphi 0, %s1044
      %s1047 = sphi 0, %s1046
      %s1061 = sphi 0, %s1047
      %s1065 = sphi 0, %s1065
      %s1067 = sphi 0, %s1065
      %s1068 = sphi 0, %s1067
      %s1082 = sphi 0, %s1068
      %s1088 = sphi 0, %s1090
      %s1091 = sphi 0, %s1088
      %s1092 = sphi 0, %s1091
      %s1108 = sphi 0, %s1092
    $region4: #{_lambda_.3} parent=1 // loop_header_branch
      %105 = sbr.rel (%p103) target = $region8
    $region5: #{_lambda_.3} parent=1 // loop_body
      %s107 = ssub.s32 %s102, 1
      %s108 = ssub.s32 %s102, 2
      %s109 = sadd.s32 %s102, 1
      %s110 = ssub.s32 %s102, %s109
      %p111 = scmp.eq.s32.totalorder %s110, 0
      %s113 = sadd.s32 %s112, 1
      %s114 = scalar_select %p111, %s112, %s113
      %p117 = pneg %p111
      %p118 = scmp.eq.s32.totalorder %s102, 1
      %p119 = por %p117, %p118
      %p120 = scmp.ne.s32.totalorder %s112, %s115
      %p121 = scmp.eq.s32.totalorder %s102, 0
      %p122 = por %p120, %p121
      %p123 = scmp.ne.s32.totalorder %s112, %s115
      %p124 = scmp.eq.s32.totalorder %s107, 1
      %p125 = por %p123, %p124
      %p126 = scmp.ne.s32.totalorder %s115, %s116
      %p127 = scmp.eq.s32.totalorder %s107, 0
      %p128 = por %p126, %p127
      %p129 = scmp.ne.s32.totalorder %s115, %s116
      %p130 = scmp.eq.s32.totalorder %s108, 1
      %p131 = por %p129, %p130
      %p133 = scmp.ne.s32.totalorder %s116, %s132
      %p134 = scmp.eq.s32.totalorder %s108, 0
      %p135 = por %p133, %p134
      %s136 = ssub.s32 %s102, %s109
      %p137 = scmp.eq.s32.totalorder %s136, 0
      %s139 = sadd.s32 %s138, 1
      %s140 = scalar_select %p137, %s138, %s139
      %p143 = pneg %p137
      %p144 = scmp.eq.s32.totalorder %s102, 1
      %p145 = por %p143, %p144
      %p146 = scmp.ne.s32.totalorder %s138, %s141
      %p147 = scmp.eq.s32.totalorder %s102, 0
      %p148 = por %p146, %p147
      %p149 = scmp.ne.s32.totalorder %s138, %s141
      %p150 = scmp.eq.s32.totalorder %s107, 1
      %p151 = por %p149, %p150
      %p152 = scmp.ne.s32.totalorder %s141, %s142
      %p153 = scmp.eq.s32.totalorder %s107, 0
      %p154 = por %p152, %p153
      %p155 = scmp.ne.s32.totalorder %s141, %s142
      %p156 = scmp.eq.s32.totalorder %s108, 1
      %p157 = por %p155, %p156
      %p159 = scmp.ne.s32.totalorder %s142, %s158
      %p160 = scmp.eq.s32.totalorder %s108, 0
      %p161 = por %p159, %p160
      %s163 = sadd.s32 %s162, 1
      %p166 = scmp.eq.s32.totalorder %s102, 1
      %p167 = scmp.ne.s32.totalorder %s162, %s164
      %p168 = scmp.eq.s32.totalorder %s102, 0
      %p169 = por %p167, %p168
      %p170 = scmp.ne.s32.totalorder %s162, %s164
      %p171 = scmp.eq.s32.totalorder %s107, 1
      %p172 = por %p170, %p171
      %p173 = scmp.ne.s32.totalorder %s164, %s165
      %p174 = scmp.eq.s32.totalorder %s107, 0
      %p175 = por %p173, %p174
      %p176 = scmp.ne.s32.totalorder %s164, %s165
      %p177 = scmp.eq.s32.totalorder %s108, 1
      %p178 = por %p176, %p177
      %p180 = scmp.ne.s32.totalorder %s165, %s179
      %p181 = scmp.eq.s32.totalorder %s108, 0
      %p182 = por %p180, %p181
      %s184 = sadd.s32 %s183, 1
      %p187 = scmp.eq.s32.totalorder %s102, 1
      %p188 = scmp.ne.s32.totalorder %s183, %s185
      %p189 = scmp.eq.s32.totalorder %s102, 0
      %p190 = por %p188, %p189
      %p191 = scmp.ne.s32.totalorder %s183, %s185
      %p192 = scmp.eq.s32.totalorder %s107, 1
      %p193 = por %p191, %p192
      %p194 = scmp.ne.s32.totalorder %s185, %s186
      %p195 = scmp.eq.s32.totalorder %s107, 0
      %p196 = por %p194, %p195
      %p197 = scmp.ne.s32.totalorder %s185, %s186
      %p198 = scmp.eq.s32.totalorder %s108, 1
      %p199 = por %p197, %p198
      %p201 = scmp.ne.s32.totalorder %s186, %s200
      %p202 = scmp.eq.s32.totalorder %s108, 0
      %p203 = por %p201, %p202
      %s205 = sadd.s32 %s204, 1
      %p208 = scmp.eq.s32.totalorder %s102, 1
      %p209 = scmp.ne.s32.totalorder %s204, %s206
      %p210 = scmp.eq.s32.totalorder %s102, 0
      %p211 = por %p209, %p210
      %p212 = scmp.ne.s32.totalorder %s204, %s206
      %p213 = scmp.eq.s32.totalorder %s107, 1
      %p214 = por %p212, %p213
      %p215 = scmp.ne.s32.totalorder %s206, %s207
      %p216 = scmp.eq.s32.totalorder %s107, 0
      %p217 = por %p215, %p216
      %p218 = scmp.ne.s32.totalorder %s206, %s207
      %p219 = scmp.eq.s32.totalorder %s108, 1
      %p220 = por %p218, %p219
      %p222 = scmp.ne.s32.totalorder %s207, %s221
      %p223 = scmp.eq.s32.totalorder %s108, 0
      %p224 = por %p222, %p223
      %s226 = sadd.s32 %s225, 1
      %p229 = scmp.eq.s32.totalorder %s102, 1
      %p230 = scmp.ne.s32.totalorder %s225, %s227
      %p231 = scmp.eq.s32.totalorder %s102, 0
      %p232 = por %p230, %p231
      %p233 = scmp.ne.s32.totalorder %s225, %s227
      %p234 = scmp.eq.s32.totalorder %s107, 1
      %p235 = por %p233, %p234
      %p236 = scmp.ne.s32.totalorder %s227, %s228
      %p237 = scmp.eq.s32.totalorder %s107, 0
      %p238 = por %p236, %p237
      %p239 = scmp.ne.s32.totalorder %s227, %s228
      %p240 = scmp.eq.s32.totalorder %s108, 1
      %p241 = por %p239, %p240
      %p243 = scmp.ne.s32.totalorder %s228, %s242
      %p244 = scmp.eq.s32.totalorder %s108, 0
      %p245 = por %p243, %p244
      %s247 = sadd.s32 %s246, 1
      %p250 = scmp.eq.s32.totalorder %s102, 1
      %p251 = scmp.ne.s32.totalorder %s246, %s248
      %p252 = scmp.eq.s32.totalorder %s102, 0
      %p253 = por %p251, %p252
      %p254 = scmp.ne.s32.totalorder %s246, %s248
      %p255 = scmp.eq.s32.totalorder %s107, 1
      %p256 = por %p254, %p255
      %p257 = scmp.ne.s32.totalorder %s248, %s249
      %p258 = scmp.eq.s32.totalorder %s107, 0
      %p259 = por %p257, %p258
      %p260 = scmp.ne.s32.totalorder %s248, %s249
      %p261 = scmp.eq.s32.totalorder %s108, 1
      %p262 = por %p260, %p261
      %p264 = scmp.ne.s32.totalorder %s249, %s263
      %p265 = scmp.eq.s32.totalorder %s108, 0
      %p266 = por %p264, %p265
      %s268 = sadd.s32 %s267, 1
      %p271 = scmp.eq.s32.totalorder %s102, 1
      %p272 = scmp.ne.s32.totalorder %s267, %s269
      %p273 = scmp.eq.s32.totalorder %s102, 0
      %p274 = por %p272, %p273
      %p275 = scmp.ne.s32.totalorder %s267, %s269
      %p276 = scmp.eq.s32.totalorder %s107, 1
      %p277 = por %p275, %p276
      %p278 = scmp.ne.s32.totalorder %s269, %s270
      %p279 = scmp.eq.s32.totalorder %s107, 0
      %p280 = por %p278, %p279
      %p281 = scmp.ne.s32.totalorder %s269, %s270
      %p282 = scmp.eq.s32.totalorder %s108, 1
      %p283 = por %p281, %p282
      %p285 = scmp.ne.s32.totalorder %s270, %s284
      %p286 = scmp.eq.s32.totalorder %s108, 0
      %p287 = por %p285, %p286
      %s289 = sadd.s32 %s288, 1
      %p292 = scmp.eq.s32.totalorder %s102, 1
      %p293 = scmp.ne.s32.totalorder %s288, %s290
      %p294 = scmp.eq.s32.totalorder %s102, 0
      %p295 = por %p293, %p294
      %p296 = scmp.ne.s32.totalorder %s288, %s290
      %p297 = scmp.eq.s32.totalorder %s107, 1
      %p298 = por %p296, %p297
      %p299 = scmp.ne.s32.totalorder %s290, %s291
      %p300 = scmp.eq.s32.totalorder %s107, 0
      %p301 = por %p299, %p300
      %p302 = scmp.ne.s32.totalorder %s290, %s291
      %p303 = scmp.eq.s32.totalorder %s108, 1
      %p304 = por %p302, %p303
      %p306 = scmp.ne.s32.totalorder %s291, %s305
      %p307 = scmp.eq.s32.totalorder %s108, 0
      %p308 = por %p306, %p307
      %s310 = sadd.s32 %s309, 1
      %p313 = scmp.eq.s32.totalorder %s102, 1
      %p314 = scmp.ne.s32.totalorder %s309, %s311
      %p315 = scmp.eq.s32.totalorder %s102, 0
      %p316 = por %p314, %p315
      %p317 = scmp.ne.s32.totalorder %s309, %s311
      %p318 = scmp.eq.s32.totalorder %s107, 1
      %p319 = por %p317, %p318
      %p320 = scmp.ne.s32.totalorder %s311, %s312
      %p321 = scmp.eq.s32.totalorder %s107, 0
      %p322 = por %p320, %p321
      %p323 = scmp.ne.s32.totalorder %s311, %s312
      %p324 = scmp.eq.s32.totalorder %s108, 1
      %p325 = por %p323, %p324
      %p327 = scmp.ne.s32.totalorder %s312, %s326
      %p328 = scmp.eq.s32.totalorder %s108, 0
      %p329 = por %p327, %p328
      %s331 = sadd.s32 %s330, 1
      %p334 = scmp.eq.s32.totalorder %s102, 1
      %p335 = scmp.ne.s32.totalorder %s330, %s332
      %p336 = scmp.eq.s32.totalorder %s102, 0
      %p337 = por %p335, %p336
      %p338 = scmp.ne.s32.totalorder %s330, %s332
      %p339 = scmp.eq.s32.totalorder %s107, 1
      %p340 = por %p338, %p339
      %p341 = scmp.ne.s32.totalorder %s332, %s333
      %p342 = scmp.eq.s32.totalorder %s107, 0
      %p343 = por %p341, %p342
      %p344 = scmp.ne.s32.totalorder %s332, %s333
      %p345 = scmp.eq.s32.totalorder %s108, 1
      %p346 = por %p344, %p345
      %p348 = scmp.ne.s32.totalorder %s333, %s347
      %p349 = scmp.eq.s32.totalorder %s108, 0
      %p350 = por %p348, %p349
      %s352 = sadd.s32 %s351, 1
      %p355 = scmp.eq.s32.totalorder %s102, 1
      %p356 = scmp.ne.s32.totalorder %s351, %s353
      %p357 = scmp.eq.s32.totalorder %s102, 0
      %p358 = por %p356, %p357
      %p359 = scmp.ne.s32.totalorder %s351, %s353
      %p360 = scmp.eq.s32.totalorder %s107, 1
      %p361 = por %p359, %p360
      %p362 = scmp.ne.s32.totalorder %s353, %s354
      %p363 = scmp.eq.s32.totalorder %s107, 0
      %p364 = por %p362, %p363
      %p365 = scmp.ne.s32.totalorder %s353, %s354
      %p366 = scmp.eq.s32.totalorder %s108, 1
      %p367 = por %p365, %p366
      %p369 = scmp.ne.s32.totalorder %s354, %s368
      %p370 = scmp.eq.s32.totalorder %s108, 0
      %p371 = por %p369, %p370
      %s373 = sadd.s32 %s372, 1
      %p376 = scmp.eq.s32.totalorder %s102, 1
      %p377 = scmp.ne.s32.totalorder %s372, %s374
      %p378 = scmp.eq.s32.totalorder %s102, 0
      %p379 = por %p377, %p378
      %p380 = scmp.ne.s32.totalorder %s372, %s374
      %p381 = scmp.eq.s32.totalorder %s107, 1
      %p382 = por %p380, %p381
      %p383 = scmp.ne.s32.totalorder %s374, %s375
      %p384 = scmp.eq.s32.totalorder %s107, 0
      %p385 = por %p383, %p384
      %p386 = scmp.ne.s32.totalorder %s374, %s375
      %p387 = scmp.eq.s32.totalorder %s108, 1
      %p388 = por %p386, %p387
      %p390 = scmp.ne.s32.totalorder %s375, %s389
      %p391 = scmp.eq.s32.totalorder %s108, 0
      %p392 = por %p390, %p391
      %s394 = sadd.s32 %s393, 1
      %p397 = scmp.eq.s32.totalorder %s102, 1
      %p398 = scmp.ne.s32.totalorder %s393, %s395
      %p399 = scmp.eq.s32.totalorder %s102, 0
      %p400 = por %p398, %p399
      %p401 = scmp.ne.s32.totalorder %s393, %s395
      %p402 = scmp.eq.s32.totalorder %s107, 1
      %p403 = por %p401, %p402
      %p404 = scmp.ne.s32.totalorder %s395, %s396
      %p405 = scmp.eq.s32.totalorder %s107, 0
      %p406 = por %p404, %p405
      %p407 = scmp.ne.s32.totalorder %s395, %s396
      %p408 = scmp.eq.s32.totalorder %s108, 1
      %p409 = por %p407, %p408
      %p411 = scmp.ne.s32.totalorder %s396, %s410
      %p412 = scmp.eq.s32.totalorder %s108, 0
      %p413 = por %p411, %p412
      %s415 = sadd.s32 %s414, 1
      %p418 = scmp.eq.s32.totalorder %s102, 1
      %p419 = scmp.ne.s32.totalorder %s414, %s416
      %p420 = scmp.eq.s32.totalorder %s102, 0
      %p421 = por %p419, %p420
      %p422 = scmp.ne.s32.totalorder %s414, %s416
      %p423 = scmp.eq.s32.totalorder %s107, 1
      %p424 = por %p422, %p423
      %p425 = scmp.ne.s32.totalorder %s416, %s417
      %p426 = scmp.eq.s32.totalorder %s107, 0
      %p427 = por %p425, %p426
      %p428 = scmp.ne.s32.totalorder %s416, %s417
      %p429 = scmp.eq.s32.totalorder %s108, 1
      %p430 = por %p428, %p429
      %p432 = scmp.ne.s32.totalorder %s417, %s431
      %p433 = scmp.eq.s32.totalorder %s108, 0
      %p434 = por %p432, %p433
      %s436 = sadd.s32 %s435, 1
      %p439 = scmp.eq.s32.totalorder %s102, 1
      %p440 = scmp.ne.s32.totalorder %s435, %s437
      %p441 = scmp.eq.s32.totalorder %s102, 0
      %p442 = por %p440, %p441
      %p443 = scmp.ne.s32.totalorder %s435, %s437
      %p444 = scmp.eq.s32.totalorder %s107, 1
      %p445 = por %p443, %p444
      %p446 = scmp.ne.s32.totalorder %s437, %s438
      %p447 = scmp.eq.s32.totalorder %s107, 0
      %p448 = por %p446, %p447
      %p449 = scmp.ne.s32.totalorder %s437, %s438
      %p450 = scmp.eq.s32.totalorder %s108, 1
      %p451 = por %p449, %p450
      %p453 = scmp.ne.s32.totalorder %s438, %s452
      %p454 = scmp.eq.s32.totalorder %s108, 0
      %p455 = por %p453, %p454
      %s457 = sadd.s32 %s456, 1
      %p460 = scmp.eq.s32.totalorder %s102, 1
      %p461 = scmp.ne.s32.totalorder %s456, %s458
      %p462 = scmp.eq.s32.totalorder %s102, 0
      %p463 = por %p461, %p462
      %p464 = scmp.ne.s32.totalorder %s456, %s458
      %p465 = scmp.eq.s32.totalorder %s107, 1
      %p466 = por %p464, %p465
      %p467 = scmp.ne.s32.totalorder %s458, %s459
      %p468 = scmp.eq.s32.totalorder %s107, 0
      %p469 = por %p467, %p468
      %p470 = scmp.ne.s32.totalorder %s458, %s459
      %p471 = scmp.eq.s32.totalorder %s108, 1
      %p472 = por %p470, %p471
      %p474 = scmp.ne.s32.totalorder %s459, %s473
      %p475 = scmp.eq.s32.totalorder %s108, 0
      %p476 = por %p474, %p475
      %s478 = sadd.s32 %s477, 1
      %p481 = scmp.eq.s32.totalorder %s102, 1
      %p482 = scmp.ne.s32.totalorder %s477, %s479
      %p483 = scmp.eq.s32.totalorder %s102, 0
      %p484 = por %p482, %p483
      %p485 = scmp.ne.s32.totalorder %s477, %s479
      %p486 = scmp.eq.s32.totalorder %s107, 1
      %p487 = por %p485, %p486
      %p488 = scmp.ne.s32.totalorder %s479, %s480
      %p489 = scmp.eq.s32.totalorder %s107, 0
      %p490 = por %p488, %p489
      %p491 = scmp.ne.s32.totalorder %s479, %s480
      %p492 = scmp.eq.s32.totalorder %s108, 1
      %p493 = por %p491, %p492
      %p495 = scmp.ne.s32.totalorder %s480, %s494
      %p496 = scmp.eq.s32.totalorder %s108, 0
      %p497 = por %p495, %p496
      %s499 = sadd.s32 %s498, 1
      %p502 = scmp.eq.s32.totalorder %s102, 1
      %p503 = scmp.ne.s32.totalorder %s498, %s500
      %p504 = scmp.eq.s32.totalorder %s102, 0
      %p505 = por %p503, %p504
      %p506 = scmp.ne.s32.totalorder %s498, %s500
      %p507 = scmp.eq.s32.totalorder %s107, 1
      %p508 = por %p506, %p507
      %p509 = scmp.ne.s32.totalorder %s500, %s501
      %p510 = scmp.eq.s32.totalorder %s107, 0
      %p511 = por %p509, %p510
      %p512 = scmp.ne.s32.totalorder %s500, %s501
      %p513 = scmp.eq.s32.totalorder %s108, 1
      %p514 = por %p512, %p513
      %p516 = scmp.ne.s32.totalorder %s501, %s515
      %p517 = scmp.eq.s32.totalorder %s108, 0
      %p518 = por %p516, %p517
      %s520 = sadd.s32 %s519, 1
      %p523 = scmp.eq.s32.totalorder %s102, 1
      %p524 = scmp.ne.s32.totalorder %s519, %s521
      %p525 = scmp.eq.s32.totalorder %s102, 0
      %p526 = por %p524, %p525
      %p527 = scmp.ne.s32.totalorder %s519, %s521
      %p528 = scmp.eq.s32.totalorder %s107, 1
      %p529 = por %p527, %p528
      %p530 = scmp.ne.s32.totalorder %s521, %s522
      %p531 = scmp.eq.s32.totalorder %s107, 0
      %p532 = por %p530, %p531
      %p533 = scmp.ne.s32.totalorder %s521, %s522
      %p534 = scmp.eq.s32.totalorder %s108, 1
      %p535 = por %p533, %p534
      %p537 = scmp.ne.s32.totalorder %s522, %s536
      %p538 = scmp.eq.s32.totalorder %s108, 0
      %p539 = por %p537, %p538
      %s541 = sadd.s32 %s540, 1
      %p544 = scmp.eq.s32.totalorder %s102, 1
      %p545 = scmp.ne.s32.totalorder %s540, %s542
      %p546 = scmp.eq.s32.totalorder %s102, 0
      %p547 = por %p545, %p546
      %p548 = scmp.ne.s32.totalorder %s540, %s542
      %p549 = scmp.eq.s32.totalorder %s107, 1
      %p550 = por %p548, %p549
      %p551 = scmp.ne.s32.totalorder %s542, %s543
      %p552 = scmp.eq.s32.totalorder %s107, 0
      %p553 = por %p551, %p552
      %p554 = scmp.ne.s32.totalorder %s542, %s543
      %p555 = scmp.eq.s32.totalorder %s108, 1
      %p556 = por %p554, %p555
      %p558 = scmp.ne.s32.totalorder %s543, %s557
      %p559 = scmp.eq.s32.totalorder %s108, 0
      %p560 = por %p558, %p559
      %s562 = sadd.s32 %s561, 1
      %p565 = scmp.eq.s32.totalorder %s102, 1
      %p566 = scmp.ne.s32.totalorder %s561, %s563
      %p567 = scmp.eq.s32.totalorder %s102, 0
      %p568 = por %p566, %p567
      %p569 = scmp.ne.s32.totalorder %s561, %s563
      %p570 = scmp.eq.s32.totalorder %s107, 1
      %p571 = por %p569, %p570
      %p572 = scmp.ne.s32.totalorder %s563, %s564
      %p573 = scmp.eq.s32.totalorder %s107, 0
      %p574 = por %p572, %p573
      %p575 = scmp.ne.s32.totalorder %s563, %s564
      %p576 = scmp.eq.s32.totalorder %s108, 1
      %p577 = por %p575, %p576
      %p579 = scmp.ne.s32.totalorder %s564, %s578
      %p580 = scmp.eq.s32.totalorder %s108, 0
      %p581 = por %p579, %p580
      %s583 = sadd.s32 %s582, 1
      %p586 = scmp.eq.s32.totalorder %s102, 1
      %p587 = scmp.ne.s32.totalorder %s582, %s584
      %p588 = scmp.eq.s32.totalorder %s102, 0
      %p589 = por %p587, %p588
      %p590 = scmp.ne.s32.totalorder %s582, %s584
      %p591 = scmp.eq.s32.totalorder %s107, 1
      %p592 = por %p590, %p591
      %p593 = scmp.ne.s32.totalorder %s584, %s585
      %p594 = scmp.eq.s32.totalorder %s107, 0
      %p595 = por %p593, %p594
      %p596 = scmp.ne.s32.totalorder %s584, %s585
      %p597 = scmp.eq.s32.totalorder %s108, 1
      %p598 = por %p596, %p597
      %p600 = scmp.ne.s32.totalorder %s585, %s599
      %p601 = scmp.eq.s32.totalorder %s108, 0
      %p602 = por %p600, %p601
      %s604 = sadd.s32 %s603, 1
      %p607 = scmp.eq.s32.totalorder %s102, 1
      %p608 = scmp.ne.s32.totalorder %s603, %s605
      %p609 = scmp.eq.s32.totalorder %s102, 0
      %p610 = por %p608, %p609
      %p611 = scmp.ne.s32.totalorder %s603, %s605
      %p612 = scmp.eq.s32.totalorder %s107, 1
      %p613 = por %p611, %p612
      %p614 = scmp.ne.s32.totalorder %s605, %s606
      %p615 = scmp.eq.s32.totalorder %s107, 0
      %p616 = por %p614, %p615
      %p617 = scmp.ne.s32.totalorder %s605, %s606
      %p618 = scmp.eq.s32.totalorder %s108, 1
      %p619 = por %p617, %p618
      %p621 = scmp.ne.s32.totalorder %s606, %s620
      %p622 = scmp.eq.s32.totalorder %s108, 0
      %p623 = por %p621, %p622
      %s625 = sadd.s32 %s624, 1
      %p628 = scmp.eq.s32.totalorder %s102, 1
      %p629 = scmp.ne.s32.totalorder %s624, %s626
      %p630 = scmp.eq.s32.totalorder %s102, 0
      %p631 = por %p629, %p630
      %p632 = scmp.ne.s32.totalorder %s624, %s626
      %p633 = scmp.eq.s32.totalorder %s107, 1
      %p634 = por %p632, %p633
      %p635 = scmp.ne.s32.totalorder %s626, %s627
      %p636 = scmp.eq.s32.totalorder %s107, 0
      %p637 = por %p635, %p636
      %p638 = scmp.ne.s32.totalorder %s626, %s627
      %p639 = scmp.eq.s32.totalorder %s108, 1
      %p640 = por %p638, %p639
      %p642 = scmp.ne.s32.totalorder %s627, %s641
      %p643 = scmp.eq.s32.totalorder %s108, 0
      %p644 = por %p642, %p643
      %s646 = sadd.s32 %s645, 1
      %p649 = scmp.eq.s32.totalorder %s102, 1
      %p650 = scmp.ne.s32.totalorder %s645, %s647
      %p651 = scmp.eq.s32.totalorder %s102, 0
      %p652 = por %p650, %p651
      %p653 = scmp.ne.s32.totalorder %s645, %s647
      %p654 = scmp.eq.s32.totalorder %s107, 1
      %p655 = por %p653, %p654
      %p656 = scmp.ne.s32.totalorder %s647, %s648
      %p657 = scmp.eq.s32.totalorder %s107, 0
      %p658 = por %p656, %p657
      %p659 = scmp.ne.s32.totalorder %s647, %s648
      %p660 = scmp.eq.s32.totalorder %s108, 1
      %p661 = por %p659, %p660
      %p663 = scmp.ne.s32.totalorder %s648, %s662
      %p664 = scmp.eq.s32.totalorder %s108, 0
      %p665 = por %p663, %p664
      %s667 = sadd.s32 %s666, 1
      %p670 = scmp.eq.s32.totalorder %s102, 1
      %p671 = scmp.ne.s32.totalorder %s666, %s668
      %p672 = scmp.eq.s32.totalorder %s102, 0
      %p673 = por %p671, %p672
      %p674 = scmp.ne.s32.totalorder %s666, %s668
      %p675 = scmp.eq.s32.totalorder %s107, 1
      %p676 = por %p674, %p675
      %p677 = scmp.ne.s32.totalorder %s668, %s669
      %p678 = scmp.eq.s32.totalorder %s107, 0
      %p679 = por %p677, %p678
      %p680 = scmp.ne.s32.totalorder %s668, %s669
      %p681 = scmp.eq.s32.totalorder %s108, 1
      %p682 = por %p680, %p681
      %p684 = scmp.ne.s32.totalorder %s669, %s683
      %p685 = scmp.eq.s32.totalorder %s108, 0
      %p686 = por %p684, %p685
      %s688 = sadd.s32 %s687, 1
      %p691 = scmp.eq.s32.totalorder %s102, 1
      %p692 = scmp.ne.s32.totalorder %s687, %s689
      %p693 = scmp.eq.s32.totalorder %s102, 0
      %p694 = por %p692, %p693
      %p695 = scmp.ne.s32.totalorder %s687, %s689
      %p696 = scmp.eq.s32.totalorder %s107, 1
      %p697 = por %p695, %p696
      %p698 = scmp.ne.s32.totalorder %s689, %s690
      %p699 = scmp.eq.s32.totalorder %s107, 0
      %p700 = por %p698, %p699
      %p701 = scmp.ne.s32.totalorder %s689, %s690
      %p702 = scmp.eq.s32.totalorder %s108, 1
      %p703 = por %p701, %p702
      %p705 = scmp.ne.s32.totalorder %s690, %s704
      %p706 = scmp.eq.s32.totalorder %s108, 0
      %p707 = por %p705, %p706
      %s709 = sadd.s32 %s708, 1
      %p712 = scmp.eq.s32.totalorder %s102, 1
      %p713 = scmp.ne.s32.totalorder %s708, %s710
      %p714 = scmp.eq.s32.totalorder %s102, 0
      %p715 = por %p713, %p714
      %p716 = scmp.ne.s32.totalorder %s708, %s710
      %p717 = scmp.eq.s32.totalorder %s107, 1
      %p718 = por %p716, %p717
      %p719 = scmp.ne.s32.totalorder %s710, %s711
      %p720 = scmp.eq.s32.totalorder %s107, 0
      %p721 = por %p719, %p720
      %p722 = scmp.ne.s32.totalorder %s710, %s711
      %p723 = scmp.eq.s32.totalorder %s108, 1
      %p724 = por %p722, %p723
      %p726 = scmp.ne.s32.totalorder %s711, %s725
      %p727 = scmp.eq.s32.totalorder %s108, 0
      %p728 = por %p726, %p727
      %s730 = sadd.s32 %s729, 1
      %p733 = scmp.eq.s32.totalorder %s102, 1
      %p734 = scmp.ne.s32.totalorder %s729, %s731
      %p735 = scmp.eq.s32.totalorder %s102, 0
      %p736 = por %p734, %p735
      %p737 = scmp.ne.s32.totalorder %s729, %s731
      %p738 = scmp.eq.s32.totalorder %s107, 1
      %p739 = por %p737, %p738
      %p740 = scmp.ne.s32.totalorder %s731, %s732
      %p741 = scmp.eq.s32.totalorder %s107, 0
      %p742 = por %p740, %p741
      %p743 = scmp.ne.s32.totalorder %s731, %s732
      %p744 = scmp.eq.s32.totalorder %s108, 1
      %p745 = por %p743, %p744
      %p747 = scmp.ne.s32.totalorder %s732, %s746
      %p748 = scmp.eq.s32.totalorder %s108, 0
      %p749 = por %p747, %p748
      %s751 = sadd.s32 %s750, 1
      %p754 = scmp.eq.s32.totalorder %s102, 1
      %p755 = scmp.ne.s32.totalorder %s750, %s752
      %p756 = scmp.eq.s32.totalorder %s102, 0
      %p757 = por %p755, %p756
      %p758 = scmp.ne.s32.totalorder %s750, %s752
      %p759 = scmp.eq.s32.totalorder %s107, 1
      %p760 = por %p758, %p759
      %p761 = scmp.ne.s32.totalorder %s752, %s753
      %p762 = scmp.eq.s32.totalorder %s107, 0
      %p763 = por %p761, %p762
      %p764 = scmp.ne.s32.totalorder %s752, %s753
      %p765 = scmp.eq.s32.totalorder %s108, 1
      %p766 = por %p764, %p765
      %p768 = scmp.ne.s32.totalorder %s753, %s767
      %p769 = scmp.eq.s32.totalorder %s108, 0
      %p770 = por %p768, %p769
      %s772 = sadd.s32 %s771, 1
      %p775 = scmp.eq.s32.totalorder %s102, 1
      %p776 = scmp.ne.s32.totalorder %s771, %s773
      %p777 = scmp.eq.s32.totalorder %s102, 0
      %p778 = por %p776, %p777
      %p779 = scmp.ne.s32.totalorder %s771, %s773
      %p780 = scmp.eq.s32.totalorder %s107, 1
      %p781 = por %p779, %p780
      %p782 = scmp.ne.s32.totalorder %s773, %s774
      %p783 = scmp.eq.s32.totalorder %s107, 0
      %p784 = por %p782, %p783
      %p785 = scmp.ne.s32.totalorder %s773, %s774
      %p786 = scmp.eq.s32.totalorder %s108, 1
      %p787 = por %p785, %p786
      %p789 = scmp.ne.s32.totalorder %s774, %s788
      %p790 = scmp.eq.s32.totalorder %s108, 0
      %p791 = por %p789, %p790
      %s793 = sadd.s32 %s792, 1
      %p796 = scmp.eq.s32.totalorder %s102, 1
      %p797 = scmp.ne.s32.totalorder %s792, %s794
      %p798 = scmp.eq.s32.totalorder %s102, 0
      %p799 = por %p797, %p798
      %p800 = scmp.ne.s32.totalorder %s792, %s794
      %p801 = scmp.eq.s32.totalorder %s107, 1
      %p802 = por %p800, %p801
      %p803 = scmp.ne.s32.totalorder %s794, %s795
      %p804 = scmp.eq.s32.totalorder %s107, 0
      %p805 = por %p803, %p804
      %p806 = scmp.ne.s32.totalorder %s794, %s795
      %p807 = scmp.eq.s32.totalorder %s108, 1
      %p808 = por %p806, %p807
      %p810 = scmp.ne.s32.totalorder %s795, %s809
      %p811 = scmp.eq.s32.totalorder %s108, 0
      %p812 = por %p810, %p811
      %s814 = sadd.s32 %s813, 1
      %p817 = scmp.eq.s32.totalorder %s102, 1
      %p818 = scmp.ne.s32.totalorder %s813, %s815
      %p819 = scmp.eq.s32.totalorder %s102, 0
      %p820 = por %p818, %p819
      %p821 = scmp.ne.s32.totalorder %s813, %s815
      %p822 = scmp.eq.s32.totalorder %s107, 1
      %p823 = por %p821, %p822
      %p824 = scmp.ne.s32.totalorder %s815, %s816
      %p825 = scmp.eq.s32.totalorder %s107, 0
      %p826 = por %p824, %p825
      %p827 = scmp.ne.s32.totalorder %s815, %s816
      %p828 = scmp.eq.s32.totalorder %s108, 1
      %p829 = por %p827, %p828
      %p831 = scmp.ne.s32.totalorder %s816, %s830
      %p832 = scmp.eq.s32.totalorder %s108, 0
      %p833 = por %p831, %p832
      %s835 = sadd.s32 %s834, 1
      %p838 = scmp.eq.s32.totalorder %s102, 1
      %p839 = scmp.ne.s32.totalorder %s834, %s836
      %p840 = scmp.eq.s32.totalorder %s102, 0
      %p841 = por %p839, %p840
      %p842 = scmp.ne.s32.totalorder %s834, %s836
      %p843 = scmp.eq.s32.totalorder %s107, 1
      %p844 = por %p842, %p843
      %p845 = scmp.ne.s32.totalorder %s836, %s837
      %p846 = scmp.eq.s32.totalorder %s107, 0
      %p847 = por %p845, %p846
      %p848 = scmp.ne.s32.totalorder %s836, %s837
      %p849 = scmp.eq.s32.totalorder %s108, 1
      %p850 = por %p848, %p849
      %p852 = scmp.ne.s32.totalorder %s837, %s851
      %p853 = scmp.eq.s32.totalorder %s108, 0
      %p854 = por %p852, %p853
      %s856 = sadd.s32 %s855, 1
      %p859 = scmp.eq.s32.totalorder %s102, 1
      %p860 = scmp.ne.s32.totalorder %s855, %s857
      %p861 = scmp.eq.s32.totalorder %s102, 0
      %p862 = por %p860, %p861
      %p863 = scmp.ne.s32.totalorder %s855, %s857
      %p864 = scmp.eq.s32.totalorder %s107, 1
      %p865 = por %p863, %p864
      %p866 = scmp.ne.s32.totalorder %s857, %s858
      %p867 = scmp.eq.s32.totalorder %s107, 0
      %p868 = por %p866, %p867
      %p869 = scmp.ne.s32.totalorder %s857, %s858
      %p870 = scmp.eq.s32.totalorder %s108, 1
      %p871 = por %p869, %p870
      %p873 = scmp.ne.s32.totalorder %s858, %s872
      %p874 = scmp.eq.s32.totalorder %s108, 0
      %p875 = por %p873, %p874
      %s877 = sadd.s32 %s876, 1
      %p880 = scmp.eq.s32.totalorder %s102, 1
      %p881 = scmp.ne.s32.totalorder %s876, %s878
      %p882 = scmp.eq.s32.totalorder %s102, 0
      %p883 = por %p881, %p882
      %p884 = scmp.ne.s32.totalorder %s876, %s878
      %p885 = scmp.eq.s32.totalorder %s107, 1
      %p886 = por %p884, %p885
      %p887 = scmp.ne.s32.totalorder %s878, %s879
      %p888 = scmp.eq.s32.totalorder %s107, 0
      %p889 = por %p887, %p888
      %p890 = scmp.ne.s32.totalorder %s878, %s879
      %p891 = scmp.eq.s32.totalorder %s108, 1
      %p892 = por %p890, %p891
      %p894 = scmp.ne.s32.totalorder %s879, %s893
      %p895 = scmp.eq.s32.totalorder %s108, 0
      %p896 = por %p894, %p895
      %s898 = sadd.s32 %s897, 1
      %p901 = scmp.eq.s32.totalorder %s102, 1
      %p902 = scmp.ne.s32.totalorder %s897, %s899
      %p903 = scmp.eq.s32.totalorder %s102, 0
      %p904 = por %p902, %p903
      %p905 = scmp.ne.s32.totalorder %s897, %s899
      %p906 = scmp.eq.s32.totalorder %s107, 1
      %p907 = por %p905, %p906
      %p908 = scmp.ne.s32.totalorder %s899, %s900
      %p909 = scmp.eq.s32.totalorder %s107, 0
      %p910 = por %p908, %p909
      %p911 = scmp.ne.s32.totalorder %s899, %s900
      %p912 = scmp.eq.s32.totalorder %s108, 1
      %p913 = por %p911, %p912
      %p915 = scmp.ne.s32.totalorder %s900, %s914
      %p916 = scmp.eq.s32.totalorder %s108, 0
      %p917 = por %p915, %p916
      %s919 = sadd.s32 %s918, 1
      %p922 = scmp.eq.s32.totalorder %s102, 1
      %p923 = scmp.ne.s32.totalorder %s918, %s920
      %p924 = scmp.eq.s32.totalorder %s102, 0
      %p925 = por %p923, %p924
      %p926 = scmp.ne.s32.totalorder %s918, %s920
      %p927 = scmp.eq.s32.totalorder %s107, 1
      %p928 = por %p926, %p927
      %p929 = scmp.ne.s32.totalorder %s920, %s921
      %p930 = scmp.eq.s32.totalorder %s107, 0
      %p931 = por %p929, %p930
      %p932 = scmp.ne.s32.totalorder %s920, %s921
      %p933 = scmp.eq.s32.totalorder %s108, 1
      %p934 = por %p932, %p933
      %p936 = scmp.ne.s32.totalorder %s921, %s935
      %p937 = scmp.eq.s32.totalorder %s108, 0
      %p938 = por %p936, %p937
      %s940 = sadd.s32 %s939, 1
      %p943 = scmp.eq.s32.totalorder %s102, 1
      %p944 = scmp.ne.s32.totalorder %s939, %s941
      %p945 = scmp.eq.s32.totalorder %s102, 0
      %p946 = por %p944, %p945
      %p947 = scmp.ne.s32.totalorder %s939, %s941
      %p948 = scmp.eq.s32.totalorder %s107, 1
      %p949 = por %p947, %p948
      %p950 = scmp.ne.s32.totalorder %s941, %s942
      %p951 = scmp.eq.s32.totalorder %s107, 0
      %p952 = por %p950, %p951
      %p953 = scmp.ne.s32.totalorder %s941, %s942
      %p954 = scmp.eq.s32.totalorder %s108, 1
      %p955 = por %p953, %p954
      %p957 = scmp.ne.s32.totalorder %s942, %s956
      %p958 = scmp.eq.s32.totalorder %s108, 0
      %p959 = por %p957, %p958
      %s961 = sadd.s32 %s960, 1
      %p964 = scmp.eq.s32.totalorder %s102, 1
      %p965 = scmp.ne.s32.totalorder %s960, %s962
      %p966 = scmp.eq.s32.totalorder %s102, 0
      %p967 = por %p965, %p966
      %p968 = scmp.ne.s32.totalorder %s960, %s962
      %p969 = scmp.eq.s32.totalorder %s107, 1
      %p970 = por %p968, %p969
      %p971 = scmp.ne.s32.totalorder %s962, %s963
      %p972 = scmp.eq.s32.totalorder %s107, 0
      %p973 = por %p971, %p972
      %p974 = scmp.ne.s32.totalorder %s962, %s963
      %p975 = scmp.eq.s32.totalorder %s108, 1
      %p976 = por %p974, %p975
      %p978 = scmp.ne.s32.totalorder %s963, %s977
      %p979 = scmp.eq.s32.totalorder %s108, 0
      %p980 = por %p978, %p979
      %s982 = sadd.s32 %s981, 1
      %p985 = scmp.eq.s32.totalorder %s102, 1
      %p986 = scmp.ne.s32.totalorder %s981, %s983
      %p987 = scmp.eq.s32.totalorder %s102, 0
      %p988 = por %p986, %p987
      %p989 = scmp.ne.s32.totalorder %s981, %s983
      %p990 = scmp.eq.s32.totalorder %s107, 1
      %p991 = por %p989, %p990
      %p992 = scmp.ne.s32.totalorder %s983, %s984
      %p993 = scmp.eq.s32.totalorder %s107, 0
      %p994 = por %p992, %p993
      %p995 = scmp.ne.s32.totalorder %s983, %s984
      %p996 = scmp.eq.s32.totalorder %s108, 1
      %p997 = por %p995, %p996
      %p999 = scmp.ne.s32.totalorder %s984, %s998
      %p1000 = scmp.eq.s32.totalorder %s108, 0
      %p1001 = por %p999, %p1000
      %s1003 = sadd.s32 %s1002, 1
      %p1006 = scmp.eq.s32.totalorder %s102, 1
      %p1007 = scmp.ne.s32.totalorder %s1002, %s1004
      %p1008 = scmp.eq.s32.totalorder %s102, 0
      %p1009 = por %p1007, %p1008
      %p1010 = scmp.ne.s32.totalorder %s1002, %s1004
      %p1011 = scmp.eq.s32.totalorder %s107, 1
      %p1012 = por %p1010, %p1011
      %p1013 = scmp.ne.s32.totalorder %s1004, %s1005
      %p1014 = scmp.eq.s32.totalorder %s107, 0
      %p1015 = por %p1013, %p1014
      %p1016 = scmp.ne.s32.totalorder %s1004, %s1005
      %p1017 = scmp.eq.s32.totalorder %s108, 1
      %p1018 = por %p1016, %p1017
      %p1020 = scmp.ne.s32.totalorder %s1005, %s1019
      %p1021 = scmp.eq.s32.totalorder %s108, 0
      %p1022 = por %p1020, %p1021
      %s1024 = sadd.s32 %s1023, 1
      %p1027 = scmp.eq.s32.totalorder %s102, 1
      %p1028 = scmp.ne.s32.totalorder %s1023, %s1025
      %p1029 = scmp.eq.s32.totalorder %s102, 0
      %p1030 = por %p1028, %p1029
      %p1031 = scmp.ne.s32.totalorder %s1023, %s1025
      %p1032 = scmp.eq.s32.totalorder %s107, 1
      %p1033 = por %p1031, %p1032
      %p1034 = scmp.ne.s32.totalorder %s1025, %s1026
      %p1035 = scmp.eq.s32.totalorder %s107, 0
      %p1036 = por %p1034, %p1035
      %p1037 = scmp.ne.s32.totalorder %s1025, %s1026
      %p1038 = scmp.eq.s32.totalorder %s108, 1
      %p1039 = por %p1037, %p1038
      %p1041 = scmp.ne.s32.totalorder %s1026, %s1040
      %p1042 = scmp.eq.s32.totalorder %s108, 0
      %p1043 = por %p1041, %p1042
      %s1045 = sadd.s32 %s1044, 1
      %p1048 = scmp.eq.s32.totalorder %s102, 1
      %p1049 = scmp.ne.s32.totalorder %s1044, %s1046
      %p1050 = scmp.eq.s32.totalorder %s102, 0
      %p1051 = por %p1049, %p1050
      %p1052 = scmp.ne.s32.totalorder %s1044, %s1046
      %p1053 = scmp.eq.s32.totalorder %s107, 1
      %p1054 = por %p1052, %p1053
      %p1055 = scmp.ne.s32.totalorder %s1046, %s1047
      %p1056 = scmp.eq.s32.totalorder %s107, 0
      %p1057 = por %p1055, %p1056
      %p1058 = scmp.ne.s32.totalorder %s1046, %s1047
      %p1059 = scmp.eq.s32.totalorder %s108, 1
      %p1060 = por %p1058, %p1059
      %p1062 = scmp.ne.s32.totalorder %s1047, %s1061
      %p1063 = scmp.eq.s32.totalorder %s108, 0
      %p1064 = por %p1062, %p1063
      %s1066 = sadd.s32 %s1065, 1
      %p1069 = scmp.eq.s32.totalorder %s102, 1
      %p1070 = scmp.ne.s32.totalorder %s1065, %s1067
      %p1071 = scmp.eq.s32.totalorder %s102, 0
      %p1072 = por %p1070, %p1071
      %p1073 = scmp.ne.s32.totalorder %s1065, %s1067
      %p1074 = scmp.eq.s32.totalorder %s107, 1
      %p1075 = por %p1073, %p1074
      %p1076 = scmp.ne.s32.totalorder %s1067, %s1068
      %p1077 = scmp.eq.s32.totalorder %s107, 0
      %p1078 = por %p1076, %p1077
      %p1079 = scmp.ne.s32.totalorder %s1067, %s1068
      %p1080 = scmp.eq.s32.totalorder %s108, 1
      %p1081 = por %p1079, %p1080
      %p1083 = scmp.ne.s32.totalorder %s1068, %s1082
      %p1084 = scmp.eq.s32.totalorder %s108, 0
      %p1085 = por %p1083, %p1084
      %s1086 = ssub.s32 %s102, %s109
      %p1087 = scmp.eq.s32.totalorder %s1086, 0
      %s1089 = sadd.s32 %s1088, 1
      %s1090 = scalar_select %p1087, %s1088, %s1089
      %p1093 = pneg %p1087
      %p1094 = scmp.eq.s32.totalorder %s102, 1
      %p1095 = por %p1093, %p1094
      %p1096 = scmp.ne.s32.totalorder %s1088, %s1091
      %p1097 = scmp.eq.s32.totalorder %s102, 0
      %p1098 = por %p1096, %p1097
      %p1099 = scmp.ne.s32.totalorder %s1088, %s1091
      %p1100 = scmp.eq.s32.totalorder %s107, 1
      %p1101 = por %p1099, %p1100
      %p1102 = scmp.ne.s32.totalorder %s1091, %s1092
      %p1103 = scmp.eq.s32.totalorder %s107, 0
      %p1104 = por %p1102, %p1103
      %p1105 = scmp.ne.s32.totalorder %s1091, %s1092
      %p1106 = scmp.eq.s32.totalorder %s108, 1
      %p1107 = por %p1105, %p1106
      %p1109 = scmp.ne.s32.totalorder %s1092, %s1108
      %p1110 = scmp.eq.s32.totalorder %s108, 0
      %p1111 = por %p1109, %p1110
      %p1112 = scmp.le.s32.totalorder 1, %s102
      %p1113 = scmp.lt.s32.totalorder %s102, 3
      %p1114 = pnand %p1112, %p1113
      %p1115 = pneg %p1114
      // Predicated region
      $region9: #{_lambda_.3} parent=5 // pred_check
        _
      $region10: #{_lambda_.3} parent=5 // pred_check_branch
        %1117 = sbr.rel (%p1114) target = $region12
      $region11: #{_lambda_.3} parent=5 // pred_region
        %s1118 = ssub.s32 %s102, 1
        // Predicated region
        $region13: #{_lambda_.3} parent=11 // pred_check
          %p1119 = pneg %p175
        $region14: #{_lambda_.3} parent=11 // pred_check_branch
          %1121 = sbr.rel (%p1119) target = $region16
        $region15: #{_lambda_.3} parent=11 // pred_region
          _
        $region16: #{_lambda_.3} parent=11 // pred_fallthru
          _
        // Predicated region
        $region17: #{_lambda_.3} parent=11 // pred_check
          %p1122 = pneg %p196
        $region18: #{_lambda_.3} parent=11 // pred_check_branch
          %1124 = sbr.rel (%p1122) target = $region20
        $region19: #{_lambda_.3} parent=11 // pred_region
          _
        $region20: #{_lambda_.3} parent=11 // pred_fallthru
          _
        // Predicated region
        $region21: #{_lambda_.3} parent=11 // pred_check
          %p1125 = pneg %p217
        $region22: #{_lambda_.3} parent=11 // pred_check_branch
          %1127 = sbr.rel (%p1125) target = $region24
        $region23: #{_lambda_.3} parent=11 // pred_region
          _
        $region24: #{_lambda_.3} parent=11 // pred_fallthru
          _
        // Predicated region
        $region25: #{_lambda_.3} parent=11 // pred_check
          %p1128 = pneg %p238
        $region26: #{_lambda_.3} parent=11 // pred_check_branch
          %1130 = sbr.rel (%p1128) target = $region28
        $region27: #{_lambda_.3} parent=11 // pred_region
          _
        $region28: #{_lambda_.3} parent=11 // pred_fallthru
          _
        // Predicated region
        $region29: #{_lambda_.3} parent=11 // pred_check
          %p1131 = pneg %p259
        $region30: #{_lambda_.3} parent=11 // pred_check_branch
          %1133 = sbr.rel (%p1131) target = $region32
        $region31: #{_lambda_.3} parent=11 // pred_region
          _
        $region32: #{_lambda_.3} parent=11 // pred_fallthru
          _
        // Predicated region
        $region33: #{_lambda_.3} parent=11 // pred_check
          %p1134 = pneg %p280
        $region34: #{_lambda_.3} parent=11 // pred_check_branch
          %1136 = sbr.rel (%p1134) target = $region36
        $region35: #{_lambda_.3} parent=11 // pred_region
          _
        $region36: #{_lambda_.3} parent=11 // pred_fallthru
          _
        // Predicated region
        $region37: #{_lambda_.3} parent=11 // pred_check
          %p1137 = pneg %p301
        $region38: #{_lambda_.3} parent=11 // pred_check_branch
          %1139 = sbr.rel (%p1137) target = $region40
        $region39: #{_lambda_.3} parent=11 // pred_region
          _
        $region40: #{_lambda_.3} parent=11 // pred_fallthru
          _
        // Predicated region
        $region41: #{_lambda_.3} parent=11 // pred_check
          %p1140 = pneg %p322
        $region42: #{_lambda_.3} parent=11 // pred_check_branch
          %1142 = sbr.rel (%p1140) target = $region44
        $region43: #{_lambda_.3} parent=11 // pred_region
          _
        $region44: #{_lambda_.3} parent=11 // pred_fallthru
          _
        // Predicated region
        $region45: #{_lambda_.3} parent=11 // pred_check
          %p1143 = pneg %p343
        $region46: #{_lambda_.3} parent=11 // pred_check_branch
          %1145 = sbr.rel (%p1143) target = $region48
        $region47: #{_lambda_.3} parent=11 // pred_region
          _
        $region48: #{_lambda_.3} parent=11 // pred_fallthru
          _
        // Predicated region
        $region49: #{_lambda_.3} parent=11 // pred_check
          %p1146 = pneg %p364
        $region50: #{_lambda_.3} parent=11 // pred_check_branch
          %1148 = sbr.rel (%p1146) target = $region52
        $region51: #{_lambda_.3} parent=11 // pred_region
          _
        $region52: #{_lambda_.3} parent=11 // pred_fallthru
          _
        // Predicated region
        $region53: #{_lambda_.3} parent=11 // pred_check
          %p1149 = pneg %p385
        $region54: #{_lambda_.3} parent=11 // pred_check_branch
          %1151 = sbr.rel (%p1149) target = $region56
        $region55: #{_lambda_.3} parent=11 // pred_region
          _
        $region56: #{_lambda_.3} parent=11 // pred_fallthru
          _
        // Predicated region
        $region57: #{_lambda_.3} parent=11 // pred_check
          %p1152 = pneg %p406
        $region58: #{_lambda_.3} parent=11 // pred_check_branch
          %1154 = sbr.rel (%p1152) target = $region60
        $region59: #{_lambda_.3} parent=11 // pred_region
          _
        $region60: #{_lambda_.3} parent=11 // pred_fallthru
          _
        // Predicated region
        $region61: #{_lambda_.3} parent=11 // pred_check
          %p1155 = pneg %p427
        $region62: #{_lambda_.3} parent=11 // pred_check_branch
          %1157 = sbr.rel (%p1155) target = $region64
        $region63: #{_lambda_.3} parent=11 // pred_region
          _
        $region64: #{_lambda_.3} parent=11 // pred_fallthru
          _
        // Predicated region
        $region65: #{_lambda_.3} parent=11 // pred_check
          %p1158 = pneg %p448
        $region66: #{_lambda_.3} parent=11 // pred_check_branch
          %1160 = sbr.rel (%p1158) target = $region68
        $region67: #{_lambda_.3} parent=11 // pred_region
          _
        $region68: #{_lambda_.3} parent=11 // pred_fallthru
          _
        // Predicated region
        $region69: #{_lambda_.3} parent=11 // pred_check
          %p1161 = pneg %p469
        $region70: #{_lambda_.3} parent=11 // pred_check_branch
          %1163 = sbr.rel (%p1161) target = $region72
        $region71: #{_lambda_.3} parent=11 // pred_region
          _
        $region72: #{_lambda_.3} parent=11 // pred_fallthru
          _
        // Predicated region
        $region73: #{_lambda_.3} parent=11 // pred_check
          %p1164 = pneg %p490
        $region74: #{_lambda_.3} parent=11 // pred_check_branch
          %1166 = sbr.rel (%p1164) target = $region76
        $region75: #{_lambda_.3} parent=11 // pred_region
          _
        $region76: #{_lambda_.3} parent=11 // pred_fallthru
          _
        // Predicated region
        $region77: #{_lambda_.3} parent=11 // pred_check
          %p1167 = pneg %p511
        $region78: #{_lambda_.3} parent=11 // pred_check_branch
          %1169 = sbr.rel (%p1167) target = $region80
        $region79: #{_lambda_.3} parent=11 // pred_region
          _
        $region80: #{_lambda_.3} parent=11 // pred_fallthru
          _
        // Predicated region
        $region81: #{_lambda_.3} parent=11 // pred_check
          %p1170 = pneg %p532
        $region82: #{_lambda_.3} parent=11 // pred_check_branch
          %1172 = sbr.rel (%p1170) target = $region84
        $region83: #{_lambda_.3} parent=11 // pred_region
          _
        $region84: #{_lambda_.3} parent=11 // pred_fallthru
          _
        // Predicated region
        $region85: #{_lambda_.3} parent=11 // pred_check
          %p1173 = pneg %p553
        $region86: #{_lambda_.3} parent=11 // pred_check_branch
          %1175 = sbr.rel (%p1173) target = $region88
        $region87: #{_lambda_.3} parent=11 // pred_region
          _
        $region88: #{_lambda_.3} parent=11 // pred_fallthru
          _
        // Predicated region
        $region89: #{_lambda_.3} parent=11 // pred_check
          %p1176 = pneg %p574
        $region90: #{_lambda_.3} parent=11 // pred_check_branch
          %1178 = sbr.rel (%p1176) target = $region92
        $region91: #{_lambda_.3} parent=11 // pred_region
          _
        $region92: #{_lambda_.3} parent=11 // pred_fallthru
          _
        // Predicated region
        $region93: #{_lambda_.3} parent=11 // pred_check
          %p1179 = pneg %p595
        $region94: #{_lambda_.3} parent=11 // pred_check_branch
          %1181 = sbr.rel (%p1179) target = $region96
        $region95: #{_lambda_.3} parent=11 // pred_region
          _
        $region96: #{_lambda_.3} parent=11 // pred_fallthru
          _
        // Predicated region
        $region97: #{_lambda_.3} parent=11 // pred_check
          %p1182 = pneg %p616
        $region98: #{_lambda_.3} parent=11 // pred_check_branch
          %1184 = sbr.rel (%p1182) target = $region100
        $region99: #{_lambda_.3} parent=11 // pred_region
          _
        $region100: #{_lambda_.3} parent=11 // pred_fallthru
          _
        // Predicated region
        $region101: #{_lambda_.3} parent=11 // pred_check
          %p1185 = pneg %p637
        $region102: #{_lambda_.3} parent=11 // pred_check_branch
          %1187 = sbr.rel (%p1185) target = $region104
        $region103: #{_lambda_.3} parent=11 // pred_region
          _
        $region104: #{_lambda_.3} parent=11 // pred_fallthru
          _
        // Predicated region
        $region105: #{_lambda_.3} parent=11 // pred_check
          %p1188 = pneg %p658
        $region106: #{_lambda_.3} parent=11 // pred_check_branch
          %1190 = sbr.rel (%p1188) target = $region108
        $region107: #{_lambda_.3} parent=11 // pred_region
          _
        $region108: #{_lambda_.3} parent=11 // pred_fallthru
          _
        // Predicated region
        $region109: #{_lambda_.3} parent=11 // pred_check
          %p1191 = pneg %p679
        $region110: #{_lambda_.3} parent=11 // pred_check_branch
          %1193 = sbr.rel (%p1191) target = $region112
        $region111: #{_lambda_.3} parent=11 // pred_region
          _
        $region112: #{_lambda_.3} parent=11 // pred_fallthru
          _
        // Predicated region
        $region113: #{_lambda_.3} parent=11 // pred_check
          %p1194 = pneg %p700
        $region114: #{_lambda_.3} parent=11 // pred_check_branch
          %1196 = sbr.rel (%p1194) target = $region116
        $region115: #{_lambda_.3} parent=11 // pred_region
          _
        $region116: #{_lambda_.3} parent=11 // pred_fallthru
          _
        // Predicated region
        $region117: #{_lambda_.3} parent=11 // pred_check
          %p1197 = pneg %p721
        $region118: #{_lambda_.3} parent=11 // pred_check_branch
          %1199 = sbr.rel (%p1197) target = $region120
        $region119: #{_lambda_.3} parent=11 // pred_region
          _
        $region120: #{_lambda_.3} parent=11 // pred_fallthru
          _
        // Predicated region
        $region121: #{_lambda_.3} parent=11 // pred_check
          %p1200 = pneg %p742
        $region122: #{_lambda_.3} parent=11 // pred_check_branch
          %1202 = sbr.rel (%p1200) target = $region124
        $region123: #{_lambda_.3} parent=11 // pred_region
          _
        $region124: #{_lambda_.3} parent=11 // pred_fallthru
          _
        // Predicated region
        $region125: #{_lambda_.3} parent=11 // pred_check
          %p1203 = pneg %p763
        $region126: #{_lambda_.3} parent=11 // pred_check_branch
          %1205 = sbr.rel (%p1203) target = $region128
        $region127: #{_lambda_.3} parent=11 // pred_region
          _
        $region128: #{_lambda_.3} parent=11 // pred_fallthru
          _
        // Predicated region
        $region129: #{_lambda_.3} parent=11 // pred_check
          %p1206 = pneg %p784
        $region130: #{_lambda_.3} parent=11 // pred_check_branch
          %1208 = sbr.rel (%p1206) target = $region132
        $region131: #{_lambda_.3} parent=11 // pred_region
          _
        $region132: #{_lambda_.3} parent=11 // pred_fallthru
          _
        // Predicated region
        $region133: #{_lambda_.3} parent=11 // pred_check
          %p1209 = pneg %p805
        $region134: #{_lambda_.3} parent=11 // pred_check_branch
          %1211 = sbr.rel (%p1209) target = $region136
        $region135: #{_lambda_.3} parent=11 // pred_region
          _
        $region136: #{_lambda_.3} parent=11 // pred_fallthru
          _
        // Predicated region
        $region137: #{_lambda_.3} parent=11 // pred_check
          %p1212 = pneg %p826
        $region138: #{_lambda_.3} parent=11 // pred_check_branch
          %1214 = sbr.rel (%p1212) target = $region140
        $region139: #{_lambda_.3} parent=11 // pred_region
          _
        $region140: #{_lambda_.3} parent=11 // pred_fallthru
          _
        // Predicated region
        $region141: #{_lambda_.3} parent=11 // pred_check
          %p1215 = pneg %p847
        $region142: #{_lambda_.3} parent=11 // pred_check_branch
          %1217 = sbr.rel (%p1215) target = $region144
        $region143: #{_lambda_.3} parent=11 // pred_region
          _
        $region144: #{_lambda_.3} parent=11 // pred_fallthru
          _
        // Predicated region
        $region145: #{_lambda_.3} parent=11 // pred_check
          %p1218 = pneg %p868
        $region146: #{_lambda_.3} parent=11 // pred_check_branch
          %1220 = sbr.rel (%p1218) target = $region148
        $region147: #{_lambda_.3} parent=11 // pred_region
          _
        $region148: #{_lambda_.3} parent=11 // pred_fallthru
          _
        // Predicated region
        $region149: #{_lambda_.3} parent=11 // pred_check
          %p1221 = pneg %p889
        $region150: #{_lambda_.3} parent=11 // pred_check_branch
          %1223 = sbr.rel (%p1221) target = $region152
        $region151: #{_lambda_.3} parent=11 // pred_region
          _
        $region152: #{_lambda_.3} parent=11 // pred_fallthru
          _
        // Predicated region
        $region153: #{_lambda_.3} parent=11 // pred_check
          %p1224 = pneg %p910
        $region154: #{_lambda_.3} parent=11 // pred_check_branch
          %1226 = sbr.rel (%p1224) target = $region156
        $region155: #{_lambda_.3} parent=11 // pred_region
          _
        $region156: #{_lambda_.3} parent=11 // pred_fallthru
          _
        // Predicated region
        $region157: #{_lambda_.3} parent=11 // pred_check
          %p1227 = pneg %p931
        $region158: #{_lambda_.3} parent=11 // pred_check_branch
          %1229 = sbr.rel (%p1227) target = $region160
        $region159: #{_lambda_.3} parent=11 // pred_region
          _
        $region160: #{_lambda_.3} parent=11 // pred_fallthru
          _
        // Predicated region
        $region161: #{_lambda_.3} parent=11 // pred_check
          %p1230 = pneg %p952
        $region162: #{_lambda_.3} parent=11 // pred_check_branch
          %1232 = sbr.rel (%p1230) target = $region164
        $region163: #{_lambda_.3} parent=11 // pred_region
          _
        $region164: #{_lambda_.3} parent=11 // pred_fallthru
          _
        // Predicated region
        $region165: #{_lambda_.3} parent=11 // pred_check
          %p1233 = pneg %p973
        $region166: #{_lambda_.3} parent=11 // pred_check_branch
          %1235 = sbr.rel (%p1233) target = $region168
        $region167: #{_lambda_.3} parent=11 // pred_region
          _
        $region168: #{_lambda_.3} parent=11 // pred_fallthru
          _
        // Predicated region
        $region169: #{_lambda_.3} parent=11 // pred_check
          %p1236 = pneg %p994
        $region170: #{_lambda_.3} parent=11 // pred_check_branch
          %1238 = sbr.rel (%p1236) target = $region172
        $region171: #{_lambda_.3} parent=11 // pred_region
          %s1240 = ssub.s32 16, 16
          %1241 = vsyncadd [#allocation3], %s1240
          %s1243 = sshll.u32 [#allocation2], 4
          %s1244 = int_to_ptr.vmem [resolvable:$true] %s1243
          %1246 = dma.hbm_to_vmem [thread:$0]  %s83, 16, %s1244, [#allocation3]
        $region172: #{_lambda_.3} parent=11 // pred_fallthru
          _
        // Predicated region
        $region173: #{_lambda_.3} parent=11 // pred_check
          %p1247 = pneg %p1015
        $region174: #{_lambda_.3} parent=11 // pred_check_branch
          %1249 = sbr.rel (%p1247) target = $region176
        $region175: #{_lambda_.3} parent=11 // pred_region
          %s1251 = ssub.s32 16, 16
          %1252 = vsyncadd [#allocation5], %s1251
          %s1254 = sshll.u32 [#allocation4], 4
          %s1255 = int_to_ptr.vmem [resolvable:$true] %s1254
          %1257 = dma.hbm_to_vmem [thread:$0]  %s85, 16, %s1255, [#allocation5]
        $region176: #{_lambda_.3} parent=11 // pred_fallthru
          _
        // Predicated region
        $region177: #{_lambda_.3} parent=11 // pred_check
          %p1258 = pneg %p1036
        $region178: #{_lambda_.3} parent=11 // pred_check_branch
          %1260 = sbr.rel (%p1258) target = $region180
        $region179: #{_lambda_.3} parent=11 // pred_region
          %s1262 = ssub.s32 16, 16
          %1263 = vsyncadd [#allocation5], %s1262
          %s1265 = sshll.u32 [#allocation6], 4
          %s1266 = int_to_ptr.vmem [resolvable:$true] %s1265
          %1268 = dma.hbm_to_vmem [thread:$0]  %s87, 16, %s1266, [#allocation5]
        $region180: #{_lambda_.3} parent=11 // pred_fallthru
          _
        // Predicated region
        $region181: #{_lambda_.3} parent=11 // pred_check
          %p1269 = pneg %p1057
        $region182: #{_lambda_.3} parent=11 // pred_check_branch
          %1271 = sbr.rel (%p1269) target = $region184
        $region183: #{_lambda_.3} parent=11 // pred_region
          _
        $region184: #{_lambda_.3} parent=11 // pred_fallthru
          _
        // Predicated region
        $region185: #{_lambda_.3} parent=11 // pred_check
          %p1272 = pneg %p1078
        $region186: #{_lambda_.3} parent=11 // pred_check_branch
          %1274 = sbr.rel (%p1272) target = $region188
        $region187: #{_lambda_.3} parent=11 // pred_region
          %s1276 = ssub.s32 16, 16
          %1277 = vsyncadd [#allocation8], %s1276
          %s1279 = sshll.u32 [#allocation7], 4
          %s1280 = int_to_ptr.vmem [resolvable:$true] %s1279
          %1282 = dma.hbm_to_vmem [thread:$0]  %s91, 16, %s1280, [#allocation8]
        $region188: #{_lambda_.3} parent=11 // pred_fallthru
          _
      $region12: #{_lambda_.3} parent=5 // pred_fallthru
        _
      %p1283 = scmp.lt.s32.totalorder %s102, 2
      // Predicated region
      $region189: #{_lambda_.3} parent=5 // pred_check
        %p1284 = pneg %p1283
      $region190: #{_lambda_.3} parent=5 // pred_check_branch
        %1286 = sbr.rel (%p1284) target = $region192
      $region191: #{_lambda_.3} parent=5 // pred_region
        // Predicated region
        $region193: #{_lambda_.3} parent=191 // pred_check
          %p1287 = pneg %p122
        $region194: #{_lambda_.3} parent=191 // pred_check_branch
          %1289 = sbr.rel (%p1287) target = $region196
        $region195: #{_lambda_.3} parent=191 // pred_region
          %p1290 = scmp.lt.s32.totalorder %s102, 1
          %s1291 = scalar_select %p1290, %s102, 1
          %s1292 = smul.addr %s1291, 8
          %s1293 = scalar_lea.vmem %s1, %s1292
        $region196: #{_lambda_.3} parent=191 // pred_fallthru
          _
        // Predicated region
        $region197: #{_lambda_.3} parent=191 // pred_check
          %p1294 = pneg %p148
        $region198: #{_lambda_.3} parent=191 // pred_check_branch
          %1296 = sbr.rel (%p1294) target = $region200
        $region199: #{_lambda_.3} parent=191 // pred_region
          %p1297 = scmp.lt.s32.totalorder %s102, 1
          %s1298 = scalar_select %p1297, %s102, 1
          %s1299 = smul.addr %s1298, 2
          %s1300 = smul.addr %s1299, 8
          %s1301 = scalar_lea.vmem %s3, %s1300
        $region200: #{_lambda_.3} parent=191 // pred_fallthru
          _
      $region192: #{_lambda_.3} parent=5 // pred_fallthru
        _
      %p1302 = scmp.le.s32.totalorder 1, %s102
      %p1303 = scmp.lt.s32.totalorder %s102, 3
      %p1304 = pnand %p1302, %p1303
      %p1305 = pneg %p1304
      // Predicated region
      $region201: #{_lambda_.3} parent=5 // pred_check
        _
      $region202: #{_lambda_.3} parent=5 // pred_check_branch
        %1307 = sbr.rel (%p1304) target = $region204
      $region203: #{_lambda_.3} parent=5 // pred_region
        %s1308 = ssub.s32 %s102, 1
        // Predicated region
        $region205: #{_lambda_.3} parent=203 // pred_check
          %p1309 = pneg %p994
        $region206: #{_lambda_.3} parent=203 // pred_check_branch
          %1311 = sbr.rel (%p1309) target = $region208
        $region207: #{_lambda_.3} parent=203 // pred_region
          %1312 = dma.done [#allocation3], 16
        $region208: #{_lambda_.3} parent=203 // pred_fallthru
          _
        // Predicated region
        $region209: #{_lambda_.3} parent=203 // pred_check
          %p1313 = pneg %p1015
        $region210: #{_lambda_.3} parent=203 // pred_check_branch
          %1315 = sbr.rel (%p1313) target = $region212
        $region211: #{_lambda_.3} parent=203 // pred_region
          %1316 = dma.done [#allocation5], 16
        $region212: #{_lambda_.3} parent=203 // pred_fallthru
          _
        // Predicated region
        $region213: #{_lambda_.3} parent=203 // pred_check
          %p1317 = pneg %p1036
        $region214: #{_lambda_.3} parent=203 // pred_check_branch
          %1319 = sbr.rel (%p1317) target = $region216
        $region215: #{_lambda_.3} parent=203 // pred_region
          %1320 = dma.done [#allocation5], 16
        $region216: #{_lambda_.3} parent=203 // pred_fallthru
          _
        // Predicated region
        $region217: #{_lambda_.3} parent=203 // pred_check
          %p1321 = pneg %p1078
        $region218: #{_lambda_.3} parent=203 // pred_check_branch
          %1323 = sbr.rel (%p1321) target = $region220
        $region219: #{_lambda_.3} parent=203 // pred_region
          %1324 = dma.done [#allocation8], 16
        $region220: #{_lambda_.3} parent=203 // pred_fallthru
          _
        %p1325 = scmp.lt.s32.totalorder %s107, 1
        %s1326 = scalar_select %p1325, %s107, 1
        %s1327 = smul.addr %s1326, 8
        %s1328 = scalar_lea.vmem %s1, %s1327
        %p1329 = pneg %p128
        %p1330 = pneg %p125
        %p1331 = scmp.lt.s32.totalorder %s107, 1
        %s1332 = scalar_select %p1331, %s107, 1
        %s1333 = smul.addr %s1332, 2
        %s1334 = smul.addr %s1333, 8
        %s1335 = scalar_lea.vmem %s3, %s1334
        %p1336 = pneg %p154
        %p1337 = pneg %p151
        %p1338 = pneg %p175
        %p1339 = pneg %p172
        %p1340 = pneg %p196
        %p1341 = pneg %p193
        %p1342 = pneg %p217
        %p1343 = pneg %p214
        %p1344 = pneg %p238
        %p1345 = pneg %p235
        %p1346 = pneg %p259
        %p1347 = pneg %p256
        %p1348 = pneg %p280
        %p1349 = pneg %p277
        %p1350 = pneg %p301
        %p1351 = pneg %p298
        %p1352 = pneg %p322
        %p1353 = pneg %p319
        %p1354 = pneg %p343
        %p1355 = pneg %p340
        %p1356 = pneg %p364
        %p1357 = pneg %p361
        %p1358 = pneg %p385
        %p1359 = pneg %p382
        %p1360 = pneg %p406
        %p1361 = pneg %p403
        %p1362 = pneg %p427
        %p1363 = pneg %p424
        %p1364 = pneg %p448
        %p1365 = pneg %p445
        %p1366 = pneg %p469
        %p1367 = pneg %p466
        %p1368 = pneg %p490
        %p1369 = pneg %p487
        %p1370 = pneg %p511
        %p1371 = pneg %p508
        %p1372 = pneg %p532
        %p1373 = pneg %p529
        %p1374 = pneg %p553
        %p1375 = pneg %p550
        %p1376 = pneg %p574
        %p1377 = pneg %p571
        %p1378 = pneg %p595
        %p1379 = pneg %p592
        %p1380 = pneg %p616
        %p1381 = pneg %p613
        %p1382 = pneg %p637
        %p1383 = pneg %p634
        %p1384 = pneg %p658
        %p1385 = pneg %p655
        %p1386 = pneg %p679
        %p1387 = pneg %p676
        %p1388 = pneg %p700
        %p1389 = pneg %p697
        %p1390 = pneg %p721
        %p1391 = pneg %p718
        %p1392 = pneg %p742
        %p1393 = pneg %p739
        %p1394 = pneg %p763
        %p1395 = pneg %p760
        %p1396 = pneg %p784
        %p1397 = pneg %p781
        %p1398 = pneg %p805
        %p1399 = pneg %p802
        %p1400 = pneg %p826
        %p1401 = pneg %p823
        %p1402 = pneg %p847
        %p1403 = pneg %p844
        %p1404 = pneg %p868
        %p1405 = pneg %p865
        %p1406 = pneg %p889
        %p1407 = pneg %p886
        %p1408 = pneg %p910
        %p1409 = pneg %p907
        %p1410 = pneg %p931
        %p1411 = pneg %p928
        %p1412 = pneg %p952
        %p1413 = pneg %p949
        %p1414 = pneg %p973
        %p1415 = pneg %p970
        %p1416 = pneg %p994
        %p1417 = pneg %p991
        %p1418 = pneg %p1015
        %p1419 = pneg %p1012
        %p1420 = pneg %p1036
        %p1421 = pneg %p1033
        %p1422 = pneg %p1057
        %p1423 = pneg %p1054
        %p1424 = pneg %p1078
        %p1425 = pneg %p1075
        %p1426 = pneg %p1104
        %p1427 = pneg %p1101
        %p1428 = scmp.lt.s32.totalorder %s107, 1
        %s1429 = scalar_select %p1428, %s107, 1
        %s1430 = smul.addr %s1429, 8
        %s1431 = scalar_lea.vmem %s93, %s1430
        %p1432 = scmp.lt.s32.totalorder %s107, 1
        %s1433 = scalar_select %p1432, %s107, 1
        %s1434 = smul.addr %s1433, 8
        %s1435 = scalar_lea.vmem %s1, %s1434
        %p1436 = scmp.lt.s32.totalorder %s107, 1
        %s1437 = scalar_select %p1436, %s107, 1
        %s1438 = smul.addr %s1437, 2
        %s1439 = smul.addr %s1438, 8
        %s1440 = scalar_lea.vmem %s3, %s1439
        %p1441 = scmp.lt.s32.totalorder %s107, 1
        %s1442 = scalar_select %p1441, %s107, 1
        %s1443 = smul.addr %s1442, 8
        %s1444 = scalar_lea.vmem %s93, %s1443
        %v1446 = vld [vmem:[%s1435] sm:$0xff]
        %v1447 = vld [vmem:[%s1440] sm:$0xff]
        %v1448 = vld [vmem:[%s1440 + $0x8] sm:$0xff]
        %v1449 = vlaneseq
        %v1450 = vshrl.u32 %v1449, 7
        %v1451 = vlaneseq
        %v1452 = vand.u32 %v1451, 127
        %vm1453 = vcmp.gt.s32.totalorder %v1452, %v1450
        %vm1454 = vcmp.ge.s32.totalorder %v1452, 8
        %vm1455 = vmor %vm1453, %vm1454
        %v1456 = vsel %vm1455, -1e+30, 0.0
        %vm1457 = vcmp.ge.s32.totalorder %v1452, 10
        %v1458 = vsel %vm1457, -1e+30, 0.0
        %v1459 = vpack.c.bf16 %v1446, %v1446
        %v1460 = vld [vmem:[%s5] sm:$0xf]
        %v1461 = vld [vmem:[%s5 + $0x4] sm:$0xf]
        %v1462 = vld [vmem:[%s5 + $0x8] sm:$0xf]
        %v1463 = vld [vmem:[%s5 + $0xc] sm:$0xf]
        %v1464 = vld [vmem:[%s7] sm:$0x1]
        %v1466 = vlaneseq
        %v1467 = vshrl.u32 %v1466, 7
        %v1468 = vsub.s32 0, %v1467
        %v1469 = vrot.slane %v1464, %v1468
        %v1475 = vunpack.c.l.b16 %v1460
        %v1476 = vunpack.c.l.b16 %v1461
        %v1477 = vunpack.c.l.b16 %v1462
        %v1478 = vunpack.c.l.b16 %v1463
        %v1479 = vpack.c.b16 %v1476, %v1475
        %v1480 = vpack.c.b16 %v1478, %v1477
        %vm1483 = vcmask 261120
        %v1485 = vsel %vm1483, %v1459, 0
        %1487 = vmatprep.subr.bf16.mxu0 0
        %1488 = vmatpush1.bf16.msra.mxu0 0
        %1489 = vmatprep.subr.bf16.mxu0 0
        %1490 = vmatpush1.bf16.msra.mxu0 0
        %1491 = vmatprep.subr.bf16.mxu0 0
        %1492 = vmatpush1.bf16.msra.mxu0 0
        %1493 = vmatprep.subr.bf16.mxu0 0
        %1494 = vmatpush1.bf16.msra.mxu0 0
        %1495 = vmatprep.subr.bf16.mxu0 0
        %1496 = vmatpush1.bf16.msra.mxu0 0
        %1497 = vmatprep.subr.bf16.mxu0 0
        %1498 = vmatpush1.bf16.msra.mxu0 0
        %1499 = vmatprep.subr.bf16.mxu0 0
        %1500 = vmatpush1.bf16.msra.mxu0 %v1480
        %1501 = vmatprep.subr.bf16.mxu0 0
        %1502 = vmatpush1.bf16.msra.mxu0 %v1479
        %1503 = vmatprep.subr.bf16.mxu0 0
        %1504 = vmatpush2.bf16.msra.mxu0 0
        %1505 = vmatprep.subr.bf16.mxu0 0
        %1506 = vmatpush2.bf16.msra.mxu0 0
        %1507 = vmatprep.subr.bf16.mxu0 0
        %1508 = vmatpush2.bf16.msra.mxu0 0
        %1509 = vmatprep.subr.bf16.mxu0 0
        %1510 = vmatpush2.bf16.msra.mxu0 0
        %1511 = vmatprep.subr.bf16.mxu0 0
        %1512 = vmatpush2.bf16.msra.mxu0 0
        %1513 = vmatprep.subr.bf16.mxu0 0
        %1514 = vmatpush2.bf16.msra.mxu0 0
        %1515 = vmatprep.subr.bf16.mxu0 0
        %1516 = vmatpush2.bf16.msra.mxu0 0
        %1517 = vmatprep.subr.bf16.mxu0 0
        %1518 = vmatpush2.bf16.msra.mxu0 0
        %1519 = vmatprep.mubr.bf16.mxu0 0
        %1520 = vmatmul.mubr.bf16.gmra.mxu0 %v1485
        %v1521 = vpop.f32.mrf.mxu0
        %v1522 = vadd.f32 %v1469, %v1521
        %v1523 = vpop.f32.mrf.mxu0
        %v1524 = vpop.f32.mrf.mxu0
        %v1525 = vpop.f32.mrf.mxu0
        %1526 = vdwg.mxu0
        %v1527 = vpack.c.bf16 %v1522, %v1522
        %v1528 = vld [vmem:[%s9] sm:$0xf]
        %v1529 = vld [vmem:[%s9 + $0x4] sm:$0xf]
        %v1530 = vld [vmem:[%s9 + $0x8] sm:$0xf]
        %v1531 = vld [vmem:[%s9 + $0xc] sm:$0xf]
        %1533 = vrot.lane.b32.xlu0 %v1527, 96
        %v1534 = vpop.permute.xlu0 %1533
        %vm1535 = vcmask 64512
        %v1537 = vsel %vm1535, %v1527, 0
        %v1540 = vsel %vm1535, %v1534, 0
        %1542 = vmatprep.subr.bf16.mxu0 0
        %1543 = vmatpush1.bf16.xpose.msra.mxu0 0
        %1544 = vmatprep.subr.bf16.mxu0 0
        %1545 = vmatpush1.bf16.xpose.msra.mxu0 0
        %1546 = vmatprep.subr.bf16.mxu0 0
        %1547 = vmatpush1.bf16.xpose.msra.mxu0 0
        %1548 = vmatprep.subr.bf16.mxu0 0
        %1549 = vmatpush1.bf16.xpose.msra.mxu0 0
        %1550 = vmatprep.subr.bf16.mxu0 0
        %1551 = vmatpush1.bf16.xpose.msra.mxu0 0
        %1552 = vmatprep.subr.bf16.mxu0 0
        %1553 = vmatpush1.bf16.xpose.msra.mxu0 0
        %1554 = vmatprep.subr.bf16.mxu0 0
        %1555 = vmatpush1.bf16.xpose.msra.mxu0 0
        %1556 = vmatprep.subr.bf16.mxu0 0
        %1557 = vmatpush1.bf16.xpose.msra.mxu0 %v1540
        %1558 = vmatprep.subr.bf16.mxu0 0
        %1559 = vmatpush2.bf16.xpose.msra.mxu0 0
        %1560 = vmatprep.subr.bf16.mxu0 0
        %1561 = vmatpush2.bf16.xpose.msra.mxu0 0
        %1562 = vmatprep.subr.bf16.mxu0 0
        %1563 = vmatpush2.bf16.xpose.msra.mxu0 0
        %1564 = vmatprep.subr.bf16.mxu0 0
        %1565 = vmatpush2.bf16.xpose.msra.mxu0 0
        %1566 = vmatprep.subr.bf16.mxu0 0
        %1567 = vmatpush2.bf16.xpose.msra.mxu0 0
        %1568 = vmatprep.subr.bf16.mxu0 0
        %1569 = vmatpush2.bf16.xpose.msra.mxu0 0
        %1570 = vmatprep.subr.bf16.mxu0 0
        %1571 = vmatpush2.bf16.xpose.msra.mxu0 0
        %1572 = vmatprep.subr.bf16.mxu0 0
        %1573 = vmatpush2.bf16.xpose.msra.mxu0 0
        %1574 = vmatprep.mubr.bf16.mxu0 0
        %1575 = vmatmul.mubr.bf16.gmra.mxu0 %v1537
        %v1576 = vpop.f32.mrf.mxu0
        %v1577 = vadd.f32 0.0, %v1576
        %v1578 = vpop.f32.mrf.mxu0
        %v1579 = vpop.f32.mrf.mxu0
        %v1580 = vpop.f32.mrf.mxu0
        %1581 = vdwg.mxu0
        %v1582 = vmul.f32 %v1577, 0.35355338
        %v1583 = vadd.f32 %v1582, %v1456
        %v1584 = vsel %vm1535, %v1583, -inf
        %1585 = vmax.xlane.f32.xlu0 %v1584
        %v1586 = vpop.xlane.xlu0 %1585
        %v1587 = vsub.f32 %v1583, %v1586
        %v1588 = vmul.f32 %v1587, 1.442695
        %v1589 = vpow.pop %v1588
        %v1590 = vsel %vm1535, %v1589, 0.0
        %1591 = vadd.xlane.f32.xlu0 %v1590
        %v1592 = vpop.xlane.xlu0 %1591
        %v1593 = vrcp.pop %v1592
        %v1594 = vmul.f32 %v1589, %v1593
        %v1595 = vpack.c.bf16 %v1594, %v1594
        %1596 = vrot.lane.b32.xlu0 %v1527, 64
        %v1597 = vpop.permute.xlu0 %1596
        %v1599 = vsel %vm1535, %v1595, 0
        %vm1601 = vcmask 1043456
        %v1603 = vsel %vm1601, %v1597, 0
        %1605 = vmatprep.subr.bf16.mxu0 0
        %1606 = vmatpush1.bf16.msra.mxu0 0
        %1607 = vmatprep.subr.bf16.mxu0 0
        %1608 = vmatpush1.bf16.msra.mxu0 0
        %1609 = vmatprep.subr.bf16.mxu0 0
        %1610 = vmatpush1.bf16.msra.mxu0 0
        %1611 = vmatprep.subr.bf16.mxu0 0
        %1612 = vmatpush1.bf16.msra.mxu0 0
        %1613 = vmatprep.subr.bf16.mxu0 0
        %1614 = vmatpush1.bf16.msra.mxu0 0
        %1615 = vmatprep.subr.bf16.mxu0 0
        %1616 = vmatpush1.bf16.msra.mxu0 0
        %1617 = vmatprep.subr.bf16.mxu0 0
        %1618 = vmatpush1.bf16.msra.mxu0 0
        %1619 = vmatprep.subr.bf16.mxu0 0
        %1620 = vmatpush1.bf16.msra.mxu0 %v1603
        %1621 = vmatprep.subr.bf16.mxu0 0
        %1622 = vmatpush2.bf16.msra.mxu0 0
        %1623 = vmatprep.subr.bf16.mxu0 0
        %1624 = vmatpush2.bf16.msra.mxu0 0
        %1625 = vmatprep.subr.bf16.mxu0 0
        %1626 = vmatpush2.bf16.msra.mxu0 0
        %1627 = vmatprep.subr.bf16.mxu0 0
        %1628 = vmatpush2.bf16.msra.mxu0 0
        %1629 = vmatprep.subr.bf16.mxu0 0
        %1630 = vmatpush2.bf16.msra.mxu0 0
        %1631 = vmatprep.subr.bf16.mxu0 0
        %1632 = vmatpush2.bf16.msra.mxu0 0
        %1633 = vmatprep.subr.bf16.mxu0 0
        %1634 = vmatpush2.bf16.msra.mxu0 0
        %1635 = vmatprep.subr.bf16.mxu0 0
        %1636 = vmatpush2.bf16.msra.mxu0 0
        %1637 = vmatprep.mubr.bf16.mxu0 0
        %1638 = vmatmul.mubr.bf16.gmra.mxu0 %v1599
        %v1639 = vpop.f32.mrf.mxu0
        %v1640 = vadd.f32 0.0, %v1639
        %v1641 = vpop.f32.mrf.mxu0
        %v1642 = vpop.f32.mrf.mxu0
        %v1643 = vpop.f32.mrf.mxu0
        %1644 = vdwg.mxu0
        %v1645 = vpack.c.bf16 %v1640, %v1640
        %1646 = vrot.lane.b32.xlu0 %v1527, 120
        %v1647 = vpop.permute.xlu0 %1646
        %1648 = vrot.lane.b32.xlu0 %v1527, 88
        %v1649 = vpop.permute.xlu0 %1648
        %v1651 = vsel %vm1535, %v1647, 0
        %v1654 = vsel %vm1535, %v1649, 0
        %1656 = vmatprep.subr.bf16.mxu0 0
        %1657 = vmatpush1.bf16.xpose.msra.mxu0 0
        %1658 = vmatprep.subr.bf16.mxu0 0
        %1659 = vmatpush1.bf16.xpose.msra.mxu0 0
        %1660 = vmatprep.subr.bf16.mxu0 0
        %1661 = vmatpush1.bf16.xpose.msra.mxu0 0
        %1662 = vmatprep.subr.bf16.mxu0 0
        %1663 = vmatpush1.bf16.xpose.msra.mxu0 0
        %1664 = vmatprep.subr.bf16.mxu0 0
        %1665 = vmatpush1.bf16.xpose.msra.mxu0 0
        %1666 = vmatprep.subr.bf16.mxu0 0
        %1667 = vmatpush1.bf16.xpose.msra.mxu0 0
        %1668 = vmatprep.subr.bf16.mxu0 0
        %1669 = vmatpush1.bf16.xpose.msra.mxu0 0
        %1670 = vmatprep.subr.bf16.mxu0 0
        %1671 = vmatpush1.bf16.xpose.msra.mxu0 %v1654
        %1672 = vmatprep.subr.bf16.mxu0 0
        %1673 = vmatpush2.bf16.xpose.msra.mxu0 0
        %1674 = vmatprep.subr.bf16.mxu0 0
        %1675 = vmatpush2.bf16.xpose.msra.mxu0 0
        %1676 = vmatprep.subr.bf16.mxu0 0
        %1677 = vmatpush2.bf16.xpose.msra.mxu0 0
        %1678 = vmatprep.subr.bf16.mxu0 0
        %1679 = vmatpush2.bf16.xpose.msra.mxu0 0
        %1680 = vmatprep.subr.bf16.mxu0 0
        %1681 = vmatpush2.bf16.xpose.msra.mxu0 0
        %1682 = vmatprep.subr.bf16.mxu0 0
        %1683 = vmatpush2.bf16.xpose.msra.mxu0 0
        %1684 = vmatprep.subr.bf16.mxu0 0
        %1685 = vmatpush2.bf16.xpose.msra.mxu0 0
        %1686 = vmatprep.subr.bf16.mxu0 0
        %1687 = vmatpush2.bf16.xpose.msra.mxu0 0
        %1688 = vmatprep.mubr.bf16.mxu0 0
        %1689 = vmatmul.mubr.bf16.gmra.mxu0 %v1651
        %v1690 = vpop.f32.mrf.mxu0
        %v1691 = vadd.f32 0.0, %v1690
        %v1692 = vpop.f32.mrf.mxu0
        %v1693 = vpop.f32.mrf.mxu0
        %v1694 = vpop.f32.mrf.mxu0
        %1695 = vdwg.mxu0
        %v1696 = vmul.f32 %v1691, 0.35355338
        %v1697 = vadd.f32 %v1696, %v1456
        %v1698 = vsel %vm1535, %v1697, -inf
        %1699 = vmax.xlane.f32.xlu0 %v1698
        %v1700 = vpop.xlane.xlu0 %1699
        %v1701 = vsub.f32 %v1697, %v1700
        %v1702 = vmul.f32 %v1701, 1.442695
        %v1703 = vpow.pop %v1702
        %v1704 = vsel %vm1535, %v1703, 0.0
        %1705 = vadd.xlane.f32.xlu0 %v1704
        %v1706 = vpop.xlane.xlu0 %1705
        %v1707 = vrcp.pop %v1706
        %v1708 = vmul.f32 %v1703, %v1707
        %v1709 = vpack.c.bf16 %v1708, %v1708
        %1710 = vrot.lane.b32.xlu0 %v1527, 56
        %v1711 = vpop.permute.xlu0 %1710
        %v1713 = vsel %vm1535, %v1709, 0
        %v1716 = vsel %vm1601, %v1711, 0
        %1718 = vmatprep.subr.bf16.mxu0 0
        %1719 = vmatpush1.bf16.msra.mxu0 0
        %1720 = vmatprep.subr.bf16.mxu0 0
        %1721 = vmatpush1.bf16.msra.mxu0 0
        %1722 = vmatprep.subr.bf16.mxu0 0
        %1723 = vmatpush1.bf16.msra.mxu0 0
        %1724 = vmatprep.subr.bf16.mxu0 0
        %1725 = vmatpush1.bf16.msra.mxu0 0
        %1726 = vmatprep.subr.bf16.mxu0 0
        %1727 = vmatpush1.bf16.msra.mxu0 0
        %1728 = vmatprep.subr.bf16.mxu0 0
        %1729 = vmatpush1.bf16.msra.mxu0 0
        %1730 = vmatprep.subr.bf16.mxu0 0
        %1731 = vmatpush1.bf16.msra.mxu0 0
        %1732 = vmatprep.subr.bf16.mxu0 0
        %1733 = vmatpush1.bf16.msra.mxu0 %v1716
        %1734 = vmatprep.subr.bf16.mxu0 0
        %1735 = vmatpush2.bf16.msra.mxu0 0
        %1736 = vmatprep.subr.bf16.mxu0 0
        %1737 = vmatpush2.bf16.msra.mxu0 0
        %1738 = vmatprep.subr.bf16.mxu0 0
        %1739 = vmatpush2.bf16.msra.mxu0 0
        %1740 = vmatprep.subr.bf16.mxu0 0
        %1741 = vmatpush2.bf16.msra.mxu0 0
        %1742 = vmatprep.subr.bf16.mxu0 0
        %1743 = vmatpush2.bf16.msra.mxu0 0
        %1744 = vmatprep.subr.bf16.mxu0 0
        %1745 = vmatpush2.bf16.msra.mxu0 0
        %1746 = vmatprep.subr.bf16.mxu0 0
        %1747 = vmatpush2.bf16.msra.mxu0 0
        %1748 = vmatprep.subr.bf16.mxu0 0
        %1749 = vmatpush2.bf16.msra.mxu0 0
        %1750 = vmatprep.mubr.bf16.mxu0 0
        %1751 = vmatmul.mubr.bf16.gmra.mxu0 %v1713
        %v1752 = vpop.f32.mrf.mxu0
        %v1753 = vadd.f32 0.0, %v1752
        %v1754 = vpop.f32.mrf.mxu0
        %v1755 = vpop.f32.mrf.mxu0
        %v1756 = vpop.f32.mrf.mxu0
        %1757 = vdwg.mxu0
        %v1758 = vpack.c.bf16 %v1753, %v1753
        %v1760 = vsel %vm1535, %v1758, 0
        %v1763 = vsel %vm1601, %v1529, 0
        %1765 = vmatprep.subr.bf16.mxu0 0
        %1766 = vmatpush1.bf16.msra.mxu0 0
        %1767 = vmatprep.subr.bf16.mxu0 0
        %1768 = vmatpush1.bf16.msra.mxu0 0
        %1769 = vmatprep.subr.bf16.mxu0 0
        %1770 = vmatpush1.bf16.msra.mxu0 0
        %1771 = vmatprep.subr.bf16.mxu0 0
        %1772 = vmatpush1.bf16.msra.mxu0 0
        %1773 = vmatprep.subr.bf16.mxu0 0
        %1774 = vmatpush1.bf16.msra.mxu0 0
        %1775 = vmatprep.subr.bf16.mxu0 0
        %1776 = vmatpush1.bf16.msra.mxu0 0
        %1777 = vmatprep.subr.bf16.mxu0 0
        %1778 = vmatpush1.bf16.msra.mxu0 0
        %1779 = vmatprep.subr.bf16.mxu0 0
        %1780 = vmatpush1.bf16.msra.mxu0 %v1763
        %1781 = vmatprep.subr.bf16.mxu0 0
        %1782 = vmatpush2.bf16.msra.mxu0 0
        %1783 = vmatprep.subr.bf16.mxu0 0
        %1784 = vmatpush2.bf16.msra.mxu0 0
        %1785 = vmatprep.subr.bf16.mxu0 0
        %1786 = vmatpush2.bf16.msra.mxu0 0
        %1787 = vmatprep.subr.bf16.mxu0 0
        %1788 = vmatpush2.bf16.msra.mxu0 0
        %1789 = vmatprep.subr.bf16.mxu0 0
        %1790 = vmatpush2.bf16.msra.mxu0 0
        %1791 = vmatprep.subr.bf16.mxu0 0
        %1792 = vmatpush2.bf16.msra.mxu0 0
        %1793 = vmatprep.subr.bf16.mxu0 0
        %1794 = vmatpush2.bf16.msra.mxu0 0
        %1795 = vmatprep.subr.bf16.mxu0 0
        %1796 = vmatpush2.bf16.msra.mxu0 0
        %1797 = vmatprep.mubr.bf16.mxu0 0
        %1798 = vmatmul.mubr.bf16.gmra.mxu0 %v1760
        %v1799 = vpop.f32.mrf.mxu0
        %v1800 = vadd.f32 0.0, %v1799
        %v1801 = vpop.f32.mrf.mxu0
        %v1802 = vpop.f32.mrf.mxu0
        %v1803 = vpop.f32.mrf.mxu0
        %1804 = vdwg.mxu0
        %v1806 = vsel %vm1535, %v1645, 0
        %v1809 = vsel %vm1601, %v1528, 0
        %1811 = vmatprep.subr.bf16.mxu0 0
        %1812 = vmatpush1.bf16.msra.mxu0 0
        %1813 = vmatprep.subr.bf16.mxu0 0
        %1814 = vmatpush1.bf16.msra.mxu0 0
        %1815 = vmatprep.subr.bf16.mxu0 0
        %1816 = vmatpush1.bf16.msra.mxu0 0
        %1817 = vmatprep.subr.bf16.mxu0 0
        %1818 = vmatpush1.bf16.msra.mxu0 0
        %1819 = vmatprep.subr.bf16.mxu0 0
        %1820 = vmatpush1.bf16.msra.mxu0 0
        %1821 = vmatprep.subr.bf16.mxu0 0
        %1822 = vmatpush1.bf16.msra.mxu0 0
        %1823 = vmatprep.subr.bf16.mxu0 0
        %1824 = vmatpush1.bf16.msra.mxu0 0
        %1825 = vmatprep.subr.bf16.mxu0 0
        %1826 = vmatpush1.bf16.msra.mxu0 %v1809
        %1827 = vmatprep.subr.bf16.mxu0 0
        %1828 = vmatpush2.bf16.msra.mxu0 0
        %1829 = vmatprep.subr.bf16.mxu0 0
        %1830 = vmatpush2.bf16.msra.mxu0 0
        %1831 = vmatprep.subr.bf16.mxu0 0
        %1832 = vmatpush2.bf16.msra.mxu0 0
        %1833 = vmatprep.subr.bf16.mxu0 0
        %1834 = vmatpush2.bf16.msra.mxu0 0
        %1835 = vmatprep.subr.bf16.mxu0 0
        %1836 = vmatpush2.bf16.msra.mxu0 0
        %1837 = vmatprep.subr.bf16.mxu0 0
        %1838 = vmatpush2.bf16.msra.mxu0 0
        %1839 = vmatprep.subr.bf16.mxu0 0
        %1840 = vmatpush2.bf16.msra.mxu0 0
        %1841 = vmatprep.subr.bf16.mxu0 0
        %1842 = vmatpush2.bf16.msra.mxu0 0
        %1843 = vmatprep.mubr.bf16.mxu0 0
        %1844 = vmatmul.mubr.bf16.gmra.mxu0 %v1806
        %v1845 = vpop.f32.mrf.mxu0
        %v1846 = vadd.f32 %v1800, %v1845
        %v1847 = vpop.f32.mrf.mxu0
        %v1848 = vpop.f32.mrf.mxu0
        %v1849 = vpop.f32.mrf.mxu0
        %1850 = vdwg.mxu0
        %1851 = vrot.lane.b32.xlu0 %v1527, 112
        %v1852 = vpop.permute.xlu0 %1851
        %1853 = vrot.lane.b32.xlu0 %v1527, 80
        %v1854 = vpop.permute.xlu0 %1853
        %v1856 = vsel %vm1535, %v1852, 0
        %v1859 = vsel %vm1535, %v1854, 0
        %1861 = vmatprep.subr.bf16.mxu0 0
        %1862 = vmatpush1.bf16.xpose.msra.mxu0 0
        %1863 = vmatprep.subr.bf16.mxu0 0
        %1864 = vmatpush1.bf16.xpose.msra.mxu0 0
        %1865 = vmatprep.subr.bf16.mxu0 0
        %1866 = vmatpush1.bf16.xpose.msra.mxu0 0
        %1867 = vmatprep.subr.bf16.mxu0 0
        %1868 = vmatpush1.bf16.xpose.msra.mxu0 0
        %1869 = vmatprep.subr.bf16.mxu0 0
        %1870 = vmatpush1.bf16.xpose.msra.mxu0 0
        %1871 = vmatprep.subr.bf16.mxu0 0
        %1872 = vmatpush1.bf16.xpose.msra.mxu0 0
        %1873 = vmatprep.subr.bf16.mxu0 0
        %1874 = vmatpush1.bf16.xpose.msra.mxu0 0
        %1875 = vmatprep.subr.bf16.mxu0 0
        %1876 = vmatpush1.bf16.xpose.msra.mxu0 %v1859
        %1877 = vmatprep.subr.bf16.mxu0 0
        %1878 = vmatpush2.bf16.xpose.msra.mxu0 0
        %1879 = vmatprep.subr.bf16.mxu0 0
        %1880 = vmatpush2.bf16.xpose.msra.mxu0 0
        %1881 = vmatprep.subr.bf16.mxu0 0
        %1882 = vmatpush2.bf16.xpose.msra.mxu0 0
        %1883 = vmatprep.subr.bf16.mxu0 0
        %1884 = vmatpush2.bf16.xpose.msra.mxu0 0
        %1885 = vmatprep.subr.bf16.mxu0 0
        %1886 = vmatpush2.bf16.xpose.msra.mxu0 0
        %1887 = vmatprep.subr.bf16.mxu0 0
        %1888 = vmatpush2.bf16.xpose.msra.mxu0 0
        %1889 = vmatprep.subr.bf16.mxu0 0
        %1890 = vmatpush2.bf16.xpose.msra.mxu0 0
        %1891 = vmatprep.subr.bf16.mxu0 0
        %1892 = vmatpush2.bf16.xpose.msra.mxu0 0
        %1893 = vmatprep.mubr.bf16.mxu0 0
        %1894 = vmatmul.mubr.bf16.gmra.mxu0 %v1856
        %v1895 = vpop.f32.mrf.mxu0
        %v1896 = vadd.f32 0.0, %v1895
        %v1897 = vpop.f32.mrf.mxu0
        %v1898 = vpop.f32.mrf.mxu0
        %v1899 = vpop.f32.mrf.mxu0
        %1900 = vdwg.mxu0
        %v1901 = vmul.f32 %v1896, 0.35355338
        %v1902 = vadd.f32 %v1901, %v1456
        %v1903 = vsel %vm1535, %v1902, -inf
        %1904 = vmax.xlane.f32.xlu0 %v1903
        %v1905 = vpop.xlane.xlu0 %1904
        %v1906 = vsub.f32 %v1902, %v1905
        %v1907 = vmul.f32 %v1906, 1.442695
        %v1908 = vpow.pop %v1907
        %v1909 = vsel %vm1535, %v1908, 0.0
        %1910 = vadd.xlane.f32.xlu0 %v1909
        %v1911 = vpop.xlane.xlu0 %1910
        %v1912 = vrcp.pop %v1911
        %v1913 = vmul.f32 %v1908, %v1912
        %v1914 = vpack.c.bf16 %v1913, %v1913
        %1915 = vrot.lane.b32.xlu0 %v1527, 48
        %v1916 = vpop.permute.xlu0 %1915
        %v1918 = vsel %vm1535, %v1914, 0
        %v1921 = vsel %vm1601, %v1916, 0
        %1923 = vmatprep.subr.bf16.mxu0 0
        %1924 = vmatpush1.bf16.msra.mxu0 0
        %1925 = vmatprep.subr.bf16.mxu0 0
        %1926 = vmatpush1.bf16.msra.mxu0 0
        %1927 = vmatprep.subr.bf16.mxu0 0
        %1928 = vmatpush1.bf16.msra.mxu0 0
        %1929 = vmatprep.subr.bf16.mxu0 0
        %1930 = vmatpush1.bf16.msra.mxu0 0
        %1931 = vmatprep.subr.bf16.mxu0 0
        %1932 = vmatpush1.bf16.msra.mxu0 0
        %1933 = vmatprep.subr.bf16.mxu0 0
        %1934 = vmatpush1.bf16.msra.mxu0 0
        %1935 = vmatprep.subr.bf16.mxu0 0
        %1936 = vmatpush1.bf16.msra.mxu0 0
        %1937 = vmatprep.subr.bf16.mxu0 0
        %1938 = vmatpush1.bf16.msra.mxu0 %v1921
        %1939 = vmatprep.subr.bf16.mxu0 0
        %1940 = vmatpush2.bf16.msra.mxu0 0
        %1941 = vmatprep.subr.bf16.mxu0 0
        %1942 = vmatpush2.bf16.msra.mxu0 0
        %1943 = vmatprep.subr.bf16.mxu0 0
        %1944 = vmatpush2.bf16.msra.mxu0 0
        %1945 = vmatprep.subr.bf16.mxu0 0
        %1946 = vmatpush2.bf16.msra.mxu0 0
        %1947 = vmatprep.subr.bf16.mxu0 0
        %1948 = vmatpush2.bf16.msra.mxu0 0
        %1949 = vmatprep.subr.bf16.mxu0 0
        %1950 = vmatpush2.bf16.msra.mxu0 0
        %1951 = vmatprep.subr.bf16.mxu0 0
        %1952 = vmatpush2.bf16.msra.mxu0 0
        %1953 = vmatprep.subr.bf16.mxu0 0
        %1954 = vmatpush2.bf16.msra.mxu0 0
        %1955 = vmatprep.mubr.bf16.mxu0 0
        %1956 = vmatmul.mubr.bf16.gmra.mxu0 %v1918
        %v1957 = vpop.f32.mrf.mxu0
        %v1958 = vadd.f32 0.0, %v1957
        %v1959 = vpop.f32.mrf.mxu0
        %v1960 = vpop.f32.mrf.mxu0
        %v1961 = vpop.f32.mrf.mxu0
        %1962 = vdwg.mxu0
        %v1963 = vpack.c.bf16 %v1958, %v1958
        %v1965 = vsel %vm1535, %v1963, 0
        %v1968 = vsel %vm1601, %v1530, 0
        %1970 = vmatprep.subr.bf16.mxu0 0
        %1971 = vmatpush1.bf16.msra.mxu0 0
        %1972 = vmatprep.subr.bf16.mxu0 0
        %1973 = vmatpush1.bf16.msra.mxu0 0
        %1974 = vmatprep.subr.bf16.mxu0 0
        %1975 = vmatpush1.bf16.msra.mxu0 0
        %1976 = vmatprep.subr.bf16.mxu0 0
        %1977 = vmatpush1.bf16.msra.mxu0 0
        %1978 = vmatprep.subr.bf16.mxu0 0
        %1979 = vmatpush1.bf16.msra.mxu0 0
        %1980 = vmatprep.subr.bf16.mxu0 0
        %1981 = vmatpush1.bf16.msra.mxu0 0
        %1982 = vmatprep.subr.bf16.mxu0 0
        %1983 = vmatpush1.bf16.msra.mxu0 0
        %1984 = vmatprep.subr.bf16.mxu0 0
        %1985 = vmatpush1.bf16.msra.mxu0 %v1968
        %1986 = vmatprep.subr.bf16.mxu0 0
        %1987 = vmatpush2.bf16.msra.mxu0 0
        %1988 = vmatprep.subr.bf16.mxu0 0
        %1989 = vmatpush2.bf16.msra.mxu0 0
        %1990 = vmatprep.subr.bf16.mxu0 0
        %1991 = vmatpush2.bf16.msra.mxu0 0
        %1992 = vmatprep.subr.bf16.mxu0 0
        %1993 = vmatpush2.bf16.msra.mxu0 0
        %1994 = vmatprep.subr.bf16.mxu0 0
        %1995 = vmatpush2.bf16.msra.mxu0 0
        %1996 = vmatprep.subr.bf16.mxu0 0
        %1997 = vmatpush2.bf16.msra.mxu0 0
        %1998 = vmatprep.subr.bf16.mxu0 0
        %1999 = vmatpush2.bf16.msra.mxu0 0
        %2000 = vmatprep.subr.bf16.mxu0 0
        %2001 = vmatpush2.bf16.msra.mxu0 0
        %2002 = vmatprep.mubr.bf16.mxu0 0
        %2003 = vmatmul.mubr.bf16.gmra.mxu0 %v1965
        %v2004 = vpop.f32.mrf.mxu0
        %v2005 = vadd.f32 0.0, %v2004
        %v2006 = vpop.f32.mrf.mxu0
        %v2007 = vpop.f32.mrf.mxu0
        %v2008 = vpop.f32.mrf.mxu0
        %2009 = vdwg.mxu0
        %v2010 = vadd.f32 %v1846, %v2005
        %2011 = vrot.lane.b32.xlu0 %v1527, 104
        %v2012 = vpop.permute.xlu0 %2011
        %2013 = vrot.lane.b32.xlu0 %v1527, 72
        %v2014 = vpop.permute.xlu0 %2013
        %v2016 = vsel %vm1535, %v2012, 0
        %v2019 = vsel %vm1535, %v2014, 0
        %2021 = vmatprep.subr.bf16.mxu0 0
        %2022 = vmatpush1.bf16.xpose.msra.mxu0 0
        %2023 = vmatprep.subr.bf16.mxu0 0
        %2024 = vmatpush1.bf16.xpose.msra.mxu0 0
        %2025 = vmatprep.subr.bf16.mxu0 0
        %2026 = vmatpush1.bf16.xpose.msra.mxu0 0
        %2027 = vmatprep.subr.bf16.mxu0 0
        %2028 = vmatpush1.bf16.xpose.msra.mxu0 0
        %2029 = vmatprep.subr.bf16.mxu0 0
        %2030 = vmatpush1.bf16.xpose.msra.mxu0 0
        %2031 = vmatprep.subr.bf16.mxu0 0
        %2032 = vmatpush1.bf16.xpose.msra.mxu0 0
        %2033 = vmatprep.subr.bf16.mxu0 0
        %2034 = vmatpush1.bf16.xpose.msra.mxu0 0
        %2035 = vmatprep.subr.bf16.mxu0 0
        %2036 = vmatpush1.bf16.xpose.msra.mxu0 %v2019
        %2037 = vmatprep.subr.bf16.mxu0 0
        %2038 = vmatpush2.bf16.xpose.msra.mxu0 0
        %2039 = vmatprep.subr.bf16.mxu0 0
        %2040 = vmatpush2.bf16.xpose.msra.mxu0 0
        %2041 = vmatprep.subr.bf16.mxu0 0
        %2042 = vmatpush2.bf16.xpose.msra.mxu0 0
        %2043 = vmatprep.subr.bf16.mxu0 0
        %2044 = vmatpush2.bf16.xpose.msra.mxu0 0
        %2045 = vmatprep.subr.bf16.mxu0 0
        %2046 = vmatpush2.bf16.xpose.msra.mxu0 0
        %2047 = vmatprep.subr.bf16.mxu0 0
        %2048 = vmatpush2.bf16.xpose.msra.mxu0 0
        %2049 = vmatprep.subr.bf16.mxu0 0
        %2050 = vmatpush2.bf16.xpose.msra.mxu0 0
        %2051 = vmatprep.subr.bf16.mxu0 0
        %2052 = vmatpush2.bf16.xpose.msra.mxu0 0
        %2053 = vmatprep.mubr.bf16.mxu0 0
        %2054 = vmatmul.mubr.bf16.gmra.mxu0 %v2016
        %v2055 = vpop.f32.mrf.mxu0
        %v2056 = vadd.f32 0.0, %v2055
        %v2057 = vpop.f32.mrf.mxu0
        %v2058 = vpop.f32.mrf.mxu0
        %v2059 = vpop.f32.mrf.mxu0
        %2060 = vdwg.mxu0
        %v2061 = vmul.f32 %v2056, 0.35355338
        %v2062 = vadd.f32 %v2061, %v1456
        %v2063 = vsel %vm1535, %v2062, -inf
        %2064 = vmax.xlane.f32.xlu0 %v2063
        %v2065 = vpop.xlane.xlu0 %2064
        %v2066 = vsub.f32 %v2062, %v2065
        %v2067 = vmul.f32 %v2066, 1.442695
        %v2068 = vpow.pop %v2067
        %v2069 = vsel %vm1535, %v2068, 0.0
        %2070 = vadd.xlane.f32.xlu0 %v2069
        %v2071 = vpop.xlane.xlu0 %2070
        %v2072 = vrcp.pop %v2071
        %v2073 = vmul.f32 %v2068, %v2072
        %v2074 = vpack.c.bf16 %v2073, %v2073
        %2075 = vrot.lane.b32.xlu0 %v1527, 40
        %v2076 = vpop.permute.xlu0 %2075
        %v2078 = vsel %vm1535, %v2074, 0
        %v2081 = vsel %vm1601, %v2076, 0
        %2083 = vmatprep.subr.bf16.mxu0 0
        %2084 = vmatpush1.bf16.msra.mxu0 0
        %2085 = vmatprep.subr.bf16.mxu0 0
        %2086 = vmatpush1.bf16.msra.mxu0 0
        %2087 = vmatprep.subr.bf16.mxu0 0
        %2088 = vmatpush1.bf16.msra.mxu0 0
        %2089 = vmatprep.subr.bf16.mxu0 0
        %2090 = vmatpush1.bf16.msra.mxu0 0
        %2091 = vmatprep.subr.bf16.mxu0 0
        %2092 = vmatpush1.bf16.msra.mxu0 0
        %2093 = vmatprep.subr.bf16.mxu0 0
        %2094 = vmatpush1.bf16.msra.mxu0 0
        %2095 = vmatprep.subr.bf16.mxu0 0
        %2096 = vmatpush1.bf16.msra.mxu0 0
        %2097 = vmatprep.subr.bf16.mxu0 0
        %2098 = vmatpush1.bf16.msra.mxu0 %v2081
        %2099 = vmatprep.subr.bf16.mxu0 0
        %2100 = vmatpush2.bf16.msra.mxu0 0
        %2101 = vmatprep.subr.bf16.mxu0 0
        %2102 = vmatpush2.bf16.msra.mxu0 0
        %2103 = vmatprep.subr.bf16.mxu0 0
        %2104 = vmatpush2.bf16.msra.mxu0 0
        %2105 = vmatprep.subr.bf16.mxu0 0
        %2106 = vmatpush2.bf16.msra.mxu0 0
        %2107 = vmatprep.subr.bf16.mxu0 0
        %2108 = vmatpush2.bf16.msra.mxu0 0
        %2109 = vmatprep.subr.bf16.mxu0 0
        %2110 = vmatpush2.bf16.msra.mxu0 0
        %2111 = vmatprep.subr.bf16.mxu0 0
        %2112 = vmatpush2.bf16.msra.mxu0 0
        %2113 = vmatprep.subr.bf16.mxu0 0
        %2114 = vmatpush2.bf16.msra.mxu0 0
        %2115 = vmatprep.mubr.bf16.mxu0 0
        %2116 = vmatmul.mubr.bf16.gmra.mxu0 %v2078
        %v2117 = vpop.f32.mrf.mxu0
        %v2118 = vadd.f32 0.0, %v2117
        %v2119 = vpop.f32.mrf.mxu0
        %v2120 = vpop.f32.mrf.mxu0
        %v2121 = vpop.f32.mrf.mxu0
        %2122 = vdwg.mxu0
        %v2123 = vpack.c.bf16 %v2118, %v2118
        %v2125 = vsel %vm1535, %v2123, 0
        %v2128 = vsel %vm1601, %v1531, 0
        %2130 = vmatprep.subr.bf16.mxu0 0
        %2131 = vmatpush1.bf16.msra.mxu0 0
        %2132 = vmatprep.subr.bf16.mxu0 0
        %2133 = vmatpush1.bf16.msra.mxu0 0
        %2134 = vmatprep.subr.bf16.mxu0 0
        %2135 = vmatpush1.bf16.msra.mxu0 0
        %2136 = vmatprep.subr.bf16.mxu0 0
        %2137 = vmatpush1.bf16.msra.mxu0 0
        %2138 = vmatprep.subr.bf16.mxu0 0
        %2139 = vmatpush1.bf16.msra.mxu0 0
        %2140 = vmatprep.subr.bf16.mxu0 0
        %2141 = vmatpush1.bf16.msra.mxu0 0
        %2142 = vmatprep.subr.bf16.mxu0 0
        %2143 = vmatpush1.bf16.msra.mxu0 0
        %2144 = vmatprep.subr.bf16.mxu0 0
        %2145 = vmatpush1.bf16.msra.mxu0 %v2128
        %2146 = vmatprep.subr.bf16.mxu0 0
        %2147 = vmatpush2.bf16.msra.mxu0 0
        %2148 = vmatprep.subr.bf16.mxu0 0
        %2149 = vmatpush2.bf16.msra.mxu0 0
        %2150 = vmatprep.subr.bf16.mxu0 0
        %2151 = vmatpush2.bf16.msra.mxu0 0
        %2152 = vmatprep.subr.bf16.mxu0 0
        %2153 = vmatpush2.bf16.msra.mxu0 0
        %2154 = vmatprep.subr.bf16.mxu0 0
        %2155 = vmatpush2.bf16.msra.mxu0 0
        %2156 = vmatprep.subr.bf16.mxu0 0
        %2157 = vmatpush2.bf16.msra.mxu0 0
        %2158 = vmatprep.subr.bf16.mxu0 0
        %2159 = vmatpush2.bf16.msra.mxu0 0
        %2160 = vmatprep.subr.bf16.mxu0 0
        %2161 = vmatpush2.bf16.msra.mxu0 0
        %2162 = vmatprep.mubr.bf16.mxu0 0
        %2163 = vmatmul.mubr.bf16.gmra.mxu0 %v2125
        %v2164 = vpop.f32.mrf.mxu0
        %v2165 = vadd.f32 0.0, %v2164
        %v2166 = vpop.f32.mrf.mxu0
        %v2167 = vpop.f32.mrf.mxu0
        %v2168 = vpop.f32.mrf.mxu0
        %2169 = vdwg.mxu0
        %v2170 = vadd.f32 %v2010, %v2165
        %v2171 = vld [vmem:[%s11] sm:$0x1]
        %v2173 = vlaneseq
        %v2174 = vshrl.u32 %v2173, 7
        %v2175 = vsub.s32 0, %v2174
        %v2176 = vrot.slane %v2171, %v2175
        %v2178 = vadd.f32 %v2170, %v2176
        %v2179 = vadd.f32 %v1446, %v2178
        %v2180 = vld [vmem:[%s33] sm:$0x1]
        %v2181 = vld [vmem:[%s35] sm:$0x1]
        %v2182 = vsel %vm1483, %v2179, 0.0
        %2183 = vadd.xlane.f32.xlu0 %v2182
        %v2184 = vpop.xlane.xlu0 %2183
        %v2185 = vrcp.pop 32.0
        %v2186 = vmul.f32 %v2184, %v2185
        %v2187 = vsub.f32 %v2179, %v2186
        %v2188 = vmul.f32 %v2187, %v2187
        %v2189 = vsel %vm1483, %v2188, 0.0
        %2190 = vadd.xlane.f32.xlu0 %v2189
        %v2191 = vpop.xlane.xlu0 %2190
        %v2192 = vmul.f32 %v2191, %v2185
        %v2193 = vadd.f32 %v2192, 1e-05
        %v2194 = vrsqrt.pop %v2193
        %v2195 = vmul.f32 %v2187, %v2194
        %v2197 = vlaneseq
        %v2198 = vshrl.u32 %v2197, 7
        %v2199 = vsub.s32 0, %v2198
        %v2200 = vrot.slane %v2180, %v2199
        %v2202 = vmul.f32 %v2195, %v2200
        %v2204 = vlaneseq
        %v2205 = vshrl.u32 %v2204, 7
        %v2206 = vsub.s32 0, %v2205
        %v2207 = vrot.slane %v2181, %v2206
        %v2209 = vadd.f32 %v2202, %v2207
        %v2210 = vpack.c.bf16 %v2209, %v2209
        %v2211 = vld [vmem:[%s13] sm:$0xf]
        %v2212 = vld [vmem:[%s13 + $0x4] sm:$0xf]
        %v2213 = vld [vmem:[%s13 + $0x8] sm:$0xf]
        %v2214 = vld [vmem:[%s13 + $0xc] sm:$0xf]
        %v2215 = vld [vmem:[%s15] sm:$0x1]
        %v2217 = vlaneseq
        %v2218 = vshrl.u32 %v2217, 7
        %v2219 = vsub.s32 0, %v2218
        %v2220 = vrot.slane %v2215, %v2219
        %v2226 = vunpack.c.l.b16 %v2211
        %v2227 = vunpack.c.l.b16 %v2212
        %v2228 = vunpack.c.l.b16 %v2213
        %v2229 = vunpack.c.l.b16 %v2214
        %v2230 = vpack.c.b16 %v2227, %v2226
        %v2231 = vpack.c.b16 %v2229, %v2228
        %v2235 = vsel %vm1483, %v2210, 0
        %2237 = vmatprep.subr.bf16.mxu0 0
        %2238 = vmatpush1.bf16.msra.mxu0 0
        %2239 = vmatprep.subr.bf16.mxu0 0
        %2240 = vmatpush1.bf16.msra.mxu0 0
        %2241 = vmatprep.subr.bf16.mxu0 0
        %2242 = vmatpush1.bf16.msra.mxu0 0
        %2243 = vmatprep.subr.bf16.mxu0 0
        %2244 = vmatpush1.bf16.msra.mxu0 0
        %2245 = vmatprep.subr.bf16.mxu0 0
        %2246 = vmatpush1.bf16.msra.mxu0 0
        %2247 = vmatprep.subr.bf16.mxu0 0
        %2248 = vmatpush1.bf16.msra.mxu0 0
        %2249 = vmatprep.subr.bf16.mxu0 0
        %2250 = vmatpush1.bf16.msra.mxu0 %v2231
        %2251 = vmatprep.subr.bf16.mxu0 0
        %2252 = vmatpush1.bf16.msra.mxu0 %v2230
        %2253 = vmatprep.subr.bf16.mxu0 0
        %2254 = vmatpush2.bf16.msra.mxu0 0
        %2255 = vmatprep.subr.bf16.mxu0 0
        %2256 = vmatpush2.bf16.msra.mxu0 0
        %2257 = vmatprep.subr.bf16.mxu0 0
        %2258 = vmatpush2.bf16.msra.mxu0 0
        %2259 = vmatprep.subr.bf16.mxu0 0
        %2260 = vmatpush2.bf16.msra.mxu0 0
        %2261 = vmatprep.subr.bf16.mxu0 0
        %2262 = vmatpush2.bf16.msra.mxu0 0
        %2263 = vmatprep.subr.bf16.mxu0 0
        %2264 = vmatpush2.bf16.msra.mxu0 0
        %2265 = vmatprep.subr.bf16.mxu0 0
        %2266 = vmatpush2.bf16.msra.mxu0 0
        %2267 = vmatprep.subr.bf16.mxu0 0
        %2268 = vmatpush2.bf16.msra.mxu0 0
        %2269 = vmatprep.mubr.bf16.mxu0 0
        %2270 = vmatmul.mubr.bf16.gmra.mxu0 %v2235
        %v2271 = vpop.f32.mrf.mxu0
        %v2272 = vadd.f32 %v2220, %v2271
        %v2273 = vpop.f32.mrf.mxu0
        %v2274 = vpop.f32.mrf.mxu0
        %v2275 = vpop.f32.mrf.mxu0
        %2276 = vdwg.mxu0
        %v2277 = vpack.c.bf16 %v1448, %v1447
        %v2278 = vld [vmem:[%s17] sm:$0xf]
        %v2279 = vld [vmem:[%s17 + $0x4] sm:$0xf]
        %v2280 = vld [vmem:[%s17 + $0x8] sm:$0xf]
        %v2281 = vld [vmem:[%s17 + $0xc] sm:$0xf]
        %v2282 = vld [vmem:[%s19] sm:$0x1]
        %v2284 = vlaneseq
        %v2285 = vshrl.u32 %v2284, 7
        %v2286 = vsub.s32 0, %v2285
        %v2287 = vrot.slane %v2282, %v2286
        %v2293 = vunpack.c.l.b16 %v2278
        %v2294 = vunpack.c.l.b16 %v2279
        %v2295 = vunpack.c.l.b16 %v2280
        %v2296 = vunpack.c.l.b16 %v2281
        %v2297 = vpack.c.b16 %v2294, %v2293
        %v2298 = vpack.c.b16 %v2296, %v2295
        %v2302 = vsel %vm1483, %v2277, 0
        %2304 = vmatprep.subr.bf16.mxu0 0
        %2305 = vmatpush1.bf16.msra.mxu0 0
        %2306 = vmatprep.subr.bf16.mxu0 0
        %2307 = vmatpush1.bf16.msra.mxu0 0
        %2308 = vmatprep.subr.bf16.mxu0 0
        %2309 = vmatpush1.bf16.msra.mxu0 0
        %2310 = vmatprep.subr.bf16.mxu0 0
        %2311 = vmatpush1.bf16.msra.mxu0 0
        %2312 = vmatprep.subr.bf16.mxu0 0
        %2313 = vmatpush1.bf16.msra.mxu0 0
        %2314 = vmatprep.subr.bf16.mxu0 0
        %2315 = vmatpush1.bf16.msra.mxu0 0
        %2316 = vmatprep.subr.bf16.mxu0 0
        %2317 = vmatpush1.bf16.msra.mxu0 %v2298
        %2318 = vmatprep.subr.bf16.mxu0 0
        %2319 = vmatpush1.bf16.msra.mxu0 %v2297
        %2320 = vmatprep.subr.bf16.mxu0 0
        %2321 = vmatpush2.bf16.msra.mxu0 0
        %2322 = vmatprep.subr.bf16.mxu0 0
        %2323 = vmatpush2.bf16.msra.mxu0 0
        %2324 = vmatprep.subr.bf16.mxu0 0
        %2325 = vmatpush2.bf16.msra.mxu0 0
        %2326 = vmatprep.subr.bf16.mxu0 0
        %2327 = vmatpush2.bf16.msra.mxu0 0
        %2328 = vmatprep.subr.bf16.mxu0 0
        %2329 = vmatpush2.bf16.msra.mxu0 0
        %2330 = vmatprep.subr.bf16.mxu0 0
        %2331 = vmatpush2.bf16.msra.mxu0 0
        %2332 = vmatprep.subr.bf16.mxu0 0
        %2333 = vmatpush2.bf16.msra.mxu0 0
        %2334 = vmatprep.subr.bf16.mxu0 0
        %2335 = vmatpush2.bf16.msra.mxu0 0
        %2336 = vmatprep.mubr.bf16.mxu0 0
        %2337 = vmatmul.mubr.bf16.gmra.mxu0 %v2302
        %v2338 = vpop.f32.mrf.mxu0
        %v2339 = vadd.f32 %v2287, %v2338
        %v2340 = vpop.f32.mrf.mxu0
        %v2341 = vpop.f32.mrf.mxu0
        %v2342 = vadd.f32 %v2287, %v2341
        %v2343 = vpop.f32.mrf.mxu0
        %2344 = vdwg.mxu0
        %v2345 = vpack.c.bf16 %v2272, %v2272
        %v2346 = vpack.c.bf16 %v2342, %v2339
        %v2347 = vld [vmem:[%s21] sm:$0xf]
        %v2348 = vld [vmem:[%s21 + $0x4] sm:$0xf]
        %v2349 = vld [vmem:[%s21 + $0x8] sm:$0xf]
        %v2350 = vld [vmem:[%s21 + $0xc] sm:$0xf]
        %v2352 = vsel %vm1535, %v2345, 0
        %v2355 = vsel %vm1535, %v2346, 0
        %2357 = vmatprep.subr.bf16.mxu0 0
        %2358 = vmatpush1.bf16.xpose.msra.mxu0 0
        %2359 = vmatprep.subr.bf16.mxu0 0
        %2360 = vmatpush1.bf16.xpose.msra.mxu0 0
        %2361 = vmatprep.subr.bf16.mxu0 0
        %2362 = vmatpush1.bf16.xpose.msra.mxu0 0
        %2363 = vmatprep.subr.bf16.mxu0 0
        %2364 = vmatpush1.bf16.xpose.msra.mxu0 0
        %2365 = vmatprep.subr.bf16.mxu0 0
        %2366 = vmatpush1.bf16.xpose.msra.mxu0 0
        %2367 = vmatprep.subr.bf16.mxu0 0
        %2368 = vmatpush1.bf16.xpose.msra.mxu0 0
        %2369 = vmatprep.subr.bf16.mxu0 0
        %2370 = vmatpush1.bf16.xpose.msra.mxu0 0
        %2371 = vmatprep.subr.bf16.mxu0 0
        %2372 = vmatpush1.bf16.xpose.msra.mxu0 %v2355
        %2373 = vmatprep.subr.bf16.mxu0 0
        %2374 = vmatpush2.bf16.xpose.msra.mxu0 0
        %2375 = vmatprep.subr.bf16.mxu0 0
        %2376 = vmatpush2.bf16.xpose.msra.mxu0 0
        %2377 = vmatprep.subr.bf16.mxu0 0
        %2378 = vmatpush2.bf16.xpose.msra.mxu0 0
        %2379 = vmatprep.subr.bf16.mxu0 0
        %2380 = vmatpush2.bf16.xpose.msra.mxu0 0
        %2381 = vmatprep.subr.bf16.mxu0 0
        %2382 = vmatpush2.bf16.xpose.msra.mxu0 0
        %2383 = vmatprep.subr.bf16.mxu0 0
        %2384 = vmatpush2.bf16.xpose.msra.mxu0 0
        %2385 = vmatprep.subr.bf16.mxu0 0
        %2386 = vmatpush2.bf16.xpose.msra.mxu0 0
        %2387 = vmatprep.subr.bf16.mxu0 0
        %2388 = vmatpush2.bf16.xpose.msra.mxu0 0
        %2389 = vmatprep.mubr.bf16.mxu0 0
        %2390 = vmatmul.mubr.bf16.gmra.mxu0 %v2352
        %v2391 = vpop.f32.mrf.mxu0
        %v2392 = vadd.f32 0.0, %v2391
        %v2393 = vpop.f32.mrf.mxu0
        %v2394 = vpop.f32.mrf.mxu0
        %v2395 = vpop.f32.mrf.mxu0
        %2396 = vdwg.mxu0
        %v2397 = vmul.f32 %v2392, 0.35355338
        %v2398 = vadd.f32 %v2397, %v1458
        %vm2399 = vcmask 130048
        %v2400 = vsel %vm2399, %v2398, -inf
        %2401 = vmax.xlane.f32.xlu0 %v2400
        %v2402 = vpop.xlane.xlu0 %2401
        %v2403 = vsub.f32 %v2398, %v2402
        %v2404 = vmul.f32 %v2403, 1.442695
        %v2405 = vpow.pop %v2404
        %v2406 = vsel %vm2399, %v2405, 0.0
        %2407 = vadd.xlane.f32.xlu0 %v2406
        %v2408 = vpop.xlane.xlu0 %2407
        %v2409 = vrcp.pop %v2408
        %v2410 = vmul.f32 %v2405, %v2409
        %v2411 = vpack.c.bf16 %v2410, %v2410
        %2413 = vrot.lane.b32.xlu0 %v2346, 96
        %v2414 = vpop.permute.xlu0 %2413
        %v2417 = vsel %vm2399, %v2411, 0
        %2419 = vmatprep.subr.bf16.mxu0 0
        %2420 = vmatpush1.bf16.msra.mxu0 0
        %2421 = vmatprep.subr.bf16.mxu0 0
        %2422 = vmatpush1.bf16.msra.mxu0 0
        %2423 = vmatprep.subr.bf16.mxu0 0
        %2424 = vmatpush1.bf16.msra.mxu0 0
        %2425 = vmatprep.subr.bf16.mxu0 0
        %2426 = vmatpush1.bf16.msra.mxu0 0
        %2427 = vmatprep.subr.bf16.mxu0 0
        %2428 = vmatpush1.bf16.msra.mxu0 0
        %2429 = vmatprep.subr.bf16.mxu0 0
        %2430 = vmatpush1.bf16.msra.mxu0 0
        %2431 = vmatprep.subr.bf16.mxu0 0
        %2432 = vmatpush1.bf16.msra.mxu0 0
        %2433 = vmatprep.subr.bf16.mxu0 0
        %2434 = vmatpush1.bf16.msra.mxu0 %v2414
        %2435 = vmatprep.subr.bf16.mxu0 0
        %2436 = vmatpush2.bf16.msra.mxu0 0
        %2437 = vmatprep.subr.bf16.mxu0 0
        %2438 = vmatpush2.bf16.msra.mxu0 0
        %2439 = vmatprep.subr.bf16.mxu0 0
        %2440 = vmatpush2.bf16.msra.mxu0 0
        %2441 = vmatprep.subr.bf16.mxu0 0
        %2442 = vmatpush2.bf16.msra.mxu0 0
        %2443 = vmatprep.subr.bf16.mxu0 0
        %2444 = vmatpush2.bf16.msra.mxu0 0
        %2445 = vmatprep.subr.bf16.mxu0 0
        %2446 = vmatpush2.bf16.msra.mxu0 0
        %2447 = vmatprep.subr.bf16.mxu0 0
        %2448 = vmatpush2.bf16.msra.mxu0 0
        %2449 = vmatprep.subr.bf16.mxu0 0
        %2450 = vmatpush2.bf16.msra.mxu0 0
        %2451 = vmatprep.mubr.bf16.mxu0 0
        %2452 = vmatmul.mubr.bf16.gmra.mxu0 %v2417
        %v2453 = vpop.f32.mrf.mxu0
        %v2454 = vadd.f32 0.0, %v2453
        %v2455 = vpop.f32.mrf.mxu0
        %v2456 = vpop.f32.mrf.mxu0
        %v2457 = vpop.f32.mrf.mxu0
        %2458 = vdwg.mxu0
        %v2459 = vpack.c.bf16 %v2454, %v2454
        %2461 = vrot.lane.b32.xlu0 %v2345, 120
        %v2462 = vpop.permute.xlu0 %2461
        %2463 = vrot.lane.b32.xlu0 %v2346, 120
        %v2464 = vpop.permute.xlu0 %2463
        %v2466 = vsel %vm1535, %v2462, 0
        %v2469 = vsel %vm1535, %v2464, 0
        %2471 = vmatprep.subr.bf16.mxu0 0
        %2472 = vmatpush1.bf16.xpose.msra.mxu0 0
        %2473 = vmatprep.subr.bf16.mxu0 0
        %2474 = vmatpush1.bf16.xpose.msra.mxu0 0
        %2475 = vmatprep.subr.bf16.mxu0 0
        %2476 = vmatpush1.bf16.xpose.msra.mxu0 0
        %2477 = vmatprep.subr.bf16.mxu0 0
        %2478 = vmatpush1.bf16.xpose.msra.mxu0 0
        %2479 = vmatprep.subr.bf16.mxu0 0
        %2480 = vmatpush1.bf16.xpose.msra.mxu0 0
        %2481 = vmatprep.subr.bf16.mxu0 0
        %2482 = vmatpush1.bf16.xpose.msra.mxu0 0
        %2483 = vmatprep.subr.bf16.mxu0 0
        %2484 = vmatpush1.bf16.xpose.msra.mxu0 0
        %2485 = vmatprep.subr.bf16.mxu0 0
        %2486 = vmatpush1.bf16.xpose.msra.mxu0 %v2469
        %2487 = vmatprep.subr.bf16.mxu0 0
        %2488 = vmatpush2.bf16.xpose.msra.mxu0 0
        %2489 = vmatprep.subr.bf16.mxu0 0
        %2490 = vmatpush2.bf16.xpose.msra.mxu0 0
        %2491 = vmatprep.subr.bf16.mxu0 0
        %2492 = vmatpush2.bf16.xpose.msra.mxu0 0
        %2493 = vmatprep.subr.bf16.mxu0 0
        %2494 = vmatpush2.bf16.xpose.msra.mxu0 0
        %2495 = vmatprep.subr.bf16.mxu0 0
        %2496 = vmatpush2.bf16.xpose.msra.mxu0 0
        %2497 = vmatprep.subr.bf16.mxu0 0
        %2498 = vmatpush2.bf16.xpose.msra.mxu0 0
        %2499 = vmatprep.subr.bf16.mxu0 0
        %2500 = vmatpush2.bf16.xpose.msra.mxu0 0
        %2501 = vmatprep.subr.bf16.mxu0 0
        %2502 = vmatpush2.bf16.xpose.msra.mxu0 0
        %2503 = vmatprep.mubr.bf16.mxu0 0
        %2504 = vmatmul.mubr.bf16.gmra.mxu0 %v2466
        %v2505 = vpop.f32.mrf.mxu0
        %v2506 = vadd.f32 0.0, %v2505
        %v2507 = vpop.f32.mrf.mxu0
        %v2508 = vpop.f32.mrf.mxu0
        %v2509 = vpop.f32.mrf.mxu0
        %2510 = vdwg.mxu0
        %v2511 = vmul.f32 %v2506, 0.35355338
        %v2512 = vadd.f32 %v2511, %v1458
        %v2513 = vsel %vm2399, %v2512, -inf
        %2514 = vmax.xlane.f32.xlu0 %v2513
        %v2515 = vpop.xlane.xlu0 %2514
        %v2516 = vsub.f32 %v2512, %v2515
        %v2517 = vmul.f32 %v2516, 1.442695
        %v2518 = vpow.pop %v2517
        %v2519 = vsel %vm2399, %v2518, 0.0
        %2520 = vadd.xlane.f32.xlu0 %v2519
        %v2521 = vpop.xlane.xlu0 %2520
        %v2522 = vrcp.pop %v2521
        %v2523 = vmul.f32 %v2518, %v2522
        %v2524 = vpack.c.bf16 %v2523, %v2523
        %2525 = vrot.lane.b32.xlu0 %v2346, 88
        %v2526 = vpop.permute.xlu0 %2525
        %v2529 = vsel %vm2399, %v2524, 0
        %2531 = vmatprep.subr.bf16.mxu0 0
        %2532 = vmatpush1.bf16.msra.mxu0 0
        %2533 = vmatprep.subr.bf16.mxu0 0
        %2534 = vmatpush1.bf16.msra.mxu0 0
        %2535 = vmatprep.subr.bf16.mxu0 0
        %2536 = vmatpush1.bf16.msra.mxu0 0
        %2537 = vmatprep.subr.bf16.mxu0 0
        %2538 = vmatpush1.bf16.msra.mxu0 0
        %2539 = vmatprep.subr.bf16.mxu0 0
        %2540 = vmatpush1.bf16.msra.mxu0 0
        %2541 = vmatprep.subr.bf16.mxu0 0
        %2542 = vmatpush1.bf16.msra.mxu0 0
        %2543 = vmatprep.subr.bf16.mxu0 0
        %2544 = vmatpush1.bf16.msra.mxu0 0
        %2545 = vmatprep.subr.bf16.mxu0 0
        %2546 = vmatpush1.bf16.msra.mxu0 %v2526
        %2547 = vmatprep.subr.bf16.mxu0 0
        %2548 = vmatpush2.bf16.msra.mxu0 0
        %2549 = vmatprep.subr.bf16.mxu0 0
        %2550 = vmatpush2.bf16.msra.mxu0 0
        %2551 = vmatprep.subr.bf16.mxu0 0
        %2552 = vmatpush2.bf16.msra.mxu0 0
        %2553 = vmatprep.subr.bf16.mxu0 0
        %2554 = vmatpush2.bf16.msra.mxu0 0
        %2555 = vmatprep.subr.bf16.mxu0 0
        %2556 = vmatpush2.bf16.msra.mxu0 0
        %2557 = vmatprep.subr.bf16.mxu0 0
        %2558 = vmatpush2.bf16.msra.mxu0 0
        %2559 = vmatprep.subr.bf16.mxu0 0
        %2560 = vmatpush2.bf16.msra.mxu0 0
        %2561 = vmatprep.subr.bf16.mxu0 0
        %2562 = vmatpush2.bf16.msra.mxu0 0
        %2563 = vmatprep.mubr.bf16.mxu0 0
        %2564 = vmatmul.mubr.bf16.gmra.mxu0 %v2529
        %v2565 = vpop.f32.mrf.mxu0
        %v2566 = vadd.f32 0.0, %v2565
        %v2567 = vpop.f32.mrf.mxu0
        %v2568 = vpop.f32.mrf.mxu0
        %v2569 = vpop.f32.mrf.mxu0
        %2570 = vdwg.mxu0
        %v2571 = vpack.c.bf16 %v2566, %v2566
        %v2573 = vsel %vm1535, %v2571, 0
        %v2576 = vsel %vm1601, %v2348, 0
        %2578 = vmatprep.subr.bf16.mxu0 0
        %2579 = vmatpush1.bf16.msra.mxu0 0
        %2580 = vmatprep.subr.bf16.mxu0 0
        %2581 = vmatpush1.bf16.msra.mxu0 0
        %2582 = vmatprep.subr.bf16.mxu0 0
        %2583 = vmatpush1.bf16.msra.mxu0 0
        %2584 = vmatprep.subr.bf16.mxu0 0
        %2585 = vmatpush1.bf16.msra.mxu0 0
        %2586 = vmatprep.subr.bf16.mxu0 0
        %2587 = vmatpush1.bf16.msra.mxu0 0
        %2588 = vmatprep.subr.bf16.mxu0 0
        %2589 = vmatpush1.bf16.msra.mxu0 0
        %2590 = vmatprep.subr.bf16.mxu0 0
        %2591 = vmatpush1.bf16.msra.mxu0 0
        %2592 = vmatprep.subr.bf16.mxu0 0
        %2593 = vmatpush1.bf16.msra.mxu0 %v2576
        %2594 = vmatprep.subr.bf16.mxu0 0
        %2595 = vmatpush2.bf16.msra.mxu0 0
        %2596 = vmatprep.subr.bf16.mxu0 0
        %2597 = vmatpush2.bf16.msra.mxu0 0
        %2598 = vmatprep.subr.bf16.mxu0 0
        %2599 = vmatpush2.bf16.msra.mxu0 0
        %2600 = vmatprep.subr.bf16.mxu0 0
        %2601 = vmatpush2.bf16.msra.mxu0 0
        %2602 = vmatprep.subr.bf16.mxu0 0
        %2603 = vmatpush2.bf16.msra.mxu0 0
        %2604 = vmatprep.subr.bf16.mxu0 0
        %2605 = vmatpush2.bf16.msra.mxu0 0
        %2606 = vmatprep.subr.bf16.mxu0 0
        %2607 = vmatpush2.bf16.msra.mxu0 0
        %2608 = vmatprep.subr.bf16.mxu0 0
        %2609 = vmatpush2.bf16.msra.mxu0 0
        %2610 = vmatprep.mubr.bf16.mxu0 0
        %2611 = vmatmul.mubr.bf16.gmra.mxu0 %v2573
        %v2612 = vpop.f32.mrf.mxu0
        %v2613 = vadd.f32 0.0, %v2612
        %v2614 = vpop.f32.mrf.mxu0
        %v2615 = vpop.f32.mrf.mxu0
        %v2616 = vpop.f32.mrf.mxu0
        %2617 = vdwg.mxu0
        %v2619 = vsel %vm1535, %v2459, 0
        %v2622 = vsel %vm1601, %v2347, 0
        %2624 = vmatprep.subr.bf16.mxu0 0
        %2625 = vmatpush1.bf16.msra.mxu0 0
        %2626 = vmatprep.subr.bf16.mxu0 0
        %2627 = vmatpush1.bf16.msra.mxu0 0
        %2628 = vmatprep.subr.bf16.mxu0 0
        %2629 = vmatpush1.bf16.msra.mxu0 0
        %2630 = vmatprep.subr.bf16.mxu0 0
        %2631 = vmatpush1.bf16.msra.mxu0 0
        %2632 = vmatprep.subr.bf16.mxu0 0
        %2633 = vmatpush1.bf16.msra.mxu0 0
        %2634 = vmatprep.subr.bf16.mxu0 0
        %2635 = vmatpush1.bf16.msra.mxu0 0
        %2636 = vmatprep.subr.bf16.mxu0 0
        %2637 = vmatpush1.bf16.msra.mxu0 0
        %2638 = vmatprep.subr.bf16.mxu0 0
        %2639 = vmatpush1.bf16.msra.mxu0 %v2622
        %2640 = vmatprep.subr.bf16.mxu0 0
        %2641 = vmatpush2.bf16.msra.mxu0 0
        %2642 = vmatprep.subr.bf16.mxu0 0
        %2643 = vmatpush2.bf16.msra.mxu0 0
        %2644 = vmatprep.subr.bf16.mxu0 0
        %2645 = vmatpush2.bf16.msra.mxu0 0
        %2646 = vmatprep.subr.bf16.mxu0 0
        %2647 = vmatpush2.bf16.msra.mxu0 0
        %2648 = vmatprep.subr.bf16.mxu0 0
        %2649 = vmatpush2.bf16.msra.mxu0 0
        %2650 = vmatprep.subr.bf16.mxu0 0
        %2651 = vmatpush2.bf16.msra.mxu0 0
        %2652 = vmatprep.subr.bf16.mxu0 0
        %2653 = vmatpush2.bf16.msra.mxu0 0
        %2654 = vmatprep.subr.bf16.mxu0 0
        %2655 = vmatpush2.bf16.msra.mxu0 0
        %2656 = vmatprep.mubr.bf16.mxu0 0
        %2657 = vmatmul.mubr.bf16.gmra.mxu0 %v2619
        %v2658 = vpop.f32.mrf.mxu0
        %v2659 = vadd.f32 %v2613, %v2658
        %v2660 = vpop.f32.mrf.mxu0
        %v2661 = vpop.f32.mrf.mxu0
        %v2662 = vpop.f32.mrf.mxu0
        %2663 = vdwg.mxu0
        %2664 = vrot.lane.b32.xlu0 %v2345, 112
        %v2665 = vpop.permute.xlu0 %2664
        %2666 = vrot.lane.b32.xlu0 %v2346, 112
        %v2667 = vpop.permute.xlu0 %2666
        %v2669 = vsel %vm1535, %v2665, 0
        %v2672 = vsel %vm1535, %v2667, 0
        %2674 = vmatprep.subr.bf16.mxu0 0
        %2675 = vmatpush1.bf16.xpose.msra.mxu0 0
        %2676 = vmatprep.subr.bf16.mxu0 0
        %2677 = vmatpush1.bf16.xpose.msra.mxu0 0
        %2678 = vmatprep.subr.bf16.mxu0 0
        %2679 = vmatpush1.bf16.xpose.msra.mxu0 0
        %2680 = vmatprep.subr.bf16.mxu0 0
        %2681 = vmatpush1.bf16.xpose.msra.mxu0 0
        %2682 = vmatprep.subr.bf16.mxu0 0
        %2683 = vmatpush1.bf16.xpose.msra.mxu0 0
        %2684 = vmatprep.subr.bf16.mxu0 0
        %2685 = vmatpush1.bf16.xpose.msra.mxu0 0
        %2686 = vmatprep.subr.bf16.mxu0 0
        %2687 = vmatpush1.bf16.xpose.msra.mxu0 0
        %2688 = vmatprep.subr.bf16.mxu0 0
        %2689 = vmatpush1.bf16.xpose.msra.mxu0 %v2672
        %2690 = vmatprep.subr.bf16.mxu0 0
        %2691 = vmatpush2.bf16.xpose.msra.mxu0 0
        %2692 = vmatprep.subr.bf16.mxu0 0
        %2693 = vmatpush2.bf16.xpose.msra.mxu0 0
        %2694 = vmatprep.subr.bf16.mxu0 0
        %2695 = vmatpush2.bf16.xpose.msra.mxu0 0
        %2696 = vmatprep.subr.bf16.mxu0 0
        %2697 = vmatpush2.bf16.xpose.msra.mxu0 0
        %2698 = vmatprep.subr.bf16.mxu0 0
        %2699 = vmatpush2.bf16.xpose.msra.mxu0 0
        %2700 = vmatprep.subr.bf16.mxu0 0
        %2701 = vmatpush2.bf16.xpose.msra.mxu0 0
        %2702 = vmatprep.subr.bf16.mxu0 0
        %2703 = vmatpush2.bf16.xpose.msra.mxu0 0
        %2704 = vmatprep.subr.bf16.mxu0 0
        %2705 = vmatpush2.bf16.xpose.msra.mxu0 0
        %2706 = vmatprep.mubr.bf16.mxu0 0
        %2707 = vmatmul.mubr.bf16.gmra.mxu0 %v2669
        %v2708 = vpop.f32.mrf.mxu0
        %v2709 = vadd.f32 0.0, %v2708
        %v2710 = vpop.f32.mrf.mxu0
        %v2711 = vpop.f32.mrf.mxu0
        %v2712 = vpop.f32.mrf.mxu0
        %2713 = vdwg.mxu0
        %v2714 = vmul.f32 %v2709, 0.35355338
        %v2715 = vadd.f32 %v2714, %v1458
        %v2716 = vsel %vm2399, %v2715, -inf
        %2717 = vmax.xlane.f32.xlu0 %v2716
        %v2718 = vpop.xlane.xlu0 %2717
        %v2719 = vsub.f32 %v2715, %v2718
        %v2720 = vmul.f32 %v2719, 1.442695
        %v2721 = vpow.pop %v2720
        %v2722 = vsel %vm2399, %v2721, 0.0
        %2723 = vadd.xlane.f32.xlu0 %v2722
        %v2724 = vpop.xlane.xlu0 %2723
        %v2725 = vrcp.pop %v2724
        %v2726 = vmul.f32 %v2721, %v2725
        %v2727 = vpack.c.bf16 %v2726, %v2726
        %2728 = vrot.lane.b32.xlu0 %v2346, 80
        %v2729 = vpop.permute.xlu0 %2728
        %v2732 = vsel %vm2399, %v2727, 0
        %2734 = vmatprep.subr.bf16.mxu0 0
        %2735 = vmatpush1.bf16.msra.mxu0 0
        %2736 = vmatprep.subr.bf16.mxu0 0
        %2737 = vmatpush1.bf16.msra.mxu0 0
        %2738 = vmatprep.subr.bf16.mxu0 0
        %2739 = vmatpush1.bf16.msra.mxu0 0
        %2740 = vmatprep.subr.bf16.mxu0 0
        %2741 = vmatpush1.bf16.msra.mxu0 0
        %2742 = vmatprep.subr.bf16.mxu0 0
        %2743 = vmatpush1.bf16.msra.mxu0 0
        %2744 = vmatprep.subr.bf16.mxu0 0
        %2745 = vmatpush1.bf16.msra.mxu0 0
        %2746 = vmatprep.subr.bf16.mxu0 0
        %2747 = vmatpush1.bf16.msra.mxu0 0
        %2748 = vmatprep.subr.bf16.mxu0 0
        %2749 = vmatpush1.bf16.msra.mxu0 %v2729
        %2750 = vmatprep.subr.bf16.mxu0 0
        %2751 = vmatpush2.bf16.msra.mxu0 0
        %2752 = vmatprep.subr.bf16.mxu0 0
        %2753 = vmatpush2.bf16.msra.mxu0 0
        %2754 = vmatprep.subr.bf16.mxu0 0
        %2755 = vmatpush2.bf16.msra.mxu0 0
        %2756 = vmatprep.subr.bf16.mxu0 0
        %2757 = vmatpush2.bf16.msra.mxu0 0
        %2758 = vmatprep.subr.bf16.mxu0 0
        %2759 = vmatpush2.bf16.msra.mxu0 0
        %2760 = vmatprep.subr.bf16.mxu0 0
        %2761 = vmatpush2.bf16.msra.mxu0 0
        %2762 = vmatprep.subr.bf16.mxu0 0
        %2763 = vmatpush2.bf16.msra.mxu0 0
        %2764 = vmatprep.subr.bf16.mxu0 0
        %2765 = vmatpush2.bf16.msra.mxu0 0
        %2766 = vmatprep.mubr.bf16.mxu0 0
        %2767 = vmatmul.mubr.bf16.gmra.mxu0 %v2732
        %v2768 = vpop.f32.mrf.mxu0
        %v2769 = vadd.f32 0.0, %v2768
        %v2770 = vpop.f32.mrf.mxu0
        %v2771 = vpop.f32.mrf.mxu0
        %v2772 = vpop.f32.mrf.mxu0
        %2773 = vdwg.mxu0
        %v2774 = vpack.c.bf16 %v2769, %v2769
        %v2776 = vsel %vm1535, %v2774, 0
        %v2779 = vsel %vm1601, %v2349, 0
        %2781 = vmatprep.subr.bf16.mxu0 0
        %2782 = vmatpush1.bf16.msra.mxu0 0
        %2783 = vmatprep.subr.bf16.mxu0 0
        %2784 = vmatpush1.bf16.msra.mxu0 0
        %2785 = vmatprep.subr.bf16.mxu0 0
        %2786 = vmatpush1.bf16.msra.mxu0 0
        %2787 = vmatprep.subr.bf16.mxu0 0
        %2788 = vmatpush1.bf16.msra.mxu0 0
        %2789 = vmatprep.subr.bf16.mxu0 0
        %2790 = vmatpush1.bf16.msra.mxu0 0
        %2791 = vmatprep.subr.bf16.mxu0 0
        %2792 = vmatpush1.bf16.msra.mxu0 0
        %2793 = vmatprep.subr.bf16.mxu0 0
        %2794 = vmatpush1.bf16.msra.mxu0 0
        %2795 = vmatprep.subr.bf16.mxu0 0
        %2796 = vmatpush1.bf16.msra.mxu0 %v2779
        %2797 = vmatprep.subr.bf16.mxu0 0
        %2798 = vmatpush2.bf16.msra.mxu0 0
        %2799 = vmatprep.subr.bf16.mxu0 0
        %2800 = vmatpush2.bf16.msra.mxu0 0
        %2801 = vmatprep.subr.bf16.mxu0 0
        %2802 = vmatpush2.bf16.msra.mxu0 0
        %2803 = vmatprep.subr.bf16.mxu0 0
        %2804 = vmatpush2.bf16.msra.mxu0 0
        %2805 = vmatprep.subr.bf16.mxu0 0
        %2806 = vmatpush2.bf16.msra.mxu0 0
        %2807 = vmatprep.subr.bf16.mxu0 0
        %2808 = vmatpush2.bf16.msra.mxu0 0
        %2809 = vmatprep.subr.bf16.mxu0 0
        %2810 = vmatpush2.bf16.msra.mxu0 0
        %2811 = vmatprep.subr.bf16.mxu0 0
        %2812 = vmatpush2.bf16.msra.mxu0 0
        %2813 = vmatprep.mubr.bf16.mxu0 0
        %2814 = vmatmul.mubr.bf16.gmra.mxu0 %v2776
        %v2815 = vpop.f32.mrf.mxu0
        %v2816 = vadd.f32 0.0, %v2815
        %v2817 = vpop.f32.mrf.mxu0
        %v2818 = vpop.f32.mrf.mxu0
        %v2819 = vpop.f32.mrf.mxu0
        %2820 = vdwg.mxu0
        %v2821 = vadd.f32 %v2659, %v2816
        %2822 = vrot.lane.b32.xlu0 %v2345, 104
        %v2823 = vpop.permute.xlu0 %2822
        %2824 = vrot.lane.b32.xlu0 %v2346, 104
        %v2825 = vpop.permute.xlu0 %2824
        %v2827 = vsel %vm1535, %v2823, 0
        %v2830 = vsel %vm1535, %v2825, 0
        %2832 = vmatprep.subr.bf16.mxu0 0
        %2833 = vmatpush1.bf16.xpose.msra.mxu0 0
        %2834 = vmatprep.subr.bf16.mxu0 0
        %2835 = vmatpush1.bf16.xpose.msra.mxu0 0
        %2836 = vmatprep.subr.bf16.mxu0 0
        %2837 = vmatpush1.bf16.xpose.msra.mxu0 0
        %2838 = vmatprep.subr.bf16.mxu0 0
        %2839 = vmatpush1.bf16.xpose.msra.mxu0 0
        %2840 = vmatprep.subr.bf16.mxu0 0
        %2841 = vmatpush1.bf16.xpose.msra.mxu0 0
        %2842 = vmatprep.subr.bf16.mxu0 0
        %2843 = vmatpush1.bf16.xpose.msra.mxu0 0
        %2844 = vmatprep.subr.bf16.mxu0 0
        %2845 = vmatpush1.bf16.xpose.msra.mxu0 0
        %2846 = vmatprep.subr.bf16.mxu0 0
        %2847 = vmatpush1.bf16.xpose.msra.mxu0 %v2830
        %2848 = vmatprep.subr.bf16.mxu0 0
        %2849 = vmatpush2.bf16.xpose.msra.mxu0 0
        %2850 = vmatprep.subr.bf16.mxu0 0
        %2851 = vmatpush2.bf16.xpose.msra.mxu0 0
        %2852 = vmatprep.subr.bf16.mxu0 0
        %2853 = vmatpush2.bf16.xpose.msra.mxu0 0
        %2854 = vmatprep.subr.bf16.mxu0 0
        %2855 = vmatpush2.bf16.xpose.msra.mxu0 0
        %2856 = vmatprep.subr.bf16.mxu0 0
        %2857 = vmatpush2.bf16.xpose.msra.mxu0 0
        %2858 = vmatprep.subr.bf16.mxu0 0
        %2859 = vmatpush2.bf16.xpose.msra.mxu0 0
        %2860 = vmatprep.subr.bf16.mxu0 0
        %2861 = vmatpush2.bf16.xpose.msra.mxu0 0
        %2862 = vmatprep.subr.bf16.mxu0 0
        %2863 = vmatpush2.bf16.xpose.msra.mxu0 0
        %2864 = vmatprep.mubr.bf16.mxu0 0
        %2865 = vmatmul.mubr.bf16.gmra.mxu0 %v2827
        %v2866 = vpop.f32.mrf.mxu0
        %v2867 = vadd.f32 0.0, %v2866
        %v2868 = vpop.f32.mrf.mxu0
        %v2869 = vpop.f32.mrf.mxu0
        %v2870 = vpop.f32.mrf.mxu0
        %2871 = vdwg.mxu0
        %v2872 = vmul.f32 %v2867, 0.35355338
        %v2873 = vadd.f32 %v2872, %v1458
        %v2874 = vsel %vm2399, %v2873, -inf
        %2875 = vmax.xlane.f32.xlu0 %v2874
        %v2876 = vpop.xlane.xlu0 %2875
        %v2877 = vsub.f32 %v2873, %v2876
        %v2878 = vmul.f32 %v2877, 1.442695
        %v2879 = vpow.pop %v2878
        %v2880 = vsel %vm2399, %v2879, 0.0
        %2881 = vadd.xlane.f32.xlu0 %v2880
        %v2882 = vpop.xlane.xlu0 %2881
        %v2883 = vrcp.pop %v2882
        %v2884 = vmul.f32 %v2879, %v2883
        %v2885 = vpack.c.bf16 %v2884, %v2884
        %2886 = vrot.lane.b32.xlu0 %v2346, 72
        %v2887 = vpop.permute.xlu0 %2886
        %v2890 = vsel %vm2399, %v2885, 0
        %2892 = vmatprep.subr.bf16.mxu0 0
        %2893 = vmatpush1.bf16.msra.mxu0 0
        %2894 = vmatprep.subr.bf16.mxu0 0
        %2895 = vmatpush1.bf16.msra.mxu0 0
        %2896 = vmatprep.subr.bf16.mxu0 0
        %2897 = vmatpush1.bf16.msra.mxu0 0
        %2898 = vmatprep.subr.bf16.mxu0 0
        %2899 = vmatpush1.bf16.msra.mxu0 0
        %2900 = vmatprep.subr.bf16.mxu0 0
        %2901 = vmatpush1.bf16.msra.mxu0 0
        %2902 = vmatprep.subr.bf16.mxu0 0
        %2903 = vmatpush1.bf16.msra.mxu0 0
        %2904 = vmatprep.subr.bf16.mxu0 0
        %2905 = vmatpush1.bf16.msra.mxu0 0
        %2906 = vmatprep.subr.bf16.mxu0 0
        %2907 = vmatpush1.bf16.msra.mxu0 %v2887
        %2908 = vmatprep.subr.bf16.mxu0 0
        %2909 = vmatpush2.bf16.msra.mxu0 0
        %2910 = vmatprep.subr.bf16.mxu0 0
        %2911 = vmatpush2.bf16.msra.mxu0 0
        %2912 = vmatprep.subr.bf16.mxu0 0
        %2913 = vmatpush2.bf16.msra.mxu0 0
        %2914 = vmatprep.subr.bf16.mxu0 0
        %2915 = vmatpush2.bf16.msra.mxu0 0
        %2916 = vmatprep.subr.bf16.mxu0 0
        %2917 = vmatpush2.bf16.msra.mxu0 0
        %2918 = vmatprep.subr.bf16.mxu0 0
        %2919 = vmatpush2.bf16.msra.mxu0 0
        %2920 = vmatprep.subr.bf16.mxu0 0
        %2921 = vmatpush2.bf16.msra.mxu0 0
        %2922 = vmatprep.subr.bf16.mxu0 0
        %2923 = vmatpush2.bf16.msra.mxu0 0
        %2924 = vmatprep.mubr.bf16.mxu0 0
        %2925 = vmatmul.mubr.bf16.gmra.mxu0 %v2890
        %v2926 = vpop.f32.mrf.mxu0
        %v2927 = vadd.f32 0.0, %v2926
        %v2928 = vpop.f32.mrf.mxu0
        %v2929 = vpop.f32.mrf.mxu0
        %v2930 = vpop.f32.mrf.mxu0
        %2931 = vdwg.mxu0
        %v2932 = vpack.c.bf16 %v2927, %v2927
        %v2934 = vsel %vm1535, %v2932, 0
        %v2937 = vsel %vm1601, %v2350, 0
        %2939 = vmatprep.subr.bf16.mxu0 0
        %2940 = vmatpush1.bf16.msra.mxu0 0
        %2941 = vmatprep.subr.bf16.mxu0 0
        %2942 = vmatpush1.bf16.msra.mxu0 0
        %2943 = vmatprep.subr.bf16.mxu0 0
        %2944 = vmatpush1.bf16.msra.mxu0 0
        %2945 = vmatprep.subr.bf16.mxu0 0
        %2946 = vmatpush1.bf16.msra.mxu0 0
        %2947 = vmatprep.subr.bf16.mxu0 0
        %2948 = vmatpush1.bf16.msra.mxu0 0
        %2949 = vmatprep.subr.bf16.mxu0 0
        %2950 = vmatpush1.bf16.msra.mxu0 0
        %2951 = vmatprep.subr.bf16.mxu0 0
        %2952 = vmatpush1.bf16.msra.mxu0 0
        %2953 = vmatprep.subr.bf16.mxu0 0
        %2954 = vmatpush1.bf16.msra.mxu0 %v2937
        %2955 = vmatprep.subr.bf16.mxu0 0
        %2956 = vmatpush2.bf16.msra.mxu0 0
        %2957 = vmatprep.subr.bf16.mxu0 0
        %2958 = vmatpush2.bf16.msra.mxu0 0
        %2959 = vmatprep.subr.bf16.mxu0 0
        %2960 = vmatpush2.bf16.msra.mxu0 0
        %2961 = vmatprep.subr.bf16.mxu0 0
        %2962 = vmatpush2.bf16.msra.mxu0 0
        %2963 = vmatprep.subr.bf16.mxu0 0
        %2964 = vmatpush2.bf16.msra.mxu0 0
        %2965 = vmatprep.subr.bf16.mxu0 0
        %2966 = vmatpush2.bf16.msra.mxu0 0
        %2967 = vmatprep.subr.bf16.mxu0 0
        %2968 = vmatpush2.bf16.msra.mxu0 0
        %2969 = vmatprep.subr.bf16.mxu0 0
        %2970 = vmatpush2.bf16.msra.mxu0 0
        %2971 = vmatprep.mubr.bf16.mxu0 0
        %2972 = vmatmul.mubr.bf16.gmra.mxu0 %v2934
        %v2973 = vpop.f32.mrf.mxu0
        %v2974 = vadd.f32 0.0, %v2973
        %v2975 = vpop.f32.mrf.mxu0
        %v2976 = vpop.f32.mrf.mxu0
        %v2977 = vpop.f32.mrf.mxu0
        %2978 = vdwg.mxu0
        %v2979 = vadd.f32 %v2821, %v2974
        %v2980 = vld [vmem:[%s23] sm:$0x1]
        %v2982 = vlaneseq
        %v2983 = vshrl.u32 %v2982, 7
        %v2984 = vsub.s32 0, %v2983
        %v2985 = vrot.slane %v2980, %v2984
        %v2987 = vadd.f32 %v2979, %v2985
        %v2988 = vadd.f32 %v2209, %v2987
        %v2989 = vld [vmem:[%s37] sm:$0x1]
        %v2990 = vld [vmem:[%s39] sm:$0x1]
        %v2991 = vsel %vm1483, %v2988, 0.0
        %2992 = vadd.xlane.f32.xlu0 %v2991
        %v2993 = vpop.xlane.xlu0 %2992
        %v2994 = vmul.f32 %v2993, %v2185
        %v2995 = vsub.f32 %v2988, %v2994
        %v2996 = vmul.f32 %v2995, %v2995
        %v2997 = vsel %vm1483, %v2996, 0.0
        %2998 = vadd.xlane.f32.xlu0 %v2997
        %v2999 = vpop.xlane.xlu0 %2998
        %v3000 = vmul.f32 %v2999, %v2185
        %v3001 = vadd.f32 %v3000, 1e-05
        %v3002 = vrsqrt.pop %v3001
        %v3003 = vmul.f32 %v2995, %v3002
        %v3005 = vlaneseq
        %v3006 = vshrl.u32 %v3005, 7
        %v3007 = vsub.s32 0, %v3006
        %v3008 = vrot.slane %v2989, %v3007
        %v3010 = vmul.f32 %v3003, %v3008
        %v3012 = vlaneseq
        %v3013 = vshrl.u32 %v3012, 7
        %v3014 = vsub.s32 0, %v3013
        %v3015 = vrot.slane %v2990, %v3014
        %v3017 = vadd.f32 %v3010, %v3015
        %v3018 = vpack.c.bf16 %v3017, %v3017
        %v3019 = vld [vmem:[%s25] sm:$0xf]
        %v3020 = vld [vmem:[%s25 + $0x4] sm:$0xf]
        %v3021 = vld [vmem:[%s25 + $0x8] sm:$0xf]
        %v3022 = vld [vmem:[%s25 + $0xc] sm:$0xf]
        %v3023 = vld [vmem:[%s27] sm:$0x1]
        %v3025 = vlaneseq
        %v3026 = vshrl.u32 %v3025, 7
        %v3027 = vsub.s32 0, %v3026
        %v3028 = vrot.slane %v3023, %v3027
        %v3034 = vunpack.c.l.b16 %v3019
        %v3035 = vunpack.c.l.b16 %v3020
        %v3036 = vunpack.c.l.b16 %v3021
        %v3037 = vunpack.c.l.b16 %v3022
        %v3038 = vpack.c.b16 %v3035, %v3034
        %v3039 = vpack.c.b16 %v3037, %v3036
        %v3043 = vsel %vm1483, %v3018, 0
        %3045 = vmatprep.subr.bf16.mxu0 0
        %3046 = vmatpush1.bf16.msra.mxu0 0
        %3047 = vmatprep.subr.bf16.mxu0 0
        %3048 = vmatpush1.bf16.msra.mxu0 0
        %3049 = vmatprep.subr.bf16.mxu0 0
        %3050 = vmatpush1.bf16.msra.mxu0 0
        %3051 = vmatprep.subr.bf16.mxu0 0
        %3052 = vmatpush1.bf16.msra.mxu0 0
        %3053 = vmatprep.subr.bf16.mxu0 0
        %3054 = vmatpush1.bf16.msra.mxu0 0
        %3055 = vmatprep.subr.bf16.mxu0 0
        %3056 = vmatpush1.bf16.msra.mxu0 0
        %3057 = vmatprep.subr.bf16.mxu0 0
        %3058 = vmatpush1.bf16.msra.mxu0 %v3039
        %3059 = vmatprep.subr.bf16.mxu0 0
        %3060 = vmatpush1.bf16.msra.mxu0 %v3038
        %3061 = vmatprep.subr.bf16.mxu0 0
        %3062 = vmatpush2.bf16.msra.mxu0 0
        %3063 = vmatprep.subr.bf16.mxu0 0
        %3064 = vmatpush2.bf16.msra.mxu0 0
        %3065 = vmatprep.subr.bf16.mxu0 0
        %3066 = vmatpush2.bf16.msra.mxu0 0
        %3067 = vmatprep.subr.bf16.mxu0 0
        %3068 = vmatpush2.bf16.msra.mxu0 0
        %3069 = vmatprep.subr.bf16.mxu0 0
        %3070 = vmatpush2.bf16.msra.mxu0 0
        %3071 = vmatprep.subr.bf16.mxu0 0
        %3072 = vmatpush2.bf16.msra.mxu0 0
        %3073 = vmatprep.subr.bf16.mxu0 0
        %3074 = vmatpush2.bf16.msra.mxu0 0
        %3075 = vmatprep.subr.bf16.mxu0 0
        %3076 = vmatpush2.bf16.msra.mxu0 0
        %3077 = vmatprep.mubr.bf16.mxu0 0
        %3078 = vmatmul.mubr.bf16.gmra.mxu0 %v3043
        %v3079 = vpop.f32.mrf.mxu0
        %v3080 = vadd.f32 %v3028, %v3079
        %v3081 = vpop.f32.mrf.mxu0
        %v3082 = vpop.f32.mrf.mxu0
        %v3083 = vpop.f32.mrf.mxu0
        %3084 = vdwg.mxu0
        %v3085 = vmax.f32 %v3080, 0.0
        %v3086 = vpack.c.bf16 %v3085, %v3085
        %v3087 = vld [vmem:[%s29] sm:$0xf]
        %v3088 = vld [vmem:[%s29 + $0x4] sm:$0xf]
        %v3089 = vld [vmem:[%s31] sm:$0x1]
        %v3091 = vlaneseq
        %v3092 = vshrl.u32 %v3091, 7
        %v3093 = vsub.s32 0, %v3092
        %v3094 = vrot.slane %v3089, %v3093
        %v3098 = vunpack.c.l.b16 %v3087
        %v3099 = vunpack.c.l.b16 %v3088
        %v3100 = vpack.c.b16 %v3099, %v3098
        %v3103 = vsel %vm2399, %v3086, 0
        %3105 = vmatprep.subr.bf16.mxu0 0
        %3106 = vmatpush1.bf16.msra.mxu0 0
        %3107 = vmatprep.subr.bf16.mxu0 0
        %3108 = vmatpush1.bf16.msra.mxu0 0
        %3109 = vmatprep.subr.bf16.mxu0 0
        %3110 = vmatpush1.bf16.msra.mxu0 0
        %3111 = vmatprep.subr.bf16.mxu0 0
        %3112 = vmatpush1.bf16.msra.mxu0 0
        %3113 = vmatprep.subr.bf16.mxu0 0
        %3114 = vmatpush1.bf16.msra.mxu0 0
        %3115 = vmatprep.subr.bf16.mxu0 0
        %3116 = vmatpush1.bf16.msra.mxu0 0
        %3117 = vmatprep.subr.bf16.mxu0 0
        %3118 = vmatpush1.bf16.msra.mxu0 0
        %3119 = vmatprep.subr.bf16.mxu0 0
        %3120 = vmatpush1.bf16.msra.mxu0 %v3100
        %3121 = vmatprep.subr.bf16.mxu0 0
        %3122 = vmatpush2.bf16.msra.mxu0 0
        %3123 = vmatprep.subr.bf16.mxu0 0
        %3124 = vmatpush2.bf16.msra.mxu0 0
        %3125 = vmatprep.subr.bf16.mxu0 0
        %3126 = vmatpush2.bf16.msra.mxu0 0
        %3127 = vmatprep.subr.bf16.mxu0 0
        %3128 = vmatpush2.bf16.msra.mxu0 0
        %3129 = vmatprep.subr.bf16.mxu0 0
        %3130 = vmatpush2.bf16.msra.mxu0 0
        %3131 = vmatprep.subr.bf16.mxu0 0
        %3132 = vmatpush2.bf16.msra.mxu0 0
        %3133 = vmatprep.subr.bf16.mxu0 0
        %3134 = vmatpush2.bf16.msra.mxu0 0
        %3135 = vmatprep.subr.bf16.mxu0 0
        %3136 = vmatpush2.bf16.msra.mxu0 0
        %3137 = vmatprep.mubr.bf16.mxu0 0
        %3138 = vmatmul.mubr.bf16.gmra.mxu0 %v3103
        %v3139 = vpop.f32.mrf.mxu0
        %v3140 = vadd.f32 %v3094, %v3139
        %v3141 = vpop.f32.mrf.mxu0
        %v3142 = vpop.f32.mrf.mxu0
        %v3143 = vpop.f32.mrf.mxu0
        %3144 = vdwg.mxu0
        %v3145 = vadd.f32 %v3017, %v3140
        %v3146 = vld [vmem:[%s41] sm:$0x1]
        %v3147 = vld [vmem:[%s43] sm:$0x1]
        %v3148 = vsel %vm1483, %v3145, 0.0
        %3149 = vadd.xlane.f32.xlu0 %v3148
        %v3150 = vpop.xlane.xlu0 %3149
        %v3151 = vmul.f32 %v3150, %v2185
        %v3152 = vsub.f32 %v3145, %v3151
        %v3153 = vmul.f32 %v3152, %v3152
        %v3154 = vsel %vm1483, %v3153, 0.0
        %3155 = vadd.xlane.f32.xlu0 %v3154
        %v3156 = vpop.xlane.xlu0 %3155
        %v3157 = vmul.f32 %v3156, %v2185
        %v3158 = vadd.f32 %v3157, 1e-05
        %v3159 = vrsqrt.pop %v3158
        %v3160 = vmul.f32 %v3152, %v3159
        %v3162 = vlaneseq
        %v3163 = vshrl.u32 %v3162, 7
        %v3164 = vsub.s32 0, %v3163
        %v3165 = vrot.slane %v3146, %v3164
        %v3167 = vmul.f32 %v3160, %v3165
        %v3169 = vlaneseq
        %v3170 = vshrl.u32 %v3169, 7
        %v3171 = vsub.s32 0, %v3170
        %v3172 = vrot.slane %v3147, %v3171
        %v3174 = vadd.f32 %v3167, %v3172
        %v3175 = vpack.c.bf16 %v3174, %v3174
        %v3176 = vld [vmem:[%s45] sm:$0xf]
        %v3177 = vld [vmem:[%s45 + $0x4] sm:$0xf]
        %v3178 = vld [vmem:[%s45 + $0x8] sm:$0xf]
        %v3179 = vld [vmem:[%s45 + $0xc] sm:$0xf]
        %v3180 = vld [vmem:[%s47] sm:$0x1]
        %v3182 = vlaneseq
        %v3183 = vshrl.u32 %v3182, 7
        %v3184 = vsub.s32 0, %v3183
        %v3185 = vrot.slane %v3180, %v3184
        %v3191 = vunpack.c.l.b16 %v3176
        %v3192 = vunpack.c.l.b16 %v3177
        %v3193 = vunpack.c.l.b16 %v3178
        %v3194 = vunpack.c.l.b16 %v3179
        %v3195 = vpack.c.b16 %v3192, %v3191
        %v3196 = vpack.c.b16 %v3194, %v3193
        %v3200 = vsel %vm1483, %v3175, 0
        %3202 = vmatprep.subr.bf16.mxu0 0
        %3203 = vmatpush1.bf16.msra.mxu0 0
        %3204 = vmatprep.subr.bf16.mxu0 0
        %3205 = vmatpush1.bf16.msra.mxu0 0
        %3206 = vmatprep.subr.bf16.mxu0 0
        %3207 = vmatpush1.bf16.msra.mxu0 0
        %3208 = vmatprep.subr.bf16.mxu0 0
        %3209 = vmatpush1.bf16.msra.mxu0 0
        %3210 = vmatprep.subr.bf16.mxu0 0
        %3211 = vmatpush1.bf16.msra.mxu0 0
        %3212 = vmatprep.subr.bf16.mxu0 0
        %3213 = vmatpush1.bf16.msra.mxu0 0
        %3214 = vmatprep.subr.bf16.mxu0 0
        %3215 = vmatpush1.bf16.msra.mxu0 %v3196
        %3216 = vmatprep.subr.bf16.mxu0 0
        %3217 = vmatpush1.bf16.msra.mxu0 %v3195
        %3218 = vmatprep.subr.bf16.mxu0 0
        %3219 = vmatpush2.bf16.msra.mxu0 0
        %3220 = vmatprep.subr.bf16.mxu0 0
        %3221 = vmatpush2.bf16.msra.mxu0 0
        %3222 = vmatprep.subr.bf16.mxu0 0
        %3223 = vmatpush2.bf16.msra.mxu0 0
        %3224 = vmatprep.subr.bf16.mxu0 0
        %3225 = vmatpush2.bf16.msra.mxu0 0
        %3226 = vmatprep.subr.bf16.mxu0 0
        %3227 = vmatpush2.bf16.msra.mxu0 0
        %3228 = vmatprep.subr.bf16.mxu0 0
        %3229 = vmatpush2.bf16.msra.mxu0 0
        %3230 = vmatprep.subr.bf16.mxu0 0
        %3231 = vmatpush2.bf16.msra.mxu0 0
        %3232 = vmatprep.subr.bf16.mxu0 0
        %3233 = vmatpush2.bf16.msra.mxu0 0
        %3234 = vmatprep.mubr.bf16.mxu0 0
        %3235 = vmatmul.mubr.bf16.gmra.mxu0 %v3200
        %v3236 = vpop.f32.mrf.mxu0
        %v3237 = vadd.f32 %v3185, %v3236
        %v3238 = vpop.f32.mrf.mxu0
        %v3239 = vpop.f32.mrf.mxu0
        %v3240 = vpop.f32.mrf.mxu0
        %3241 = vdwg.mxu0
        %v3242 = vpack.c.bf16 %v3237, %v3237
        %v3243 = vld [vmem:[%s49] sm:$0xf]
        %v3244 = vld [vmem:[%s49 + $0x4] sm:$0xf]
        %v3245 = vld [vmem:[%s49 + $0x8] sm:$0xf]
        %v3246 = vld [vmem:[%s49 + $0xc] sm:$0xf]
        %3248 = vrot.lane.b32.xlu0 %v3242, 96
        %v3249 = vpop.permute.xlu0 %3248
        %v3251 = vsel %vm1535, %v3242, 0
        %v3254 = vsel %vm1535, %v3249, 0
        %3256 = vmatprep.subr.bf16.mxu0 0
        %3257 = vmatpush1.bf16.xpose.msra.mxu0 0
        %3258 = vmatprep.subr.bf16.mxu0 0
        %3259 = vmatpush1.bf16.xpose.msra.mxu0 0
        %3260 = vmatprep.subr.bf16.mxu0 0
        %3261 = vmatpush1.bf16.xpose.msra.mxu0 0
        %3262 = vmatprep.subr.bf16.mxu0 0
        %3263 = vmatpush1.bf16.xpose.msra.mxu0 0
        %3264 = vmatprep.subr.bf16.mxu0 0
        %3265 = vmatpush1.bf16.xpose.msra.mxu0 0
        %3266 = vmatprep.subr.bf16.mxu0 0
        %3267 = vmatpush1.bf16.xpose.msra.mxu0 0
        %3268 = vmatprep.subr.bf16.mxu0 0
        %3269 = vmatpush1.bf16.xpose.msra.mxu0 0
        %3270 = vmatprep.subr.bf16.mxu0 0
        %3271 = vmatpush1.bf16.xpose.msra.mxu0 %v3254
        %3272 = vmatprep.subr.bf16.mxu0 0
        %3273 = vmatpush2.bf16.xpose.msra.mxu0 0
        %3274 = vmatprep.subr.bf16.mxu0 0
        %3275 = vmatpush2.bf16.xpose.msra.mxu0 0
        %3276 = vmatprep.subr.bf16.mxu0 0
        %3277 = vmatpush2.bf16.xpose.msra.mxu0 0
        %3278 = vmatprep.subr.bf16.mxu0 0
        %3279 = vmatpush2.bf16.xpose.msra.mxu0 0
        %3280 = vmatprep.subr.bf16.mxu0 0
        %3281 = vmatpush2.bf16.xpose.msra.mxu0 0
        %3282 = vmatprep.subr.bf16.mxu0 0
        %3283 = vmatpush2.bf16.xpose.msra.mxu0 0
        %3284 = vmatprep.subr.bf16.mxu0 0
        %3285 = vmatpush2.bf16.xpose.msra.mxu0 0
        %3286 = vmatprep.subr.bf16.mxu0 0
        %3287 = vmatpush2.bf16.xpose.msra.mxu0 0
        %3288 = vmatprep.mubr.bf16.mxu0 0
        %3289 = vmatmul.mubr.bf16.gmra.mxu0 %v3251
        %v3290 = vpop.f32.mrf.mxu0
        %v3291 = vadd.f32 0.0, %v3290
        %v3292 = vpop.f32.mrf.mxu0
        %v3293 = vpop.f32.mrf.mxu0
        %v3294 = vpop.f32.mrf.mxu0
        %3295 = vdwg.mxu0
        %v3296 = vmul.f32 %v3291, 0.35355338
        %v3297 = vadd.f32 %v3296, %v1456
        %v3298 = vsel %vm1535, %v3297, -inf
        %3299 = vmax.xlane.f32.xlu0 %v3298
        %v3300 = vpop.xlane.xlu0 %3299
        %v3301 = vsub.f32 %v3297, %v3300
        %v3302 = vmul.f32 %v3301, 1.442695
        %v3303 = vpow.pop %v3302
        %v3304 = vsel %vm1535, %v3303, 0.0
        %3305 = vadd.xlane.f32.xlu0 %v3304
        %v3306 = vpop.xlane.xlu0 %3305
        %v3307 = vrcp.pop %v3306
        %v3308 = vmul.f32 %v3303, %v3307
        %v3309 = vpack.c.bf16 %v3308, %v3308
        %3310 = vrot.lane.b32.xlu0 %v3242, 64
        %v3311 = vpop.permute.xlu0 %3310
        %v3313 = vsel %vm1535, %v3309, 0
        %v3316 = vsel %vm1601, %v3311, 0
        %3318 = vmatprep.subr.bf16.mxu0 0
        %3319 = vmatpush1.bf16.msra.mxu0 0
        %3320 = vmatprep.subr.bf16.mxu0 0
        %3321 = vmatpush1.bf16.msra.mxu0 0
        %3322 = vmatprep.subr.bf16.mxu0 0
        %3323 = vmatpush1.bf16.msra.mxu0 0
        %3324 = vmatprep.subr.bf16.mxu0 0
        %3325 = vmatpush1.bf16.msra.mxu0 0
        %3326 = vmatprep.subr.bf16.mxu0 0
        %3327 = vmatpush1.bf16.msra.mxu0 0
        %3328 = vmatprep.subr.bf16.mxu0 0
        %3329 = vmatpush1.bf16.msra.mxu0 0
        %3330 = vmatprep.subr.bf16.mxu0 0
        %3331 = vmatpush1.bf16.msra.mxu0 0
        %3332 = vmatprep.subr.bf16.mxu0 0
        %3333 = vmatpush1.bf16.msra.mxu0 %v3316
        %3334 = vmatprep.subr.bf16.mxu0 0
        %3335 = vmatpush2.bf16.msra.mxu0 0
        %3336 = vmatprep.subr.bf16.mxu0 0
        %3337 = vmatpush2.bf16.msra.mxu0 0
        %3338 = vmatprep.subr.bf16.mxu0 0
        %3339 = vmatpush2.bf16.msra.mxu0 0
        %3340 = vmatprep.subr.bf16.mxu0 0
        %3341 = vmatpush2.bf16.msra.mxu0 0
        %3342 = vmatprep.subr.bf16.mxu0 0
        %3343 = vmatpush2.bf16.msra.mxu0 0
        %3344 = vmatprep.subr.bf16.mxu0 0
        %3345 = vmatpush2.bf16.msra.mxu0 0
        %3346 = vmatprep.subr.bf16.mxu0 0
        %3347 = vmatpush2.bf16.msra.mxu0 0
        %3348 = vmatprep.subr.bf16.mxu0 0
        %3349 = vmatpush2.bf16.msra.mxu0 0
        %3350 = vmatprep.mubr.bf16.mxu0 0
        %3351 = vmatmul.mubr.bf16.gmra.mxu0 %v3313
        %v3352 = vpop.f32.mrf.mxu0
        %v3353 = vadd.f32 0.0, %v3352
        %v3354 = vpop.f32.mrf.mxu0
        %v3355 = vpop.f32.mrf.mxu0
        %v3356 = vpop.f32.mrf.mxu0
        %3357 = vdwg.mxu0
        %v3358 = vpack.c.bf16 %v3353, %v3353
        %3359 = vrot.lane.b32.xlu0 %v3242, 120
        %v3360 = vpop.permute.xlu0 %3359
        %3361 = vrot.lane.b32.xlu0 %v3242, 88
        %v3362 = vpop.permute.xlu0 %3361
        %v3364 = vsel %vm1535, %v3360, 0
        %v3367 = vsel %vm1535, %v3362, 0
        %3369 = vmatprep.subr.bf16.mxu0 0
        %3370 = vmatpush1.bf16.xpose.msra.mxu0 0
        %3371 = vmatprep.subr.bf16.mxu0 0
        %3372 = vmatpush1.bf16.xpose.msra.mxu0 0
        %3373 = vmatprep.subr.bf16.mxu0 0
        %3374 = vmatpush1.bf16.xpose.msra.mxu0 0
        %3375 = vmatprep.subr.bf16.mxu0 0
        %3376 = vmatpush1.bf16.xpose.msra.mxu0 0
        %3377 = vmatprep.subr.bf16.mxu0 0
        %3378 = vmatpush1.bf16.xpose.msra.mxu0 0
        %3379 = vmatprep.subr.bf16.mxu0 0
        %3380 = vmatpush1.bf16.xpose.msra.mxu0 0
        %3381 = vmatprep.subr.bf16.mxu0 0
        %3382 = vmatpush1.bf16.xpose.msra.mxu0 0
        %3383 = vmatprep.subr.bf16.mxu0 0
        %3384 = vmatpush1.bf16.xpose.msra.mxu0 %v3367
        %3385 = vmatprep.subr.bf16.mxu0 0
        %3386 = vmatpush2.bf16.xpose.msra.mxu0 0
        %3387 = vmatprep.subr.bf16.mxu0 0
        %3388 = vmatpush2.bf16.xpose.msra.mxu0 0
        %3389 = vmatprep.subr.bf16.mxu0 0
        %3390 = vmatpush2.bf16.xpose.msra.mxu0 0
        %3391 = vmatprep.subr.bf16.mxu0 0
        %3392 = vmatpush2.bf16.xpose.msra.mxu0 0
        %3393 = vmatprep.subr.bf16.mxu0 0
        %3394 = vmatpush2.bf16.xpose.msra.mxu0 0
        %3395 = vmatprep.subr.bf16.mxu0 0
        %3396 = vmatpush2.bf16.xpose.msra.mxu0 0
        %3397 = vmatprep.subr.bf16.mxu0 0
        %3398 = vmatpush2.bf16.xpose.msra.mxu0 0
        %3399 = vmatprep.subr.bf16.mxu0 0
        %3400 = vmatpush2.bf16.xpose.msra.mxu0 0
        %3401 = vmatprep.mubr.bf16.mxu0 0
        %3402 = vmatmul.mubr.bf16.gmra.mxu0 %v3364
        %v3403 = vpop.f32.mrf.mxu0
        %v3404 = vadd.f32 0.0, %v3403
        %v3405 = vpop.f32.mrf.mxu0
        %v3406 = vpop.f32.mrf.mxu0
        %v3407 = vpop.f32.mrf.mxu0
        %3408 = vdwg.mxu0
        %v3409 = vmul.f32 %v3404, 0.35355338
        %v3410 = vadd.f32 %v3409, %v1456
        %v3411 = vsel %vm1535, %v3410, -inf
        %3412 = vmax.xlane.f32.xlu0 %v3411
        %v3413 = vpop.xlane.xlu0 %3412
        %v3414 = vsub.f32 %v3410, %v3413
        %v3415 = vmul.f32 %v3414, 1.442695
        %v3416 = vpow.pop %v3415
        %v3417 = vsel %vm1535, %v3416, 0.0
        %3418 = vadd.xlane.f32.xlu0 %v3417
        %v3419 = vpop.xlane.xlu0 %3418
        %v3420 = vrcp.pop %v3419
        %v3421 = vmul.f32 %v3416, %v3420
        %v3422 = vpack.c.bf16 %v3421, %v3421
        %3423 = vrot.lane.b32.xlu0 %v3242, 56
        %v3424 = vpop.permute.xlu0 %3423
        %v3426 = vsel %vm1535, %v3422, 0
        %v3429 = vsel %vm1601, %v3424, 0
        %3431 = vmatprep.subr.bf16.mxu0 0
        %3432 = vmatpush1.bf16.msra.mxu0 0
        %3433 = vmatprep.subr.bf16.mxu0 0
        %3434 = vmatpush1.bf16.msra.mxu0 0
        %3435 = vmatprep.subr.bf16.mxu0 0
        %3436 = vmatpush1.bf16.msra.mxu0 0
        %3437 = vmatprep.subr.bf16.mxu0 0
        %3438 = vmatpush1.bf16.msra.mxu0 0
        %3439 = vmatprep.subr.bf16.mxu0 0
        %3440 = vmatpush1.bf16.msra.mxu0 0
        %3441 = vmatprep.subr.bf16.mxu0 0
        %3442 = vmatpush1.bf16.msra.mxu0 0
        %3443 = vmatprep.subr.bf16.mxu0 0
        %3444 = vmatpush1.bf16.msra.mxu0 0
        %3445 = vmatprep.subr.bf16.mxu0 0
        %3446 = vmatpush1.bf16.msra.mxu0 %v3429
        %3447 = vmatprep.subr.bf16.mxu0 0
        %3448 = vmatpush2.bf16.msra.mxu0 0
        %3449 = vmatprep.subr.bf16.mxu0 0
        %3450 = vmatpush2.bf16.msra.mxu0 0
        %3451 = vmatprep.subr.bf16.mxu0 0
        %3452 = vmatpush2.bf16.msra.mxu0 0
        %3453 = vmatprep.subr.bf16.mxu0 0
        %3454 = vmatpush2.bf16.msra.mxu0 0
        %3455 = vmatprep.subr.bf16.mxu0 0
        %3456 = vmatpush2.bf16.msra.mxu0 0
        %3457 = vmatprep.subr.bf16.mxu0 0
        %3458 = vmatpush2.bf16.msra.mxu0 0
        %3459 = vmatprep.subr.bf16.mxu0 0
        %3460 = vmatpush2.bf16.msra.mxu0 0
        %3461 = vmatprep.subr.bf16.mxu0 0
        %3462 = vmatpush2.bf16.msra.mxu0 0
        %3463 = vmatprep.mubr.bf16.mxu0 0
        %3464 = vmatmul.mubr.bf16.gmra.mxu0 %v3426
        %v3465 = vpop.f32.mrf.mxu0
        %v3466 = vadd.f32 0.0, %v3465
        %v3467 = vpop.f32.mrf.mxu0
        %v3468 = vpop.f32.mrf.mxu0
        %v3469 = vpop.f32.mrf.mxu0
        %3470 = vdwg.mxu0
        %v3471 = vpack.c.bf16 %v3466, %v3466
        %v3473 = vsel %vm1535, %v3471, 0
        %v3476 = vsel %vm1601, %v3244, 0
        %3478 = vmatprep.subr.bf16.mxu0 0
        %3479 = vmatpush1.bf16.msra.mxu0 0
        %3480 = vmatprep.subr.bf16.mxu0 0
        %3481 = vmatpush1.bf16.msra.mxu0 0
        %3482 = vmatprep.subr.bf16.mxu0 0
        %3483 = vmatpush1.bf16.msra.mxu0 0
        %3484 = vmatprep.subr.bf16.mxu0 0
        %3485 = vmatpush1.bf16.msra.mxu0 0
        %3486 = vmatprep.subr.bf16.mxu0 0
        %3487 = vmatpush1.bf16.msra.mxu0 0
        %3488 = vmatprep.subr.bf16.mxu0 0
        %3489 = vmatpush1.bf16.msra.mxu0 0
        %3490 = vmatprep.subr.bf16.mxu0 0
        %3491 = vmatpush1.bf16.msra.mxu0 0
        %3492 = vmatprep.subr.bf16.mxu0 0
        %3493 = vmatpush1.bf16.msra.mxu0 %v3476
        %3494 = vmatprep.subr.bf16.mxu0 0
        %3495 = vmatpush2.bf16.msra.mxu0 0
        %3496 = vmatprep.subr.bf16.mxu0 0
        %3497 = vmatpush2.bf16.msra.mxu0 0
        %3498 = vmatprep.subr.bf16.mxu0 0
        %3499 = vmatpush2.bf16.msra.mxu0 0
        %3500 = vmatprep.subr.bf16.mxu0 0
        %3501 = vmatpush2.bf16.msra.mxu0 0
        %3502 = vmatprep.subr.bf16.mxu0 0
        %3503 = vmatpush2.bf16.msra.mxu0 0
        %3504 = vmatprep.subr.bf16.mxu0 0
        %3505 = vmatpush2.bf16.msra.mxu0 0
        %3506 = vmatprep.subr.bf16.mxu0 0
        %3507 = vmatpush2.bf16.msra.mxu0 0
        %3508 = vmatprep.subr.bf16.mxu0 0
        %3509 = vmatpush2.bf16.msra.mxu0 0
        %3510 = vmatprep.mubr.bf16.mxu0 0
        %3511 = vmatmul.mubr.bf16.gmra.mxu0 %v3473
        %v3512 = vpop.f32.mrf.mxu0
        %v3513 = vadd.f32 0.0, %v3512
        %v3514 = vpop.f32.mrf.mxu0
        %v3515 = vpop.f32.mrf.mxu0
        %v3516 = vpop.f32.mrf.mxu0
        %3517 = vdwg.mxu0
        %v3519 = vsel %vm1535, %v3358, 0
        %v3522 = vsel %vm1601, %v3243, 0
        %3524 = vmatprep.subr.bf16.mxu0 0
        %3525 = vmatpush1.bf16.msra.mxu0 0
        %3526 = vmatprep.subr.bf16.mxu0 0
        %3527 = vmatpush1.bf16.msra.mxu0 0
        %3528 = vmatprep.subr.bf16.mxu0 0
        %3529 = vmatpush1.bf16.msra.mxu0 0
        %3530 = vmatprep.subr.bf16.mxu0 0
        %3531 = vmatpush1.bf16.msra.mxu0 0
        %3532 = vmatprep.subr.bf16.mxu0 0
        %3533 = vmatpush1.bf16.msra.mxu0 0
        %3534 = vmatprep.subr.bf16.mxu0 0
        %3535 = vmatpush1.bf16.msra.mxu0 0
        %3536 = vmatprep.subr.bf16.mxu0 0
        %3537 = vmatpush1.bf16.msra.mxu0 0
        %3538 = vmatprep.subr.bf16.mxu0 0
        %3539 = vmatpush1.bf16.msra.mxu0 %v3522
        %3540 = vmatprep.subr.bf16.mxu0 0
        %3541 = vmatpush2.bf16.msra.mxu0 0
        %3542 = vmatprep.subr.bf16.mxu0 0
        %3543 = vmatpush2.bf16.msra.mxu0 0
        %3544 = vmatprep.subr.bf16.mxu0 0
        %3545 = vmatpush2.bf16.msra.mxu0 0
        %3546 = vmatprep.subr.bf16.mxu0 0
        %3547 = vmatpush2.bf16.msra.mxu0 0
        %3548 = vmatprep.subr.bf16.mxu0 0
        %3549 = vmatpush2.bf16.msra.mxu0 0
        %3550 = vmatprep.subr.bf16.mxu0 0
        %3551 = vmatpush2.bf16.msra.mxu0 0
        %3552 = vmatprep.subr.bf16.mxu0 0
        %3553 = vmatpush2.bf16.msra.mxu0 0
        %3554 = vmatprep.subr.bf16.mxu0 0
        %3555 = vmatpush2.bf16.msra.mxu0 0
        %3556 = vmatprep.mubr.bf16.mxu0 0
        %3557 = vmatmul.mubr.bf16.gmra.mxu0 %v3519
        %v3558 = vpop.f32.mrf.mxu0
        %v3559 = vadd.f32 %v3513, %v3558
        %v3560 = vpop.f32.mrf.mxu0
        %v3561 = vpop.f32.mrf.mxu0
        %v3562 = vpop.f32.mrf.mxu0
        %3563 = vdwg.mxu0
        %3564 = vrot.lane.b32.xlu0 %v3242, 112
        %v3565 = vpop.permute.xlu0 %3564
        %3566 = vrot.lane.b32.xlu0 %v3242, 80
        %v3567 = vpop.permute.xlu0 %3566
        %v3569 = vsel %vm1535, %v3565, 0
        %v3572 = vsel %vm1535, %v3567, 0
        %3574 = vmatprep.subr.bf16.mxu0 0
        %3575 = vmatpush1.bf16.xpose.msra.mxu0 0
        %3576 = vmatprep.subr.bf16.mxu0 0
        %3577 = vmatpush1.bf16.xpose.msra.mxu0 0
        %3578 = vmatprep.subr.bf16.mxu0 0
        %3579 = vmatpush1.bf16.xpose.msra.mxu0 0
        %3580 = vmatprep.subr.bf16.mxu0 0
        %3581 = vmatpush1.bf16.xpose.msra.mxu0 0
        %3582 = vmatprep.subr.bf16.mxu0 0
        %3583 = vmatpush1.bf16.xpose.msra.mxu0 0
        %3584 = vmatprep.subr.bf16.mxu0 0
        %3585 = vmatpush1.bf16.xpose.msra.mxu0 0
        %3586 = vmatprep.subr.bf16.mxu0 0
        %3587 = vmatpush1.bf16.xpose.msra.mxu0 0
        %3588 = vmatprep.subr.bf16.mxu0 0
        %3589 = vmatpush1.bf16.xpose.msra.mxu0 %v3572
        %3590 = vmatprep.subr.bf16.mxu0 0
        %3591 = vmatpush2.bf16.xpose.msra.mxu0 0
        %3592 = vmatprep.subr.bf16.mxu0 0
        %3593 = vmatpush2.bf16.xpose.msra.mxu0 0
        %3594 = vmatprep.subr.bf16.mxu0 0
        %3595 = vmatpush2.bf16.xpose.msra.mxu0 0
        %3596 = vmatprep.subr.bf16.mxu0 0
        %3597 = vmatpush2.bf16.xpose.msra.mxu0 0
        %3598 = vmatprep.subr.bf16.mxu0 0
        %3599 = vmatpush2.bf16.xpose.msra.mxu0 0
        %3600 = vmatprep.subr.bf16.mxu0 0
        %3601 = vmatpush2.bf16.xpose.msra.mxu0 0
        %3602 = vmatprep.subr.bf16.mxu0 0
        %3603 = vmatpush2.bf16.xpose.msra.mxu0 0
        %3604 = vmatprep.subr.bf16.mxu0 0
        %3605 = vmatpush2.bf16.xpose.msra.mxu0 0
        %3606 = vmatprep.mubr.bf16.mxu0 0
        %3607 = vmatmul.mubr.bf16.gmra.mxu0 %v3569
        %v3608 = vpop.f32.mrf.mxu0
        %v3609 = vadd.f32 0.0, %v3608
        %v3610 = vpop.f32.mrf.mxu0
        %v3611 = vpop.f32.mrf.mxu0
        %v3612 = vpop.f32.mrf.mxu0
        %3613 = vdwg.mxu0
        %v3614 = vmul.f32 %v3609, 0.35355338
        %v3615 = vadd.f32 %v3614, %v1456
        %v3616 = vsel %vm1535, %v3615, -inf
        %3617 = vmax.xlane.f32.xlu0 %v3616
        %v3618 = vpop.xlane.xlu0 %3617
        %v3619 = vsub.f32 %v3615, %v3618
        %v3620 = vmul.f32 %v3619, 1.442695
        %v3621 = vpow.pop %v3620
        %v3622 = vsel %vm1535, %v3621, 0.0
        %3623 = vadd.xlane.f32.xlu0 %v3622
        %v3624 = vpop.xlane.xlu0 %3623
        %v3625 = vrcp.pop %v3624
        %v3626 = vmul.f32 %v3621, %v3625
        %v3627 = vpack.c.bf16 %v3626, %v3626
        %3628 = vrot.lane.b32.xlu0 %v3242, 48
        %v3629 = vpop.permute.xlu0 %3628
        %v3631 = vsel %vm1535, %v3627, 0
        %v3634 = vsel %vm1601, %v3629, 0
        %3636 = vmatprep.subr.bf16.mxu0 0
        %3637 = vmatpush1.bf16.msra.mxu0 0
        %3638 = vmatprep.subr.bf16.mxu0 0
        %3639 = vmatpush1.bf16.msra.mxu0 0
        %3640 = vmatprep.subr.bf16.mxu0 0
        %3641 = vmatpush1.bf16.msra.mxu0 0
        %3642 = vmatprep.subr.bf16.mxu0 0
        %3643 = vmatpush1.bf16.msra.mxu0 0
        %3644 = vmatprep.subr.bf16.mxu0 0
        %3645 = vmatpush1.bf16.msra.mxu0 0
        %3646 = vmatprep.subr.bf16.mxu0 0
        %3647 = vmatpush1.bf16.msra.mxu0 0
        %3648 = vmatprep.subr.bf16.mxu0 0
        %3649 = vmatpush1.bf16.msra.mxu0 0
        %3650 = vmatprep.subr.bf16.mxu0 0
        %3651 = vmatpush1.bf16.msra.mxu0 %v3634
        %3652 = vmatprep.subr.bf16.mxu0 0
        %3653 = vmatpush2.bf16.msra.mxu0 0
        %3654 = vmatprep.subr.bf16.mxu0 0
        %3655 = vmatpush2.bf16.msra.mxu0 0
        %3656 = vmatprep.subr.bf16.mxu0 0
        %3657 = vmatpush2.bf16.msra.mxu0 0
        %3658 = vmatprep.subr.bf16.mxu0 0
        %3659 = vmatpush2.bf16.msra.mxu0 0
        %3660 = vmatprep.subr.bf16.mxu0 0
        %3661 = vmatpush2.bf16.msra.mxu0 0
        %3662 = vmatprep.subr.bf16.mxu0 0
        %3663 = vmatpush2.bf16.msra.mxu0 0
        %3664 = vmatprep.subr.bf16.mxu0 0
        %3665 = vmatpush2.bf16.msra.mxu0 0
        %3666 = vmatprep.subr.bf16.mxu0 0
        %3667 = vmatpush2.bf16.msra.mxu0 0
        %3668 = vmatprep.mubr.bf16.mxu0 0
        %3669 = vmatmul.mubr.bf16.gmra.mxu0 %v3631
        %v3670 = vpop.f32.mrf.mxu0
        %v3671 = vadd.f32 0.0, %v3670
        %v3672 = vpop.f32.mrf.mxu0
        %v3673 = vpop.f32.mrf.mxu0
        %v3674 = vpop.f32.mrf.mxu0
        %3675 = vdwg.mxu0
        %v3676 = vpack.c.bf16 %v3671, %v3671
        %v3678 = vsel %vm1535, %v3676, 0
        %v3681 = vsel %vm1601, %v3245, 0
        %3683 = vmatprep.subr.bf16.mxu0 0
        %3684 = vmatpush1.bf16.msra.mxu0 0
        %3685 = vmatprep.subr.bf16.mxu0 0
        %3686 = vmatpush1.bf16.msra.mxu0 0
        %3687 = vmatprep.subr.bf16.mxu0 0
        %3688 = vmatpush1.bf16.msra.mxu0 0
        %3689 = vmatprep.subr.bf16.mxu0 0
        %3690 = vmatpush1.bf16.msra.mxu0 0
        %3691 = vmatprep.subr.bf16.mxu0 0
        %3692 = vmatpush1.bf16.msra.mxu0 0
        %3693 = vmatprep.subr.bf16.mxu0 0
        %3694 = vmatpush1.bf16.msra.mxu0 0
        %3695 = vmatprep.subr.bf16.mxu0 0
        %3696 = vmatpush1.bf16.msra.mxu0 0
        %3697 = vmatprep.subr.bf16.mxu0 0
        %3698 = vmatpush1.bf16.msra.mxu0 %v3681
        %3699 = vmatprep.subr.bf16.mxu0 0
        %3700 = vmatpush2.bf16.msra.mxu0 0
        %3701 = vmatprep.subr.bf16.mxu0 0
        %3702 = vmatpush2.bf16.msra.mxu0 0
        %3703 = vmatprep.subr.bf16.mxu0 0
        %3704 = vmatpush2.bf16.msra.mxu0 0
        %3705 = vmatprep.subr.bf16.mxu0 0
        %3706 = vmatpush2.bf16.msra.mxu0 0
        %3707 = vmatprep.subr.bf16.mxu0 0
        %3708 = vmatpush2.bf16.msra.mxu0 0
        %3709 = vmatprep.subr.bf16.mxu0 0
        %3710 = vmatpush2.bf16.msra.mxu0 0
        %3711 = vmatprep.subr.bf16.mxu0 0
        %3712 = vmatpush2.bf16.msra.mxu0 0
        %3713 = vmatprep.subr.bf16.mxu0 0
        %3714 = vmatpush2.bf16.msra.mxu0 0
        %3715 = vmatprep.mubr.bf16.mxu0 0
        %3716 = vmatmul.mubr.bf16.gmra.mxu0 %v3678
        %v3717 = vpop.f32.mrf.mxu0
        %v3718 = vadd.f32 0.0, %v3717
        %v3719 = vpop.f32.mrf.mxu0
        %v3720 = vpop.f32.mrf.mxu0
        %v3721 = vpop.f32.mrf.mxu0
        %3722 = vdwg.mxu0
        %v3723 = vadd.f32 %v3559, %v3718
        %3724 = vrot.lane.b32.xlu0 %v3242, 104
        %v3725 = vpop.permute.xlu0 %3724
        %3726 = vrot.lane.b32.xlu0 %v3242, 72
        %v3727 = vpop.permute.xlu0 %3726
        %v3729 = vsel %vm1535, %v3725, 0
        %v3732 = vsel %vm1535, %v3727, 0
        %3734 = vmatprep.subr.bf16.mxu0 0
        %3735 = vmatpush1.bf16.xpose.msra.mxu0 0
        %3736 = vmatprep.subr.bf16.mxu0 0
        %3737 = vmatpush1.bf16.xpose.msra.mxu0 0
        %3738 = vmatprep.subr.bf16.mxu0 0
        %3739 = vmatpush1.bf16.xpose.msra.mxu0 0
        %3740 = vmatprep.subr.bf16.mxu0 0
        %3741 = vmatpush1.bf16.xpose.msra.mxu0 0
        %3742 = vmatprep.subr.bf16.mxu0 0
        %3743 = vmatpush1.bf16.xpose.msra.mxu0 0
        %3744 = vmatprep.subr.bf16.mxu0 0
        %3745 = vmatpush1.bf16.xpose.msra.mxu0 0
        %3746 = vmatprep.subr.bf16.mxu0 0
        %3747 = vmatpush1.bf16.xpose.msra.mxu0 0
        %3748 = vmatprep.subr.bf16.mxu0 0
        %3749 = vmatpush1.bf16.xpose.msra.mxu0 %v3732
        %3750 = vmatprep.subr.bf16.mxu0 0
        %3751 = vmatpush2.bf16.xpose.msra.mxu0 0
        %3752 = vmatprep.subr.bf16.mxu0 0
        %3753 = vmatpush2.bf16.xpose.msra.mxu0 0
        %3754 = vmatprep.subr.bf16.mxu0 0
        %3755 = vmatpush2.bf16.xpose.msra.mxu0 0
        %3756 = vmatprep.subr.bf16.mxu0 0
        %3757 = vmatpush2.bf16.xpose.msra.mxu0 0
        %3758 = vmatprep.subr.bf16.mxu0 0
        %3759 = vmatpush2.bf16.xpose.msra.mxu0 0
        %3760 = vmatprep.subr.bf16.mxu0 0
        %3761 = vmatpush2.bf16.xpose.msra.mxu0 0
        %3762 = vmatprep.subr.bf16.mxu0 0
        %3763 = vmatpush2.bf16.xpose.msra.mxu0 0
        %3764 = vmatprep.subr.bf16.mxu0 0
        %3765 = vmatpush2.bf16.xpose.msra.mxu0 0
        %3766 = vmatprep.mubr.bf16.mxu0 0
        %3767 = vmatmul.mubr.bf16.gmra.mxu0 %v3729
        %v3768 = vpop.f32.mrf.mxu0
        %v3769 = vadd.f32 0.0, %v3768
        %v3770 = vpop.f32.mrf.mxu0
        %v3771 = vpop.f32.mrf.mxu0
        %v3772 = vpop.f32.mrf.mxu0
        %3773 = vdwg.mxu0
        %v3774 = vmul.f32 %v3769, 0.35355338
        %v3775 = vadd.f32 %v3774, %v1456
        %v3776 = vsel %vm1535, %v3775, -inf
        %3777 = vmax.xlane.f32.xlu0 %v3776
        %v3778 = vpop.xlane.xlu0 %3777
        %v3779 = vsub.f32 %v3775, %v3778
        %v3780 = vmul.f32 %v3779, 1.442695
        %v3781 = vpow.pop %v3780
        %v3782 = vsel %vm1535, %v3781, 0.0
        %3783 = vadd.xlane.f32.xlu0 %v3782
        %v3784 = vpop.xlane.xlu0 %3783
        %v3785 = vrcp.pop %v3784
        %v3786 = vmul.f32 %v3781, %v3785
        %v3787 = vpack.c.bf16 %v3786, %v3786
        %3788 = vrot.lane.b32.xlu0 %v3242, 40
        %v3789 = vpop.permute.xlu0 %3788
        %v3791 = vsel %vm1535, %v3787, 0
        %v3794 = vsel %vm1601, %v3789, 0
        %3796 = vmatprep.subr.bf16.mxu0 0
        %3797 = vmatpush1.bf16.msra.mxu0 0
        %3798 = vmatprep.subr.bf16.mxu0 0
        %3799 = vmatpush1.bf16.msra.mxu0 0
        %3800 = vmatprep.subr.bf16.mxu0 0
        %3801 = vmatpush1.bf16.msra.mxu0 0
        %3802 = vmatprep.subr.bf16.mxu0 0
        %3803 = vmatpush1.bf16.msra.mxu0 0
        %3804 = vmatprep.subr.bf16.mxu0 0
        %3805 = vmatpush1.bf16.msra.mxu0 0
        %3806 = vmatprep.subr.bf16.mxu0 0
        %3807 = vmatpush1.bf16.msra.mxu0 0
        %3808 = vmatprep.subr.bf16.mxu0 0
        %3809 = vmatpush1.bf16.msra.mxu0 0
        %3810 = vmatprep.subr.bf16.mxu0 0
        %3811 = vmatpush1.bf16.msra.mxu0 %v3794
        %3812 = vmatprep.subr.bf16.mxu0 0
        %3813 = vmatpush2.bf16.msra.mxu0 0
        %3814 = vmatprep.subr.bf16.mxu0 0
        %3815 = vmatpush2.bf16.msra.mxu0 0
        %3816 = vmatprep.subr.bf16.mxu0 0
        %3817 = vmatpush2.bf16.msra.mxu0 0
        %3818 = vmatprep.subr.bf16.mxu0 0
        %3819 = vmatpush2.bf16.msra.mxu0 0
        %3820 = vmatprep.subr.bf16.mxu0 0
        %3821 = vmatpush2.bf16.msra.mxu0 0
        %3822 = vmatprep.subr.bf16.mxu0 0
        %3823 = vmatpush2.bf16.msra.mxu0 0
        %3824 = vmatprep.subr.bf16.mxu0 0
        %3825 = vmatpush2.bf16.msra.mxu0 0
        %3826 = vmatprep.subr.bf16.mxu0 0
        %3827 = vmatpush2.bf16.msra.mxu0 0
        %3828 = vmatprep.mubr.bf16.mxu0 0
        %3829 = vmatmul.mubr.bf16.gmra.mxu0 %v3791
        %v3830 = vpop.f32.mrf.mxu0
        %v3831 = vadd.f32 0.0, %v3830
        %v3832 = vpop.f32.mrf.mxu0
        %v3833 = vpop.f32.mrf.mxu0
        %v3834 = vpop.f32.mrf.mxu0
        %3835 = vdwg.mxu0
        %v3836 = vpack.c.bf16 %v3831, %v3831
        %v3838 = vsel %vm1535, %v3836, 0
        %v3841 = vsel %vm1601, %v3246, 0
        %3843 = vmatprep.subr.bf16.mxu0 0
        %3844 = vmatpush1.bf16.msra.mxu0 0
        %3845 = vmatprep.subr.bf16.mxu0 0
        %3846 = vmatpush1.bf16.msra.mxu0 0
        %3847 = vmatprep.subr.bf16.mxu0 0
        %3848 = vmatpush1.bf16.msra.mxu0 0
        %3849 = vmatprep.subr.bf16.mxu0 0
        %3850 = vmatpush1.bf16.msra.mxu0 0
        %3851 = vmatprep.subr.bf16.mxu0 0
        %3852 = vmatpush1.bf16.msra.mxu0 0
        %3853 = vmatprep.subr.bf16.mxu0 0
        %3854 = vmatpush1.bf16.msra.mxu0 0
        %3855 = vmatprep.subr.bf16.mxu0 0
        %3856 = vmatpush1.bf16.msra.mxu0 0
        %3857 = vmatprep.subr.bf16.mxu0 0
        %3858 = vmatpush1.bf16.msra.mxu0 %v3841
        %3859 = vmatprep.subr.bf16.mxu0 0
        %3860 = vmatpush2.bf16.msra.mxu0 0
        %3861 = vmatprep.subr.bf16.mxu0 0
        %3862 = vmatpush2.bf16.msra.mxu0 0
        %3863 = vmatprep.subr.bf16.mxu0 0
        %3864 = vmatpush2.bf16.msra.mxu0 0
        %3865 = vmatprep.subr.bf16.mxu0 0
        %3866 = vmatpush2.bf16.msra.mxu0 0
        %3867 = vmatprep.subr.bf16.mxu0 0
        %3868 = vmatpush2.bf16.msra.mxu0 0
        %3869 = vmatprep.subr.bf16.mxu0 0
        %3870 = vmatpush2.bf16.msra.mxu0 0
        %3871 = vmatprep.subr.bf16.mxu0 0
        %3872 = vmatpush2.bf16.msra.mxu0 0
        %3873 = vmatprep.subr.bf16.mxu0 0
        %3874 = vmatpush2.bf16.msra.mxu0 0
        %3875 = vmatprep.mubr.bf16.mxu0 0
        %3876 = vmatmul.mubr.bf16.gmra.mxu0 %v3838
        %v3877 = vpop.f32.mrf.mxu0
        %v3878 = vadd.f32 0.0, %v3877
        %v3879 = vpop.f32.mrf.mxu0
        %v3880 = vpop.f32.mrf.mxu0
        %v3881 = vpop.f32.mrf.mxu0
        %3882 = vdwg.mxu0
        %v3883 = vadd.f32 %v3723, %v3878
        %v3884 = vld [vmem:[%s51] sm:$0x1]
        %v3886 = vlaneseq
        %v3887 = vshrl.u32 %v3886, 7
        %v3888 = vsub.s32 0, %v3887
        %v3889 = vrot.slane %v3884, %v3888
        %v3891 = vadd.f32 %v3883, %v3889
        %v3892 = vadd.f32 %v3174, %v3891
        %v3893 = vld [vmem:[%s73] sm:$0x1]
        %v3894 = vld [vmem:[%s75] sm:$0x1]
        %v3895 = vsel %vm1483, %v3892, 0.0
        %3896 = vadd.xlane.f32.xlu0 %v3895
        %v3897 = vpop.xlane.xlu0 %3896
        %v3898 = vmul.f32 %v3897, %v2185
        %v3899 = vsub.f32 %v3892, %v3898
        %v3900 = vmul.f32 %v3899, %v3899
        %v3901 = vsel %vm1483, %v3900, 0.0
        %3902 = vadd.xlane.f32.xlu0 %v3901
        %v3903 = vpop.xlane.xlu0 %3902
        %v3904 = vmul.f32 %v3903, %v2185
        %v3905 = vadd.f32 %v3904, 1e-05
        %v3906 = vrsqrt.pop %v3905
        %v3907 = vmul.f32 %v3899, %v3906
        %v3909 = vlaneseq
        %v3910 = vshrl.u32 %v3909, 7
        %v3911 = vsub.s32 0, %v3910
        %v3912 = vrot.slane %v3893, %v3911
        %v3914 = vmul.f32 %v3907, %v3912
        %v3916 = vlaneseq
        %v3917 = vshrl.u32 %v3916, 7
        %v3918 = vsub.s32 0, %v3917
        %v3919 = vrot.slane %v3894, %v3918
        %v3921 = vadd.f32 %v3914, %v3919
        %v3922 = vpack.c.bf16 %v3921, %v3921
        %v3923 = vld [vmem:[%s53] sm:$0xf]
        %v3924 = vld [vmem:[%s53 + $0x4] sm:$0xf]
        %v3925 = vld [vmem:[%s53 + $0x8] sm:$0xf]
        %v3926 = vld [vmem:[%s53 + $0xc] sm:$0xf]
        %v3927 = vld [vmem:[%s55] sm:$0x1]
        %v3929 = vlaneseq
        %v3930 = vshrl.u32 %v3929, 7
        %v3931 = vsub.s32 0, %v3930
        %v3932 = vrot.slane %v3927, %v3931
        %v3938 = vunpack.c.l.b16 %v3923
        %v3939 = vunpack.c.l.b16 %v3924
        %v3940 = vunpack.c.l.b16 %v3925
        %v3941 = vunpack.c.l.b16 %v3926
        %v3942 = vpack.c.b16 %v3939, %v3938
        %v3943 = vpack.c.b16 %v3941, %v3940
        %v3947 = vsel %vm1483, %v3922, 0
        %3949 = vmatprep.subr.bf16.mxu0 0
        %3950 = vmatpush1.bf16.msra.mxu0 0
        %3951 = vmatprep.subr.bf16.mxu0 0
        %3952 = vmatpush1.bf16.msra.mxu0 0
        %3953 = vmatprep.subr.bf16.mxu0 0
        %3954 = vmatpush1.bf16.msra.mxu0 0
        %3955 = vmatprep.subr.bf16.mxu0 0
        %3956 = vmatpush1.bf16.msra.mxu0 0
        %3957 = vmatprep.subr.bf16.mxu0 0
        %3958 = vmatpush1.bf16.msra.mxu0 0
        %3959 = vmatprep.subr.bf16.mxu0 0
        %3960 = vmatpush1.bf16.msra.mxu0 0
        %3961 = vmatprep.subr.bf16.mxu0 0
        %3962 = vmatpush1.bf16.msra.mxu0 %v3943
        %3963 = vmatprep.subr.bf16.mxu0 0
        %3964 = vmatpush1.bf16.msra.mxu0 %v3942
        %3965 = vmatprep.subr.bf16.mxu0 0
        %3966 = vmatpush2.bf16.msra.mxu0 0
        %3967 = vmatprep.subr.bf16.mxu0 0
        %3968 = vmatpush2.bf16.msra.mxu0 0
        %3969 = vmatprep.subr.bf16.mxu0 0
        %3970 = vmatpush2.bf16.msra.mxu0 0
        %3971 = vmatprep.subr.bf16.mxu0 0
        %3972 = vmatpush2.bf16.msra.mxu0 0
        %3973 = vmatprep.subr.bf16.mxu0 0
        %3974 = vmatpush2.bf16.msra.mxu0 0
        %3975 = vmatprep.subr.bf16.mxu0 0
        %3976 = vmatpush2.bf16.msra.mxu0 0
        %3977 = vmatprep.subr.bf16.mxu0 0
        %3978 = vmatpush2.bf16.msra.mxu0 0
        %3979 = vmatprep.subr.bf16.mxu0 0
        %3980 = vmatpush2.bf16.msra.mxu0 0
        %3981 = vmatprep.mubr.bf16.mxu0 0
        %3982 = vmatmul.mubr.bf16.gmra.mxu0 %v3947
        %v3983 = vpop.f32.mrf.mxu0
        %v3984 = vadd.f32 %v3932, %v3983
        %v3985 = vpop.f32.mrf.mxu0
        %v3986 = vpop.f32.mrf.mxu0
        %v3987 = vpop.f32.mrf.mxu0
        %3988 = vdwg.mxu0
        %v3989 = vld [vmem:[%s57] sm:$0xf]
        %v3990 = vld [vmem:[%s57 + $0x4] sm:$0xf]
        %v3991 = vld [vmem:[%s57 + $0x8] sm:$0xf]
        %v3992 = vld [vmem:[%s57 + $0xc] sm:$0xf]
        %v3993 = vld [vmem:[%s59] sm:$0x1]
        %v3995 = vlaneseq
        %v3996 = vshrl.u32 %v3995, 7
        %v3997 = vsub.s32 0, %v3996
        %v3998 = vrot.slane %v3993, %v3997
        %v4004 = vunpack.c.l.b16 %v3989
        %v4005 = vunpack.c.l.b16 %v3990
        %v4006 = vunpack.c.l.b16 %v3991
        %v4007 = vunpack.c.l.b16 %v3992
        %v4008 = vpack.c.b16 %v4005, %v4004
        %v4009 = vpack.c.b16 %v4007, %v4006
        %4012 = vmatprep.subr.bf16.mxu0 0
        %4013 = vmatpush1.bf16.msra.mxu0 0
        %4014 = vmatprep.subr.bf16.mxu0 0
        %4015 = vmatpush1.bf16.msra.mxu0 0
        %4016 = vmatprep.subr.bf16.mxu0 0
        %4017 = vmatpush1.bf16.msra.mxu0 0
        %4018 = vmatprep.subr.bf16.mxu0 0
        %4019 = vmatpush1.bf16.msra.mxu0 0
        %4020 = vmatprep.subr.bf16.mxu0 0
        %4021 = vmatpush1.bf16.msra.mxu0 0
        %4022 = vmatprep.subr.bf16.mxu0 0
        %4023 = vmatpush1.bf16.msra.mxu0 0
        %4024 = vmatprep.subr.bf16.mxu0 0
        %4025 = vmatpush1.bf16.msra.mxu0 %v4009
        %4026 = vmatprep.subr.bf16.mxu0 0
        %4027 = vmatpush1.bf16.msra.mxu0 %v4008
        %4028 = vmatprep.subr.bf16.mxu0 0
        %4029 = vmatpush2.bf16.msra.mxu0 0
        %4030 = vmatprep.subr.bf16.mxu0 0
        %4031 = vmatpush2.bf16.msra.mxu0 0
        %4032 = vmatprep.subr.bf16.mxu0 0
        %4033 = vmatpush2.bf16.msra.mxu0 0
        %4034 = vmatprep.subr.bf16.mxu0 0
        %4035 = vmatpush2.bf16.msra.mxu0 0
        %4036 = vmatprep.subr.bf16.mxu0 0
        %4037 = vmatpush2.bf16.msra.mxu0 0
        %4038 = vmatprep.subr.bf16.mxu0 0
        %4039 = vmatpush2.bf16.msra.mxu0 0
        %4040 = vmatprep.subr.bf16.mxu0 0
        %4041 = vmatpush2.bf16.msra.mxu0 0
        %4042 = vmatprep.subr.bf16.mxu0 0
        %4043 = vmatpush2.bf16.msra.mxu0 0
        %4044 = vmatprep.mubr.bf16.mxu0 0
        %4045 = vmatmul.mubr.bf16.gmra.mxu0 %v2302
        %v4046 = vpop.f32.mrf.mxu0
        %v4047 = vadd.f32 %v3998, %v4046
        %v4048 = vpop.f32.mrf.mxu0
        %v4049 = vpop.f32.mrf.mxu0
        %v4050 = vadd.f32 %v3998, %v4049
        %v4051 = vpop.f32.mrf.mxu0
        %4052 = vdwg.mxu0
        %v4053 = vpack.c.bf16 %v3984, %v3984
        %v4054 = vpack.c.bf16 %v4050, %v4047
        %v4055 = vld [vmem:[%s61] sm:$0xf]
        %v4056 = vld [vmem:[%s61 + $0x4] sm:$0xf]
        %v4057 = vld [vmem:[%s61 + $0x8] sm:$0xf]
        %v4058 = vld [vmem:[%s61 + $0xc] sm:$0xf]
        %v4060 = vsel %vm1535, %v4053, 0
        %v4063 = vsel %vm1535, %v4054, 0
        %4065 = vmatprep.subr.bf16.mxu0 0
        %4066 = vmatpush1.bf16.xpose.msra.mxu0 0
        %4067 = vmatprep.subr.bf16.mxu0 0
        %4068 = vmatpush1.bf16.xpose.msra.mxu0 0
        %4069 = vmatprep.subr.bf16.mxu0 0
        %4070 = vmatpush1.bf16.xpose.msra.mxu0 0
        %4071 = vmatprep.subr.bf16.mxu0 0
        %4072 = vmatpush1.bf16.xpose.msra.mxu0 0
        %4073 = vmatprep.subr.bf16.mxu0 0
        %4074 = vmatpush1.bf16.xpose.msra.mxu0 0
        %4075 = vmatprep.subr.bf16.mxu0 0
        %4076 = vmatpush1.bf16.xpose.msra.mxu0 0
        %4077 = vmatprep.subr.bf16.mxu0 0
        %4078 = vmatpush1.bf16.xpose.msra.mxu0 0
        %4079 = vmatprep.subr.bf16.mxu0 0
        %4080 = vmatpush1.bf16.xpose.msra.mxu0 %v4063
        %4081 = vmatprep.subr.bf16.mxu0 0
        %4082 = vmatpush2.bf16.xpose.msra.mxu0 0
        %4083 = vmatprep.subr.bf16.mxu0 0
        %4084 = vmatpush2.bf16.xpose.msra.mxu0 0
        %4085 = vmatprep.subr.bf16.mxu0 0
        %4086 = vmatpush2.bf16.xpose.msra.mxu0 0
        %4087 = vmatprep.subr.bf16.mxu0 0
        %4088 = vmatpush2.bf16.xpose.msra.mxu0 0
        %4089 = vmatprep.subr.bf16.mxu0 0
        %4090 = vmatpush2.bf16.xpose.msra.mxu0 0
        %4091 = vmatprep.subr.bf16.mxu0 0
        %4092 = vmatpush2.bf16.xpose.msra.mxu0 0
        %4093 = vmatprep.subr.bf16.mxu0 0
        %4094 = vmatpush2.bf16.xpose.msra.mxu0 0
        %4095 = vmatprep.subr.bf16.mxu0 0
        %4096 = vmatpush2.bf16.xpose.msra.mxu0 0
        %4097 = vmatprep.mubr.bf16.mxu0 0
        %4098 = vmatmul.mubr.bf16.gmra.mxu0 %v4060
        %v4099 = vpop.f32.mrf.mxu0
        %v4100 = vadd.f32 0.0, %v4099
        %v4101 = vpop.f32.mrf.mxu0
        %v4102 = vpop.f32.mrf.mxu0
        %v4103 = vpop.f32.mrf.mxu0
        %4104 = vdwg.mxu0
        %v4105 = vmul.f32 %v4100, 0.35355338
        %v4106 = vadd.f32 %v4105, %v1458
        %v4107 = vsel %vm2399, %v4106, -inf
        %4108 = vmax.xlane.f32.xlu0 %v4107
        %v4109 = vpop.xlane.xlu0 %4108
        %v4110 = vsub.f32 %v4106, %v4109
        %v4111 = vmul.f32 %v4110, 1.442695
        %v4112 = vpow.pop %v4111
        %v4113 = vsel %vm2399, %v4112, 0.0
        %4114 = vadd.xlane.f32.xlu0 %v4113
        %v4115 = vpop.xlane.xlu0 %4114
        %v4116 = vrcp.pop %v4115
        %v4117 = vmul.f32 %v4112, %v4116
        %v4118 = vpack.c.bf16 %v4117, %v4117
        %4120 = vrot.lane.b32.xlu0 %v4054, 96
        %v4121 = vpop.permute.xlu0 %4120
        %v4124 = vsel %vm2399, %v4118, 0
        %4126 = vmatprep.subr.bf16.mxu0 0
        %4127 = vmatpush1.bf16.msra.mxu0 0
        %4128 = vmatprep.subr.bf16.mxu0 0
        %4129 = vmatpush1.bf16.msra.mxu0 0
        %4130 = vmatprep.subr.bf16.mxu0 0
        %4131 = vmatpush1.bf16.msra.mxu0 0
        %4132 = vmatprep.subr.bf16.mxu0 0
        %4133 = vmatpush1.bf16.msra.mxu0 0
        %4134 = vmatprep.subr.bf16.mxu0 0
        %4135 = vmatpush1.bf16.msra.mxu0 0
        %4136 = vmatprep.subr.bf16.mxu0 0
        %4137 = vmatpush1.bf16.msra.mxu0 0
        %4138 = vmatprep.subr.bf16.mxu0 0
        %4139 = vmatpush1.bf16.msra.mxu0 0
        %4140 = vmatprep.subr.bf16.mxu0 0
        %4141 = vmatpush1.bf16.msra.mxu0 %v4121
        %4142 = vmatprep.subr.bf16.mxu0 0
        %4143 = vmatpush2.bf16.msra.mxu0 0
        %4144 = vmatprep.subr.bf16.mxu0 0
        %4145 = vmatpush2.bf16.msra.mxu0 0
        %4146 = vmatprep.subr.bf16.mxu0 0
        %4147 = vmatpush2.bf16.msra.mxu0 0
        %4148 = vmatprep.subr.bf16.mxu0 0
        %4149 = vmatpush2.bf16.msra.mxu0 0
        %4150 = vmatprep.subr.bf16.mxu0 0
        %4151 = vmatpush2.bf16.msra.mxu0 0
        %4152 = vmatprep.subr.bf16.mxu0 0
        %4153 = vmatpush2.bf16.msra.mxu0 0
        %4154 = vmatprep.subr.bf16.mxu0 0
        %4155 = vmatpush2.bf16.msra.mxu0 0
        %4156 = vmatprep.subr.bf16.mxu0 0
        %4157 = vmatpush2.bf16.msra.mxu0 0
        %4158 = vmatprep.mubr.bf16.mxu0 0
        %4159 = vmatmul.mubr.bf16.gmra.mxu0 %v4124
        %v4160 = vpop.f32.mrf.mxu0
        %v4161 = vadd.f32 0.0, %v4160
        %v4162 = vpop.f32.mrf.mxu0
        %v4163 = vpop.f32.mrf.mxu0
        %v4164 = vpop.f32.mrf.mxu0
        %4165 = vdwg.mxu0
        %v4166 = vpack.c.bf16 %v4161, %v4161
        %4168 = vrot.lane.b32.xlu0 %v4053, 120
        %v4169 = vpop.permute.xlu0 %4168
        %4170 = vrot.lane.b32.xlu0 %v4054, 120
        %v4171 = vpop.permute.xlu0 %4170
        %v4173 = vsel %vm1535, %v4169, 0
        %v4176 = vsel %vm1535, %v4171, 0
        %4178 = vmatprep.subr.bf16.mxu0 0
        %4179 = vmatpush1.bf16.xpose.msra.mxu0 0
        %4180 = vmatprep.subr.bf16.mxu0 0
        %4181 = vmatpush1.bf16.xpose.msra.mxu0 0
        %4182 = vmatprep.subr.bf16.mxu0 0
        %4183 = vmatpush1.bf16.xpose.msra.mxu0 0
        %4184 = vmatprep.subr.bf16.mxu0 0
        %4185 = vmatpush1.bf16.xpose.msra.mxu0 0
        %4186 = vmatprep.subr.bf16.mxu0 0
        %4187 = vmatpush1.bf16.xpose.msra.mxu0 0
        %4188 = vmatprep.subr.bf16.mxu0 0
        %4189 = vmatpush1.bf16.xpose.msra.mxu0 0
        %4190 = vmatprep.subr.bf16.mxu0 0
        %4191 = vmatpush1.bf16.xpose.msra.mxu0 0
        %4192 = vmatprep.subr.bf16.mxu0 0
        %4193 = vmatpush1.bf16.xpose.msra.mxu0 %v4176
        %4194 = vmatprep.subr.bf16.mxu0 0
        %4195 = vmatpush2.bf16.xpose.msra.mxu0 0
        %4196 = vmatprep.subr.bf16.mxu0 0
        %4197 = vmatpush2.bf16.xpose.msra.mxu0 0
        %4198 = vmatprep.subr.bf16.mxu0 0
        %4199 = vmatpush2.bf16.xpose.msra.mxu0 0
        %4200 = vmatprep.subr.bf16.mxu0 0
        %4201 = vmatpush2.bf16.xpose.msra.mxu0 0
        %4202 = vmatprep.subr.bf16.mxu0 0
        %4203 = vmatpush2.bf16.xpose.msra.mxu0 0
        %4204 = vmatprep.subr.bf16.mxu0 0
        %4205 = vmatpush2.bf16.xpose.msra.mxu0 0
        %4206 = vmatprep.subr.bf16.mxu0 0
        %4207 = vmatpush2.bf16.xpose.msra.mxu0 0
        %4208 = vmatprep.subr.bf16.mxu0 0
        %4209 = vmatpush2.bf16.xpose.msra.mxu0 0
        %4210 = vmatprep.mubr.bf16.mxu0 0
        %4211 = vmatmul.mubr.bf16.gmra.mxu0 %v4173
        %v4212 = vpop.f32.mrf.mxu0
        %v4213 = vadd.f32 0.0, %v4212
        %v4214 = vpop.f32.mrf.mxu0
        %v4215 = vpop.f32.mrf.mxu0
        %v4216 = vpop.f32.mrf.mxu0
        %4217 = vdwg.mxu0
        %v4218 = vmul.f32 %v4213, 0.35355338
        %v4219 = vadd.f32 %v4218, %v1458
        %v4220 = vsel %vm2399, %v4219, -inf
        %4221 = vmax.xlane.f32.xlu0 %v4220
        %v4222 = vpop.xlane.xlu0 %4221
        %v4223 = vsub.f32 %v4219, %v4222
        %v4224 = vmul.f32 %v4223, 1.442695
        %v4225 = vpow.pop %v4224
        %v4226 = vsel %vm2399, %v4225, 0.0
        %4227 = vadd.xlane.f32.xlu0 %v4226
        %v4228 = vpop.xlane.xlu0 %4227
        %v4229 = vrcp.pop %v4228
        %v4230 = vmul.f32 %v4225, %v4229
        %v4231 = vpack.c.bf16 %v4230, %v4230
        %4232 = vrot.lane.b32.xlu0 %v4054, 88
        %v4233 = vpop.permute.xlu0 %4232
        %v4236 = vsel %vm2399, %v4231, 0
        %4238 = vmatprep.subr.bf16.mxu0 0
        %4239 = vmatpush1.bf16.msra.mxu0 0
        %4240 = vmatprep.subr.bf16.mxu0 0
        %4241 = vmatpush1.bf16.msra.mxu0 0
        %4242 = vmatprep.subr.bf16.mxu0 0
        %4243 = vmatpush1.bf16.msra.mxu0 0
        %4244 = vmatprep.subr.bf16.mxu0 0
        %4245 = vmatpush1.bf16.msra.mxu0 0
        %4246 = vmatprep.subr.bf16.mxu0 0
        %4247 = vmatpush1.bf16.msra.mxu0 0
        %4248 = vmatprep.subr.bf16.mxu0 0
        %4249 = vmatpush1.bf16.msra.mxu0 0
        %4250 = vmatprep.subr.bf16.mxu0 0
        %4251 = vmatpush1.bf16.msra.mxu0 0
        %4252 = vmatprep.subr.bf16.mxu0 0
        %4253 = vmatpush1.bf16.msra.mxu0 %v4233
        %4254 = vmatprep.subr.bf16.mxu0 0
        %4255 = vmatpush2.bf16.msra.mxu0 0
        %4256 = vmatprep.subr.bf16.mxu0 0
        %4257 = vmatpush2.bf16.msra.mxu0 0
        %4258 = vmatprep.subr.bf16.mxu0 0
        %4259 = vmatpush2.bf16.msra.mxu0 0
        %4260 = vmatprep.subr.bf16.mxu0 0
        %4261 = vmatpush2.bf16.msra.mxu0 0
        %4262 = vmatprep.subr.bf16.mxu0 0
        %4263 = vmatpush2.bf16.msra.mxu0 0
        %4264 = vmatprep.subr.bf16.mxu0 0
        %4265 = vmatpush2.bf16.msra.mxu0 0
        %4266 = vmatprep.subr.bf16.mxu0 0
        %4267 = vmatpush2.bf16.msra.mxu0 0
        %4268 = vmatprep.subr.bf16.mxu0 0
        %4269 = vmatpush2.bf16.msra.mxu0 0
        %4270 = vmatprep.mubr.bf16.mxu0 0
        %4271 = vmatmul.mubr.bf16.gmra.mxu0 %v4236
        %v4272 = vpop.f32.mrf.mxu0
        %v4273 = vadd.f32 0.0, %v4272
        %v4274 = vpop.f32.mrf.mxu0
        %v4275 = vpop.f32.mrf.mxu0
        %v4276 = vpop.f32.mrf.mxu0
        %4277 = vdwg.mxu0
        %v4278 = vpack.c.bf16 %v4273, %v4273
        %v4280 = vsel %vm1535, %v4278, 0
        %v4283 = vsel %vm1601, %v4056, 0
        %4285 = vmatprep.subr.bf16.mxu0 0
        %4286 = vmatpush1.bf16.msra.mxu0 0
        %4287 = vmatprep.subr.bf16.mxu0 0
        %4288 = vmatpush1.bf16.msra.mxu0 0
        %4289 = vmatprep.subr.bf16.mxu0 0
        %4290 = vmatpush1.bf16.msra.mxu0 0
        %4291 = vmatprep.subr.bf16.mxu0 0
        %4292 = vmatpush1.bf16.msra.mxu0 0
        %4293 = vmatprep.subr.bf16.mxu0 0
        %4294 = vmatpush1.bf16.msra.mxu0 0
        %4295 = vmatprep.subr.bf16.mxu0 0
        %4296 = vmatpush1.bf16.msra.mxu0 0
        %4297 = vmatprep.subr.bf16.mxu0 0
        %4298 = vmatpush1.bf16.msra.mxu0 0
        %4299 = vmatprep.subr.bf16.mxu0 0
        %4300 = vmatpush1.bf16.msra.mxu0 %v4283
        %4301 = vmatprep.subr.bf16.mxu0 0
        %4302 = vmatpush2.bf16.msra.mxu0 0
        %4303 = vmatprep.subr.bf16.mxu0 0
        %4304 = vmatpush2.bf16.msra.mxu0 0
        %4305 = vmatprep.subr.bf16.mxu0 0
        %4306 = vmatpush2.bf16.msra.mxu0 0
        %4307 = vmatprep.subr.bf16.mxu0 0
        %4308 = vmatpush2.bf16.msra.mxu0 0
        %4309 = vmatprep.subr.bf16.mxu0 0
        %4310 = vmatpush2.bf16.msra.mxu0 0
        %4311 = vmatprep.subr.bf16.mxu0 0
        %4312 = vmatpush2.bf16.msra.mxu0 0
        %4313 = vmatprep.subr.bf16.mxu0 0
        %4314 = vmatpush2.bf16.msra.mxu0 0
        %4315 = vmatprep.subr.bf16.mxu0 0
        %4316 = vmatpush2.bf16.msra.mxu0 0
        %4317 = vmatprep.mubr.bf16.mxu0 0
        %4318 = vmatmul.mubr.bf16.gmra.mxu0 %v4280
        %v4319 = vpop.f32.mrf.mxu0
        %v4320 = vadd.f32 0.0, %v4319
        %v4321 = vpop.f32.mrf.mxu0
        %v4322 = vpop.f32.mrf.mxu0
        %v4323 = vpop.f32.mrf.mxu0
        %4324 = vdwg.mxu0
        %v4326 = vsel %vm1535, %v4166, 0
        %v4329 = vsel %vm1601, %v4055, 0
        %4331 = vmatprep.subr.bf16.mxu0 0
        %4332 = vmatpush1.bf16.msra.mxu0 0
        %4333 = vmatprep.subr.bf16.mxu0 0
        %4334 = vmatpush1.bf16.msra.mxu0 0
        %4335 = vmatprep.subr.bf16.mxu0 0
        %4336 = vmatpush1.bf16.msra.mxu0 0
        %4337 = vmatprep.subr.bf16.mxu0 0
        %4338 = vmatpush1.bf16.msra.mxu0 0
        %4339 = vmatprep.subr.bf16.mxu0 0
        %4340 = vmatpush1.bf16.msra.mxu0 0
        %4341 = vmatprep.subr.bf16.mxu0 0
        %4342 = vmatpush1.bf16.msra.mxu0 0
        %4343 = vmatprep.subr.bf16.mxu0 0
        %4344 = vmatpush1.bf16.msra.mxu0 0
        %4345 = vmatprep.subr.bf16.mxu0 0
        %4346 = vmatpush1.bf16.msra.mxu0 %v4329
        %4347 = vmatprep.subr.bf16.mxu0 0
        %4348 = vmatpush2.bf16.msra.mxu0 0
        %4349 = vmatprep.subr.bf16.mxu0 0
        %4350 = vmatpush2.bf16.msra.mxu0 0
        %4351 = vmatprep.subr.bf16.mxu0 0
        %4352 = vmatpush2.bf16.msra.mxu0 0
        %4353 = vmatprep.subr.bf16.mxu0 0
        %4354 = vmatpush2.bf16.msra.mxu0 0
        %4355 = vmatprep.subr.bf16.mxu0 0
        %4356 = vmatpush2.bf16.msra.mxu0 0
        %4357 = vmatprep.subr.bf16.mxu0 0
        %4358 = vmatpush2.bf16.msra.mxu0 0
        %4359 = vmatprep.subr.bf16.mxu0 0
        %4360 = vmatpush2.bf16.msra.mxu0 0
        %4361 = vmatprep.subr.bf16.mxu0 0
        %4362 = vmatpush2.bf16.msra.mxu0 0
        %4363 = vmatprep.mubr.bf16.mxu0 0
        %4364 = vmatmul.mubr.bf16.gmra.mxu0 %v4326
        %v4365 = vpop.f32.mrf.mxu0
        %v4366 = vadd.f32 %v4320, %v4365
        %v4367 = vpop.f32.mrf.mxu0
        %v4368 = vpop.f32.mrf.mxu0
        %v4369 = vpop.f32.mrf.mxu0
        %4370 = vdwg.mxu0
        %4371 = vrot.lane.b32.xlu0 %v4053, 112
        %v4372 = vpop.permute.xlu0 %4371
        %4373 = vrot.lane.b32.xlu0 %v4054, 112
        %v4374 = vpop.permute.xlu0 %4373
        %v4376 = vsel %vm1535, %v4372, 0
        %v4379 = vsel %vm1535, %v4374, 0
        %4381 = vmatprep.subr.bf16.mxu0 0
        %4382 = vmatpush1.bf16.xpose.msra.mxu0 0
        %4383 = vmatprep.subr.bf16.mxu0 0
        %4384 = vmatpush1.bf16.xpose.msra.mxu0 0
        %4385 = vmatprep.subr.bf16.mxu0 0
        %4386 = vmatpush1.bf16.xpose.msra.mxu0 0
        %4387 = vmatprep.subr.bf16.mxu0 0
        %4388 = vmatpush1.bf16.xpose.msra.mxu0 0
        %4389 = vmatprep.subr.bf16.mxu0 0
        %4390 = vmatpush1.bf16.xpose.msra.mxu0 0
        %4391 = vmatprep.subr.bf16.mxu0 0
        %4392 = vmatpush1.bf16.xpose.msra.mxu0 0
        %4393 = vmatprep.subr.bf16.mxu0 0
        %4394 = vmatpush1.bf16.xpose.msra.mxu0 0
        %4395 = vmatprep.subr.bf16.mxu0 0
        %4396 = vmatpush1.bf16.xpose.msra.mxu0 %v4379
        %4397 = vmatprep.subr.bf16.mxu0 0
        %4398 = vmatpush2.bf16.xpose.msra.mxu0 0
        %4399 = vmatprep.subr.bf16.mxu0 0
        %4400 = vmatpush2.bf16.xpose.msra.mxu0 0
        %4401 = vmatprep.subr.bf16.mxu0 0
        %4402 = vmatpush2.bf16.xpose.msra.mxu0 0
        %4403 = vmatprep.subr.bf16.mxu0 0
        %4404 = vmatpush2.bf16.xpose.msra.mxu0 0
        %4405 = vmatprep.subr.bf16.mxu0 0
        %4406 = vmatpush2.bf16.xpose.msra.mxu0 0
        %4407 = vmatprep.subr.bf16.mxu0 0
        %4408 = vmatpush2.bf16.xpose.msra.mxu0 0
        %4409 = vmatprep.subr.bf16.mxu0 0
        %4410 = vmatpush2.bf16.xpose.msra.mxu0 0
        %4411 = vmatprep.subr.bf16.mxu0 0
        %4412 = vmatpush2.bf16.xpose.msra.mxu0 0
        %4413 = vmatprep.mubr.bf16.mxu0 0
        %4414 = vmatmul.mubr.bf16.gmra.mxu0 %v4376
        %v4415 = vpop.f32.mrf.mxu0
        %v4416 = vadd.f32 0.0, %v4415
        %v4417 = vpop.f32.mrf.mxu0
        %v4418 = vpop.f32.mrf.mxu0
        %v4419 = vpop.f32.mrf.mxu0
        %4420 = vdwg.mxu0
        %v4421 = vmul.f32 %v4416, 0.35355338
        %v4422 = vadd.f32 %v4421, %v1458
        %v4423 = vsel %vm2399, %v4422, -inf
        %4424 = vmax.xlane.f32.xlu0 %v4423
        %v4425 = vpop.xlane.xlu0 %4424
        %v4426 = vsub.f32 %v4422, %v4425
        %v4427 = vmul.f32 %v4426, 1.442695
        %v4428 = vpow.pop %v4427
        %v4429 = vsel %vm2399, %v4428, 0.0
        %4430 = vadd.xlane.f32.xlu0 %v4429
        %v4431 = vpop.xlane.xlu0 %4430
        %v4432 = vrcp.pop %v4431
        %v4433 = vmul.f32 %v4428, %v4432
        %v4434 = vpack.c.bf16 %v4433, %v4433
        %4435 = vrot.lane.b32.xlu0 %v4054, 80
        %v4436 = vpop.permute.xlu0 %4435
        %v4439 = vsel %vm2399, %v4434, 0
        %4441 = vmatprep.subr.bf16.mxu0 0
        %4442 = vmatpush1.bf16.msra.mxu0 0
        %4443 = vmatprep.subr.bf16.mxu0 0
        %4444 = vmatpush1.bf16.msra.mxu0 0
        %4445 = vmatprep.subr.bf16.mxu0 0
        %4446 = vmatpush1.bf16.msra.mxu0 0
        %4447 = vmatprep.subr.bf16.mxu0 0
        %4448 = vmatpush1.bf16.msra.mxu0 0
        %4449 = vmatprep.subr.bf16.mxu0 0
        %4450 = vmatpush1.bf16.msra.mxu0 0
        %4451 = vmatprep.subr.bf16.mxu0 0
        %4452 = vmatpush1.bf16.msra.mxu0 0
        %4453 = vmatprep.subr.bf16.mxu0 0
        %4454 = vmatpush1.bf16.msra.mxu0 0
        %4455 = vmatprep.subr.bf16.mxu0 0
        %4456 = vmatpush1.bf16.msra.mxu0 %v4436
        %4457 = vmatprep.subr.bf16.mxu0 0
        %4458 = vmatpush2.bf16.msra.mxu0 0
        %4459 = vmatprep.subr.bf16.mxu0 0
        %4460 = vmatpush2.bf16.msra.mxu0 0
        %4461 = vmatprep.subr.bf16.mxu0 0
        %4462 = vmatpush2.bf16.msra.mxu0 0
        %4463 = vmatprep.subr.bf16.mxu0 0
        %4464 = vmatpush2.bf16.msra.mxu0 0
        %4465 = vmatprep.subr.bf16.mxu0 0
        %4466 = vmatpush2.bf16.msra.mxu0 0
        %4467 = vmatprep.subr.bf16.mxu0 0
        %4468 = vmatpush2.bf16.msra.mxu0 0
        %4469 = vmatprep.subr.bf16.mxu0 0
        %4470 = vmatpush2.bf16.msra.mxu0 0
        %4471 = vmatprep.subr.bf16.mxu0 0
        %4472 = vmatpush2.bf16.msra.mxu0 0
        %4473 = vmatprep.mubr.bf16.mxu0 0
        %4474 = vmatmul.mubr.bf16.gmra.mxu0 %v4439
        %v4475 = vpop.f32.mrf.mxu0
        %v4476 = vadd.f32 0.0, %v4475
        %v4477 = vpop.f32.mrf.mxu0
        %v4478 = vpop.f32.mrf.mxu0
        %v4479 = vpop.f32.mrf.mxu0
        %4480 = vdwg.mxu0
        %v4481 = vpack.c.bf16 %v4476, %v4476
        %v4483 = vsel %vm1535, %v4481, 0
        %v4486 = vsel %vm1601, %v4057, 0
        %4488 = vmatprep.subr.bf16.mxu0 0
        %4489 = vmatpush1.bf16.msra.mxu0 0
        %4490 = vmatprep.subr.bf16.mxu0 0
        %4491 = vmatpush1.bf16.msra.mxu0 0
        %4492 = vmatprep.subr.bf16.mxu0 0
        %4493 = vmatpush1.bf16.msra.mxu0 0
        %4494 = vmatprep.subr.bf16.mxu0 0
        %4495 = vmatpush1.bf16.msra.mxu0 0
        %4496 = vmatprep.subr.bf16.mxu0 0
        %4497 = vmatpush1.bf16.msra.mxu0 0
        %4498 = vmatprep.subr.bf16.mxu0 0
        %4499 = vmatpush1.bf16.msra.mxu0 0
        %4500 = vmatprep.subr.bf16.mxu0 0
        %4501 = vmatpush1.bf16.msra.mxu0 0
        %4502 = vmatprep.subr.bf16.mxu0 0
        %4503 = vmatpush1.bf16.msra.mxu0 %v4486
        %4504 = vmatprep.subr.bf16.mxu0 0
        %4505 = vmatpush2.bf16.msra.mxu0 0
        %4506 = vmatprep.subr.bf16.mxu0 0
        %4507 = vmatpush2.bf16.msra.mxu0 0
        %4508 = vmatprep.subr.bf16.mxu0 0
        %4509 = vmatpush2.bf16.msra.mxu0 0
        %4510 = vmatprep.subr.bf16.mxu0 0
        %4511 = vmatpush2.bf16.msra.mxu0 0
        %4512 = vmatprep.subr.bf16.mxu0 0
        %4513 = vmatpush2.bf16.msra.mxu0 0
        %4514 = vmatprep.subr.bf16.mxu0 0
        %4515 = vmatpush2.bf16.msra.mxu0 0
        %4516 = vmatprep.subr.bf16.mxu0 0
        %4517 = vmatpush2.bf16.msra.mxu0 0
        %4518 = vmatprep.subr.bf16.mxu0 0
        %4519 = vmatpush2.bf16.msra.mxu0 0
        %4520 = vmatprep.mubr.bf16.mxu0 0
        %4521 = vmatmul.mubr.bf16.gmra.mxu0 %v4483
        %v4522 = vpop.f32.mrf.mxu0
        %v4523 = vadd.f32 0.0, %v4522
        %v4524 = vpop.f32.mrf.mxu0
        %v4525 = vpop.f32.mrf.mxu0
        %v4526 = vpop.f32.mrf.mxu0
        %4527 = vdwg.mxu0
        %v4528 = vadd.f32 %v4366, %v4523
        %4529 = vrot.lane.b32.xlu0 %v4053, 104
        %v4530 = vpop.permute.xlu0 %4529
        %4531 = vrot.lane.b32.xlu0 %v4054, 104
        %v4532 = vpop.permute.xlu0 %4531
        %v4534 = vsel %vm1535, %v4530, 0
        %v4537 = vsel %vm1535, %v4532, 0
        %4539 = vmatprep.subr.bf16.mxu0 0
        %4540 = vmatpush1.bf16.xpose.msra.mxu0 0
        %4541 = vmatprep.subr.bf16.mxu0 0
        %4542 = vmatpush1.bf16.xpose.msra.mxu0 0
        %4543 = vmatprep.subr.bf16.mxu0 0
        %4544 = vmatpush1.bf16.xpose.msra.mxu0 0
        %4545 = vmatprep.subr.bf16.mxu0 0
        %4546 = vmatpush1.bf16.xpose.msra.mxu0 0
        %4547 = vmatprep.subr.bf16.mxu0 0
        %4548 = vmatpush1.bf16.xpose.msra.mxu0 0
        %4549 = vmatprep.subr.bf16.mxu0 0
        %4550 = vmatpush1.bf16.xpose.msra.mxu0 0
        %4551 = vmatprep.subr.bf16.mxu0 0
        %4552 = vmatpush1.bf16.xpose.msra.mxu0 0
        %4553 = vmatprep.subr.bf16.mxu0 0
        %4554 = vmatpush1.bf16.xpose.msra.mxu0 %v4537
        %4555 = vmatprep.subr.bf16.mxu0 0
        %4556 = vmatpush2.bf16.xpose.msra.mxu0 0
        %4557 = vmatprep.subr.bf16.mxu0 0
        %4558 = vmatpush2.bf16.xpose.msra.mxu0 0
        %4559 = vmatprep.subr.bf16.mxu0 0
        %4560 = vmatpush2.bf16.xpose.msra.mxu0 0
        %4561 = vmatprep.subr.bf16.mxu0 0
        %4562 = vmatpush2.bf16.xpose.msra.mxu0 0
        %4563 = vmatprep.subr.bf16.mxu0 0
        %4564 = vmatpush2.bf16.xpose.msra.mxu0 0
        %4565 = vmatprep.subr.bf16.mxu0 0
        %4566 = vmatpush2.bf16.xpose.msra.mxu0 0
        %4567 = vmatprep.subr.bf16.mxu0 0
        %4568 = vmatpush2.bf16.xpose.msra.mxu0 0
        %4569 = vmatprep.subr.bf16.mxu0 0
        %4570 = vmatpush2.bf16.xpose.msra.mxu0 0
        %4571 = vmatprep.mubr.bf16.mxu0 0
        %4572 = vmatmul.mubr.bf16.gmra.mxu0 %v4534
        %v4573 = vpop.f32.mrf.mxu0
        %v4574 = vadd.f32 0.0, %v4573
        %v4575 = vpop.f32.mrf.mxu0
        %v4576 = vpop.f32.mrf.mxu0
        %v4577 = vpop.f32.mrf.mxu0
        %4578 = vdwg.mxu0
        %v4579 = vmul.f32 %v4574, 0.35355338
        %v4580 = vadd.f32 %v4579, %v1458
        %v4581 = vsel %vm2399, %v4580, -inf
        %4582 = vmax.xlane.f32.xlu0 %v4581
        %v4583 = vpop.xlane.xlu0 %4582
        %v4584 = vsub.f32 %v4580, %v4583
        %v4585 = vmul.f32 %v4584, 1.442695
        %v4586 = vpow.pop %v4585
        %v4587 = vsel %vm2399, %v4586, 0.0
        %4588 = vadd.xlane.f32.xlu0 %v4587
        %v4589 = vpop.xlane.xlu0 %4588
        %v4590 = vrcp.pop %v4589
        %v4591 = vmul.f32 %v4586, %v4590
        %v4592 = vpack.c.bf16 %v4591, %v4591
        %4593 = vrot.lane.b32.xlu0 %v4054, 72
        %v4594 = vpop.permute.xlu0 %4593
        %v4597 = vsel %vm2399, %v4592, 0
        %4599 = vmatprep.subr.bf16.mxu0 0
        %4600 = vmatpush1.bf16.msra.mxu0 0
        %4601 = vmatprep.subr.bf16.mxu0 0
        %4602 = vmatpush1.bf16.msra.mxu0 0
        %4603 = vmatprep.subr.bf16.mxu0 0
        %4604 = vmatpush1.bf16.msra.mxu0 0
        %4605 = vmatprep.subr.bf16.mxu0 0
        %4606 = vmatpush1.bf16.msra.mxu0 0
        %4607 = vmatprep.subr.bf16.mxu0 0
        %4608 = vmatpush1.bf16.msra.mxu0 0
        %4609 = vmatprep.subr.bf16.mxu0 0
        %4610 = vmatpush1.bf16.msra.mxu0 0
        %4611 = vmatprep.subr.bf16.mxu0 0
        %4612 = vmatpush1.bf16.msra.mxu0 0
        %4613 = vmatprep.subr.bf16.mxu0 0
        %4614 = vmatpush1.bf16.msra.mxu0 %v4594
        %4615 = vmatprep.subr.bf16.mxu0 0
        %4616 = vmatpush2.bf16.msra.mxu0 0
        %4617 = vmatprep.subr.bf16.mxu0 0
        %4618 = vmatpush2.bf16.msra.mxu0 0
        %4619 = vmatprep.subr.bf16.mxu0 0
        %4620 = vmatpush2.bf16.msra.mxu0 0
        %4621 = vmatprep.subr.bf16.mxu0 0
        %4622 = vmatpush2.bf16.msra.mxu0 0
        %4623 = vmatprep.subr.bf16.mxu0 0
        %4624 = vmatpush2.bf16.msra.mxu0 0
        %4625 = vmatprep.subr.bf16.mxu0 0
        %4626 = vmatpush2.bf16.msra.mxu0 0
        %4627 = vmatprep.subr.bf16.mxu0 0
        %4628 = vmatpush2.bf16.msra.mxu0 0
        %4629 = vmatprep.subr.bf16.mxu0 0
        %4630 = vmatpush2.bf16.msra.mxu0 0
        %4631 = vmatprep.mubr.bf16.mxu0 0
        %4632 = vmatmul.mubr.bf16.gmra.mxu0 %v4597
        %v4633 = vpop.f32.mrf.mxu0
        %v4634 = vadd.f32 0.0, %v4633
        %v4635 = vpop.f32.mrf.mxu0
        %v4636 = vpop.f32.mrf.mxu0
        %v4637 = vpop.f32.mrf.mxu0
        %4638 = vdwg.mxu0
        %v4639 = vpack.c.bf16 %v4634, %v4634
        %v4641 = vsel %vm1535, %v4639, 0
        %v4644 = vsel %vm1601, %v4058, 0
        %4646 = vmatprep.subr.bf16.mxu0 0
        %4647 = vmatpush1.bf16.msra.mxu0 0
        %4648 = vmatprep.subr.bf16.mxu0 0
        %4649 = vmatpush1.bf16.msra.mxu0 0
        %4650 = vmatprep.subr.bf16.mxu0 0
        %4651 = vmatpush1.bf16.msra.mxu0 0
        %4652 = vmatprep.subr.bf16.mxu0 0
        %4653 = vmatpush1.bf16.msra.mxu0 0
        %4654 = vmatprep.subr.bf16.mxu0 0
        %4655 = vmatpush1.bf16.msra.mxu0 0
        %4656 = vmatprep.subr.bf16.mxu0 0
        %4657 = vmatpush1.bf16.msra.mxu0 0
        %4658 = vmatprep.subr.bf16.mxu0 0
        %4659 = vmatpush1.bf16.msra.mxu0 0
        %4660 = vmatprep.subr.bf16.mxu0 0
        %4661 = vmatpush1.bf16.msra.mxu0 %v4644
        %4662 = vmatprep.subr.bf16.mxu0 0
        %4663 = vmatpush2.bf16.msra.mxu0 0
        %4664 = vmatprep.subr.bf16.mxu0 0
        %4665 = vmatpush2.bf16.msra.mxu0 0
        %4666 = vmatprep.subr.bf16.mxu0 0
        %4667 = vmatpush2.bf16.msra.mxu0 0
        %4668 = vmatprep.subr.bf16.mxu0 0
        %4669 = vmatpush2.bf16.msra.mxu0 0
        %4670 = vmatprep.subr.bf16.mxu0 0
        %4671 = vmatpush2.bf16.msra.mxu0 0
        %4672 = vmatprep.subr.bf16.mxu0 0
        %4673 = vmatpush2.bf16.msra.mxu0 0
        %4674 = vmatprep.subr.bf16.mxu0 0
        %4675 = vmatpush2.bf16.msra.mxu0 0
        %4676 = vmatprep.subr.bf16.mxu0 0
        %4677 = vmatpush2.bf16.msra.mxu0 0
        %4678 = vmatprep.mubr.bf16.mxu0 0
        %4679 = vmatmul.mubr.bf16.gmra.mxu0 %v4641
        %v4680 = vpop.f32.mrf.mxu0
        %v4681 = vadd.f32 0.0, %v4680
        %v4682 = vpop.f32.mrf.mxu0
        %v4683 = vpop.f32.mrf.mxu0
        %v4684 = vpop.f32.mrf.mxu0
        %4685 = vdwg.mxu0
        %v4686 = vadd.f32 %v4528, %v4681
        %v4687 = vld [vmem:[%s63] sm:$0x1]
        %v4689 = vlaneseq
        %v4690 = vshrl.u32 %v4689, 7
        %v4691 = vsub.s32 0, %v4690
        %v4692 = vrot.slane %v4687, %v4691
        %v4694 = vadd.f32 %v4686, %v4692
        %v4695 = vadd.f32 %v3921, %v4694
        %v4696 = vld [vmem:[%s77] sm:$0x1]
        %v4697 = vld [vmem:[%s79] sm:$0x1]
        %v4698 = vsel %vm1483, %v4695, 0.0
        %4699 = vadd.xlane.f32.xlu0 %v4698
        %v4700 = vpop.xlane.xlu0 %4699
        %v4701 = vmul.f32 %v4700, %v2185
        %v4702 = vsub.f32 %v4695, %v4701
        %v4703 = vmul.f32 %v4702, %v4702
        %v4704 = vsel %vm1483, %v4703, 0.0
        %4705 = vadd.xlane.f32.xlu0 %v4704
        %v4706 = vpop.xlane.xlu0 %4705
        %v4707 = vmul.f32 %v4706, %v2185
        %v4708 = vadd.f32 %v4707, 1e-05
        %v4709 = vrsqrt.pop %v4708
        %v4710 = vmul.f32 %v4702, %v4709
        %v4712 = vlaneseq
        %v4713 = vshrl.u32 %v4712, 7
        %v4714 = vsub.s32 0, %v4713
        %v4715 = vrot.slane %v4696, %v4714
        %v4717 = vmul.f32 %v4710, %v4715
        %v4719 = vlaneseq
        %v4720 = vshrl.u32 %v4719, 7
        %v4721 = vsub.s32 0, %v4720
        %v4722 = vrot.slane %v4697, %v4721
        %v4724 = vadd.f32 %v4717, %v4722
        %v4725 = vpack.c.bf16 %v4724, %v4724
        %v4726 = vld [vmem:[%s65] sm:$0xf]
        %v4727 = vld [vmem:[%s65 + $0x4] sm:$0xf]
        %v4728 = vld [vmem:[%s65 + $0x8] sm:$0xf]
        %v4729 = vld [vmem:[%s65 + $0xc] sm:$0xf]
        %v4730 = vld [vmem:[%s67] sm:$0x1]
        %v4732 = vlaneseq
        %v4733 = vshrl.u32 %v4732, 7
        %v4734 = vsub.s32 0, %v4733
        %v4735 = vrot.slane %v4730, %v4734
        %v4741 = vunpack.c.l.b16 %v4726
        %v4742 = vunpack.c.l.b16 %v4727
        %v4743 = vunpack.c.l.b16 %v4728
        %v4744 = vunpack.c.l.b16 %v4729
        %v4745 = vpack.c.b16 %v4742, %v4741
        %v4746 = vpack.c.b16 %v4744, %v4743
        %v4750 = vsel %vm1483, %v4725, 0
        %4752 = vmatprep.subr.bf16.mxu0 0
        %4753 = vmatpush1.bf16.msra.mxu0 0
        %4754 = vmatprep.subr.bf16.mxu0 0
        %4755 = vmatpush1.bf16.msra.mxu0 0
        %4756 = vmatprep.subr.bf16.mxu0 0
        %4757 = vmatpush1.bf16.msra.mxu0 0
        %4758 = vmatprep.subr.bf16.mxu0 0
        %4759 = vmatpush1.bf16.msra.mxu0 0
        %4760 = vmatprep.subr.bf16.mxu0 0
        %4761 = vmatpush1.bf16.msra.mxu0 0
        %4762 = vmatprep.subr.bf16.mxu0 0
        %4763 = vmatpush1.bf16.msra.mxu0 0
        %4764 = vmatprep.subr.bf16.mxu0 0
        %4765 = vmatpush1.bf16.msra.mxu0 %v4746
        %4766 = vmatprep.subr.bf16.mxu0 0
        %4767 = vmatpush1.bf16.msra.mxu0 %v4745
        %4768 = vmatprep.subr.bf16.mxu0 0
        %4769 = vmatpush2.bf16.msra.mxu0 0
        %4770 = vmatprep.subr.bf16.mxu0 0
        %4771 = vmatpush2.bf16.msra.mxu0 0
        %4772 = vmatprep.subr.bf16.mxu0 0
        %4773 = vmatpush2.bf16.msra.mxu0 0
        %4774 = vmatprep.subr.bf16.mxu0 0
        %4775 = vmatpush2.bf16.msra.mxu0 0
        %4776 = vmatprep.subr.bf16.mxu0 0
        %4777 = vmatpush2.bf16.msra.mxu0 0
        %4778 = vmatprep.subr.bf16.mxu0 0
        %4779 = vmatpush2.bf16.msra.mxu0 0
        %4780 = vmatprep.subr.bf16.mxu0 0
        %4781 = vmatpush2.bf16.msra.mxu0 0
        %4782 = vmatprep.subr.bf16.mxu0 0
        %4783 = vmatpush2.bf16.msra.mxu0 0
        %4784 = vmatprep.mubr.bf16.mxu0 0
        %4785 = vmatmul.mubr.bf16.gmra.mxu0 %v4750
        %v4786 = vpop.f32.mrf.mxu0
        %v4787 = vadd.f32 %v4735, %v4786
        %v4788 = vpop.f32.mrf.mxu0
        %v4789 = vpop.f32.mrf.mxu0
        %v4790 = vpop.f32.mrf.mxu0
        %4791 = vdwg.mxu0
        %v4792 = vmax.f32 %v4787, 0.0
        %v4793 = vpack.c.bf16 %v4792, %v4792
        %v4794 = vld [vmem:[%s69] sm:$0xf]
        %v4795 = vld [vmem:[%s69 + $0x4] sm:$0xf]
        %v4796 = vld [vmem:[%s71] sm:$0x1]
        %v4798 = vlaneseq
        %v4799 = vshrl.u32 %v4798, 7
        %v4800 = vsub.s32 0, %v4799
        %v4801 = vrot.slane %v4796, %v4800
        %v4805 = vunpack.c.l.b16 %v4794
        %v4806 = vunpack.c.l.b16 %v4795
        %v4807 = vpack.c.b16 %v4806, %v4805
        %v4810 = vsel %vm2399, %v4793, 0
        %4812 = vmatprep.subr.bf16.mxu0 0
        %4813 = vmatpush1.bf16.msra.mxu0 0
        %4814 = vmatprep.subr.bf16.mxu0 0
        %4815 = vmatpush1.bf16.msra.mxu0 0
        %4816 = vmatprep.subr.bf16.mxu0 0
        %4817 = vmatpush1.bf16.msra.mxu0 0
        %4818 = vmatprep.subr.bf16.mxu0 0
        %4819 = vmatpush1.bf16.msra.mxu0 0
        %4820 = vmatprep.subr.bf16.mxu0 0
        %4821 = vmatpush1.bf16.msra.mxu0 0
        %4822 = vmatprep.subr.bf16.mxu0 0
        %4823 = vmatpush1.bf16.msra.mxu0 0
        %4824 = vmatprep.subr.bf16.mxu0 0
        %4825 = vmatpush1.bf16.msra.mxu0 0
        %4826 = vmatprep.subr.bf16.mxu0 0
        %4827 = vmatpush1.bf16.msra.mxu0 %v4807
        %4828 = vmatprep.subr.bf16.mxu0 0
        %4829 = vmatpush2.bf16.msra.mxu0 0
        %4830 = vmatprep.subr.bf16.mxu0 0
        %4831 = vmatpush2.bf16.msra.mxu0 0
        %4832 = vmatprep.subr.bf16.mxu0 0
        %4833 = vmatpush2.bf16.msra.mxu0 0
        %4834 = vmatprep.subr.bf16.mxu0 0
        %4835 = vmatpush2.bf16.msra.mxu0 0
        %4836 = vmatprep.subr.bf16.mxu0 0
        %4837 = vmatpush2.bf16.msra.mxu0 0
        %4838 = vmatprep.subr.bf16.mxu0 0
        %4839 = vmatpush2.bf16.msra.mxu0 0
        %4840 = vmatprep.subr.bf16.mxu0 0
        %4841 = vmatpush2.bf16.msra.mxu0 0
        %4842 = vmatprep.subr.bf16.mxu0 0
        %4843 = vmatpush2.bf16.msra.mxu0 0
        %4844 = vmatprep.mubr.bf16.mxu0 0
        %4845 = vmatmul.mubr.bf16.gmra.mxu0 %v4810
        %v4846 = vpop.f32.mrf.mxu0
        %v4847 = vadd.f32 %v4801, %v4846
        %v4848 = vpop.f32.mrf.mxu0
        %v4849 = vpop.f32.mrf.mxu0
        %v4850 = vpop.f32.mrf.mxu0
        %4851 = vdwg.mxu0
        %v4852 = vadd.f32 %v4724, %v4847
        %v4853 = vld [vmem:[%s81] sm:$0x1]
        %v4854 = vld [vmem:[#allocation2] sm:$0x1]
        %v4855 = vsel %vm1483, %v4852, 0.0
        %4856 = vadd.xlane.f32.xlu0 %v4855
        %v4857 = vpop.xlane.xlu0 %4856
        %v4858 = vmul.f32 %v4857, %v2185
        %v4859 = vsub.f32 %v4852, %v4858
        %v4860 = vmul.f32 %v4859, %v4859
        %v4861 = vsel %vm1483, %v4860, 0.0
        %4862 = vadd.xlane.f32.xlu0 %v4861
        %v4863 = vpop.xlane.xlu0 %4862
        %v4864 = vmul.f32 %v4863, %v2185
        %v4865 = vadd.f32 %v4864, 1e-05
        %v4866 = vrsqrt.pop %v4865
        %v4867 = vmul.f32 %v4859, %v4866
        %v4869 = vlaneseq
        %v4870 = vshrl.u32 %v4869, 7
        %v4871 = vsub.s32 0, %v4870
        %v4872 = vrot.slane %v4853, %v4871
        %v4874 = vmul.f32 %v4867, %v4872
        %v4876 = vlaneseq
        %v4877 = vshrl.u32 %v4876, 7
        %v4878 = vsub.s32 0, %v4877
        %v4879 = vrot.slane %v4854, %v4878
        %v4881 = vadd.f32 %v4874, %v4879
        %v4882 = vld [vmem:[#allocation4] sm:$0x1]
        %v4883 = vld [vmem:[#allocation6] sm:$0x1]
        %v4884 = vsel %vm1483, %v4881, 0.0
        %4885 = vadd.xlane.f32.xlu0 %v4884
        %v4886 = vpop.xlane.xlu0 %4885
        %v4887 = vmul.f32 %v4886, %v2185
        %v4888 = vsub.f32 %v4881, %v4887
        %v4889 = vmul.f32 %v4888, %v4888
        %v4890 = vsel %vm1483, %v4889, 0.0
        %4891 = vadd.xlane.f32.xlu0 %v4890
        %v4892 = vpop.xlane.xlu0 %4891
        %v4893 = vmul.f32 %v4892, %v2185
        %v4894 = vadd.f32 %v4893, 1e-05
        %v4895 = vrsqrt.pop %v4894
        %v4896 = vmul.f32 %v4888, %v4895
        %v4898 = vlaneseq
        %v4899 = vshrl.u32 %v4898, 7
        %v4900 = vsub.s32 0, %v4899
        %v4901 = vrot.slane %v4882, %v4900
        %v4903 = vmul.f32 %v4896, %v4901
        %v4905 = vlaneseq
        %v4906 = vshrl.u32 %v4905, 7
        %v4907 = vsub.s32 0, %v4906
        %v4908 = vrot.slane %v4883, %v4907
        %v4910 = vadd.f32 %v4903, %v4908
        %v4911 = vpack.c.bf16 %v4910, %v4910
        %v4912 = vld [vmem:[%s89] sm:$0xf]
        %v4913 = vld [vmem:[%s89 + $0x4] sm:$0xf]
        %v4914 = vld [vmem:[%s89 + $0x8] sm:$0xf]
        %v4915 = vld [vmem:[%s89 + $0xc] sm:$0xf]
        %v4916 = vld [vmem:[#allocation7] sm:$0x1]
        %v4918 = vlaneseq
        %v4919 = vshrl.u32 %v4918, 7
        %v4920 = vsub.s32 0, %v4919
        %v4921 = vrot.slane %v4916, %v4920
        %v4927 = vunpack.c.l.b16 %v4912
        %v4928 = vunpack.c.l.b16 %v4913
        %v4929 = vunpack.c.l.b16 %v4914
        %v4930 = vunpack.c.l.b16 %v4915
        %v4931 = vpack.c.b16 %v4928, %v4927
        %v4932 = vpack.c.b16 %v4930, %v4929
        %v4936 = vsel %vm1483, %v4911, 0
        %4938 = vmatprep.subr.bf16.mxu0 0
        %4939 = vmatpush1.bf16.msra.mxu0 0
        %4940 = vmatprep.subr.bf16.mxu0 0
        %4941 = vmatpush1.bf16.msra.mxu0 0
        %4942 = vmatprep.subr.bf16.mxu0 0
        %4943 = vmatpush1.bf16.msra.mxu0 0
        %4944 = vmatprep.subr.bf16.mxu0 0
        %4945 = vmatpush1.bf16.msra.mxu0 0
        %4946 = vmatprep.subr.bf16.mxu0 0
        %4947 = vmatpush1.bf16.msra.mxu0 0
        %4948 = vmatprep.subr.bf16.mxu0 0
        %4949 = vmatpush1.bf16.msra.mxu0 0
        %4950 = vmatprep.subr.bf16.mxu0 0
        %4951 = vmatpush1.bf16.msra.mxu0 %v4932
        %4952 = vmatprep.subr.bf16.mxu0 0
        %4953 = vmatpush1.bf16.msra.mxu0 %v4931
        %4954 = vmatprep.subr.bf16.mxu0 0
        %4955 = vmatpush2.bf16.msra.mxu0 0
        %4956 = vmatprep.subr.bf16.mxu0 0
        %4957 = vmatpush2.bf16.msra.mxu0 0
        %4958 = vmatprep.subr.bf16.mxu0 0
        %4959 = vmatpush2.bf16.msra.mxu0 0
        %4960 = vmatprep.subr.bf16.mxu0 0
        %4961 = vmatpush2.bf16.msra.mxu0 0
        %4962 = vmatprep.subr.bf16.mxu0 0
        %4963 = vmatpush2.bf16.msra.mxu0 0
        %4964 = vmatprep.subr.bf16.mxu0 0
        %4965 = vmatpush2.bf16.msra.mxu0 0
        %4966 = vmatprep.subr.bf16.mxu0 0
        %4967 = vmatpush2.bf16.msra.mxu0 0
        %4968 = vmatprep.subr.bf16.mxu0 0
        %4969 = vmatpush2.bf16.msra.mxu0 0
        %4970 = vmatprep.mubr.bf16.mxu0 0
        %4971 = vmatmul.mubr.bf16.gmra.mxu0 %v4936
        %v4972 = vpop.f32.mrf.mxu0
        %v4973 = vadd.f32 %v4921, %v4972
        %v4974 = vpop.f32.mrf.mxu0
        %v4975 = vpop.f32.mrf.mxu0
        %v4976 = vpop.f32.mrf.mxu0
        %4977 = vdwg.mxu0
        %4978 = vst [vmem:[%s1444] sm:$0xff] %v4973
        %p4979 = scmp.lt.s32.totalorder %s107, 1
        %s4980 = scalar_select %p4979, %s107, 1
        %s4981 = smul.addr %s4980, 8
        %s4982 = scalar_lea.vmem %s93, %s4981
        // Predicated region
        $region221: #{_lambda_.3} parent=203 // pred_check
          %p4983 = pneg %p1101
        $region222: #{_lambda_.3} parent=203 // pred_check_branch
          %4985 = sbr.rel (%p4983) target = $region224
        $region223: #{_lambda_.3} parent=203 // pred_region
          _
        $region224: #{_lambda_.3} parent=203 // pred_fallthru
          _
      $region204: #{_lambda_.3} parent=5 // pred_fallthru
        _
      %p4986 = scmp.le.s32.totalorder 2, %s102
      // Predicated region
      $region225: #{_lambda_.3} parent=5 // pred_check
        %p4987 = pneg %p4986
      $region226: #{_lambda_.3} parent=5 // pred_check_branch
        %4989 = sbr.rel (%p4987) target = $region228
      $region227: #{_lambda_.3} parent=5 // pred_region
        %s4990 = ssub.s32 %s102, 2
        // Predicated region
        $region229: #{_lambda_.3} parent=227 // pred_check
          %p4991 = pneg %p1107
        $region230: #{_lambda_.3} parent=227 // pred_check_branch
          %4993 = sbr.rel (%p4991) target = $region232
        $region231: #{_lambda_.3} parent=227 // pred_region
          %p4994 = scmp.lt.s32.totalorder %s108, 1
          %s4995 = scalar_select %p4994, %s108, 1
          %s4996 = smul.addr %s4995, 8
          %s4997 = scalar_lea.vmem %s93, %s4996
        $region232: #{_lambda_.3} parent=227 // pred_fallthru
          _
      $region228: #{_lambda_.3} parent=5 // pred_fallthru
        _
    $region6: #{_lambda_.3} parent=1 // loop_footer
      %s106 = sadd.s32 1, %s102
    $region7: #{_lambda_.3} parent=1 // loop_footer_branch
      %101 = sbr.rel target = $region3
    $region8: #{_lambda_.3} parent=1 // loop_exit
      _
    %4998 = vsyncpa [#allocation3], 1
    %s4999 = scalar_lea.sflag [#allocation3], 1
    %5000 = vsyncpa %s4999, 1
    %5001 = vsyncpa [#allocation5], 1
    %5002 = vsyncpa [#allocation8], 1

</llo_original>
